<compile_context>
chip_gen: v6e
topology: v6e:2x2x1
jax: 0.10.0
libtpu: 0.0.40
codegen_flags: <defaults>
</compile_context>

<pallas_src>
import functools
import numpy as np
import jax
import jax.numpy as jnp
from jax import lax
from jax.experimental import pallas as pl
from jax.experimental.pallas import tpu as pltpu

# ---- problem sizes (small, consistent with the module) ----------------------
B = 2
C_IN = 16          # in_channels
C_OUT = 32         # out_channels (divisible by 8 for GroupNorm, 16 for SE)
C_UP = 24          # up_channels  (!= out_channels -> up_conv is a real conv)
H = W = 16
HW = H * W
H_UP = W_UP = 8
GROUPS = 8
EPS = 1e-5
_INV_SQRT2 = 0.7071067811865476
_W_SHIFT = W.bit_length() - 1      # log2(W); H, W are powers of two


def _gelu(x):
    # exact (erf-based) GELU, matching torch.nn.functional.gelu default
    return 0.5 * x * (1.0 + lax.erf(x * _INV_SQRT2))


# ---------------- compile-time constant matrices (numpy) ----------------------
def _np_group_avg():
    # ga[c, c'] = 1/(HW*cg) for c' in the same GroupNorm group as c.
    cg = C_OUT // GROUPS
    a = np.zeros((C_OUT, C_OUT), np.float32)
    for c in range(C_OUT):
        g = c // cg
        a[c, g * cg:(g + 1) * cg] = 1.0 / (HW * cg)
    return a


_GROUP_AVG = _np_group_avg()

_CONST_ORDER = ("wxc", "bxc", "wup", "bup", "g1", "be1", "g2", "be2", "b2",
                "ga", "m2", "wf1", "bf1", "wf2", "bf2", "w7", "bsp",
                "ws1", "bs1", "ws2", "bs2")


def pack_params(params, ws_np, bs_np):
    """One-time (numpy) packing of module weights into kernel constants."""
    p = {k: np.asarray(v, np.float32) for k, v in params.items()}
    ws = np.asarray(ws_np, np.float32)                       # (7, 7, 2)
    c = dict(
        # fused [conv1; downsample] 1x1 weights / biases
        wxc=np.concatenate([p['w1'].T, p['wd'].T], axis=0),  # (2C, C_IN)
        bxc=np.concatenate([p['b1'].T, p['bd'].T], axis=0),  # (2C, 1)
        wup=np.ascontiguousarray(p['wu'].T),                 # (C, C_UP)
        bup=np.ascontiguousarray(p['bu'].T),                 # (C, 1)
        g1=np.ascontiguousarray(p['g1'].T), be1=np.ascontiguousarray(p['be1'].T),
        g2=np.ascontiguousarray(p['g2'].T), be2=np.ascontiguousarray(p['be2'].T),
        b2=np.ascontiguousarray(p['b2'].T),
        ga=_GROUP_AVG,
        # 3x3 conv re-packed: m2[dy*C+co, dx*C+ci] = w2[dy, dx, ci, co]
        m2=np.ascontiguousarray(
            np.transpose(p['w2'], (0, 3, 1, 2)).reshape(3 * C_OUT, 3 * C_OUT)),
        wf1=np.ascontiguousarray(p['wf1'].T), bf1=np.ascontiguousarray(p['bf1'].T),
        wf2=np.ascontiguousarray(p['wf2'].T), bf2=np.ascontiguousarray(p['bf2'].T),
        # spatial 7x7 (2->1) conv weights: w7[dx, dy, c] = ws[dy, dx, c]
        w7=np.ascontiguousarray(np.transpose(ws, (1, 0, 2))),      # (7, 7, 2)
        bsp=np.full((1, 1), float(bs_np), np.float32),
        ws1=np.ascontiguousarray(p['ws1'].T), bs1=np.ascontiguousarray(p['bs1'].T),
        ws2=np.ascontiguousarray(p['ws2'].T), bs2=np.ascontiguousarray(p['bs2'].T),
    )
    return {k: jnp.asarray(v) for k, v in c.items()}


# ---------------- kernel factory ----------------------------------------------
def _make_kernel(nb):
    """nb = number of images folded into the lane axis of one block."""
    n = nb * HW

    def slices(t):
        # per-image (C, HW) lane slices (256-lane aligned)
        if nb == 1:
            return [t]
        return [t[:, b * HW:(b + 1) * HW] for b in range(nb)]

    def join(ps):
        # re-join per-image pieces along the lane axis (128-aligned concat)
        return ps[0] if nb == 1 else jnp.concatenate(ps, axis=1)

    def kernel(x_ref, up_ref,
               wxc_ref, bxc_ref, wup_ref, bup_ref,
               g1_ref, be1_ref, g2_ref, be2_ref, b2_ref,
               ga_ref, m2_ref,
               wf1_ref, bf1_ref, wf2_ref, bf2_ref,
               w7_ref, bsp_ref,
               ws1_ref, bs1_ref, ws2_ref, bs2_ref,
               o_ref):
        x_in = x_ref[0]                                      # (C_IN, n)
        up2d = up_ref[0]                                     # (C_UP, n)
        ga = ga_ref[...]

        # in-image (h, w) position of every lane; valid for the batch fold too,
        # since the per-image HW block is a multiple of W.
        lane = lax.broadcasted_iota(jnp.int32, (1, n), 1)
        w_pos = lane & (W - 1)
        h_pos = (lane >> _W_SHIFT) & (H - 1)

        # ---- GroupNorm(8, C): lane-reduce to (C,1), group-average via tiny dot
        def group_norm(t, gamma, beta):
            outs = []
            for tb in slices(t):
                s1 = jnp.sum(tb, axis=1, keepdims=True)                      # (C,1)
                mean = jnp.dot(ga, s1, preferred_element_type=jnp.float32)   # (C,1)
                tc = tb - mean
                s2 = jnp.sum(tc * tc, axis=1, keepdims=True)
                var = jnp.dot(ga, s2, preferred_element_type=jnp.float32)
                scale = gamma * lax.rsqrt(var + EPS)      # gamma folded into scale
                outs.append(tc * scale + beta)
            return join(outs)

        # ---- fused 1x1 convs: [conv1; downsample] on x, up_conv on up --------
        r = jnp.dot(wxc_ref[...], x_in,
                    preferred_element_type=jnp.float32) + bxc_ref[...]
        h1 = r[0:C_OUT, :]                                   # conv1(x)
        identity = r[C_OUT:2 * C_OUT, :]                     # downsample(x)
        up_add = jnp.dot(wup_ref[...], up2d,
                         preferred_element_type=jnp.float32) + bup_ref[...]

        # ---- conv1 -> GN1 -> GELU ---------------------------------------------
        xa = _gelu(group_norm(h1, g1_ref[...], be1_ref[...]))

        # ---- conv2 (3x3, pad=1): lane rolls + one (3C,3C)@(3C,n) matmul -------
        xl = jnp.where(w_pos > 0,
                       pltpu.roll(xa, shift=1, axis=1), 0.0)         # src col w-1
        xr = jnp.where(w_pos < W - 1,
                       pltpu.roll(xa, shift=n - 1, axis=1), 0.0)     # src col w+1
        xcs = jnp.concatenate([xl, xa, xr], axis=0)                  # (3C, n)
        a_all = jnp.dot(m2_ref[...], xcs, preferred_element_type=jnp.float32)
        y = (a_all[C_OUT:2 * C_OUT, :]
             + jnp.where(h_pos > 0,
                         pltpu.roll(a_all[0:C_OUT, :], shift=W, axis=1),
                         0.0)                                        # src row h-1
             + jnp.where(h_pos < H - 1,
                         pltpu.roll(a_all[2 * C_OUT:3 * C_OUT, :],
                                    shift=n - W, axis=1),
                         0.0)                                        # src row h+1
             + b2_ref[...])

        # ---- GN2 -> GELU -> + up -----------------------------------------------
        x = _gelu(group_norm(y, g2_ref[...], be2_ref[...])) + up_add

        # ---- CBAM channel attention: narrow (C,1) MLP per image ---------------
        wf1 = wf1_ref[...]; bf1 = bf1_ref[...]
        wf2 = wf2_ref[...]; bf2 = bf2_ref[...]

        def chan_fc(v):                                      # v: (C, 1)
            hh = jnp.maximum(
                jnp.dot(wf1, v, preferred_element_type=jnp.float32) + bf1, 0.0)
            return jnp.dot(wf2, hh, preferred_element_type=jnp.float32) + bf2

        gated = []
        for xb in slices(x):
            avg_c = jnp.mean(xb, axis=1, keepdims=True)
            max_c = jnp.max(xb, axis=1, keepdims=True)
            g = jax.nn.sigmoid(chan_fc(avg_c) + chan_fc(max_c))      # (C, 1)
            gated.append(xb * g)
        x = join(gated)

        # ---- CBAM spatial attention: 7x7 (2->1) conv via rolls + tiny dots ----
        avg_s = jnp.mean(x, axis=0, keepdims=True)                   # (1, n)
        max_s = jnp.max(x, axis=0, keepdims=True)                    # (1, n)
        row_idx = lax.broadcasted_iota(jnp.int32, (2, n), 0)
        sm = jnp.where(row_idx == 0,
                       jnp.broadcast_to(avg_s, (2, n)),
                       jnp.broadcast_to(max_s, (2, n)))              # (2, n)
        a7 = None
        for dx in range(7):
            s = dx - 3                                               # source col w+s
            if s == 0:
                piece = sm
            else:
                piece = jnp.where((w_pos + s >= 0) & (w_pos + s < W),
                                  pltpu.roll(sm, shift=(-s) % n, axis=1), 0.0)
            contrib = jnp.dot(w7_ref[dx], piece,
                              preferred_element_type=jnp.float32)    # (7, n)
            a7 = contrib if a7 is None else a7 + contrib
        sp = None
        for dy in range(7):
            s = dy - 3                                               # source row h+s
            row = a7[dy:dy + 1, :]
            if s != 0:
                row = jnp.where((h_pos + s >= 0) & (h_pos + s < H),
                                pltpu.roll(row, shift=(-s * W) % n, axis=1), 0.0)
            sp = row if sp is None else sp + row
        x = x * jax.nn.sigmoid(sp + bsp_ref[...])

        # ---- SE block: narrow (C,1) MLP per image ------------------------------
        ws1 = ws1_ref[...]; bs1 = bs1_ref[...]
        ws2 = ws2_ref[...]; bs2 = bs2_ref[...]
        ses = []
        for xb in slices(x):
            v = jnp.mean(xb, axis=1, keepdims=True)
            hh = jnp.maximum(
                jnp.dot(ws1, v, preferred_element_type=jnp.float32) + bs1, 0.0)
            s = jax.nn.sigmoid(
                jnp.dot(ws2, hh, preferred_element_type=jnp.float32) + bs2)
            ses.append(xb * s)
        x = join(ses)

        # ---- residual ----------------------------------------------------------
        o_ref[0] = x + identity

    return kernel


# ---------------- wrapper ------------------------------------------------------
def _const_spec(a):
    nd = a.ndim
    return pl.BlockSpec(a.shape, lambda i, _nd=nd: (0,) * _nd)


def _default_merge_batch():
    # Single-TensorCore chips (v5e/v6e): fold the batch into the lane axis.
    # Multi-TensorCore chips (v7x / v4 megacore): keep grid=(B,) "parallel".
    try:
        kind = jax.devices()[0].device_kind.lower()
    except Exception:
        return True
    return not ("v7" in kind or "v4" in kind)


def enhanced_fpn_block(x_nchw, up_nchw, consts, *, merge_batch=True):
    """NCHW in/out, matching EnhancedLightFPNBlock.forward(x, up)."""
    b = x_nchw.shape[0]
    x = x_nchw.astype(jnp.float32).reshape(b, C_IN, HW)

    # nearest-neighbor 2x upsample as reshape+broadcast (no gather ops);
    # the pointwise up_conv commutes with NN replication so it stays in-kernel.
    up = up_nchw.astype(jnp.float32)
    up_r = jnp.broadcast_to(
        up[:, :, :, None, :, None],
        (b, C_UP, H_UP, H // H_UP, W_UP, W // W_UP)).reshape(b, C_UP, HW)

    if merge_batch:
        nb, nblk = b, 1
        x = jnp.transpose(x, (1, 0, 2)).reshape(1, C_IN, b * HW)
        up_r = jnp.transpose(up_r, (1, 0, 2)).reshape(1, C_UP, b * HW)
    else:
        nb, nblk = 1, b
    n = nb * HW

    const_list = [consts[k] for k in _CONST_ORDER]
    in_specs = ([pl.BlockSpec((1, C_IN, n), lambda i: (i, 0, 0)),
                 pl.BlockSpec((1, C_UP, n), lambda i: (i, 0, 0))]
                + [_const_spec(a) for a in const_list])

    out = pl.pallas_call(
        _make_kernel(nb),
        out_shape=jax.ShapeDtypeStruct((nblk, C_OUT, n), jnp.float32),
        grid=(nblk,),
        in_specs=in_specs,
        out_specs=pl.BlockSpec((1, C_OUT, n), lambda i: (i, 0, 0)),
        compiler_params=pltpu.CompilerParams(dimension_semantics=("parallel",)),
    )(x, up_r, *const_list)

    if merge_batch:
        out = jnp.transpose(out.reshape(C_OUT, b, HW), (1, 0, 2))
    return out.reshape(b, C_OUT, H, W)


# ---------------- deterministic parameter init --------------------------------
def init_params(key):
    ks = jax.random.split(key, 24)

    def nrm(k, shape, scale=0.1):
        return scale * jax.random.normal(k, shape, jnp.float32)

    p = {
        'w1': nrm(ks[0], (C_IN, C_OUT)),    'b1': nrm(ks[1], (1, C_OUT)),
        'g1': 1.0 + nrm(ks[2], (1, C_OUT)), 'be1': nrm(ks[3], (1, C_OUT)),
        'w2': nrm(ks[4], (3, 3, C_OUT, C_OUT)), 'b2': nrm(ks[5], (1, C_OUT)),
        'g2': 1.0 + nrm(ks[6], (1, C_OUT)), 'be2': nrm(ks[7], (1, C_OUT)),
        'wu': nrm(ks[8], (C_UP, C_OUT)),    'bu': nrm(ks[9], (1, C_OUT)),
        'wd': nrm(ks[10], (C_IN, C_OUT)),   'bd': nrm(ks[11], (1, C_OUT)),
        'wf1': nrm(ks[12], (C_OUT, C_OUT // 8)), 'bf1': nrm(ks[13], (1, C_OUT // 8)),
        'wf2': nrm(ks[14], (C_OUT // 8, C_OUT)), 'bf2': nrm(ks[15], (1, C_OUT)),
        'ws1': nrm(ks[16], (C_OUT, C_OUT // 16)), 'bs1': nrm(ks[17], (1, C_OUT // 16)),
        'ws2': nrm(ks[18], (C_OUT // 16, C_OUT)), 'bs2': nrm(ks[19], (1, C_OUT)),
    }
    ws_np = np.asarray(nrm(ks[20], (7, 7, 2), scale=0.05), np.float32)  # spatial 7x7 w
    bs_np = float(np.asarray(nrm(ks[21], ()), np.float32))              # spatial bias
    return p, ws_np, bs_np


# ---------------- pure-JAX reference (PyTorch op order) ------------------------
def reference(x_nchw, up_nchw, p, ws_np, bs_np):
    x = jnp.transpose(x_nchw, (0, 2, 3, 1)).astype(jnp.float32)
    up = jnp.transpose(up_nchw, (0, 2, 3, 1)).astype(jnp.float32)

    def conv1x1(t, w, b):
        return jnp.einsum('bhwc,cd->bhwd', t, w) + b.reshape(1, 1, 1, -1)

    def gn(t, gamma, beta):
        bn, hn, wn, c = t.shape
        g = t.reshape(bn, hn * wn, GROUPS, c // GROUPS)
        mean = g.mean(axis=(1, 3), keepdims=True)
        var = ((g - mean) ** 2).mean(axis=(1, 3), keepdims=True)
        g = (g - mean) / jnp.sqrt(var + EPS)
        return g.reshape(bn, hn, wn, c) * gamma.reshape(1, 1, 1, -1) + beta.reshape(1, 1, 1, -1)

    def gelu(t):
        return 0.5 * t * (1.0 + jax.scipy.special.erf(t * _INV_SQRT2))

    identity = conv1x1(x, p['wd'], p['bd'])
    y = gelu(gn(conv1x1(x, p['w1'], p['b1']), p['g1'], p['be1']))

    yp = jnp.pad(y, ((0, 0), (1, 1), (1, 1), (0, 0)))
    acc = jnp.zeros_like(y)
    for dy in range(3):
        for dx in range(3):
            acc = acc + jnp.einsum('bhwc,cd->bhwd', yp[:, dy:dy + H, dx:dx + W, :], p['w2'][dy, dx])
    y = gelu(gn(acc + p['b2'].reshape(1, 1, 1, -1), p['g2'], p['be2']))

    # up_conv then nearest interpolation (PyTorch order)
    u = conv1x1(up, p['wu'], p['bu'])
    idx_h = (np.arange(H) * up.shape[1]) // H
    idx_w = (np.arange(W) * up.shape[2]) // W
    u = u[:, idx_h][:, :, idx_w]
    y = y + u

    def fc(v):
        return jnp.maximum(v @ p['wf1'] + p['bf1'], 0.0) @ p['wf2'] + p['bf2']

    ch = jax.nn.sigmoid(fc(y.mean(axis=(1, 2))) + fc(y.max(axis=(1, 2))))
    y = y * ch[:, None, None, :]

    am = y.mean(axis=-1)
    mm = y.max(axis=-1)
    ap = jnp.pad(am, ((0, 0), (3, 3), (3, 3)))
    mp = jnp.pad(mm, ((0, 0), (3, 3), (3, 3)))
    sp = jnp.full((y.shape[0], H, W), bs_np, jnp.float32)
    for dy in range(7):
        for dx in range(7):
            sp = (sp + ap[:, dy:dy + H, dx:dx + W] * float(ws_np[dy, dx, 0])
                  + mp[:, dy:dy + H, dx:dx + W] * float(ws_np[dy, dx, 1]))
    y = y * jax.nn.sigmoid(sp)[..., None]

    se_v = y.mean(axis=(1, 2))
    se = jax.nn.sigmoid(jnp.maximum(se_v @ p['ws1'] + p['bs1'], 0.0) @ p['ws2'] + p['bs2'])
    y = y * se[:, None, None, :]
    y = y + identity
    return jnp.transpose(y, (0, 3, 1, 2))


if __name__ == "__main__":
    key = jax.random.PRNGKey(0)
    k_param, k_x, k_up = jax.random.split(key, 3)
    params, ws_np, bs_np = init_params(k_param)

    # weight packing done once, outside the hot call path
    consts = pack_params(params, ws_np, bs_np)

    x = jax.random.normal(k_x, (B, C_IN, H, W), jnp.float32)        # NCHW like PyTorch
    up = jax.random.normal(k_up, (B, C_UP, H_UP, W_UP), jnp.float32)

    merge = _default_merge_batch()     # fold batch into lanes on single-TC chips
    fwd = jax.jit(functools.partial(enhanced_fpn_block, merge_batch=merge))

    out = jax.block_until_ready(fwd(x, up, consts))

    ref = jax.block_until_ready(reference(x, up, params, ws_np, bs_np))
    np.testing.assert_allclose(np.asarray(out), np.asarray(ref), rtol=1e-2, atol=1e-2)

    print("KERNEL_OK")
</pallas_src>

<mosaic_0001>
module attributes {stable_mosaic.version = 11 : i64} {
  func.func @kernel(%arg0: i32, %arg1: memref<1x16x512xf32, #tpu.memory_space<vmem>>, %arg2: memref<1x24x512xf32, #tpu.memory_space<vmem>>, %arg3: memref<64x16xf32, #tpu.memory_space<vmem>>, %arg4: memref<64x1xf32, #tpu.memory_space<vmem>>, %arg5: memref<32x24xf32, #tpu.memory_space<vmem>>, %arg6: memref<32x1xf32, #tpu.memory_space<vmem>>, %arg7: memref<32x1xf32, #tpu.memory_space<vmem>>, %arg8: memref<32x1xf32, #tpu.memory_space<vmem>>, %arg9: memref<32x1xf32, #tpu.memory_space<vmem>>, %arg10: memref<32x1xf32, #tpu.memory_space<vmem>>, %arg11: memref<32x1xf32, #tpu.memory_space<vmem>>, %arg12: memref<32x32xf32, #tpu.memory_space<vmem>>, %arg13: memref<96x96xf32, #tpu.memory_space<vmem>>, %arg14: memref<4x32xf32, #tpu.memory_space<vmem>>, %arg15: memref<4x1xf32, #tpu.memory_space<vmem>>, %arg16: memref<32x4xf32, #tpu.memory_space<vmem>>, %arg17: memref<32x1xf32, #tpu.memory_space<vmem>>, %arg18: memref<7x7x2xf32, #tpu.memory_space<vmem>>, %arg19: memref<1x1xf32, #tpu.memory_space<vmem>>, %arg20: memref<2x32xf32, #tpu.memory_space<vmem>>, %arg21: memref<2x1xf32, #tpu.memory_space<vmem>>, %arg22: memref<32x2xf32, #tpu.memory_space<vmem>>, %arg23: memref<32x1xf32, #tpu.memory_space<vmem>>, %arg24: memref<1x32x512xf32, #tpu.memory_space<vmem>>) attributes {dimension_semantics = [#tpu.dimension_semantics<parallel>], iteration_bounds = array<i64: 1>, scalar_prefetch = 0 : i64, scratch_operands = 0 : i64, tpu.core_type = #tpu.core_type<tc>, window_params = [{transform_indices = @transform_0, window_bounds = array<i64: 1, 16, 512>}, {transform_indices = @transform_1, window_bounds = array<i64: 1, 24, 512>}, {pipeline_mode = #tpu.pipeline_mode<synchronous>, transform_indices = @transform_2, window_bounds = array<i64: 64, 16>}, {pipeline_mode = #tpu.pipeline_mode<synchronous>, transform_indices = @transform_3, window_bounds = array<i64: 64, 1>}, {pipeline_mode = #tpu.pipeline_mode<synchronous>, transform_indices = @transform_4, window_bounds = array<i64: 32, 24>}, {pipeline_mode = #tpu.pipeline_mode<synchronous>, transform_indices = @transform_5, window_bounds = array<i64: 32, 1>}, {pipeline_mode = #tpu.pipeline_mode<synchronous>, transform_indices = @transform_6, window_bounds = array<i64: 32, 1>}, {pipeline_mode = #tpu.pipeline_mode<synchronous>, transform_indices = @transform_7, window_bounds = array<i64: 32, 1>}, {pipeline_mode = #tpu.pipeline_mode<synchronous>, transform_indices = @transform_8, window_bounds = array<i64: 32, 1>}, {pipeline_mode = #tpu.pipeline_mode<synchronous>, transform_indices = @transform_9, window_bounds = array<i64: 32, 1>}, {pipeline_mode = #tpu.pipeline_mode<synchronous>, transform_indices = @transform_10, window_bounds = array<i64: 32, 1>}, {pipeline_mode = #tpu.pipeline_mode<synchronous>, transform_indices = @transform_11, window_bounds = array<i64: 32, 32>}, {pipeline_mode = #tpu.pipeline_mode<synchronous>, transform_indices = @transform_12, window_bounds = array<i64: 96, 96>}, {pipeline_mode = #tpu.pipeline_mode<synchronous>, transform_indices = @transform_13, window_bounds = array<i64: 4, 32>}, {pipeline_mode = #tpu.pipeline_mode<synchronous>, transform_indices = @transform_14, window_bounds = array<i64: 4, 1>}, {pipeline_mode = #tpu.pipeline_mode<synchronous>, transform_indices = @transform_15, window_bounds = array<i64: 32, 4>}, {pipeline_mode = #tpu.pipeline_mode<synchronous>, transform_indices = @transform_16, window_bounds = array<i64: 32, 1>}, {pipeline_mode = #tpu.pipeline_mode<synchronous>, transform_indices = @transform_17, window_bounds = array<i64: 7, 7, 2>}, {pipeline_mode = #tpu.pipeline_mode<synchronous>, transform_indices = @transform_18, window_bounds = array<i64: 1, 1>}, {pipeline_mode = #tpu.pipeline_mode<synchronous>, transform_indices = @transform_19, window_bounds = array<i64: 2, 32>}, {pipeline_mode = #tpu.pipeline_mode<synchronous>, transform_indices = @transform_20, window_bounds = array<i64: 2, 1>}, {pipeline_mode = #tpu.pipeline_mode<synchronous>, transform_indices = @transform_21, window_bounds = array<i64: 32, 2>}, {pipeline_mode = #tpu.pipeline_mode<synchronous>, transform_indices = @transform_22, window_bounds = array<i64: 32, 1>}, {transform_indices = @transform_23, window_bounds = array<i64: 1, 32, 512>}]} {
    %c0 = arith.constant 0 : index
    %c0_0 = arith.constant 0 : index
    %c0_1 = arith.constant 0 : index
    %0 = vector.load %arg1[%c0, %c0_0, %c0_1] : memref<1x16x512xf32, #tpu.memory_space<vmem>>, vector<1x16x512xf32>
    %1 = vector.shape_cast %0 : vector<1x16x512xf32> to vector<16x512xf32>
    %c0_2 = arith.constant 0 : index
    %c0_3 = arith.constant 0 : index
    %c0_4 = arith.constant 0 : index
    %2 = vector.load %arg2[%c0_2, %c0_3, %c0_4] : memref<1x24x512xf32, #tpu.memory_space<vmem>>, vector<1x24x512xf32>
    %3 = vector.shape_cast %2 : vector<1x24x512xf32> to vector<24x512xf32>
    %c0_5 = arith.constant 0 : index
    %c0_6 = arith.constant 0 : index
    %4 = vector.load %arg12[%c0_5, %c0_6] : memref<32x32xf32, #tpu.memory_space<vmem>>, vector<32x32xf32>
    %5 = tpu.iota {dimensions = array<i32: 1>} : vector<1x512xi32>
    %c15_i32 = arith.constant 15 : i32
    %6 = vector.broadcast %c15_i32 : i32 to vector<1x512xi32>
    %7 = arith.andi %5, %6 : vector<1x512xi32>
    %c4_i32 = arith.constant 4 : i32
    %8 = vector.broadcast %c4_i32 : i32 to vector<1x512xi32>
    %9 = arith.shrsi %5, %8 : vector<1x512xi32>
    %c15_i32_7 = arith.constant 15 : i32
    %10 = vector.broadcast %c15_i32_7 : i32 to vector<1x512xi32>
    %11 = arith.andi %9, %10 : vector<1x512xi32>
    %c0_8 = arith.constant 0 : index
    %c0_9 = arith.constant 0 : index
    %12 = vector.load %arg3[%c0_8, %c0_9] : memref<64x16xf32, #tpu.memory_space<vmem>>, vector<64x16xf32>
    %cst = arith.constant dense<0.000000e+00> : vector<64x512xf32>
    %13 = tpu.matmul %12, %1, %cst {dimension_numbers = #tpu.dot_dimension_numbers<[1], [0], [0], [1], [0, 0, 1, 1], [], []>} : vector<64x16xf32>, vector<16x512xf32>, vector<64x512xf32> -> vector<64x512xf32>
    %c0_10 = arith.constant 0 : index
    %c0_11 = arith.constant 0 : index
    %14 = vector.load %arg4[%c0_10, %c0_11] : memref<64x1xf32, #tpu.memory_space<vmem>>, vector<64x1xf32>
    %15 = vector.broadcast %14 : vector<64x1xf32> to vector<64x512xf32>
    %16 = arith.addf %13, %15 : vector<64x512xf32>
    %17 = vector.extract_strided_slice %16 {offsets = [0, 0], sizes = [32, 512], strides = [1, 1]} : vector<64x512xf32> to vector<32x512xf32>
    %18 = vector.extract_strided_slice %16 {offsets = [32, 0], sizes = [32, 512], strides = [1, 1]} : vector<64x512xf32> to vector<32x512xf32>
    %c0_12 = arith.constant 0 : index
    %c0_13 = arith.constant 0 : index
    %19 = vector.load %arg5[%c0_12, %c0_13] : memref<32x24xf32, #tpu.memory_space<vmem>>, vector<32x24xf32>
    %cst_14 = arith.constant dense<0.000000e+00> : vector<32x512xf32>
    %20 = tpu.matmul %19, %3, %cst_14 {dimension_numbers = #tpu.dot_dimension_numbers<[1], [0], [0], [1], [0, 0, 1, 1], [], []>} : vector<32x24xf32>, vector<24x512xf32>, vector<32x512xf32> -> vector<32x512xf32>
    %c0_15 = arith.constant 0 : index
    %c0_16 = arith.constant 0 : index
    %21 = vector.load %arg6[%c0_15, %c0_16] : memref<32x1xf32, #tpu.memory_space<vmem>>, vector<32x1xf32>
    %22 = vector.broadcast %21 : vector<32x1xf32> to vector<32x512xf32>
    %23 = arith.addf %20, %22 : vector<32x512xf32>
    %c0_17 = arith.constant 0 : index
    %c0_18 = arith.constant 0 : index
    %24 = vector.load %arg7[%c0_17, %c0_18] : memref<32x1xf32, #tpu.memory_space<vmem>>, vector<32x1xf32>
    %c0_19 = arith.constant 0 : index
    %c0_20 = arith.constant 0 : index
    %25 = vector.load %arg8[%c0_19, %c0_20] : memref<32x1xf32, #tpu.memory_space<vmem>>, vector<32x1xf32>
    %26 = vector.extract_strided_slice %17 {offsets = [0, 0], sizes = [32, 256], strides = [1, 1]} : vector<32x512xf32> to vector<32x256xf32>
    %27 = vector.extract_strided_slice %17 {offsets = [0, 256], sizes = [32, 256], strides = [1, 1]} : vector<32x512xf32> to vector<32x256xf32>
    %cst_21 = arith.constant dense<0.000000e+00> : vector<32xf32>
    %28 = vector.multi_reduction <add>, %26, %cst_21 [1] : vector<32x256xf32> to vector<32xf32>
    %29 = vector.shape_cast %28 : vector<32xf32> to vector<32x1xf32>
    %cst_22 = arith.constant dense<0.000000e+00> : vector<32x1xf32>
    %30 = tpu.matmul %4, %29, %cst_22 {dimension_numbers = #tpu.dot_dimension_numbers<[1], [0], [0], [1], [0, 0, 1, 1], [], []>} : vector<32x32xf32>, vector<32x1xf32>, vector<32x1xf32> -> vector<32x1xf32>
    %31 = vector.broadcast %30 : vector<32x1xf32> to vector<32x256xf32>
    %32 = arith.subf %26, %31 : vector<32x256xf32>
    %33 = arith.mulf %32, %32 : vector<32x256xf32>
    %cst_23 = arith.constant dense<0.000000e+00> : vector<32xf32>
    %34 = vector.multi_reduction <add>, %33, %cst_23 [1] : vector<32x256xf32> to vector<32xf32>
    %35 = vector.shape_cast %34 : vector<32xf32> to vector<32x1xf32>
    %cst_24 = arith.constant dense<0.000000e+00> : vector<32x1xf32>
    %36 = tpu.matmul %4, %35, %cst_24 {dimension_numbers = #tpu.dot_dimension_numbers<[1], [0], [0], [1], [0, 0, 1, 1], [], []>} : vector<32x32xf32>, vector<32x1xf32>, vector<32x1xf32> -> vector<32x1xf32>
    %cst_25 = arith.constant 9.99999974E-6 : f32
    %37 = vector.broadcast %cst_25 : f32 to vector<32x1xf32>
    %38 = arith.addf %36, %37 : vector<32x1xf32>
    %39 = math.rsqrt %38 : vector<32x1xf32>
    %40 = arith.mulf %24, %39 : vector<32x1xf32>
    %41 = vector.broadcast %40 : vector<32x1xf32> to vector<32x256xf32>
    %42 = arith.mulf %32, %41 : vector<32x256xf32>
    %43 = vector.broadcast %25 : vector<32x1xf32> to vector<32x256xf32>
    %44 = arith.addf %42, %43 : vector<32x256xf32>
    %cst_26 = arith.constant dense<0.000000e+00> : vector<32xf32>
    %45 = vector.multi_reduction <add>, %27, %cst_26 [1] : vector<32x256xf32> to vector<32xf32>
    %46 = vector.shape_cast %45 : vector<32xf32> to vector<32x1xf32>
    %cst_27 = arith.constant dense<0.000000e+00> : vector<32x1xf32>
    %47 = tpu.matmul %4, %46, %cst_27 {dimension_numbers = #tpu.dot_dimension_numbers<[1], [0], [0], [1], [0, 0, 1, 1], [], []>} : vector<32x32xf32>, vector<32x1xf32>, vector<32x1xf32> -> vector<32x1xf32>
    %48 = vector.broadcast %47 : vector<32x1xf32> to vector<32x256xf32>
    %49 = arith.subf %27, %48 : vector<32x256xf32>
    %50 = arith.mulf %49, %49 : vector<32x256xf32>
    %cst_28 = arith.constant dense<0.000000e+00> : vector<32xf32>
    %51 = vector.multi_reduction <add>, %50, %cst_28 [1] : vector<32x256xf32> to vector<32xf32>
    %52 = vector.shape_cast %51 : vector<32xf32> to vector<32x1xf32>
    %cst_29 = arith.constant dense<0.000000e+00> : vector<32x1xf32>
    %53 = tpu.matmul %4, %52, %cst_29 {dimension_numbers = #tpu.dot_dimension_numbers<[1], [0], [0], [1], [0, 0, 1, 1], [], []>} : vector<32x32xf32>, vector<32x1xf32>, vector<32x1xf32> -> vector<32x1xf32>
    %cst_30 = arith.constant 9.99999974E-6 : f32
    %54 = vector.broadcast %cst_30 : f32 to vector<32x1xf32>
    %55 = arith.addf %53, %54 : vector<32x1xf32>
    %56 = math.rsqrt %55 : vector<32x1xf32>
    %57 = arith.mulf %24, %56 : vector<32x1xf32>
    %58 = vector.broadcast %57 : vector<32x1xf32> to vector<32x256xf32>
    %59 = arith.mulf %49, %58 : vector<32x256xf32>
    %60 = vector.broadcast %25 : vector<32x1xf32> to vector<32x256xf32>
    %61 = arith.addf %59, %60 : vector<32x256xf32>
    %62 = tpu.concatenate %44, %61 in 1 : vector<32x256xf32>, vector<32x256xf32> -> vector<32x512xf32>
    %cst_31 = arith.constant 5.000000e-01 : f32
    %63 = vector.broadcast %cst_31 : f32 to vector<32x512xf32>
    %64 = arith.mulf %63, %62 : vector<32x512xf32>
    %cst_32 = arith.constant 0.707106769 : f32
    %65 = vector.broadcast %cst_32 : f32 to vector<32x512xf32>
    %66 = arith.mulf %62, %65 : vector<32x512xf32>
    %67 = math.erf %66 : vector<32x512xf32>
    %cst_33 = arith.constant 1.000000e+00 : f32
    %68 = vector.broadcast %cst_33 : f32 to vector<32x512xf32>
    %69 = arith.addf %68, %67 : vector<32x512xf32>
    %70 = arith.mulf %64, %69 : vector<32x512xf32>
    %c0_i32 = arith.constant 0 : i32
    %71 = vector.broadcast %c0_i32 : i32 to vector<1x512xi32>
    %72 = arith.cmpi sgt, %7, %71 : vector<1x512xi32>
    %c1_i32 = arith.constant 1 : i32
    %73 = tpu.dynamic_rotate %70 by %c1_i32 dim 1 : vector<32x512xf32>, i32 -> vector<32x512xf32>
    %cst_34 = arith.constant 0.000000e+00 : f32
    %74 = vector.shape_cast %72 : vector<1x512xi1> to vector<1x512xi1>
    %75 = vector.broadcast %74 : vector<1x512xi1> to vector<32x512xi1>
    %76 = vector.broadcast %cst_34 : f32 to vector<32x512xf32>
    %77 = arith.select %75, %73, %76 : vector<32x512xi1>, vector<32x512xf32>
    %c15_i32_35 = arith.constant 15 : i32
    %78 = vector.broadcast %c15_i32_35 : i32 to vector<1x512xi32>
    %79 = arith.cmpi slt, %7, %78 : vector<1x512xi32>
    %c511_i32 = arith.constant 511 : i32
    %80 = tpu.dynamic_rotate %70 by %c511_i32 dim 1 : vector<32x512xf32>, i32 -> vector<32x512xf32>
    %cst_36 = arith.constant 0.000000e+00 : f32
    %81 = vector.shape_cast %79 : vector<1x512xi1> to vector<1x512xi1>
    %82 = vector.broadcast %81 : vector<1x512xi1> to vector<32x512xi1>
    %83 = vector.broadcast %cst_36 : f32 to vector<32x512xf32>
    %84 = arith.select %82, %80, %83 : vector<32x512xi1>, vector<32x512xf32>
    %85 = tpu.concatenate %77, %70, %84 in 0 : vector<32x512xf32>, vector<32x512xf32>, vector<32x512xf32> -> vector<96x512xf32>
    %c0_37 = arith.constant 0 : index
    %c0_38 = arith.constant 0 : index
    %86 = vector.load %arg13[%c0_37, %c0_38] : memref<96x96xf32, #tpu.memory_space<vmem>>, vector<96x96xf32>
    %cst_39 = arith.constant dense<0.000000e+00> : vector<96x512xf32>
    %87 = tpu.matmul %86, %85, %cst_39 {dimension_numbers = #tpu.dot_dimension_numbers<[1], [0], [0], [1], [0, 0, 1, 1], [], []>} : vector<96x96xf32>, vector<96x512xf32>, vector<96x512xf32> -> vector<96x512xf32>
    %88 = vector.extract_strided_slice %87 {offsets = [32, 0], sizes = [32, 512], strides = [1, 1]} : vector<96x512xf32> to vector<32x512xf32>
    %c0_i32_40 = arith.constant 0 : i32
    %89 = vector.broadcast %c0_i32_40 : i32 to vector<1x512xi32>
    %90 = arith.cmpi sgt, %11, %89 : vector<1x512xi32>
    %91 = vector.extract_strided_slice %87 {offsets = [0, 0], sizes = [32, 512], strides = [1, 1]} : vector<96x512xf32> to vector<32x512xf32>
    %c16_i32 = arith.constant 16 : i32
    %92 = tpu.dynamic_rotate %91 by %c16_i32 dim 1 : vector<32x512xf32>, i32 -> vector<32x512xf32>
    %cst_41 = arith.constant 0.000000e+00 : f32
    %93 = vector.shape_cast %90 : vector<1x512xi1> to vector<1x512xi1>
    %94 = vector.broadcast %93 : vector<1x512xi1> to vector<32x512xi1>
    %95 = vector.broadcast %cst_41 : f32 to vector<32x512xf32>
    %96 = arith.select %94, %92, %95 : vector<32x512xi1>, vector<32x512xf32>
    %97 = arith.addf %88, %96 : vector<32x512xf32>
    %c15_i32_42 = arith.constant 15 : i32
    %98 = vector.broadcast %c15_i32_42 : i32 to vector<1x512xi32>
    %99 = arith.cmpi slt, %11, %98 : vector<1x512xi32>
    %100 = vector.extract_strided_slice %87 {offsets = [64, 0], sizes = [32, 512], strides = [1, 1]} : vector<96x512xf32> to vector<32x512xf32>
    %c496_i32 = arith.constant 496 : i32
    %101 = tpu.dynamic_rotate %100 by %c496_i32 dim 1 : vector<32x512xf32>, i32 -> vector<32x512xf32>
    %cst_43 = arith.constant 0.000000e+00 : f32
    %102 = vector.shape_cast %99 : vector<1x512xi1> to vector<1x512xi1>
    %103 = vector.broadcast %102 : vector<1x512xi1> to vector<32x512xi1>
    %104 = vector.broadcast %cst_43 : f32 to vector<32x512xf32>
    %105 = arith.select %103, %101, %104 : vector<32x512xi1>, vector<32x512xf32>
    %106 = arith.addf %97, %105 : vector<32x512xf32>
    %c0_44 = arith.constant 0 : index
    %c0_45 = arith.constant 0 : index
    %107 = vector.load %arg11[%c0_44, %c0_45] : memref<32x1xf32, #tpu.memory_space<vmem>>, vector<32x1xf32>
    %108 = vector.broadcast %107 : vector<32x1xf32> to vector<32x512xf32>
    %109 = arith.addf %106, %108 : vector<32x512xf32>
    %c0_46 = arith.constant 0 : index
    %c0_47 = arith.constant 0 : index
    %110 = vector.load %arg9[%c0_46, %c0_47] : memref<32x1xf32, #tpu.memory_space<vmem>>, vector<32x1xf32>
    %c0_48 = arith.constant 0 : index
    %c0_49 = arith.constant 0 : index
    %111 = vector.load %arg10[%c0_48, %c0_49] : memref<32x1xf32, #tpu.memory_space<vmem>>, vector<32x1xf32>
    %112 = vector.extract_strided_slice %109 {offsets = [0, 0], sizes = [32, 256], strides = [1, 1]} : vector<32x512xf32> to vector<32x256xf32>
    %113 = vector.extract_strided_slice %109 {offsets = [0, 256], sizes = [32, 256], strides = [1, 1]} : vector<32x512xf32> to vector<32x256xf32>
    %cst_50 = arith.constant dense<0.000000e+00> : vector<32xf32>
    %114 = vector.multi_reduction <add>, %112, %cst_50 [1] : vector<32x256xf32> to vector<32xf32>
    %115 = vector.shape_cast %114 : vector<32xf32> to vector<32x1xf32>
    %cst_51 = arith.constant dense<0.000000e+00> : vector<32x1xf32>
    %116 = tpu.matmul %4, %115, %cst_51 {dimension_numbers = #tpu.dot_dimension_numbers<[1], [0], [0], [1], [0, 0, 1, 1], [], []>} : vector<32x32xf32>, vector<32x1xf32>, vector<32x1xf32> -> vector<32x1xf32>
    %117 = vector.broadcast %116 : vector<32x1xf32> to vector<32x256xf32>
    %118 = arith.subf %112, %117 : vector<32x256xf32>
    %119 = arith.mulf %118, %118 : vector<32x256xf32>
    %cst_52 = arith.constant dense<0.000000e+00> : vector<32xf32>
    %120 = vector.multi_reduction <add>, %119, %cst_52 [1] : vector<32x256xf32> to vector<32xf32>
    %121 = vector.shape_cast %120 : vector<32xf32> to vector<32x1xf32>
    %cst_53 = arith.constant dense<0.000000e+00> : vector<32x1xf32>
    %122 = tpu.matmul %4, %121, %cst_53 {dimension_numbers = #tpu.dot_dimension_numbers<[1], [0], [0], [1], [0, 0, 1, 1], [], []>} : vector<32x32xf32>, vector<32x1xf32>, vector<32x1xf32> -> vector<32x1xf32>
    %cst_54 = arith.constant 9.99999974E-6 : f32
    %123 = vector.broadcast %cst_54 : f32 to vector<32x1xf32>
    %124 = arith.addf %122, %123 : vector<32x1xf32>
    %125 = math.rsqrt %124 : vector<32x1xf32>
    %126 = arith.mulf %110, %125 : vector<32x1xf32>
    %127 = vector.broadcast %126 : vector<32x1xf32> to vector<32x256xf32>
    %128 = arith.mulf %118, %127 : vector<32x256xf32>
    %129 = vector.broadcast %111 : vector<32x1xf32> to vector<32x256xf32>
    %130 = arith.addf %128, %129 : vector<32x256xf32>
    %cst_55 = arith.constant dense<0.000000e+00> : vector<32xf32>
    %131 = vector.multi_reduction <add>, %113, %cst_55 [1] : vector<32x256xf32> to vector<32xf32>
    %132 = vector.shape_cast %131 : vector<32xf32> to vector<32x1xf32>
    %cst_56 = arith.constant dense<0.000000e+00> : vector<32x1xf32>
    %133 = tpu.matmul %4, %132, %cst_56 {dimension_numbers = #tpu.dot_dimension_numbers<[1], [0], [0], [1], [0, 0, 1, 1], [], []>} : vector<32x32xf32>, vector<32x1xf32>, vector<32x1xf32> -> vector<32x1xf32>
    %134 = vector.broadcast %133 : vector<32x1xf32> to vector<32x256xf32>
    %135 = arith.subf %113, %134 : vector<32x256xf32>
    %136 = arith.mulf %135, %135 : vector<32x256xf32>
    %cst_57 = arith.constant dense<0.000000e+00> : vector<32xf32>
    %137 = vector.multi_reduction <add>, %136, %cst_57 [1] : vector<32x256xf32> to vector<32xf32>
    %138 = vector.shape_cast %137 : vector<32xf32> to vector<32x1xf32>
    %cst_58 = arith.constant dense<0.000000e+00> : vector<32x1xf32>
    %139 = tpu.matmul %4, %138, %cst_58 {dimension_numbers = #tpu.dot_dimension_numbers<[1], [0], [0], [1], [0, 0, 1, 1], [], []>} : vector<32x32xf32>, vector<32x1xf32>, vector<32x1xf32> -> vector<32x1xf32>
    %cst_59 = arith.constant 9.99999974E-6 : f32
    %140 = vector.broadcast %cst_59 : f32 to vector<32x1xf32>
    %141 = arith.addf %139, %140 : vector<32x1xf32>
    %142 = math.rsqrt %141 : vector<32x1xf32>
    %143 = arith.mulf %110, %142 : vector<32x1xf32>
    %144 = vector.broadcast %143 : vector<32x1xf32> to vector<32x256xf32>
    %145 = arith.mulf %135, %144 : vector<32x256xf32>
    %146 = vector.broadcast %111 : vector<32x1xf32> to vector<32x256xf32>
    %147 = arith.addf %145, %146 : vector<32x256xf32>
    %148 = tpu.concatenate %130, %147 in 1 : vector<32x256xf32>, vector<32x256xf32> -> vector<32x512xf32>
    %cst_60 = arith.constant 5.000000e-01 : f32
    %149 = vector.broadcast %cst_60 : f32 to vector<32x512xf32>
    %150 = arith.mulf %149, %148 : vector<32x512xf32>
    %cst_61 = arith.constant 0.707106769 : f32
    %151 = vector.broadcast %cst_61 : f32 to vector<32x512xf32>
    %152 = arith.mulf %148, %151 : vector<32x512xf32>
    %153 = math.erf %152 : vector<32x512xf32>
    %cst_62 = arith.constant 1.000000e+00 : f32
    %154 = vector.broadcast %cst_62 : f32 to vector<32x512xf32>
    %155 = arith.addf %154, %153 : vector<32x512xf32>
    %156 = arith.mulf %150, %155 : vector<32x512xf32>
    %157 = arith.addf %156, %23 : vector<32x512xf32>
    %c0_63 = arith.constant 0 : index
    %c0_64 = arith.constant 0 : index
    %158 = vector.load %arg14[%c0_63, %c0_64] : memref<4x32xf32, #tpu.memory_space<vmem>>, vector<4x32xf32>
    %c0_65 = arith.constant 0 : index
    %c0_66 = arith.constant 0 : index
    %159 = vector.load %arg15[%c0_65, %c0_66] : memref<4x1xf32, #tpu.memory_space<vmem>>, vector<4x1xf32>
    %c0_67 = arith.constant 0 : index
    %c0_68 = arith.constant 0 : index
    %160 = vector.load %arg16[%c0_67, %c0_68] : memref<32x4xf32, #tpu.memory_space<vmem>>, vector<32x4xf32>
    %c0_69 = arith.constant 0 : index
    %c0_70 = arith.constant 0 : index
    %161 = vector.load %arg17[%c0_69, %c0_70] : memref<32x1xf32, #tpu.memory_space<vmem>>, vector<32x1xf32>
    %162 = vector.extract_strided_slice %157 {offsets = [0, 0], sizes = [32, 256], strides = [1, 1]} : vector<32x512xf32> to vector<32x256xf32>
    %163 = vector.extract_strided_slice %157 {offsets = [0, 256], sizes = [32, 256], strides = [1, 1]} : vector<32x512xf32> to vector<32x256xf32>
    %cst_71 = arith.constant dense<0.000000e+00> : vector<32xf32>
    %164 = vector.multi_reduction <add>, %162, %cst_71 [1] : vector<32x256xf32> to vector<32xf32>
    %165 = vector.shape_cast %164 : vector<32xf32> to vector<32x1xf32>
    %cst_72 = arith.constant 2.560000e+02 : f32
    %166 = vector.broadcast %cst_72 : f32 to vector<32x1xf32>
    %167 = arith.divf %165, %166 : vector<32x1xf32>
    %cst_73 = arith.constant dense<0xFF800000> : vector<32xf32>
    %168 = vector.multi_reduction <maximumf>, %162, %cst_73 [1] : vector<32x256xf32> to vector<32xf32>
    %169 = vector.shape_cast %168 : vector<32xf32> to vector<32x1xf32>
    %cst_74 = arith.constant dense<0.000000e+00> : vector<4x1xf32>
    %170 = tpu.matmul %158, %167, %cst_74 {dimension_numbers = #tpu.dot_dimension_numbers<[1], [0], [0], [1], [0, 0, 1, 1], [], []>} : vector<4x32xf32>, vector<32x1xf32>, vector<4x1xf32> -> vector<4x1xf32>
    %171 = arith.addf %170, %159 : vector<4x1xf32>
    %cst_75 = arith.constant 0.000000e+00 : f32
    %172 = vector.broadcast %cst_75 : f32 to vector<4x1xf32>
    %173 = arith.maximumf %171, %172 : vector<4x1xf32>
    %cst_76 = arith.constant dense<0.000000e+00> : vector<32x1xf32>
    %174 = tpu.matmul %160, %173, %cst_76 {dimension_numbers = #tpu.dot_dimension_numbers<[1], [0], [0], [1], [0, 0, 1, 1], [], []>} : vector<32x4xf32>, vector<4x1xf32>, vector<32x1xf32> -> vector<32x1xf32>
    %175 = arith.addf %174, %161 : vector<32x1xf32>
    %cst_77 = arith.constant dense<0.000000e+00> : vector<4x1xf32>
    %176 = tpu.matmul %158, %169, %cst_77 {dimension_numbers = #tpu.dot_dimension_numbers<[1], [0], [0], [1], [0, 0, 1, 1], [], []>} : vector<4x32xf32>, vector<32x1xf32>, vector<4x1xf32> -> vector<4x1xf32>
    %177 = arith.addf %176, %159 : vector<4x1xf32>
    %cst_78 = arith.constant 0.000000e+00 : f32
    %178 = vector.broadcast %cst_78 : f32 to vector<4x1xf32>
    %179 = arith.maximumf %177, %178 : vector<4x1xf32>
    %cst_79 = arith.constant dense<0.000000e+00> : vector<32x1xf32>
    %180 = tpu.matmul %160, %179, %cst_79 {dimension_numbers = #tpu.dot_dimension_numbers<[1], [0], [0], [1], [0, 0, 1, 1], [], []>} : vector<32x4xf32>, vector<4x1xf32>, vector<32x1xf32> -> vector<32x1xf32>
    %181 = arith.addf %180, %161 : vector<32x1xf32>
    %182 = arith.addf %175, %181 : vector<32x1xf32>
    %183 = arith.negf %182 : vector<32x1xf32>
    %184 = math.exp %183 : vector<32x1xf32>
    %cst_80 = arith.constant 1.000000e+00 : f32
    %185 = vector.broadcast %cst_80 : f32 to vector<32x1xf32>
    %186 = arith.addf %185, %184 : vector<32x1xf32>
    %187 = arith.divf %185, %186 : vector<32x1xf32>
    %188 = vector.broadcast %187 : vector<32x1xf32> to vector<32x256xf32>
    %189 = arith.mulf %162, %188 : vector<32x256xf32>
    %cst_81 = arith.constant dense<0.000000e+00> : vector<32xf32>
    %190 = vector.multi_reduction <add>, %163, %cst_81 [1] : vector<32x256xf32> to vector<32xf32>
    %191 = vector.shape_cast %190 : vector<32xf32> to vector<32x1xf32>
    %cst_82 = arith.constant 2.560000e+02 : f32
    %192 = vector.broadcast %cst_82 : f32 to vector<32x1xf32>
    %193 = arith.divf %191, %192 : vector<32x1xf32>
    %cst_83 = arith.constant dense<0xFF800000> : vector<32xf32>
    %194 = vector.multi_reduction <maximumf>, %163, %cst_83 [1] : vector<32x256xf32> to vector<32xf32>
    %195 = vector.shape_cast %194 : vector<32xf32> to vector<32x1xf32>
    %cst_84 = arith.constant dense<0.000000e+00> : vector<4x1xf32>
    %196 = tpu.matmul %158, %193, %cst_84 {dimension_numbers = #tpu.dot_dimension_numbers<[1], [0], [0], [1], [0, 0, 1, 1], [], []>} : vector<4x32xf32>, vector<32x1xf32>, vector<4x1xf32> -> vector<4x1xf32>
    %197 = arith.addf %196, %159 : vector<4x1xf32>
    %cst_85 = arith.constant 0.000000e+00 : f32
    %198 = vector.broadcast %cst_85 : f32 to vector<4x1xf32>
    %199 = arith.maximumf %197, %198 : vector<4x1xf32>
    %cst_86 = arith.constant dense<0.000000e+00> : vector<32x1xf32>
    %200 = tpu.matmul %160, %199, %cst_86 {dimension_numbers = #tpu.dot_dimension_numbers<[1], [0], [0], [1], [0, 0, 1, 1], [], []>} : vector<32x4xf32>, vector<4x1xf32>, vector<32x1xf32> -> vector<32x1xf32>
    %201 = arith.addf %200, %161 : vector<32x1xf32>
    %cst_87 = arith.constant dense<0.000000e+00> : vector<4x1xf32>
    %202 = tpu.matmul %158, %195, %cst_87 {dimension_numbers = #tpu.dot_dimension_numbers<[1], [0], [0], [1], [0, 0, 1, 1], [], []>} : vector<4x32xf32>, vector<32x1xf32>, vector<4x1xf32> -> vector<4x1xf32>
    %203 = arith.addf %202, %159 : vector<4x1xf32>
    %cst_88 = arith.constant 0.000000e+00 : f32
    %204 = vector.broadcast %cst_88 : f32 to vector<4x1xf32>
    %205 = arith.maximumf %203, %204 : vector<4x1xf32>
    %cst_89 = arith.constant dense<0.000000e+00> : vector<32x1xf32>
    %206 = tpu.matmul %160, %205, %cst_89 {dimension_numbers = #tpu.dot_dimension_numbers<[1], [0], [0], [1], [0, 0, 1, 1], [], []>} : vector<32x4xf32>, vector<4x1xf32>, vector<32x1xf32> -> vector<32x1xf32>
    %207 = arith.addf %206, %161 : vector<32x1xf32>
    %208 = arith.addf %201, %207 : vector<32x1xf32>
    %209 = arith.negf %208 : vector<32x1xf32>
    %210 = math.exp %209 : vector<32x1xf32>
    %cst_90 = arith.constant 1.000000e+00 : f32
    %211 = vector.broadcast %cst_90 : f32 to vector<32x1xf32>
    %212 = arith.addf %211, %210 : vector<32x1xf32>
    %213 = arith.divf %211, %212 : vector<32x1xf32>
    %214 = vector.broadcast %213 : vector<32x1xf32> to vector<32x256xf32>
    %215 = arith.mulf %163, %214 : vector<32x256xf32>
    %216 = tpu.concatenate %189, %215 in 1 : vector<32x256xf32>, vector<32x256xf32> -> vector<32x512xf32>
    %cst_91 = arith.constant dense<0.000000e+00> : vector<512xf32>
    %217 = vector.multi_reduction <add>, %216, %cst_91 [0] : vector<32x512xf32> to vector<512xf32>
    %218 = vector.shape_cast %217 : vector<512xf32> to vector<1x512xf32>
    %cst_92 = arith.constant 3.200000e+01 : f32
    %219 = vector.broadcast %cst_92 : f32 to vector<1x512xf32>
    %220 = arith.divf %218, %219 : vector<1x512xf32>
    %cst_93 = arith.constant dense<0xFF800000> : vector<512xf32>
    %221 = vector.multi_reduction <maximumf>, %216, %cst_93 [0] : vector<32x512xf32> to vector<512xf32>
    %222 = vector.shape_cast %221 : vector<512xf32> to vector<1x512xf32>
    %223 = tpu.iota {dimensions = array<i32: 0>} : vector<2x512xi32>
    %c0_i32_94 = arith.constant 0 : i32
    %224 = vector.broadcast %c0_i32_94 : i32 to vector<2x512xi32>
    %225 = arith.cmpi eq, %223, %224 : vector<2x512xi32>
    %226 = vector.shape_cast %220 : vector<1x512xf32> to vector<1x512xf32>
    %227 = vector.broadcast %226 : vector<1x512xf32> to vector<2x512xf32>
    %228 = vector.shape_cast %222 : vector<1x512xf32> to vector<1x512xf32>
    %229 = vector.broadcast %228 : vector<1x512xf32> to vector<2x512xf32>
    %230 = arith.select %225, %227, %229 : vector<2x512xi1>, vector<2x512xf32>
    %c-3_i32 = arith.constant -3 : i32
    %231 = vector.broadcast %c-3_i32 : i32 to vector<1x512xi32>
    %232 = arith.addi %7, %231 : vector<1x512xi32>
    %c0_i32_95 = arith.constant 0 : i32
    %233 = vector.broadcast %c0_i32_95 : i32 to vector<1x512xi32>
    %234 = arith.cmpi sge, %232, %233 : vector<1x512xi32>
    %c-3_i32_96 = arith.constant -3 : i32
    %235 = vector.broadcast %c-3_i32_96 : i32 to vector<1x512xi32>
    %236 = arith.addi %7, %235 : vector<1x512xi32>
    %c16_i32_97 = arith.constant 16 : i32
    %237 = vector.broadcast %c16_i32_97 : i32 to vector<1x512xi32>
    %238 = arith.cmpi slt, %236, %237 : vector<1x512xi32>
    %239 = arith.andi %234, %238 : vector<1x512xi1>
    %c3_i32 = arith.constant 3 : i32
    %240 = tpu.dynamic_rotate %230 by %c3_i32 dim 1 : vector<2x512xf32>, i32 -> vector<2x512xf32>
    %cst_98 = arith.constant 0.000000e+00 : f32
    %241 = vector.shape_cast %239 : vector<1x512xi1> to vector<1x512xi1>
    %242 = vector.broadcast %241 : vector<1x512xi1> to vector<2x512xi1>
    %243 = vector.broadcast %cst_98 : f32 to vector<2x512xf32>
    %244 = arith.select %242, %240, %243 : vector<2x512xi1>, vector<2x512xf32>
    %c0_99 = arith.constant 0 : index
    %c0_100 = arith.constant 0 : index
    %c0_101 = arith.constant 0 : index
    %245 = vector.load %arg18[%c0_99, %c0_100, %c0_101] : memref<7x7x2xf32, #tpu.memory_space<vmem>>, vector<1x7x2xf32>
    %246 = vector.shape_cast %245 : vector<1x7x2xf32> to vector<7x2xf32>
    %cst_102 = arith.constant dense<0.000000e+00> : vector<7x512xf32>
    %247 = tpu.matmul %246, %244, %cst_102 {dimension_numbers = #tpu.dot_dimension_numbers<[1], [0], [0], [1], [0, 0, 1, 1], [], []>} : vector<7x2xf32>, vector<2x512xf32>, vector<7x512xf32> -> vector<7x512xf32>
    %c-2_i32 = arith.constant -2 : i32
    %248 = vector.broadcast %c-2_i32 : i32 to vector<1x512xi32>
    %249 = arith.addi %7, %248 : vector<1x512xi32>
    %c0_i32_103 = arith.constant 0 : i32
    %250 = vector.broadcast %c0_i32_103 : i32 to vector<1x512xi32>
    %251 = arith.cmpi sge, %249, %250 : vector<1x512xi32>
    %c-2_i32_104 = arith.constant -2 : i32
    %252 = vector.broadcast %c-2_i32_104 : i32 to vector<1x512xi32>
    %253 = arith.addi %7, %252 : vector<1x512xi32>
    %c16_i32_105 = arith.constant 16 : i32
    %254 = vector.broadcast %c16_i32_105 : i32 to vector<1x512xi32>
    %255 = arith.cmpi slt, %253, %254 : vector<1x512xi32>
    %256 = arith.andi %251, %255 : vector<1x512xi1>
    %c2_i32 = arith.constant 2 : i32
    %257 = tpu.dynamic_rotate %230 by %c2_i32 dim 1 : vector<2x512xf32>, i32 -> vector<2x512xf32>
    %cst_106 = arith.constant 0.000000e+00 : f32
    %258 = vector.shape_cast %256 : vector<1x512xi1> to vector<1x512xi1>
    %259 = vector.broadcast %258 : vector<1x512xi1> to vector<2x512xi1>
    %260 = vector.broadcast %cst_106 : f32 to vector<2x512xf32>
    %261 = arith.select %259, %257, %260 : vector<2x512xi1>, vector<2x512xf32>
    %c1 = arith.constant 1 : index
    %c0_107 = arith.constant 0 : index
    %c0_108 = arith.constant 0 : index
    %262 = vector.load %arg18[%c1, %c0_107, %c0_108] : memref<7x7x2xf32, #tpu.memory_space<vmem>>, vector<1x7x2xf32>
    %263 = vector.shape_cast %262 : vector<1x7x2xf32> to vector<7x2xf32>
    %cst_109 = arith.constant dense<0.000000e+00> : vector<7x512xf32>
    %264 = tpu.matmul %263, %261, %cst_109 {dimension_numbers = #tpu.dot_dimension_numbers<[1], [0], [0], [1], [0, 0, 1, 1], [], []>} : vector<7x2xf32>, vector<2x512xf32>, vector<7x512xf32> -> vector<7x512xf32>
    %265 = arith.addf %247, %264 : vector<7x512xf32>
    %c-1_i32 = arith.constant -1 : i32
    %266 = vector.broadcast %c-1_i32 : i32 to vector<1x512xi32>
    %267 = arith.addi %7, %266 : vector<1x512xi32>
    %c0_i32_110 = arith.constant 0 : i32
    %268 = vector.broadcast %c0_i32_110 : i32 to vector<1x512xi32>
    %269 = arith.cmpi sge, %267, %268 : vector<1x512xi32>
    %c-1_i32_111 = arith.constant -1 : i32
    %270 = vector.broadcast %c-1_i32_111 : i32 to vector<1x512xi32>
    %271 = arith.addi %7, %270 : vector<1x512xi32>
    %c16_i32_112 = arith.constant 16 : i32
    %272 = vector.broadcast %c16_i32_112 : i32 to vector<1x512xi32>
    %273 = arith.cmpi slt, %271, %272 : vector<1x512xi32>
    %274 = arith.andi %269, %273 : vector<1x512xi1>
    %c1_i32_113 = arith.constant 1 : i32
    %275 = tpu.dynamic_rotate %230 by %c1_i32_113 dim 1 : vector<2x512xf32>, i32 -> vector<2x512xf32>
    %cst_114 = arith.constant 0.000000e+00 : f32
    %276 = vector.shape_cast %274 : vector<1x512xi1> to vector<1x512xi1>
    %277 = vector.broadcast %276 : vector<1x512xi1> to vector<2x512xi1>
    %278 = vector.broadcast %cst_114 : f32 to vector<2x512xf32>
    %279 = arith.select %277, %275, %278 : vector<2x512xi1>, vector<2x512xf32>
    %c2 = arith.constant 2 : index
    %c0_115 = arith.constant 0 : index
    %c0_116 = arith.constant 0 : index
    %280 = vector.load %arg18[%c2, %c0_115, %c0_116] : memref<7x7x2xf32, #tpu.memory_space<vmem>>, vector<1x7x2xf32>
    %281 = vector.shape_cast %280 : vector<1x7x2xf32> to vector<7x2xf32>
    %cst_117 = arith.constant dense<0.000000e+00> : vector<7x512xf32>
    %282 = tpu.matmul %281, %279, %cst_117 {dimension_numbers = #tpu.dot_dimension_numbers<[1], [0], [0], [1], [0, 0, 1, 1], [], []>} : vector<7x2xf32>, vector<2x512xf32>, vector<7x512xf32> -> vector<7x512xf32>
    %283 = arith.addf %265, %282 : vector<7x512xf32>
    %c3 = arith.constant 3 : index
    %c0_118 = arith.constant 0 : index
    %c0_119 = arith.constant 0 : index
    %284 = vector.load %arg18[%c3, %c0_118, %c0_119] : memref<7x7x2xf32, #tpu.memory_space<vmem>>, vector<1x7x2xf32>
    %285 = vector.shape_cast %284 : vector<1x7x2xf32> to vector<7x2xf32>
    %cst_120 = arith.constant dense<0.000000e+00> : vector<7x512xf32>
    %286 = tpu.matmul %285, %230, %cst_120 {dimension_numbers = #tpu.dot_dimension_numbers<[1], [0], [0], [1], [0, 0, 1, 1], [], []>} : vector<7x2xf32>, vector<2x512xf32>, vector<7x512xf32> -> vector<7x512xf32>
    %287 = arith.addf %283, %286 : vector<7x512xf32>
    %c1_i32_121 = arith.constant 1 : i32
    %288 = vector.broadcast %c1_i32_121 : i32 to vector<1x512xi32>
    %289 = arith.addi %7, %288 : vector<1x512xi32>
    %c0_i32_122 = arith.constant 0 : i32
    %290 = vector.broadcast %c0_i32_122 : i32 to vector<1x512xi32>
    %291 = arith.cmpi sge, %289, %290 : vector<1x512xi32>
    %c1_i32_123 = arith.constant 1 : i32
    %292 = vector.broadcast %c1_i32_123 : i32 to vector<1x512xi32>
    %293 = arith.addi %7, %292 : vector<1x512xi32>
    %c16_i32_124 = arith.constant 16 : i32
    %294 = vector.broadcast %c16_i32_124 : i32 to vector<1x512xi32>
    %295 = arith.cmpi slt, %293, %294 : vector<1x512xi32>
    %296 = arith.andi %291, %295 : vector<1x512xi1>
    %c511_i32_125 = arith.constant 511 : i32
    %297 = tpu.dynamic_rotate %230 by %c511_i32_125 dim 1 : vector<2x512xf32>, i32 -> vector<2x512xf32>
    %cst_126 = arith.constant 0.000000e+00 : f32
    %298 = vector.shape_cast %296 : vector<1x512xi1> to vector<1x512xi1>
    %299 = vector.broadcast %298 : vector<1x512xi1> to vector<2x512xi1>
    %300 = vector.broadcast %cst_126 : f32 to vector<2x512xf32>
    %301 = arith.select %299, %297, %300 : vector<2x512xi1>, vector<2x512xf32>
    %c4 = arith.constant 4 : index
    %c0_127 = arith.constant 0 : index
    %c0_128 = arith.constant 0 : index
    %302 = vector.load %arg18[%c4, %c0_127, %c0_128] : memref<7x7x2xf32, #tpu.memory_space<vmem>>, vector<1x7x2xf32>
    %303 = vector.shape_cast %302 : vector<1x7x2xf32> to vector<7x2xf32>
    %cst_129 = arith.constant dense<0.000000e+00> : vector<7x512xf32>
    %304 = tpu.matmul %303, %301, %cst_129 {dimension_numbers = #tpu.dot_dimension_numbers<[1], [0], [0], [1], [0, 0, 1, 1], [], []>} : vector<7x2xf32>, vector<2x512xf32>, vector<7x512xf32> -> vector<7x512xf32>
    %305 = arith.addf %287, %304 : vector<7x512xf32>
    %c2_i32_130 = arith.constant 2 : i32
    %306 = vector.broadcast %c2_i32_130 : i32 to vector<1x512xi32>
    %307 = arith.addi %7, %306 : vector<1x512xi32>
    %c0_i32_131 = arith.constant 0 : i32
    %308 = vector.broadcast %c0_i32_131 : i32 to vector<1x512xi32>
    %309 = arith.cmpi sge, %307, %308 : vector<1x512xi32>
    %c2_i32_132 = arith.constant 2 : i32
    %310 = vector.broadcast %c2_i32_132 : i32 to vector<1x512xi32>
    %311 = arith.addi %7, %310 : vector<1x512xi32>
    %c16_i32_133 = arith.constant 16 : i32
    %312 = vector.broadcast %c16_i32_133 : i32 to vector<1x512xi32>
    %313 = arith.cmpi slt, %311, %312 : vector<1x512xi32>
    %314 = arith.andi %309, %313 : vector<1x512xi1>
    %c510_i32 = arith.constant 510 : i32
    %315 = tpu.dynamic_rotate %230 by %c510_i32 dim 1 : vector<2x512xf32>, i32 -> vector<2x512xf32>
    %cst_134 = arith.constant 0.000000e+00 : f32
    %316 = vector.shape_cast %314 : vector<1x512xi1> to vector<1x512xi1>
    %317 = vector.broadcast %316 : vector<1x512xi1> to vector<2x512xi1>
    %318 = vector.broadcast %cst_134 : f32 to vector<2x512xf32>
    %319 = arith.select %317, %315, %318 : vector<2x512xi1>, vector<2x512xf32>
    %c5 = arith.constant 5 : index
    %c0_135 = arith.constant 0 : index
    %c0_136 = arith.constant 0 : index
    %320 = vector.load %arg18[%c5, %c0_135, %c0_136] : memref<7x7x2xf32, #tpu.memory_space<vmem>>, vector<1x7x2xf32>
    %321 = vector.shape_cast %320 : vector<1x7x2xf32> to vector<7x2xf32>
    %cst_137 = arith.constant dense<0.000000e+00> : vector<7x512xf32>
    %322 = tpu.matmul %321, %319, %cst_137 {dimension_numbers = #tpu.dot_dimension_numbers<[1], [0], [0], [1], [0, 0, 1, 1], [], []>} : vector<7x2xf32>, vector<2x512xf32>, vector<7x512xf32> -> vector<7x512xf32>
    %323 = arith.addf %305, %322 : vector<7x512xf32>
    %c3_i32_138 = arith.constant 3 : i32
    %324 = vector.broadcast %c3_i32_138 : i32 to vector<1x512xi32>
    %325 = arith.addi %7, %324 : vector<1x512xi32>
    %c0_i32_139 = arith.constant 0 : i32
    %326 = vector.broadcast %c0_i32_139 : i32 to vector<1x512xi32>
    %327 = arith.cmpi sge, %325, %326 : vector<1x512xi32>
    %c3_i32_140 = arith.constant 3 : i32
    %328 = vector.broadcast %c3_i32_140 : i32 to vector<1x512xi32>
    %329 = arith.addi %7, %328 : vector<1x512xi32>
    %c16_i32_141 = arith.constant 16 : i32
    %330 = vector.broadcast %c16_i32_141 : i32 to vector<1x512xi32>
    %331 = arith.cmpi slt, %329, %330 : vector<1x512xi32>
    %332 = arith.andi %327, %331 : vector<1x512xi1>
    %c509_i32 = arith.constant 509 : i32
    %333 = tpu.dynamic_rotate %230 by %c509_i32 dim 1 : vector<2x512xf32>, i32 -> vector<2x512xf32>
    %cst_142 = arith.constant 0.000000e+00 : f32
    %334 = vector.shape_cast %332 : vector<1x512xi1> to vector<1x512xi1>
    %335 = vector.broadcast %334 : vector<1x512xi1> to vector<2x512xi1>
    %336 = vector.broadcast %cst_142 : f32 to vector<2x512xf32>
    %337 = arith.select %335, %333, %336 : vector<2x512xi1>, vector<2x512xf32>
    %c6 = arith.constant 6 : index
    %c0_143 = arith.constant 0 : index
    %c0_144 = arith.constant 0 : index
    %338 = vector.load %arg18[%c6, %c0_143, %c0_144] : memref<7x7x2xf32, #tpu.memory_space<vmem>>, vector<1x7x2xf32>
    %339 = vector.shape_cast %338 : vector<1x7x2xf32> to vector<7x2xf32>
    %cst_145 = arith.constant dense<0.000000e+00> : vector<7x512xf32>
    %340 = tpu.matmul %339, %337, %cst_145 {dimension_numbers = #tpu.dot_dimension_numbers<[1], [0], [0], [1], [0, 0, 1, 1], [], []>} : vector<7x2xf32>, vector<2x512xf32>, vector<7x512xf32> -> vector<7x512xf32>
    %341 = arith.addf %323, %340 : vector<7x512xf32>
    %342 = vector.extract_strided_slice %341 {offsets = [0, 0], sizes = [1, 512], strides = [1, 1]} : vector<7x512xf32> to vector<1x512xf32>
    %c-3_i32_146 = arith.constant -3 : i32
    %343 = vector.broadcast %c-3_i32_146 : i32 to vector<1x512xi32>
    %344 = arith.addi %11, %343 : vector<1x512xi32>
    %c0_i32_147 = arith.constant 0 : i32
    %345 = vector.broadcast %c0_i32_147 : i32 to vector<1x512xi32>
    %346 = arith.cmpi sge, %344, %345 : vector<1x512xi32>
    %c-3_i32_148 = arith.constant -3 : i32
    %347 = vector.broadcast %c-3_i32_148 : i32 to vector<1x512xi32>
    %348 = arith.addi %11, %347 : vector<1x512xi32>
    %c16_i32_149 = arith.constant 16 : i32
    %349 = vector.broadcast %c16_i32_149 : i32 to vector<1x512xi32>
    %350 = arith.cmpi slt, %348, %349 : vector<1x512xi32>
    %351 = arith.andi %346, %350 : vector<1x512xi1>
    %c48_i32 = arith.constant 48 : i32
    %352 = tpu.dynamic_rotate %342 by %c48_i32 dim 1 : vector<1x512xf32>, i32 -> vector<1x512xf32>
    %cst_150 = arith.constant 0.000000e+00 : f32
    %353 = vector.broadcast %cst_150 : f32 to vector<1x512xf32>
    %354 = arith.select %351, %352, %353 : vector<1x512xi1>, vector<1x512xf32>
    %355 = vector.extract_strided_slice %341 {offsets = [1, 0], sizes = [1, 512], strides = [1, 1]} : vector<7x512xf32> to vector<1x512xf32>
    %c-2_i32_151 = arith.constant -2 : i32
    %356 = vector.broadcast %c-2_i32_151 : i32 to vector<1x512xi32>
    %357 = arith.addi %11, %356 : vector<1x512xi32>
    %c0_i32_152 = arith.constant 0 : i32
    %358 = vector.broadcast %c0_i32_152 : i32 to vector<1x512xi32>
    %359 = arith.cmpi sge, %357, %358 : vector<1x512xi32>
    %c-2_i32_153 = arith.constant -2 : i32
    %360 = vector.broadcast %c-2_i32_153 : i32 to vector<1x512xi32>
    %361 = arith.addi %11, %360 : vector<1x512xi32>
    %c16_i32_154 = arith.constant 16 : i32
    %362 = vector.broadcast %c16_i32_154 : i32 to vector<1x512xi32>
    %363 = arith.cmpi slt, %361, %362 : vector<1x512xi32>
    %364 = arith.andi %359, %363 : vector<1x512xi1>
    %c32_i32 = arith.constant 32 : i32
    %365 = tpu.dynamic_rotate %355 by %c32_i32 dim 1 : vector<1x512xf32>, i32 -> vector<1x512xf32>
    %cst_155 = arith.constant 0.000000e+00 : f32
    %366 = vector.broadcast %cst_155 : f32 to vector<1x512xf32>
    %367 = arith.select %364, %365, %366 : vector<1x512xi1>, vector<1x512xf32>
    %368 = arith.addf %354, %367 : vector<1x512xf32>
    %369 = vector.extract_strided_slice %341 {offsets = [2, 0], sizes = [1, 512], strides = [1, 1]} : vector<7x512xf32> to vector<1x512xf32>
    %c-1_i32_156 = arith.constant -1 : i32
    %370 = vector.broadcast %c-1_i32_156 : i32 to vector<1x512xi32>
    %371 = arith.addi %11, %370 : vector<1x512xi32>
    %c0_i32_157 = arith.constant 0 : i32
    %372 = vector.broadcast %c0_i32_157 : i32 to vector<1x512xi32>
    %373 = arith.cmpi sge, %371, %372 : vector<1x512xi32>
    %c-1_i32_158 = arith.constant -1 : i32
    %374 = vector.broadcast %c-1_i32_158 : i32 to vector<1x512xi32>
    %375 = arith.addi %11, %374 : vector<1x512xi32>
    %c16_i32_159 = arith.constant 16 : i32
    %376 = vector.broadcast %c16_i32_159 : i32 to vector<1x512xi32>
    %377 = arith.cmpi slt, %375, %376 : vector<1x512xi32>
    %378 = arith.andi %373, %377 : vector<1x512xi1>
    %c16_i32_160 = arith.constant 16 : i32
    %379 = tpu.dynamic_rotate %369 by %c16_i32_160 dim 1 : vector<1x512xf32>, i32 -> vector<1x512xf32>
    %cst_161 = arith.constant 0.000000e+00 : f32
    %380 = vector.broadcast %cst_161 : f32 to vector<1x512xf32>
    %381 = arith.select %378, %379, %380 : vector<1x512xi1>, vector<1x512xf32>
    %382 = arith.addf %368, %381 : vector<1x512xf32>
    %383 = vector.extract_strided_slice %341 {offsets = [3, 0], sizes = [1, 512], strides = [1, 1]} : vector<7x512xf32> to vector<1x512xf32>
    %384 = arith.addf %382, %383 : vector<1x512xf32>
    %385 = vector.extract_strided_slice %341 {offsets = [4, 0], sizes = [1, 512], strides = [1, 1]} : vector<7x512xf32> to vector<1x512xf32>
    %c1_i32_162 = arith.constant 1 : i32
    %386 = vector.broadcast %c1_i32_162 : i32 to vector<1x512xi32>
    %387 = arith.addi %11, %386 : vector<1x512xi32>
    %c0_i32_163 = arith.constant 0 : i32
    %388 = vector.broadcast %c0_i32_163 : i32 to vector<1x512xi32>
    %389 = arith.cmpi sge, %387, %388 : vector<1x512xi32>
    %c1_i32_164 = arith.constant 1 : i32
    %390 = vector.broadcast %c1_i32_164 : i32 to vector<1x512xi32>
    %391 = arith.addi %11, %390 : vector<1x512xi32>
    %c16_i32_165 = arith.constant 16 : i32
    %392 = vector.broadcast %c16_i32_165 : i32 to vector<1x512xi32>
    %393 = arith.cmpi slt, %391, %392 : vector<1x512xi32>
    %394 = arith.andi %389, %393 : vector<1x512xi1>
    %c496_i32_166 = arith.constant 496 : i32
    %395 = tpu.dynamic_rotate %385 by %c496_i32_166 dim 1 : vector<1x512xf32>, i32 -> vector<1x512xf32>
    %cst_167 = arith.constant 0.000000e+00 : f32
    %396 = vector.broadcast %cst_167 : f32 to vector<1x512xf32>
    %397 = arith.select %394, %395, %396 : vector<1x512xi1>, vector<1x512xf32>
    %398 = arith.addf %384, %397 : vector<1x512xf32>
    %399 = vector.extract_strided_slice %341 {offsets = [5, 0], sizes = [1, 512], strides = [1, 1]} : vector<7x512xf32> to vector<1x512xf32>
    %c2_i32_168 = arith.constant 2 : i32
    %400 = vector.broadcast %c2_i32_168 : i32 to vector<1x512xi32>
    %401 = arith.addi %11, %400 : vector<1x512xi32>
    %c0_i32_169 = arith.constant 0 : i32
    %402 = vector.broadcast %c0_i32_169 : i32 to vector<1x512xi32>
    %403 = arith.cmpi sge, %401, %402 : vector<1x512xi32>
    %c2_i32_170 = arith.constant 2 : i32
    %404 = vector.broadcast %c2_i32_170 : i32 to vector<1x512xi32>
    %405 = arith.addi %11, %404 : vector<1x512xi32>
    %c16_i32_171 = arith.constant 16 : i32
    %406 = vector.broadcast %c16_i32_171 : i32 to vector<1x512xi32>
    %407 = arith.cmpi slt, %405, %406 : vector<1x512xi32>
    %408 = arith.andi %403, %407 : vector<1x512xi1>
    %c480_i32 = arith.constant 480 : i32
    %409 = tpu.dynamic_rotate %399 by %c480_i32 dim 1 : vector<1x512xf32>, i32 -> vector<1x512xf32>
    %cst_172 = arith.constant 0.000000e+00 : f32
    %410 = vector.broadcast %cst_172 : f32 to vector<1x512xf32>
    %411 = arith.select %408, %409, %410 : vector<1x512xi1>, vector<1x512xf32>
    %412 = arith.addf %398, %411 : vector<1x512xf32>
    %413 = vector.extract_strided_slice %341 {offsets = [6, 0], sizes = [1, 512], strides = [1, 1]} : vector<7x512xf32> to vector<1x512xf32>
    %c3_i32_173 = arith.constant 3 : i32
    %414 = vector.broadcast %c3_i32_173 : i32 to vector<1x512xi32>
    %415 = arith.addi %11, %414 : vector<1x512xi32>
    %c0_i32_174 = arith.constant 0 : i32
    %416 = vector.broadcast %c0_i32_174 : i32 to vector<1x512xi32>
    %417 = arith.cmpi sge, %415, %416 : vector<1x512xi32>
    %c3_i32_175 = arith.constant 3 : i32
    %418 = vector.broadcast %c3_i32_175 : i32 to vector<1x512xi32>
    %419 = arith.addi %11, %418 : vector<1x512xi32>
    %c16_i32_176 = arith.constant 16 : i32
    %420 = vector.broadcast %c16_i32_176 : i32 to vector<1x512xi32>
    %421 = arith.cmpi slt, %419, %420 : vector<1x512xi32>
    %422 = arith.andi %417, %421 : vector<1x512xi1>
    %c464_i32 = arith.constant 464 : i32
    %423 = tpu.dynamic_rotate %413 by %c464_i32 dim 1 : vector<1x512xf32>, i32 -> vector<1x512xf32>
    %cst_177 = arith.constant 0.000000e+00 : f32
    %424 = vector.broadcast %cst_177 : f32 to vector<1x512xf32>
    %425 = arith.select %422, %423, %424 : vector<1x512xi1>, vector<1x512xf32>
    %426 = arith.addf %412, %425 : vector<1x512xf32>
    %c0_178 = arith.constant 0 : index
    %c0_179 = arith.constant 0 : index
    %427 = vector.load %arg19[%c0_178, %c0_179] : memref<1x1xf32, #tpu.memory_space<vmem>>, vector<1x1xf32>
    %428 = vector.broadcast %427 : vector<1x1xf32> to vector<1x512xf32>
    %429 = arith.addf %426, %428 : vector<1x512xf32>
    %430 = arith.negf %429 : vector<1x512xf32>
    %431 = math.exp %430 : vector<1x512xf32>
    %cst_180 = arith.constant 1.000000e+00 : f32
    %432 = vector.broadcast %cst_180 : f32 to vector<1x512xf32>
    %433 = arith.addf %432, %431 : vector<1x512xf32>
    %434 = arith.divf %432, %433 : vector<1x512xf32>
    %435 = vector.broadcast %434 : vector<1x512xf32> to vector<32x512xf32>
    %436 = arith.mulf %216, %435 : vector<32x512xf32>
    %c0_181 = arith.constant 0 : index
    %c0_182 = arith.constant 0 : index
    %437 = vector.load %arg20[%c0_181, %c0_182] : memref<2x32xf32, #tpu.memory_space<vmem>>, vector<2x32xf32>
    %c0_183 = arith.constant 0 : index
    %c0_184 = arith.constant 0 : index
    %438 = vector.load %arg21[%c0_183, %c0_184] : memref<2x1xf32, #tpu.memory_space<vmem>>, vector<2x1xf32>
    %c0_185 = arith.constant 0 : index
    %c0_186 = arith.constant 0 : index
    %439 = vector.load %arg22[%c0_185, %c0_186] : memref<32x2xf32, #tpu.memory_space<vmem>>, vector<32x2xf32>
    %c0_187 = arith.constant 0 : index
    %c0_188 = arith.constant 0 : index
    %440 = vector.load %arg23[%c0_187, %c0_188] : memref<32x1xf32, #tpu.memory_space<vmem>>, vector<32x1xf32>
    %441 = vector.extract_strided_slice %436 {offsets = [0, 0], sizes = [32, 256], strides = [1, 1]} : vector<32x512xf32> to vector<32x256xf32>
    %442 = vector.extract_strided_slice %436 {offsets = [0, 256], sizes = [32, 256], strides = [1, 1]} : vector<32x512xf32> to vector<32x256xf32>
    %cst_189 = arith.constant dense<0.000000e+00> : vector<32xf32>
    %443 = vector.multi_reduction <add>, %441, %cst_189 [1] : vector<32x256xf32> to vector<32xf32>
    %444 = vector.shape_cast %443 : vector<32xf32> to vector<32x1xf32>
    %cst_190 = arith.constant 2.560000e+02 : f32
    %445 = vector.broadcast %cst_190 : f32 to vector<32x1xf32>
    %446 = arith.divf %444, %445 : vector<32x1xf32>
    %cst_191 = arith.constant dense<0.000000e+00> : vector<2x1xf32>
    %447 = tpu.matmul %437, %446, %cst_191 {dimension_numbers = #tpu.dot_dimension_numbers<[1], [0], [0], [1], [0, 0, 1, 1], [], []>} : vector<2x32xf32>, vector<32x1xf32>, vector<2x1xf32> -> vector<2x1xf32>
    %448 = arith.addf %447, %438 : vector<2x1xf32>
    %cst_192 = arith.constant 0.000000e+00 : f32
    %449 = vector.broadcast %cst_192 : f32 to vector<2x1xf32>
    %450 = arith.maximumf %448, %449 : vector<2x1xf32>
    %cst_193 = arith.constant dense<0.000000e+00> : vector<32x1xf32>
    %451 = tpu.matmul %439, %450, %cst_193 {dimension_numbers = #tpu.dot_dimension_numbers<[1], [0], [0], [1], [0, 0, 1, 1], [], []>} : vector<32x2xf32>, vector<2x1xf32>, vector<32x1xf32> -> vector<32x1xf32>
    %452 = arith.addf %451, %440 : vector<32x1xf32>
    %453 = arith.negf %452 : vector<32x1xf32>
    %454 = math.exp %453 : vector<32x1xf32>
    %cst_194 = arith.constant 1.000000e+00 : f32
    %455 = vector.broadcast %cst_194 : f32 to vector<32x1xf32>
    %456 = arith.addf %455, %454 : vector<32x1xf32>
    %457 = arith.divf %455, %456 : vector<32x1xf32>
    %458 = vector.broadcast %457 : vector<32x1xf32> to vector<32x256xf32>
    %459 = arith.mulf %441, %458 : vector<32x256xf32>
    %cst_195 = arith.constant dense<0.000000e+00> : vector<32xf32>
    %460 = vector.multi_reduction <add>, %442, %cst_195 [1] : vector<32x256xf32> to vector<32xf32>
    %461 = vector.shape_cast %460 : vector<32xf32> to vector<32x1xf32>
    %cst_196 = arith.constant 2.560000e+02 : f32
    %462 = vector.broadcast %cst_196 : f32 to vector<32x1xf32>
    %463 = arith.divf %461, %462 : vector<32x1xf32>
    %cst_197 = arith.constant dense<0.000000e+00> : vector<2x1xf32>
    %464 = tpu.matmul %437, %463, %cst_197 {dimension_numbers = #tpu.dot_dimension_numbers<[1], [0], [0], [1], [0, 0, 1, 1], [], []>} : vector<2x32xf32>, vector<32x1xf32>, vector<2x1xf32> -> vector<2x1xf32>
    %465 = arith.addf %464, %438 : vector<2x1xf32>
    %cst_198 = arith.constant 0.000000e+00 : f32
    %466 = vector.broadcast %cst_198 : f32 to vector<2x1xf32>
    %467 = arith.maximumf %465, %466 : vector<2x1xf32>
    %cst_199 = arith.constant dense<0.000000e+00> : vector<32x1xf32>
    %468 = tpu.matmul %439, %467, %cst_199 {dimension_numbers = #tpu.dot_dimension_numbers<[1], [0], [0], [1], [0, 0, 1, 1], [], []>} : vector<32x2xf32>, vector<2x1xf32>, vector<32x1xf32> -> vector<32x1xf32>
    %469 = arith.addf %468, %440 : vector<32x1xf32>
    %470 = arith.negf %469 : vector<32x1xf32>
    %471 = math.exp %470 : vector<32x1xf32>
    %cst_200 = arith.constant 1.000000e+00 : f32
    %472 = vector.broadcast %cst_200 : f32 to vector<32x1xf32>
    %473 = arith.addf %472, %471 : vector<32x1xf32>
    %474 = arith.divf %472, %473 : vector<32x1xf32>
    %475 = vector.broadcast %474 : vector<32x1xf32> to vector<32x256xf32>
    %476 = arith.mulf %442, %475 : vector<32x256xf32>
    %477 = tpu.concatenate %459, %476 in 1 : vector<32x256xf32>, vector<32x256xf32> -> vector<32x512xf32>
    %478 = arith.addf %477, %18 : vector<32x512xf32>
    %c0_201 = arith.constant 0 : index
    %c0_202 = arith.constant 0 : index
    %c0_203 = arith.constant 0 : index
    %479 = vector.load %arg24[%c0_201, %c0_202, %c0_203] : memref<1x32x512xf32, #tpu.memory_space<vmem>>, vector<1x32x512xf32>
    %480 = vector.shape_cast %479 : vector<1x32x512xf32> to vector<32x512xf32>
    %481 = vector.shape_cast %478 : vector<32x512xf32> to vector<1x32x512xf32>
    tpu.vector_store %arg24[%c0_201, %c0_202, %c0_203], %481 {strides = array<i32>} : memref<1x32x512xf32, #tpu.memory_space<vmem>>, vector<1x32x512xf32>,
    return
  }
  func.func @transform_0(%arg0: i32) -> (i32, i32, i32) {
    %c0_i32 = arith.constant 0 : i32
    %c0_i32_0 = arith.constant 0 : i32
    %c0_i32_1 = arith.constant 0 : i32
    return %arg0, %c0_i32, %c0_i32_0 : i32, i32, i32
  }
  func.func @transform_1(%arg0: i32) -> (i32, i32, i32) {
    %c0_i32 = arith.constant 0 : i32
    %c0_i32_0 = arith.constant 0 : i32
    %c0_i32_1 = arith.constant 0 : i32
    return %arg0, %c0_i32, %c0_i32_0 : i32, i32, i32
  }
  func.func @transform_2(%arg0: i32) -> (i32, i32) {
    %c0_i32 = arith.constant 0 : i32
    %c0_i32_0 = arith.constant 0 : i32
    %c0_i32_1 = arith.constant 0 : i32
    return %c0_i32, %c0_i32_0 : i32, i32
  }
  func.func @transform_3(%arg0: i32) -> (i32, i32) {
    %c0_i32 = arith.constant 0 : i32
    %c0_i32_0 = arith.constant 0 : i32
    %c0_i32_1 = arith.constant 0 : i32
    return %c0_i32, %c0_i32_0 : i32, i32
  }
  func.func @transform_4(%arg0: i32) -> (i32, i32) {
    %c0_i32 = arith.constant 0 : i32
    %c0_i32_0 = arith.constant 0 : i32
    %c0_i32_1 = arith.constant 0 : i32
    return %c0_i32, %c0_i32_0 : i32, i32
  }
  func.func @transform_5(%arg0: i32) -> (i32, i32) {
    %c0_i32 = arith.constant 0 : i32
    %c0_i32_0 = arith.constant 0 : i32
    %c0_i32_1 = arith.constant 0 : i32
    return %c0_i32, %c0_i32_0 : i32, i32
  }
  func.func @transform_6(%arg0: i32) -> (i32, i32) {
    %c0_i32 = arith.constant 0 : i32
    %c0_i32_0 = arith.constant 0 : i32
    %c0_i32_1 = arith.constant 0 : i32
    return %c0_i32, %c0_i32_0 : i32, i32
  }
  func.func @transform_7(%arg0: i32) -> (i32, i32) {
    %c0_i32 = arith.constant 0 : i32
    %c0_i32_0 = arith.constant 0 : i32
    %c0_i32_1 = arith.constant 0 : i32
    return %c0_i32, %c0_i32_0 : i32, i32
  }
  func.func @transform_8(%arg0: i32) -> (i32, i32) {
    %c0_i32 = arith.constant 0 : i32
    %c0_i32_0 = arith.constant 0 : i32
    %c0_i32_1 = arith.constant 0 : i32
    return %c0_i32, %c0_i32_0 : i32, i32
  }
  func.func @transform_9(%arg0: i32) -> (i32, i32) {
    %c0_i32 = arith.constant 0 : i32
    %c0_i32_0 = arith.constant 0 : i32
    %c0_i32_1 = arith.constant 0 : i32
    return %c0_i32, %c0_i32_0 : i32, i32
  }
  func.func @transform_10(%arg0: i32) -> (i32, i32) {
    %c0_i32 = arith.constant 0 : i32
    %c0_i32_0 = arith.constant 0 : i32
    %c0_i32_1 = arith.constant 0 : i32
    return %c0_i32, %c0_i32_0 : i32, i32
  }
  func.func @transform_11(%arg0: i32) -> (i32, i32) {
    %c0_i32 = arith.constant 0 : i32
    %c0_i32_0 = arith.constant 0 : i32
    %c0_i32_1 = arith.constant 0 : i32
    return %c0_i32, %c0_i32_0 : i32, i32
  }
  func.func @transform_12(%arg0: i32) -> (i32, i32) {
    %c0_i32 = arith.constant 0 : i32
    %c0_i32_0 = arith.constant 0 : i32
    %c0_i32_1 = arith.constant 0 : i32
    return %c0_i32, %c0_i32_0 : i32, i32
  }
  func.func @transform_13(%arg0: i32) -> (i32, i32) {
    %c0_i32 = arith.constant 0 : i32
    %c0_i32_0 = arith.constant 0 : i32
    %c0_i32_1 = arith.constant 0 : i32
    return %c0_i32, %c0_i32_0 : i32, i32
  }
  func.func @transform_14(%arg0: i32) -> (i32, i32) {
    %c0_i32 = arith.constant 0 : i32
    %c0_i32_0 = arith.constant 0 : i32
    %c0_i32_1 = arith.constant 0 : i32
    return %c0_i32, %c0_i32_0 : i32, i32
  }
  func.func @transform_15(%arg0: i32) -> (i32, i32) {
    %c0_i32 = arith.constant 0 : i32
    %c0_i32_0 = arith.constant 0 : i32
    %c0_i32_1 = arith.constant 0 : i32
    return %c0_i32, %c0_i32_0 : i32, i32
  }
  func.func @transform_16(%arg0: i32) -> (i32, i32) {
    %c0_i32 = arith.constant 0 : i32
    %c0_i32_0 = arith.constant 0 : i32
    %c0_i32_1 = arith.constant 0 : i32
    return %c0_i32, %c0_i32_0 : i32, i32
  }
  func.func @transform_17(%arg0: i32) -> (i32, i32, i32) {
    %c0_i32 = arith.constant 0 : i32
    %c0_i32_0 = arith.constant 0 : i32
    %c0_i32_1 = arith.constant 0 : i32
    %c0_i32_2 = arith.constant 0 : i32
    return %c0_i32, %c0_i32_0, %c0_i32_1 : i32, i32, i32
  }
  func.func @transform_18(%arg0: i32) -> (i32, i32) {
    %c0_i32 = arith.constant 0 : i32
    %c0_i32_0 = arith.constant 0 : i32
    %c0_i32_1 = arith.constant 0 : i32
    return %c0_i32, %c0_i32_0 : i32, i32
  }
  func.func @transform_19(%arg0: i32) -> (i32, i32) {
    %c0_i32 = arith.constant 0 : i32
    %c0_i32_0 = arith.constant 0 : i32
    %c0_i32_1 = arith.constant 0 : i32
    return %c0_i32, %c0_i32_0 : i32, i32
  }
  func.func @transform_20(%arg0: i32) -> (i32, i32) {
    %c0_i32 = arith.constant 0 : i32
    %c0_i32_0 = arith.constant 0 : i32
    %c0_i32_1 = arith.constant 0 : i32
    return %c0_i32, %c0_i32_0 : i32, i32
  }
  func.func @transform_21(%arg0: i32) -> (i32, i32) {
    %c0_i32 = arith.constant 0 : i32
    %c0_i32_0 = arith.constant 0 : i32
    %c0_i32_1 = arith.constant 0 : i32
    return %c0_i32, %c0_i32_0 : i32, i32
  }
  func.func @transform_22(%arg0: i32) -> (i32, i32) {
    %c0_i32 = arith.constant 0 : i32
    %c0_i32_0 = arith.constant 0 : i32
    %c0_i32_1 = arith.constant 0 : i32
    return %c0_i32, %c0_i32_0 : i32, i32
  }
  func.func @transform_23(%arg0: i32) -> (i32, i32, i32) {
    %c0_i32 = arith.constant 0 : i32
    %c0_i32_0 = arith.constant 0 : i32
    %c0_i32_1 = arith.constant 0 : i32
    return %arg0, %c0_i32, %c0_i32_0 : i32, i32, i32
  }
}

</mosaic_0001>

<llo_original>
// kernel: enhanced_fpn_block.1
$region0: #{enhanced_fpn_block.1}
  #allocation0 [shape = 'u32[]', space=smem, size = 0x4, offset = 0x4, fixed_abs, tag = 'smem constant byte address 0x4 - core index']
  #allocation1 [shape = 'u32[144,128]{1,0:T(1,128)}', space=vmem, size = 0x12000, scoped, tag = 'internal scratch']
  #allocation2 [shape = 'f32[1,1]{1,0:T(1,128)S(1)}', space=vmem, size = 0x200, scoped, tag = 'scoped memory for enhanced_fpn_block.1']
  %s0 = inlined_call_operand.vmem [shape: f32[1,16,512], index: 0, kind: input, shape index: {}]
  %s1 = inlined_call_operand.vmem [shape: f32[1,24,512], index: 1, kind: input, shape index: {}]
  %s2 = inlined_call_operand.vmem [shape: f32[64,16], index: 2, kind: input, shape index: {}]
  %s3 = inlined_call_operand.vmem [shape: f32[64,1], index: 3, kind: input, shape index: {}]
  %s4 = inlined_call_operand.vmem [shape: f32[32,24], index: 4, kind: input, shape index: {}]
  %s5 = inlined_call_operand.vmem [shape: f32[32,1], index: 5, kind: input, shape index: {}]
  %s6 = inlined_call_operand.vmem [shape: f32[32,1], index: 6, kind: input, shape index: {}]
  %s7 = inlined_call_operand.vmem [shape: f32[32,1], index: 7, kind: input, shape index: {}]
  %s8 = inlined_call_operand.vmem [shape: f32[32,1], index: 8, kind: input, shape index: {}]
  %s9 = inlined_call_operand.vmem [shape: f32[32,1], index: 9, kind: input, shape index: {}]
  %s10 = inlined_call_operand.vmem [shape: f32[32,1], index: 10, kind: input, shape index: {}]
  %s11 = inlined_call_operand.vmem [shape: f32[32,32], index: 11, kind: input, shape index: {}]
  %s12 = inlined_call_operand.vmem [shape: f32[96,96], index: 12, kind: input, shape index: {}]
  %s13 = inlined_call_operand.vmem [shape: f32[4,32], index: 13, kind: input, shape index: {}]
  %s14 = inlined_call_operand.vmem [shape: f32[4,1], index: 14, kind: input, shape index: {}]
  %s15 = inlined_call_operand.vmem [shape: f32[32,4], index: 15, kind: input, shape index: {}]
  %s16 = inlined_call_operand.vmem [shape: f32[32,1], index: 16, kind: input, shape index: {}]
  %s17 = inlined_call_operand.vmem [shape: f32[7,7,2], index: 17, kind: input, shape index: {}]
  %s18 = inlined_call_operand.<no memory space> [shape: f32[1,1], index: 18, kind: input, shape index: {}]
  %s19 = inlined_call_operand.vmem [shape: f32[2,32], index: 19, kind: input, shape index: {}]
  %s20 = inlined_call_operand.vmem [shape: f32[2,1], index: 20, kind: input, shape index: {}]
  %s21 = inlined_call_operand.vmem [shape: f32[32,2], index: 21, kind: input, shape index: {}]
  %s22 = inlined_call_operand.vmem [shape: f32[32,1], index: 22, kind: input, shape index: {}]
  %s23 = inlined_call_operand.vmem [shape: f32[1,32,512], index: 23, kind: output, shape index: {}]
  %s24 = sld [smem:[#allocation0]]
  $region102: #{enhanced_fpn_block.1} parent=0
    _
  %s26 = ssub.s32 1, %s24
  %s27 = scalar_select 0, %s26, %s24
  %v28 = vstv %s18
  %29 = vst [vmem:[#allocation2] sm:$0x1] %v28
  // Predicated region
  $region2: #{enhanced_fpn_block.1} parent=0 // pred_check
    _
  $region3: #{enhanced_fpn_block.1} parent=0 // pred_check_branch
    %31 = sbr.rel (0) target = $region5
  $region4: #{enhanced_fpn_block.1} parent=0 // pred_region
    _
  $region5: #{enhanced_fpn_block.1} parent=0 // pred_fallthru
    _
  // Predicated region
  $region6: #{enhanced_fpn_block.1} parent=0 // pred_check
    _
  $region7: #{enhanced_fpn_block.1} parent=0 // pred_check_branch
    %33 = sbr.rel (0) target = $region9
  $region8: #{enhanced_fpn_block.1} parent=0 // pred_region
    _
  $region9: #{enhanced_fpn_block.1} parent=0 // pred_fallthru
    _
  // Predicated region
  $region10: #{enhanced_fpn_block.1} parent=0 // pred_check
    _
  $region11: #{enhanced_fpn_block.1} parent=0 // pred_check_branch
    %35 = sbr.rel (0) target = $region13
  $region12: #{enhanced_fpn_block.1} parent=0 // pred_region
    _
  $region13: #{enhanced_fpn_block.1} parent=0 // pred_fallthru
    _
  // Predicated region
  $region14: #{enhanced_fpn_block.1} parent=0 // pred_check
    _
  $region15: #{enhanced_fpn_block.1} parent=0 // pred_check_branch
    %37 = sbr.rel (0) target = $region17
  $region16: #{enhanced_fpn_block.1} parent=0 // pred_region
    _
  $region17: #{enhanced_fpn_block.1} parent=0 // pred_fallthru
    _
  // Predicated region
  $region18: #{enhanced_fpn_block.1} parent=0 // pred_check
    _
  $region19: #{enhanced_fpn_block.1} parent=0 // pred_check_branch
    %39 = sbr.rel (0) target = $region21
  $region20: #{enhanced_fpn_block.1} parent=0 // pred_region
    _
  $region21: #{enhanced_fpn_block.1} parent=0 // pred_fallthru
    _
  // Predicated region
  $region22: #{enhanced_fpn_block.1} parent=0 // pred_check
    _
  $region23: #{enhanced_fpn_block.1} parent=0 // pred_check_branch
    %41 = sbr.rel (0) target = $region25
  $region24: #{enhanced_fpn_block.1} parent=0 // pred_region
    _
  $region25: #{enhanced_fpn_block.1} parent=0 // pred_fallthru
    _
  // Predicated region
  $region26: #{enhanced_fpn_block.1} parent=0 // pred_check
    _
  $region27: #{enhanced_fpn_block.1} parent=0 // pred_check_branch
    %43 = sbr.rel (0) target = $region29
  $region28: #{enhanced_fpn_block.1} parent=0 // pred_region
    _
  $region29: #{enhanced_fpn_block.1} parent=0 // pred_fallthru
    _
  // Predicated region
  $region30: #{enhanced_fpn_block.1} parent=0 // pred_check
    _
  $region31: #{enhanced_fpn_block.1} parent=0 // pred_check_branch
    %45 = sbr.rel (0) target = $region33
  $region32: #{enhanced_fpn_block.1} parent=0 // pred_region
    _
  $region33: #{enhanced_fpn_block.1} parent=0 // pred_fallthru
    _
  // Predicated region
  $region34: #{enhanced_fpn_block.1} parent=0 // pred_check
    _
  $region35: #{enhanced_fpn_block.1} parent=0 // pred_check_branch
    %47 = sbr.rel (0) target = $region37
  $region36: #{enhanced_fpn_block.1} parent=0 // pred_region
    _
  $region37: #{enhanced_fpn_block.1} parent=0 // pred_fallthru
    _
  // Predicated region
  $region38: #{enhanced_fpn_block.1} parent=0 // pred_check
    _
  $region39: #{enhanced_fpn_block.1} parent=0 // pred_check_branch
    %49 = sbr.rel (0) target = $region41
  $region40: #{enhanced_fpn_block.1} parent=0 // pred_region
    _
  $region41: #{enhanced_fpn_block.1} parent=0 // pred_fallthru
    _
  // Predicated region
  $region42: #{enhanced_fpn_block.1} parent=0 // pred_check
    _
  $region43: #{enhanced_fpn_block.1} parent=0 // pred_check_branch
    %51 = sbr.rel (0) target = $region45
  $region44: #{enhanced_fpn_block.1} parent=0 // pred_region
    _
  $region45: #{enhanced_fpn_block.1} parent=0 // pred_fallthru
    _
  // Predicated region
  $region46: #{enhanced_fpn_block.1} parent=0 // pred_check
    _
  $region47: #{enhanced_fpn_block.1} parent=0 // pred_check_branch
    %53 = sbr.rel (0) target = $region49
  $region48: #{enhanced_fpn_block.1} parent=0 // pred_region
    _
  $region49: #{enhanced_fpn_block.1} parent=0 // pred_fallthru
    _
  // Predicated region
  $region50: #{enhanced_fpn_block.1} parent=0 // pred_check
    _
  $region51: #{enhanced_fpn_block.1} parent=0 // pred_check_branch
    %55 = sbr.rel (0) target = $region53
  $region52: #{enhanced_fpn_block.1} parent=0 // pred_region
    _
  $region53: #{enhanced_fpn_block.1} parent=0 // pred_fallthru
    _
  // Predicated region
  $region54: #{enhanced_fpn_block.1} parent=0 // pred_check
    _
  $region55: #{enhanced_fpn_block.1} parent=0 // pred_check_branch
    %57 = sbr.rel (0) target = $region57
  $region56: #{enhanced_fpn_block.1} parent=0 // pred_region
    _
  $region57: #{enhanced_fpn_block.1} parent=0 // pred_fallthru
    _
  // Predicated region
  $region58: #{enhanced_fpn_block.1} parent=0 // pred_check
    _
  $region59: #{enhanced_fpn_block.1} parent=0 // pred_check_branch
    %59 = sbr.rel (0) target = $region61
  $region60: #{enhanced_fpn_block.1} parent=0 // pred_region
    _
  $region61: #{enhanced_fpn_block.1} parent=0 // pred_fallthru
    _
  // Predicated region
  $region62: #{enhanced_fpn_block.1} parent=0 // pred_check
    _
  $region63: #{enhanced_fpn_block.1} parent=0 // pred_check_branch
    %61 = sbr.rel (0) target = $region65
  $region64: #{enhanced_fpn_block.1} parent=0 // pred_region
    _
  $region65: #{enhanced_fpn_block.1} parent=0 // pred_fallthru
    _
  // Predicated region
  $region66: #{enhanced_fpn_block.1} parent=0 // pred_check
    _
  $region67: #{enhanced_fpn_block.1} parent=0 // pred_check_branch
    %63 = sbr.rel (0) target = $region69
  $region68: #{enhanced_fpn_block.1} parent=0 // pred_region
    _
  $region69: #{enhanced_fpn_block.1} parent=0 // pred_fallthru
    _
  // Predicated region
  $region70: #{enhanced_fpn_block.1} parent=0 // pred_check
    _
  $region71: #{enhanced_fpn_block.1} parent=0 // pred_check_branch
    %65 = sbr.rel (0) target = $region73
  $region72: #{enhanced_fpn_block.1} parent=0 // pred_region
    _
  $region73: #{enhanced_fpn_block.1} parent=0 // pred_fallthru
    _
  // Predicated region
  $region74: #{enhanced_fpn_block.1} parent=0 // pred_check
    _
  $region75: #{enhanced_fpn_block.1} parent=0 // pred_check_branch
    %67 = sbr.rel (0) target = $region77
  $region76: #{enhanced_fpn_block.1} parent=0 // pred_region
    _
  $region77: #{enhanced_fpn_block.1} parent=0 // pred_fallthru
    _
  // Predicated region
  $region78: #{enhanced_fpn_block.1} parent=0 // pred_check
    _
  $region79: #{enhanced_fpn_block.1} parent=0 // pred_check_branch
    %69 = sbr.rel (0) target = $region81
  $region80: #{enhanced_fpn_block.1} parent=0 // pred_region
    _
  $region81: #{enhanced_fpn_block.1} parent=0 // pred_fallthru
    _
  // Predicated region
  $region82: #{enhanced_fpn_block.1} parent=0 // pred_check
    _
  $region83: #{enhanced_fpn_block.1} parent=0 // pred_check_branch
    %71 = sbr.rel (0) target = $region85
  $region84: #{enhanced_fpn_block.1} parent=0 // pred_region
    _
  $region85: #{enhanced_fpn_block.1} parent=0 // pred_fallthru
    _
  // Predicated region
  $region86: #{enhanced_fpn_block.1} parent=0 // pred_check
    _
  $region87: #{enhanced_fpn_block.1} parent=0 // pred_check_branch
    %73 = sbr.rel (0) target = $region89
  $region88: #{enhanced_fpn_block.1} parent=0 // pred_region
    _
  $region89: #{enhanced_fpn_block.1} parent=0 // pred_fallthru
    _
  // Predicated region
  $region90: #{enhanced_fpn_block.1} parent=0 // pred_check
    _
  $region91: #{enhanced_fpn_block.1} parent=0 // pred_check_branch
    %75 = sbr.rel (0) target = $region93
  $region92: #{enhanced_fpn_block.1} parent=0 // pred_region
    _
  $region93: #{enhanced_fpn_block.1} parent=0 // pred_fallthru
    _
  %v76 = vld [vmem:[%s0] sm:$0xff]
  %v77 = vld [vmem:[%s0 + $0x8] sm:$0xff]
  %v78 = vld [vmem:[%s0 + $0x10] sm:$0xff]
  %v79 = vld [vmem:[%s0 + $0x18] sm:$0xff]
  %v80 = vld [vmem:[%s0 + $0x20] sm:$0xff]
  %v81 = vld [vmem:[%s0 + $0x28] sm:$0xff]
  %v82 = vld [vmem:[%s0 + $0x30] sm:$0xff]
  %v83 = vld [vmem:[%s0 + $0x38] sm:$0xff]
  %v84 = vld [vmem:[%s1] sm:$0xff]
  %v85 = vld [vmem:[%s1 + $0x8] sm:$0xff]
  %v86 = vld [vmem:[%s1 + $0x10] sm:$0xff]
  %v87 = vld [vmem:[%s1 + $0x18] sm:$0xff]
  %v88 = vld [vmem:[%s1 + $0x20] sm:$0xff]
  %v89 = vld [vmem:[%s1 + $0x28] sm:$0xff]
  %v90 = vld [vmem:[%s1 + $0x30] sm:$0xff]
  %v91 = vld [vmem:[%s1 + $0x38] sm:$0xff]
  %v92 = vld [vmem:[%s1 + $0x40] sm:$0xff]
  %v93 = vld [vmem:[%s1 + $0x48] sm:$0xff]
  %v94 = vld [vmem:[%s1 + $0x50] sm:$0xff]
  %v95 = vld [vmem:[%s1 + $0x58] sm:$0xff]
  %v96 = vld [vmem:[%s11] sm:$0xff]
  %v97 = vld [vmem:[%s11 + $0x8] sm:$0xff]
  %v98 = vld [vmem:[%s11 + $0x10] sm:$0xff]
  %v99 = vld [vmem:[%s11 + $0x18] sm:$0xff]
  %v100 = vlaneseq
  %v101 = vand.u32 %v100, 127
  %v102 = vadd.s32 %v101, 128
  %v103 = vadd.s32 %v101, 256
  %v104 = vadd.s32 %v101, 384
  %v105 = vand.u32 %v101, 15
  %v106 = vand.u32 %v102, 15
  %v107 = vand.u32 %v103, 15
  %v108 = vand.u32 %v104, 15
  %v109 = vshra.s32 %v101, 4
  %v110 = vshra.s32 %v102, 4
  %v111 = vshra.s32 %v103, 4
  %v112 = vshra.s32 %v104, 4
  %v113 = vand.u32 %v109, 15
  %v114 = vand.u32 %v110, 15
  %v115 = vand.u32 %v111, 15
  %v116 = vand.u32 %v112, 15
  %v117 = vld [vmem:[%s2] sm:$0xff]
  %v118 = vld [vmem:[%s2 + $0x8] sm:$0xff]
  %v119 = vld [vmem:[%s2 + $0x10] sm:$0xff]
  %v120 = vld [vmem:[%s2 + $0x18] sm:$0xff]
  %v121 = vld [vmem:[%s2 + $0x20] sm:$0xff]
  %v122 = vld [vmem:[%s2 + $0x28] sm:$0xff]
  %v123 = vld [vmem:[%s2 + $0x30] sm:$0xff]
  %v124 = vld [vmem:[%s2 + $0x38] sm:$0xff]
  %v125 = vld [vmem:[%s3] sm:$0xff]
  %v126 = vld [vmem:[%s3 + $0x8] sm:$0xff]
  %v127 = vld [vmem:[%s3 + $0x10] sm:$0xff]
  %v128 = vld [vmem:[%s3 + $0x18] sm:$0xff]
  %v129 = vld [vmem:[%s3 + $0x20] sm:$0xff]
  %v130 = vld [vmem:[%s3 + $0x28] sm:$0xff]
  %v131 = vld [vmem:[%s3 + $0x30] sm:$0xff]
  %v132 = vld [vmem:[%s3 + $0x38] sm:$0xff]
  %134 = vset.pattern.permute.xlu0 0
  %135 = vperm.xlu0 %134, %v125
  %v136 = vpop.permute.xlu0 %135
  %139 = vset.pattern.permute.xlu0 0
  %140 = vperm.xlu0 %139, %v126
  %v141 = vpop.permute.xlu0 %140
  %144 = vset.pattern.permute.xlu0 0
  %145 = vperm.xlu0 %144, %v127
  %v146 = vpop.permute.xlu0 %145
  %149 = vset.pattern.permute.xlu0 0
  %150 = vperm.xlu0 %149, %v128
  %v151 = vpop.permute.xlu0 %150
  %154 = vset.pattern.permute.xlu0 0
  %155 = vperm.xlu0 %154, %v129
  %v156 = vpop.permute.xlu0 %155
  %159 = vset.pattern.permute.xlu0 0
  %160 = vperm.xlu0 %159, %v130
  %v161 = vpop.permute.xlu0 %160
  %164 = vset.pattern.permute.xlu0 0
  %165 = vperm.xlu0 %164, %v131
  %v166 = vpop.permute.xlu0 %165
  %169 = vset.pattern.permute.xlu0 0
  %170 = vperm.xlu0 %169, %v132
  %v171 = vpop.permute.xlu0 %170
  %vm173 = vcmask 130048
  %v175 = vsel %vm173, %v117, 0
  %v178 = vsel %vm173, %v118, 0
  %v181 = vsel %vm173, %v119, 0
  %v184 = vsel %vm173, %v120, 0
  %v187 = vsel %vm173, %v121, 0
  %v190 = vsel %vm173, %v122, 0
  %v193 = vsel %vm173, %v123, 0
  %v196 = vsel %vm173, %v124, 0
  %198 = vmatprep.subr.mxu0 0.0
  %199 = vmatpush1.msra.mxu0 0.0
  %200 = vmatprep.subr.mxu0 0.0
  %201 = vmatpush1.msra.mxu0 0.0
  %202 = vmatprep.subr.mxu0 0.0
  %203 = vmatpush1.msra.mxu0 0.0
  %204 = vmatprep.subr.mxu0 0.0
  %205 = vmatpush1.msra.mxu0 0.0
  %206 = vmatprep.subr.mxu0 0.0
  %207 = vmatpush1.msra.mxu0 0.0
  %208 = vmatprep.subr.mxu0 0.0
  %209 = vmatpush1.msra.mxu0 0.0
  %210 = vmatprep.subr.mxu0 0.0
  %211 = vmatpush1.msra.mxu0 0.0
  %212 = vmatprep.subr.mxu0 0.0
  %213 = vmatpush1.msra.mxu0 0.0
  %214 = vmatprep.subr.mxu0 0.0
  %215 = vmatpush1.msra.mxu0 0.0
  %216 = vmatprep.subr.mxu0 0.0
  %217 = vmatpush1.msra.mxu0 0.0
  %218 = vmatprep.subr.mxu0 0.0
  %219 = vmatpush1.msra.mxu0 0.0
  %220 = vmatprep.subr.mxu0 0.0
  %221 = vmatpush1.msra.mxu0 0.0
  %222 = vmatprep.subr.mxu0 0.0
  %223 = vmatpush1.msra.mxu0 0.0
  %224 = vmatprep.subr.mxu0 0.0
  %225 = vmatpush1.msra.mxu0 0.0
  %226 = vmatprep.subr.mxu0 %v81
  %227 = vmatpush1.msra.mxu0 %v80
  %228 = vmatprep.subr.mxu0 %v77
  %229 = vmatpush1.msra.mxu0 %v76
  %230 = vmatprep.subr.mxu0 0.0
  %231 = vmatpush2.msra.mxu0 0.0
  %232 = vmatprep.subr.mxu0 0.0
  %233 = vmatpush2.msra.mxu0 0.0
  %234 = vmatprep.subr.mxu0 0.0
  %235 = vmatpush2.msra.mxu0 0.0
  %236 = vmatprep.subr.mxu0 0.0
  %237 = vmatpush2.msra.mxu0 0.0
  %238 = vmatprep.subr.mxu0 0.0
  %239 = vmatpush2.msra.mxu0 0.0
  %240 = vmatprep.subr.mxu0 0.0
  %241 = vmatpush2.msra.mxu0 0.0
  %242 = vmatprep.subr.mxu0 0.0
  %243 = vmatpush2.msra.mxu0 0.0
  %244 = vmatprep.subr.mxu0 0.0
  %245 = vmatpush2.msra.mxu0 0.0
  %246 = vmatprep.subr.mxu0 0.0
  %247 = vmatpush2.msra.mxu0 0.0
  %248 = vmatprep.subr.mxu0 0.0
  %249 = vmatpush2.msra.mxu0 0.0
  %250 = vmatprep.subr.mxu0 0.0
  %251 = vmatpush2.msra.mxu0 0.0
  %252 = vmatprep.subr.mxu0 0.0
  %253 = vmatpush2.msra.mxu0 0.0
  %254 = vmatprep.subr.mxu0 0.0
  %255 = vmatpush2.msra.mxu0 0.0
  %256 = vmatprep.subr.mxu0 0.0
  %257 = vmatpush2.msra.mxu0 0.0
  %258 = vmatprep.subr.mxu0 0.0
  %259 = vmatpush2.msra.mxu0 0.0
  %260 = vmatprep.subr.mxu0 0.0
  %261 = vmatpush2.msra.mxu0 0.0
  %262 = vmatprep.mubr.f32.mxu0 0.0
  %263 = vmatmul.mubr.f32.gmra.mxu0 %v175
  %v264 = vpop.f32.mrf.mxu0
  %v265 = vadd.f32 %v136, %v264
  %v266 = vpop.f32.mrf.mxu0
  %v267 = vadd.f32 %v136, %v266
  %268 = vmatprep.mubr.f32.mxu0 0.0
  %269 = vmatmul.mubr.f32.gmra.mxu0 %v178
  %v270 = vpop.f32.mrf.mxu0
  %v271 = vadd.f32 %v141, %v270
  %v272 = vpop.f32.mrf.mxu0
  %v273 = vadd.f32 %v141, %v272
  %274 = vmatprep.mubr.f32.mxu0 0.0
  %275 = vmatmul.mubr.f32.gmra.mxu0 %v181
  %v276 = vpop.f32.mrf.mxu0
  %v277 = vadd.f32 %v146, %v276
  %v278 = vpop.f32.mrf.mxu0
  %v279 = vadd.f32 %v146, %v278
  %280 = vmatprep.mubr.f32.mxu0 0.0
  %281 = vmatmul.mubr.f32.gmra.mxu0 %v184
  %v282 = vpop.f32.mrf.mxu0
  %v283 = vadd.f32 %v151, %v282
  %v284 = vpop.f32.mrf.mxu0
  %v285 = vadd.f32 %v151, %v284
  %286 = vmatprep.mubr.f32.mxu0 0.0
  %287 = vmatmul.mubr.f32.gmra.mxu0 %v187
  %v288 = vpop.f32.mrf.mxu0
  %v289 = vadd.f32 %v156, %v288
  %v290 = vpop.f32.mrf.mxu0
  %v291 = vadd.f32 %v156, %v290
  %292 = vmatprep.mubr.f32.mxu0 0.0
  %293 = vmatmul.mubr.f32.gmra.mxu0 %v190
  %v294 = vpop.f32.mrf.mxu0
  %v295 = vadd.f32 %v161, %v294
  %v296 = vpop.f32.mrf.mxu0
  %v297 = vadd.f32 %v161, %v296
  %298 = vmatprep.mubr.f32.mxu0 0.0
  %299 = vmatmul.mubr.f32.gmra.mxu0 %v193
  %v300 = vpop.f32.mrf.mxu0
  %v301 = vadd.f32 %v166, %v300
  %v302 = vpop.f32.mrf.mxu0
  %v303 = vadd.f32 %v166, %v302
  %304 = vmatprep.mubr.f32.mxu0 0.0
  %305 = vmatmul.mubr.f32.gmra.mxu0 %v196
  %v306 = vpop.f32.mrf.mxu0
  %v307 = vadd.f32 %v171, %v306
  %v308 = vpop.f32.mrf.mxu0
  %v309 = vadd.f32 %v171, %v308
  %310 = vdwg.mxu0
  %311 = vmatprep.subr.mxu0 0.0
  %312 = vmatpush1.msra.mxu0 0.0
  %313 = vmatprep.subr.mxu0 0.0
  %314 = vmatpush1.msra.mxu0 0.0
  %315 = vmatprep.subr.mxu0 0.0
  %316 = vmatpush1.msra.mxu0 0.0
  %317 = vmatprep.subr.mxu0 0.0
  %318 = vmatpush1.msra.mxu0 0.0
  %319 = vmatprep.subr.mxu0 0.0
  %320 = vmatpush1.msra.mxu0 0.0
  %321 = vmatprep.subr.mxu0 0.0
  %322 = vmatpush1.msra.mxu0 0.0
  %323 = vmatprep.subr.mxu0 0.0
  %324 = vmatpush1.msra.mxu0 0.0
  %325 = vmatprep.subr.mxu0 0.0
  %326 = vmatpush1.msra.mxu0 0.0
  %327 = vmatprep.subr.mxu0 0.0
  %328 = vmatpush1.msra.mxu0 0.0
  %329 = vmatprep.subr.mxu0 0.0
  %330 = vmatpush1.msra.mxu0 0.0
  %331 = vmatprep.subr.mxu0 0.0
  %332 = vmatpush1.msra.mxu0 0.0
  %333 = vmatprep.subr.mxu0 0.0
  %334 = vmatpush1.msra.mxu0 0.0
  %335 = vmatprep.subr.mxu0 0.0
  %336 = vmatpush1.msra.mxu0 0.0
  %337 = vmatprep.subr.mxu0 0.0
  %338 = vmatpush1.msra.mxu0 0.0
  %339 = vmatprep.subr.mxu0 %v83
  %340 = vmatpush1.msra.mxu0 %v82
  %341 = vmatprep.subr.mxu0 %v79
  %342 = vmatpush1.msra.mxu0 %v78
  %343 = vmatprep.subr.mxu0 0.0
  %344 = vmatpush2.msra.mxu0 0.0
  %345 = vmatprep.subr.mxu0 0.0
  %346 = vmatpush2.msra.mxu0 0.0
  %347 = vmatprep.subr.mxu0 0.0
  %348 = vmatpush2.msra.mxu0 0.0
  %349 = vmatprep.subr.mxu0 0.0
  %350 = vmatpush2.msra.mxu0 0.0
  %351 = vmatprep.subr.mxu0 0.0
  %352 = vmatpush2.msra.mxu0 0.0
  %353 = vmatprep.subr.mxu0 0.0
  %354 = vmatpush2.msra.mxu0 0.0
  %355 = vmatprep.subr.mxu0 0.0
  %356 = vmatpush2.msra.mxu0 0.0
  %357 = vmatprep.subr.mxu0 0.0
  %358 = vmatpush2.msra.mxu0 0.0
  %359 = vmatprep.subr.mxu0 0.0
  %360 = vmatpush2.msra.mxu0 0.0
  %361 = vmatprep.subr.mxu0 0.0
  %362 = vmatpush2.msra.mxu0 0.0
  %363 = vmatprep.subr.mxu0 0.0
  %364 = vmatpush2.msra.mxu0 0.0
  %365 = vmatprep.subr.mxu0 0.0
  %366 = vmatpush2.msra.mxu0 0.0
  %367 = vmatprep.subr.mxu0 0.0
  %368 = vmatpush2.msra.mxu0 0.0
  %369 = vmatprep.subr.mxu0 0.0
  %370 = vmatpush2.msra.mxu0 0.0
  %371 = vmatprep.subr.mxu0 0.0
  %372 = vmatpush2.msra.mxu0 0.0
  %373 = vmatprep.subr.mxu0 0.0
  %374 = vmatpush2.msra.mxu0 0.0
  %375 = vmatprep.mubr.f32.mxu0 0.0
  %376 = vmatmul.mubr.f32.gmra.mxu0 %v175
  %v377 = vpop.f32.mrf.mxu0
  %v378 = vadd.f32 %v136, %v377
  %v379 = vpop.f32.mrf.mxu0
  %v380 = vadd.f32 %v136, %v379
  %381 = vmatprep.mubr.f32.mxu0 0.0
  %382 = vmatmul.mubr.f32.gmra.mxu0 %v178
  %v383 = vpop.f32.mrf.mxu0
  %v384 = vadd.f32 %v141, %v383
  %v385 = vpop.f32.mrf.mxu0
  %v386 = vadd.f32 %v141, %v385
  %387 = vmatprep.mubr.f32.mxu0 0.0
  %388 = vmatmul.mubr.f32.gmra.mxu0 %v181
  %v389 = vpop.f32.mrf.mxu0
  %v390 = vadd.f32 %v146, %v389
  %v391 = vpop.f32.mrf.mxu0
  %v392 = vadd.f32 %v146, %v391
  %393 = vmatprep.mubr.f32.mxu0 0.0
  %394 = vmatmul.mubr.f32.gmra.mxu0 %v184
  %v395 = vpop.f32.mrf.mxu0
  %v396 = vadd.f32 %v151, %v395
  %v397 = vpop.f32.mrf.mxu0
  %v398 = vadd.f32 %v151, %v397
  %399 = vmatprep.mubr.f32.mxu0 0.0
  %400 = vmatmul.mubr.f32.gmra.mxu0 %v187
  %v401 = vpop.f32.mrf.mxu0
  %v402 = vadd.f32 %v156, %v401
  %v403 = vpop.f32.mrf.mxu0
  %v404 = vadd.f32 %v156, %v403
  %405 = vmatprep.mubr.f32.mxu0 0.0
  %406 = vmatmul.mubr.f32.gmra.mxu0 %v190
  %v407 = vpop.f32.mrf.mxu0
  %v408 = vadd.f32 %v161, %v407
  %v409 = vpop.f32.mrf.mxu0
  %v410 = vadd.f32 %v161, %v409
  %411 = vmatprep.mubr.f32.mxu0 0.0
  %412 = vmatmul.mubr.f32.gmra.mxu0 %v193
  %v413 = vpop.f32.mrf.mxu0
  %v414 = vadd.f32 %v166, %v413
  %v415 = vpop.f32.mrf.mxu0
  %v416 = vadd.f32 %v166, %v415
  %417 = vmatprep.mubr.f32.mxu0 0.0
  %418 = vmatmul.mubr.f32.gmra.mxu0 %v196
  %v419 = vpop.f32.mrf.mxu0
  %v420 = vadd.f32 %v171, %v419
  %v421 = vpop.f32.mrf.mxu0
  %v422 = vadd.f32 %v171, %v421
  %423 = vdwg.mxu0
  %v424 = vld [vmem:[%s4] sm:$0xff]
  %v425 = vld [vmem:[%s4 + $0x8] sm:$0xff]
  %v426 = vld [vmem:[%s4 + $0x10] sm:$0xff]
  %v427 = vld [vmem:[%s4 + $0x18] sm:$0xff]
  %v428 = vld [vmem:[%s5] sm:$0xff]
  %v429 = vld [vmem:[%s5 + $0x8] sm:$0xff]
  %v430 = vld [vmem:[%s5 + $0x10] sm:$0xff]
  %v431 = vld [vmem:[%s5 + $0x18] sm:$0xff]
  %433 = vset.pattern.permute.xlu0 0
  %434 = vperm.xlu0 %433, %v428
  %v435 = vpop.permute.xlu0 %434
  %438 = vset.pattern.permute.xlu0 0
  %439 = vperm.xlu0 %438, %v429
  %v440 = vpop.permute.xlu0 %439
  %443 = vset.pattern.permute.xlu0 0
  %444 = vperm.xlu0 %443, %v430
  %v445 = vpop.permute.xlu0 %444
  %448 = vset.pattern.permute.xlu0 0
  %449 = vperm.xlu0 %448, %v431
  %v450 = vpop.permute.xlu0 %449
  %vm452 = vcmask 195584
  %v454 = vsel %vm452, %v424, 0
  %v457 = vsel %vm452, %v425, 0
  %v460 = vsel %vm452, %v426, 0
  %v463 = vsel %vm452, %v427, 0
  %465 = vmatprep.subr.mxu0 0.0
  %466 = vmatpush1.msra.mxu0 0.0
  %467 = vmatprep.subr.mxu0 0.0
  %468 = vmatpush1.msra.mxu0 0.0
  %469 = vmatprep.subr.mxu0 0.0
  %470 = vmatpush1.msra.mxu0 0.0
  %471 = vmatprep.subr.mxu0 0.0
  %472 = vmatpush1.msra.mxu0 0.0
  %473 = vmatprep.subr.mxu0 0.0
  %474 = vmatpush1.msra.mxu0 0.0
  %475 = vmatprep.subr.mxu0 0.0
  %476 = vmatpush1.msra.mxu0 0.0
  %477 = vmatprep.subr.mxu0 0.0
  %478 = vmatpush1.msra.mxu0 0.0
  %479 = vmatprep.subr.mxu0 0.0
  %480 = vmatpush1.msra.mxu0 0.0
  %481 = vmatprep.subr.mxu0 0.0
  %482 = vmatpush1.msra.mxu0 0.0
  %483 = vmatprep.subr.mxu0 0.0
  %484 = vmatpush1.msra.mxu0 0.0
  %485 = vmatprep.subr.mxu0 0.0
  %486 = vmatpush1.msra.mxu0 0.0
  %487 = vmatprep.subr.mxu0 0.0
  %488 = vmatpush1.msra.mxu0 0.0
  %489 = vmatprep.subr.mxu0 0.0
  %490 = vmatpush1.msra.mxu0 0.0
  %491 = vmatprep.subr.mxu0 %v93
  %492 = vmatpush1.msra.mxu0 %v92
  %493 = vmatprep.subr.mxu0 %v89
  %494 = vmatpush1.msra.mxu0 %v88
  %495 = vmatprep.subr.mxu0 %v85
  %496 = vmatpush1.msra.mxu0 %v84
  %497 = vmatprep.subr.mxu0 0.0
  %498 = vmatpush2.msra.mxu0 0.0
  %499 = vmatprep.subr.mxu0 0.0
  %500 = vmatpush2.msra.mxu0 0.0
  %501 = vmatprep.subr.mxu0 0.0
  %502 = vmatpush2.msra.mxu0 0.0
  %503 = vmatprep.subr.mxu0 0.0
  %504 = vmatpush2.msra.mxu0 0.0
  %505 = vmatprep.subr.mxu0 0.0
  %506 = vmatpush2.msra.mxu0 0.0
  %507 = vmatprep.subr.mxu0 0.0
  %508 = vmatpush2.msra.mxu0 0.0
  %509 = vmatprep.subr.mxu0 0.0
  %510 = vmatpush2.msra.mxu0 0.0
  %511 = vmatprep.subr.mxu0 0.0
  %512 = vmatpush2.msra.mxu0 0.0
  %513 = vmatprep.subr.mxu0 0.0
  %514 = vmatpush2.msra.mxu0 0.0
  %515 = vmatprep.subr.mxu0 0.0
  %516 = vmatpush2.msra.mxu0 0.0
  %517 = vmatprep.subr.mxu0 0.0
  %518 = vmatpush2.msra.mxu0 0.0
  %519 = vmatprep.subr.mxu0 0.0
  %520 = vmatpush2.msra.mxu0 0.0
  %521 = vmatprep.subr.mxu0 0.0
  %522 = vmatpush2.msra.mxu0 0.0
  %523 = vmatprep.subr.mxu0 0.0
  %524 = vmatpush2.msra.mxu0 0.0
  %525 = vmatprep.subr.mxu0 0.0
  %526 = vmatpush2.msra.mxu0 0.0
  %527 = vmatprep.subr.mxu0 0.0
  %528 = vmatpush2.msra.mxu0 0.0
  %529 = vmatprep.mubr.f32.mxu0 0.0
  %530 = vmatmul.mubr.f32.gmra.mxu0 %v454
  %v531 = vpop.f32.mrf.mxu0
  %v532 = vadd.f32 %v435, %v531
  %v533 = vpop.f32.mrf.mxu0
  %v534 = vadd.f32 %v435, %v533
  %535 = vmatprep.mubr.f32.mxu0 0.0
  %536 = vmatmul.mubr.f32.gmra.mxu0 %v457
  %v537 = vpop.f32.mrf.mxu0
  %v538 = vadd.f32 %v440, %v537
  %v539 = vpop.f32.mrf.mxu0
  %v540 = vadd.f32 %v440, %v539
  %541 = vmatprep.mubr.f32.mxu0 0.0
  %542 = vmatmul.mubr.f32.gmra.mxu0 %v460
  %v543 = vpop.f32.mrf.mxu0
  %v544 = vadd.f32 %v445, %v543
  %v545 = vpop.f32.mrf.mxu0
  %v546 = vadd.f32 %v445, %v545
  %547 = vmatprep.mubr.f32.mxu0 0.0
  %548 = vmatmul.mubr.f32.gmra.mxu0 %v463
  %v549 = vpop.f32.mrf.mxu0
  %v550 = vadd.f32 %v450, %v549
  %v551 = vpop.f32.mrf.mxu0
  %v552 = vadd.f32 %v450, %v551
  %553 = vdwg.mxu0
  %554 = vmatprep.subr.mxu0 0.0
  %555 = vmatpush1.msra.mxu0 0.0
  %556 = vmatprep.subr.mxu0 0.0
  %557 = vmatpush1.msra.mxu0 0.0
  %558 = vmatprep.subr.mxu0 0.0
  %559 = vmatpush1.msra.mxu0 0.0
  %560 = vmatprep.subr.mxu0 0.0
  %561 = vmatpush1.msra.mxu0 0.0
  %562 = vmatprep.subr.mxu0 0.0
  %563 = vmatpush1.msra.mxu0 0.0
  %564 = vmatprep.subr.mxu0 0.0
  %565 = vmatpush1.msra.mxu0 0.0
  %566 = vmatprep.subr.mxu0 0.0
  %567 = vmatpush1.msra.mxu0 0.0
  %568 = vmatprep.subr.mxu0 0.0
  %569 = vmatpush1.msra.mxu0 0.0
  %570 = vmatprep.subr.mxu0 0.0
  %571 = vmatpush1.msra.mxu0 0.0
  %572 = vmatprep.subr.mxu0 0.0
  %573 = vmatpush1.msra.mxu0 0.0
  %574 = vmatprep.subr.mxu0 0.0
  %575 = vmatpush1.msra.mxu0 0.0
  %576 = vmatprep.subr.mxu0 0.0
  %577 = vmatpush1.msra.mxu0 0.0
  %578 = vmatprep.subr.mxu0 0.0
  %579 = vmatpush1.msra.mxu0 0.0
  %580 = vmatprep.subr.mxu0 %v95
  %581 = vmatpush1.msra.mxu0 %v94
  %582 = vmatprep.subr.mxu0 %v91
  %583 = vmatpush1.msra.mxu0 %v90
  %584 = vmatprep.subr.mxu0 %v87
  %585 = vmatpush1.msra.mxu0 %v86
  %586 = vmatprep.subr.mxu0 0.0
  %587 = vmatpush2.msra.mxu0 0.0
  %588 = vmatprep.subr.mxu0 0.0
  %589 = vmatpush2.msra.mxu0 0.0
  %590 = vmatprep.subr.mxu0 0.0
  %591 = vmatpush2.msra.mxu0 0.0
  %592 = vmatprep.subr.mxu0 0.0
  %593 = vmatpush2.msra.mxu0 0.0
  %594 = vmatprep.subr.mxu0 0.0
  %595 = vmatpush2.msra.mxu0 0.0
  %596 = vmatprep.subr.mxu0 0.0
  %597 = vmatpush2.msra.mxu0 0.0
  %598 = vmatprep.subr.mxu0 0.0
  %599 = vmatpush2.msra.mxu0 0.0
  %600 = vmatprep.subr.mxu0 0.0
  %601 = vmatpush2.msra.mxu0 0.0
  %602 = vmatprep.subr.mxu0 0.0
  %603 = vmatpush2.msra.mxu0 0.0
  %604 = vmatprep.subr.mxu0 0.0
  %605 = vmatpush2.msra.mxu0 0.0
  %606 = vmatprep.subr.mxu0 0.0
  %607 = vmatpush2.msra.mxu0 0.0
  %608 = vmatprep.subr.mxu0 0.0
  %609 = vmatpush2.msra.mxu0 0.0
  %610 = vmatprep.subr.mxu0 0.0
  %611 = vmatpush2.msra.mxu0 0.0
  %612 = vmatprep.subr.mxu0 0.0
  %613 = vmatpush2.msra.mxu0 0.0
  %614 = vmatprep.subr.mxu0 0.0
  %615 = vmatpush2.msra.mxu0 0.0
  %616 = vmatprep.subr.mxu0 0.0
  %617 = vmatpush2.msra.mxu0 0.0
  %618 = vmatprep.mubr.f32.mxu0 0.0
  %619 = vmatmul.mubr.f32.gmra.mxu0 %v454
  %v620 = vpop.f32.mrf.mxu0
  %v621 = vadd.f32 %v435, %v620
  %v622 = vpop.f32.mrf.mxu0
  %v623 = vadd.f32 %v435, %v622
  %624 = vmatprep.mubr.f32.mxu0 0.0
  %625 = vmatmul.mubr.f32.gmra.mxu0 %v457
  %v626 = vpop.f32.mrf.mxu0
  %v627 = vadd.f32 %v440, %v626
  %v628 = vpop.f32.mrf.mxu0
  %v629 = vadd.f32 %v440, %v628
  %630 = vmatprep.mubr.f32.mxu0 0.0
  %631 = vmatmul.mubr.f32.gmra.mxu0 %v460
  %v632 = vpop.f32.mrf.mxu0
  %v633 = vadd.f32 %v445, %v632
  %v634 = vpop.f32.mrf.mxu0
  %v635 = vadd.f32 %v445, %v634
  %636 = vmatprep.mubr.f32.mxu0 0.0
  %637 = vmatmul.mubr.f32.gmra.mxu0 %v463
  %v638 = vpop.f32.mrf.mxu0
  %v639 = vadd.f32 %v450, %v638
  %v640 = vpop.f32.mrf.mxu0
  %v641 = vadd.f32 %v450, %v640
  %642 = vdwg.mxu0
  %v643 = vld [vmem:[%s6] sm:$0xff]
  %v644 = vld [vmem:[%s6 + $0x8] sm:$0xff]
  %v645 = vld [vmem:[%s6 + $0x10] sm:$0xff]
  %v646 = vld [vmem:[%s6 + $0x18] sm:$0xff]
  %v647 = vld [vmem:[%s7] sm:$0xff]
  %v648 = vld [vmem:[%s7 + $0x8] sm:$0xff]
  %v649 = vld [vmem:[%s7 + $0x10] sm:$0xff]
  %v650 = vld [vmem:[%s7 + $0x18] sm:$0xff]
  %v651 = vadd.f32 %v265, %v267
  %652 = vadd.xlane.f32.xlu0 %v651
  %v653 = vpop.xlane.xlu0 %652
  %v654 = vadd.f32 %v271, %v273
  %655 = vadd.xlane.f32.xlu0 %v654
  %v656 = vpop.xlane.xlu0 %655
  %v657 = vadd.f32 %v277, %v279
  %658 = vadd.xlane.f32.xlu0 %v657
  %v659 = vpop.xlane.xlu0 %658
  %v660 = vadd.f32 %v283, %v285
  %661 = vadd.xlane.f32.xlu0 %v660
  %v662 = vpop.xlane.xlu0 %661
  %vm663 = vcmask 261120
  %v665 = vsel %vm663, %v96, 0
  %v668 = vsel %vm663, %v97, 0
  %v671 = vsel %vm663, %v98, 0
  %v674 = vsel %vm663, %v99, 0
  %676 = vmatprep.subr.mxu0 0.0
  %677 = vmatpush1.msra.mxu0 0.0
  %678 = vmatprep.subr.mxu0 0.0
  %679 = vmatpush1.msra.mxu0 0.0
  %680 = vmatprep.subr.mxu0 0.0
  %681 = vmatpush1.msra.mxu0 0.0
  %682 = vmatprep.subr.mxu0 0.0
  %683 = vmatpush1.msra.mxu0 0.0
  %684 = vmatprep.subr.mxu0 0.0
  %685 = vmatpush1.msra.mxu0 0.0
  %686 = vmatprep.subr.mxu0 0.0
  %687 = vmatpush1.msra.mxu0 0.0
  %688 = vmatprep.subr.mxu0 0.0
  %689 = vmatpush1.msra.mxu0 0.0
  %690 = vmatprep.subr.mxu0 0.0
  %691 = vmatpush1.msra.mxu0 0.0
  %692 = vmatprep.subr.mxu0 0.0
  %693 = vmatpush1.msra.mxu0 0.0
  %694 = vmatprep.subr.mxu0 0.0
  %695 = vmatpush1.msra.mxu0 0.0
  %696 = vmatprep.subr.mxu0 0.0
  %697 = vmatpush1.msra.mxu0 0.0
  %698 = vmatprep.subr.mxu0 0.0
  %699 = vmatpush1.msra.mxu0 0.0
  %700 = vmatprep.subr.mxu0 0.0
  %701 = vmatpush1.msra.mxu0 %v662
  %702 = vmatprep.subr.mxu0 0.0
  %703 = vmatpush1.msra.mxu0 %v659
  %704 = vmatprep.subr.mxu0 0.0
  %705 = vmatpush1.msra.mxu0 %v656
  %706 = vmatprep.subr.mxu0 0.0
  %707 = vmatpush1.msra.mxu0 %v653
  %708 = vmatprep.subr.mxu0 0.0
  %709 = vmatpush2.msra.mxu0 0.0
  %710 = vmatprep.subr.mxu0 0.0
  %711 = vmatpush2.msra.mxu0 0.0
  %712 = vmatprep.subr.mxu0 0.0
  %713 = vmatpush2.msra.mxu0 0.0
  %714 = vmatprep.subr.mxu0 0.0
  %715 = vmatpush2.msra.mxu0 0.0
  %716 = vmatprep.subr.mxu0 0.0
  %717 = vmatpush2.msra.mxu0 0.0
  %718 = vmatprep.subr.mxu0 0.0
  %719 = vmatpush2.msra.mxu0 0.0
  %720 = vmatprep.subr.mxu0 0.0
  %721 = vmatpush2.msra.mxu0 0.0
  %722 = vmatprep.subr.mxu0 0.0
  %723 = vmatpush2.msra.mxu0 0.0
  %724 = vmatprep.subr.mxu0 0.0
  %725 = vmatpush2.msra.mxu0 0.0
  %726 = vmatprep.subr.mxu0 0.0
  %727 = vmatpush2.msra.mxu0 0.0
  %728 = vmatprep.subr.mxu0 0.0
  %729 = vmatpush2.msra.mxu0 0.0
  %730 = vmatprep.subr.mxu0 0.0
  %731 = vmatpush2.msra.mxu0 0.0
  %732 = vmatprep.subr.mxu0 0.0
  %733 = vmatpush2.msra.mxu0 0.0
  %734 = vmatprep.subr.mxu0 0.0
  %735 = vmatpush2.msra.mxu0 0.0
  %736 = vmatprep.subr.mxu0 0.0
  %737 = vmatpush2.msra.mxu0 0.0
  %738 = vmatprep.subr.mxu0 0.0
  %739 = vmatpush2.msra.mxu0 0.0
  %740 = vmatprep.mubr.f32.mxu0 0.0
  %741 = vmatmul.mubr.f32.gmra.mxu0 %v665
  %v742 = vpop.f32.mrf.mxu0
  %v743 = vadd.f32 0.0, %v742
  %v744 = vpop.f32.mrf.mxu0
  %745 = vmatprep.mubr.f32.mxu0 0.0
  %746 = vmatmul.mubr.f32.gmra.mxu0 %v668
  %v747 = vpop.f32.mrf.mxu0
  %v748 = vadd.f32 0.0, %v747
  %v749 = vpop.f32.mrf.mxu0
  %750 = vmatprep.mubr.f32.mxu0 0.0
  %751 = vmatmul.mubr.f32.gmra.mxu0 %v671
  %v752 = vpop.f32.mrf.mxu0
  %v753 = vadd.f32 0.0, %v752
  %v754 = vpop.f32.mrf.mxu0
  %755 = vmatprep.mubr.f32.mxu0 0.0
  %756 = vmatmul.mubr.f32.gmra.mxu0 %v674
  %v757 = vpop.f32.mrf.mxu0
  %v758 = vadd.f32 0.0, %v757
  %v759 = vpop.f32.mrf.mxu0
  %760 = vdwg.mxu0
  %762 = vset.pattern.permute.xlu0 0
  %763 = vperm.xlu0 %762, %v743
  %v764 = vpop.permute.xlu0 %763
  %767 = vset.pattern.permute.xlu0 0
  %768 = vperm.xlu0 %767, %v748
  %v769 = vpop.permute.xlu0 %768
  %772 = vset.pattern.permute.xlu0 0
  %773 = vperm.xlu0 %772, %v753
  %v774 = vpop.permute.xlu0 %773
  %777 = vset.pattern.permute.xlu0 0
  %778 = vperm.xlu0 %777, %v758
  %v779 = vpop.permute.xlu0 %778
  %v781 = vsub.f32 %v265, %v764
  %v782 = vsub.f32 %v267, %v764
  %v783 = vsub.f32 %v271, %v769
  %v784 = vsub.f32 %v273, %v769
  %v785 = vsub.f32 %v277, %v774
  %v786 = vsub.f32 %v279, %v774
  %v787 = vsub.f32 %v283, %v779
  %v788 = vsub.f32 %v285, %v779
  %v789 = vmul.f32 %v781, %v781
  %v790 = vmul.f32 %v782, %v782
  %v791 = vmul.f32 %v783, %v783
  %v792 = vmul.f32 %v784, %v784
  %v793 = vmul.f32 %v785, %v785
  %v794 = vmul.f32 %v786, %v786
  %v795 = vmul.f32 %v787, %v787
  %v796 = vmul.f32 %v788, %v788
  %v797 = vadd.f32 %v789, %v790
  %798 = vadd.xlane.f32.xlu0 %v797
  %v799 = vpop.xlane.xlu0 %798
  %v800 = vadd.f32 %v791, %v792
  %801 = vadd.xlane.f32.xlu0 %v800
  %v802 = vpop.xlane.xlu0 %801
  %v803 = vadd.f32 %v793, %v794
  %804 = vadd.xlane.f32.xlu0 %v803
  %v805 = vpop.xlane.xlu0 %804
  %v806 = vadd.f32 %v795, %v796
  %807 = vadd.xlane.f32.xlu0 %v806
  %v808 = vpop.xlane.xlu0 %807
  %809 = vmatprep.subr.mxu0 0.0
  %810 = vmatpush1.msra.mxu0 0.0
  %811 = vmatprep.subr.mxu0 0.0
  %812 = vmatpush1.msra.mxu0 0.0
  %813 = vmatprep.subr.mxu0 0.0
  %814 = vmatpush1.msra.mxu0 0.0
  %815 = vmatprep.subr.mxu0 0.0
  %816 = vmatpush1.msra.mxu0 0.0
  %817 = vmatprep.subr.mxu0 0.0
  %818 = vmatpush1.msra.mxu0 0.0
  %819 = vmatprep.subr.mxu0 0.0
  %820 = vmatpush1.msra.mxu0 0.0
  %821 = vmatprep.subr.mxu0 0.0
  %822 = vmatpush1.msra.mxu0 0.0
  %823 = vmatprep.subr.mxu0 0.0
  %824 = vmatpush1.msra.mxu0 0.0
  %825 = vmatprep.subr.mxu0 0.0
  %826 = vmatpush1.msra.mxu0 0.0
  %827 = vmatprep.subr.mxu0 0.0
  %828 = vmatpush1.msra.mxu0 0.0
  %829 = vmatprep.subr.mxu0 0.0
  %830 = vmatpush1.msra.mxu0 0.0
  %831 = vmatprep.subr.mxu0 0.0
  %832 = vmatpush1.msra.mxu0 0.0
  %833 = vmatprep.subr.mxu0 0.0
  %834 = vmatpush1.msra.mxu0 %v808
  %835 = vmatprep.subr.mxu0 0.0
  %836 = vmatpush1.msra.mxu0 %v805
  %837 = vmatprep.subr.mxu0 0.0
  %838 = vmatpush1.msra.mxu0 %v802
  %839 = vmatprep.subr.mxu0 0.0
  %840 = vmatpush1.msra.mxu0 %v799
  %841 = vmatprep.subr.mxu0 0.0
  %842 = vmatpush2.msra.mxu0 0.0
  %843 = vmatprep.subr.mxu0 0.0
  %844 = vmatpush2.msra.mxu0 0.0
  %845 = vmatprep.subr.mxu0 0.0
  %846 = vmatpush2.msra.mxu0 0.0
  %847 = vmatprep.subr.mxu0 0.0
  %848 = vmatpush2.msra.mxu0 0.0
  %849 = vmatprep.subr.mxu0 0.0
  %850 = vmatpush2.msra.mxu0 0.0
  %851 = vmatprep.subr.mxu0 0.0
  %852 = vmatpush2.msra.mxu0 0.0
  %853 = vmatprep.subr.mxu0 0.0
  %854 = vmatpush2.msra.mxu0 0.0
  %855 = vmatprep.subr.mxu0 0.0
  %856 = vmatpush2.msra.mxu0 0.0
  %857 = vmatprep.subr.mxu0 0.0
  %858 = vmatpush2.msra.mxu0 0.0
  %859 = vmatprep.subr.mxu0 0.0
  %860 = vmatpush2.msra.mxu0 0.0
  %861 = vmatprep.subr.mxu0 0.0
  %862 = vmatpush2.msra.mxu0 0.0
  %863 = vmatprep.subr.mxu0 0.0
  %864 = vmatpush2.msra.mxu0 0.0
  %865 = vmatprep.subr.mxu0 0.0
  %866 = vmatpush2.msra.mxu0 0.0
  %867 = vmatprep.subr.mxu0 0.0
  %868 = vmatpush2.msra.mxu0 0.0
  %869 = vmatprep.subr.mxu0 0.0
  %870 = vmatpush2.msra.mxu0 0.0
  %871 = vmatprep.subr.mxu0 0.0
  %872 = vmatpush2.msra.mxu0 0.0
  %873 = vmatprep.mubr.f32.mxu0 0.0
  %874 = vmatmul.mubr.f32.gmra.mxu0 %v665
  %v875 = vpop.f32.mrf.mxu0
  %v876 = vadd.f32 1e-05, %v875
  %v877 = vpop.f32.mrf.mxu0
  %878 = vmatprep.mubr.f32.mxu0 0.0
  %879 = vmatmul.mubr.f32.gmra.mxu0 %v668
  %v880 = vpop.f32.mrf.mxu0
  %v881 = vadd.f32 1e-05, %v880
  %v882 = vpop.f32.mrf.mxu0
  %883 = vmatprep.mubr.f32.mxu0 0.0
  %884 = vmatmul.mubr.f32.gmra.mxu0 %v671
  %v885 = vpop.f32.mrf.mxu0
  %v886 = vadd.f32 1e-05, %v885
  %v887 = vpop.f32.mrf.mxu0
  %888 = vmatprep.mubr.f32.mxu0 0.0
  %889 = vmatmul.mubr.f32.gmra.mxu0 %v674
  %v890 = vpop.f32.mrf.mxu0
  %v891 = vadd.f32 1e-05, %v890
  %v892 = vpop.f32.mrf.mxu0
  %893 = vdwg.mxu0
  %v894 = vrsqrt.pop %v876
  %v895 = vrsqrt.pop %v881
  %v896 = vrsqrt.pop %v886
  %v897 = vrsqrt.pop %v891
  %v898 = vmul.f32 %v643, %v894
  %v899 = vmul.f32 %v644, %v895
  %v900 = vmul.f32 %v645, %v896
  %v901 = vmul.f32 %v646, %v897
  %903 = vset.pattern.permute.xlu0 0
  %904 = vperm.xlu0 %903, %v898
  %v905 = vpop.permute.xlu0 %904
  %908 = vset.pattern.permute.xlu0 0
  %909 = vperm.xlu0 %908, %v899
  %v910 = vpop.permute.xlu0 %909
  %913 = vset.pattern.permute.xlu0 0
  %914 = vperm.xlu0 %913, %v900
  %v915 = vpop.permute.xlu0 %914
  %918 = vset.pattern.permute.xlu0 0
  %919 = vperm.xlu0 %918, %v901
  %v920 = vpop.permute.xlu0 %919
  %v922 = vmul.f32 %v781, %v905
  %v923 = vmul.f32 %v782, %v905
  %v924 = vmul.f32 %v783, %v910
  %v925 = vmul.f32 %v784, %v910
  %v926 = vmul.f32 %v785, %v915
  %v927 = vmul.f32 %v786, %v915
  %v928 = vmul.f32 %v787, %v920
  %v929 = vmul.f32 %v788, %v920
  %931 = vset.pattern.permute.xlu0 0
  %932 = vperm.xlu0 %931, %v647
  %v933 = vpop.permute.xlu0 %932
  %936 = vset.pattern.permute.xlu0 0
  %937 = vperm.xlu0 %936, %v648
  %v938 = vpop.permute.xlu0 %937
  %941 = vset.pattern.permute.xlu0 0
  %942 = vperm.xlu0 %941, %v649
  %v943 = vpop.permute.xlu0 %942
  %946 = vset.pattern.permute.xlu0 0
  %947 = vperm.xlu0 %946, %v650
  %v948 = vpop.permute.xlu0 %947
  %v950 = vadd.f32 %v922, %v933
  %v951 = vadd.f32 %v923, %v933
  %v952 = vadd.f32 %v924, %v938
  %v953 = vadd.f32 %v925, %v938
  %v954 = vadd.f32 %v926, %v943
  %v955 = vadd.f32 %v927, %v943
  %v956 = vadd.f32 %v928, %v948
  %v957 = vadd.f32 %v929, %v948
  %v958 = vadd.f32 %v378, %v380
  %959 = vadd.xlane.f32.xlu0 %v958
  %v960 = vpop.xlane.xlu0 %959
  %v961 = vadd.f32 %v384, %v386
  %962 = vadd.xlane.f32.xlu0 %v961
  %v963 = vpop.xlane.xlu0 %962
  %v964 = vadd.f32 %v390, %v392
  %965 = vadd.xlane.f32.xlu0 %v964
  %v966 = vpop.xlane.xlu0 %965
  %v967 = vadd.f32 %v396, %v398
  %968 = vadd.xlane.f32.xlu0 %v967
  %v969 = vpop.xlane.xlu0 %968
  %970 = vmatprep.subr.mxu0 0.0
  %971 = vmatpush1.msra.mxu0 0.0
  %972 = vmatprep.subr.mxu0 0.0
  %973 = vmatpush1.msra.mxu0 0.0
  %974 = vmatprep.subr.mxu0 0.0
  %975 = vmatpush1.msra.mxu0 0.0
  %976 = vmatprep.subr.mxu0 0.0
  %977 = vmatpush1.msra.mxu0 0.0
  %978 = vmatprep.subr.mxu0 0.0
  %979 = vmatpush1.msra.mxu0 0.0
  %980 = vmatprep.subr.mxu0 0.0
  %981 = vmatpush1.msra.mxu0 0.0
  %982 = vmatprep.subr.mxu0 0.0
  %983 = vmatpush1.msra.mxu0 0.0
  %984 = vmatprep.subr.mxu0 0.0
  %985 = vmatpush1.msra.mxu0 0.0
  %986 = vmatprep.subr.mxu0 0.0
  %987 = vmatpush1.msra.mxu0 0.0
  %988 = vmatprep.subr.mxu0 0.0
  %989 = vmatpush1.msra.mxu0 0.0
  %990 = vmatprep.subr.mxu0 0.0
  %991 = vmatpush1.msra.mxu0 0.0
  %992 = vmatprep.subr.mxu0 0.0
  %993 = vmatpush1.msra.mxu0 0.0
  %994 = vmatprep.subr.mxu0 0.0
  %995 = vmatpush1.msra.mxu0 %v969
  %996 = vmatprep.subr.mxu0 0.0
  %997 = vmatpush1.msra.mxu0 %v966
  %998 = vmatprep.subr.mxu0 0.0
  %999 = vmatpush1.msra.mxu0 %v963
  %1000 = vmatprep.subr.mxu0 0.0
  %1001 = vmatpush1.msra.mxu0 %v960
  %1002 = vmatprep.subr.mxu0 0.0
  %1003 = vmatpush2.msra.mxu0 0.0
  %1004 = vmatprep.subr.mxu0 0.0
  %1005 = vmatpush2.msra.mxu0 0.0
  %1006 = vmatprep.subr.mxu0 0.0
  %1007 = vmatpush2.msra.mxu0 0.0
  %1008 = vmatprep.subr.mxu0 0.0
  %1009 = vmatpush2.msra.mxu0 0.0
  %1010 = vmatprep.subr.mxu0 0.0
  %1011 = vmatpush2.msra.mxu0 0.0
  %1012 = vmatprep.subr.mxu0 0.0
  %1013 = vmatpush2.msra.mxu0 0.0
  %1014 = vmatprep.subr.mxu0 0.0
  %1015 = vmatpush2.msra.mxu0 0.0
  %1016 = vmatprep.subr.mxu0 0.0
  %1017 = vmatpush2.msra.mxu0 0.0
  %1018 = vmatprep.subr.mxu0 0.0
  %1019 = vmatpush2.msra.mxu0 0.0
  %1020 = vmatprep.subr.mxu0 0.0
  %1021 = vmatpush2.msra.mxu0 0.0
  %1022 = vmatprep.subr.mxu0 0.0
  %1023 = vmatpush2.msra.mxu0 0.0
  %1024 = vmatprep.subr.mxu0 0.0
  %1025 = vmatpush2.msra.mxu0 0.0
  %1026 = vmatprep.subr.mxu0 0.0
  %1027 = vmatpush2.msra.mxu0 0.0
  %1028 = vmatprep.subr.mxu0 0.0
  %1029 = vmatpush2.msra.mxu0 0.0
  %1030 = vmatprep.subr.mxu0 0.0
  %1031 = vmatpush2.msra.mxu0 0.0
  %1032 = vmatprep.subr.mxu0 0.0
  %1033 = vmatpush2.msra.mxu0 0.0
  %1034 = vmatprep.mubr.f32.mxu0 0.0
  %1035 = vmatmul.mubr.f32.gmra.mxu0 %v665
  %v1036 = vpop.f32.mrf.mxu0
  %v1037 = vadd.f32 0.0, %v1036
  %v1038 = vpop.f32.mrf.mxu0
  %1039 = vmatprep.mubr.f32.mxu0 0.0
  %1040 = vmatmul.mubr.f32.gmra.mxu0 %v668
  %v1041 = vpop.f32.mrf.mxu0
  %v1042 = vadd.f32 0.0, %v1041
  %v1043 = vpop.f32.mrf.mxu0
  %1044 = vmatprep.mubr.f32.mxu0 0.0
  %1045 = vmatmul.mubr.f32.gmra.mxu0 %v671
  %v1046 = vpop.f32.mrf.mxu0
  %v1047 = vadd.f32 0.0, %v1046
  %v1048 = vpop.f32.mrf.mxu0
  %1049 = vmatprep.mubr.f32.mxu0 0.0
  %1050 = vmatmul.mubr.f32.gmra.mxu0 %v674
  %v1051 = vpop.f32.mrf.mxu0
  %v1052 = vadd.f32 0.0, %v1051
  %v1053 = vpop.f32.mrf.mxu0
  %1054 = vdwg.mxu0
  %1056 = vset.pattern.permute.xlu0 0
  %1057 = vperm.xlu0 %1056, %v1037
  %v1058 = vpop.permute.xlu0 %1057
  %1061 = vset.pattern.permute.xlu0 0
  %1062 = vperm.xlu0 %1061, %v1042
  %v1063 = vpop.permute.xlu0 %1062
  %1066 = vset.pattern.permute.xlu0 0
  %1067 = vperm.xlu0 %1066, %v1047
  %v1068 = vpop.permute.xlu0 %1067
  %1071 = vset.pattern.permute.xlu0 0
  %1072 = vperm.xlu0 %1071, %v1052
  %v1073 = vpop.permute.xlu0 %1072
  %v1075 = vsub.f32 %v378, %v1058
  %v1076 = vsub.f32 %v380, %v1058
  %v1077 = vsub.f32 %v384, %v1063
  %v1078 = vsub.f32 %v386, %v1063
  %v1079 = vsub.f32 %v390, %v1068
  %v1080 = vsub.f32 %v392, %v1068
  %v1081 = vsub.f32 %v396, %v1073
  %v1082 = vsub.f32 %v398, %v1073
  %v1083 = vmul.f32 %v1075, %v1075
  %v1084 = vmul.f32 %v1076, %v1076
  %v1085 = vmul.f32 %v1077, %v1077
  %v1086 = vmul.f32 %v1078, %v1078
  %v1087 = vmul.f32 %v1079, %v1079
  %v1088 = vmul.f32 %v1080, %v1080
  %v1089 = vmul.f32 %v1081, %v1081
  %v1090 = vmul.f32 %v1082, %v1082
  %v1091 = vadd.f32 %v1083, %v1084
  %1092 = vadd.xlane.f32.xlu0 %v1091
  %v1093 = vpop.xlane.xlu0 %1092
  %v1094 = vadd.f32 %v1085, %v1086
  %1095 = vadd.xlane.f32.xlu0 %v1094
  %v1096 = vpop.xlane.xlu0 %1095
  %v1097 = vadd.f32 %v1087, %v1088
  %1098 = vadd.xlane.f32.xlu0 %v1097
  %v1099 = vpop.xlane.xlu0 %1098
  %v1100 = vadd.f32 %v1089, %v1090
  %1101 = vadd.xlane.f32.xlu0 %v1100
  %v1102 = vpop.xlane.xlu0 %1101
  %1103 = vmatprep.subr.mxu0 0.0
  %1104 = vmatpush1.msra.mxu0 0.0
  %1105 = vmatprep.subr.mxu0 0.0
  %1106 = vmatpush1.msra.mxu0 0.0
  %1107 = vmatprep.subr.mxu0 0.0
  %1108 = vmatpush1.msra.mxu0 0.0
  %1109 = vmatprep.subr.mxu0 0.0
  %1110 = vmatpush1.msra.mxu0 0.0
  %1111 = vmatprep.subr.mxu0 0.0
  %1112 = vmatpush1.msra.mxu0 0.0
  %1113 = vmatprep.subr.mxu0 0.0
  %1114 = vmatpush1.msra.mxu0 0.0
  %1115 = vmatprep.subr.mxu0 0.0
  %1116 = vmatpush1.msra.mxu0 0.0
  %1117 = vmatprep.subr.mxu0 0.0
  %1118 = vmatpush1.msra.mxu0 0.0
  %1119 = vmatprep.subr.mxu0 0.0
  %1120 = vmatpush1.msra.mxu0 0.0
  %1121 = vmatprep.subr.mxu0 0.0
  %1122 = vmatpush1.msra.mxu0 0.0
  %1123 = vmatprep.subr.mxu0 0.0
  %1124 = vmatpush1.msra.mxu0 0.0
  %1125 = vmatprep.subr.mxu0 0.0
  %1126 = vmatpush1.msra.mxu0 0.0
  %1127 = vmatprep.subr.mxu0 0.0
  %1128 = vmatpush1.msra.mxu0 %v1102
  %1129 = vmatprep.subr.mxu0 0.0
  %1130 = vmatpush1.msra.mxu0 %v1099
  %1131 = vmatprep.subr.mxu0 0.0
  %1132 = vmatpush1.msra.mxu0 %v1096
  %1133 = vmatprep.subr.mxu0 0.0
  %1134 = vmatpush1.msra.mxu0 %v1093
  %1135 = vmatprep.subr.mxu0 0.0
  %1136 = vmatpush2.msra.mxu0 0.0
  %1137 = vmatprep.subr.mxu0 0.0
  %1138 = vmatpush2.msra.mxu0 0.0
  %1139 = vmatprep.subr.mxu0 0.0
  %1140 = vmatpush2.msra.mxu0 0.0
  %1141 = vmatprep.subr.mxu0 0.0
  %1142 = vmatpush2.msra.mxu0 0.0
  %1143 = vmatprep.subr.mxu0 0.0
  %1144 = vmatpush2.msra.mxu0 0.0
  %1145 = vmatprep.subr.mxu0 0.0
  %1146 = vmatpush2.msra.mxu0 0.0
  %1147 = vmatprep.subr.mxu0 0.0
  %1148 = vmatpush2.msra.mxu0 0.0
  %1149 = vmatprep.subr.mxu0 0.0
  %1150 = vmatpush2.msra.mxu0 0.0
  %1151 = vmatprep.subr.mxu0 0.0
  %1152 = vmatpush2.msra.mxu0 0.0
  %1153 = vmatprep.subr.mxu0 0.0
  %1154 = vmatpush2.msra.mxu0 0.0
  %1155 = vmatprep.subr.mxu0 0.0
  %1156 = vmatpush2.msra.mxu0 0.0
  %1157 = vmatprep.subr.mxu0 0.0
  %1158 = vmatpush2.msra.mxu0 0.0
  %1159 = vmatprep.subr.mxu0 0.0
  %1160 = vmatpush2.msra.mxu0 0.0
  %1161 = vmatprep.subr.mxu0 0.0
  %1162 = vmatpush2.msra.mxu0 0.0
  %1163 = vmatprep.subr.mxu0 0.0
  %1164 = vmatpush2.msra.mxu0 0.0
  %1165 = vmatprep.subr.mxu0 0.0
  %1166 = vmatpush2.msra.mxu0 0.0
  %1167 = vmatprep.mubr.f32.mxu0 0.0
  %1168 = vmatmul.mubr.f32.gmra.mxu0 %v665
  %v1169 = vpop.f32.mrf.mxu0
  %v1170 = vadd.f32 1e-05, %v1169
  %v1171 = vpop.f32.mrf.mxu0
  %1172 = vmatprep.mubr.f32.mxu0 0.0
  %1173 = vmatmul.mubr.f32.gmra.mxu0 %v668
  %v1174 = vpop.f32.mrf.mxu0
  %v1175 = vadd.f32 1e-05, %v1174
  %v1176 = vpop.f32.mrf.mxu0
  %1177 = vmatprep.mubr.f32.mxu0 0.0
  %1178 = vmatmul.mubr.f32.gmra.mxu0 %v671
  %v1179 = vpop.f32.mrf.mxu0
  %v1180 = vadd.f32 1e-05, %v1179
  %v1181 = vpop.f32.mrf.mxu0
  %1182 = vmatprep.mubr.f32.mxu0 0.0
  %1183 = vmatmul.mubr.f32.gmra.mxu0 %v674
  %v1184 = vpop.f32.mrf.mxu0
  %v1185 = vadd.f32 1e-05, %v1184
  %v1186 = vpop.f32.mrf.mxu0
  %1187 = vdwg.mxu0
  %v1188 = vrsqrt.pop %v1170
  %v1189 = vrsqrt.pop %v1175
  %v1190 = vrsqrt.pop %v1180
  %v1191 = vrsqrt.pop %v1185
  %v1192 = vmul.f32 %v643, %v1188
  %v1193 = vmul.f32 %v644, %v1189
  %v1194 = vmul.f32 %v645, %v1190
  %v1195 = vmul.f32 %v646, %v1191
  %1197 = vset.pattern.permute.xlu0 0
  %1198 = vperm.xlu0 %1197, %v1192
  %v1199 = vpop.permute.xlu0 %1198
  %1202 = vset.pattern.permute.xlu0 0
  %1203 = vperm.xlu0 %1202, %v1193
  %v1204 = vpop.permute.xlu0 %1203
  %1207 = vset.pattern.permute.xlu0 0
  %1208 = vperm.xlu0 %1207, %v1194
  %v1209 = vpop.permute.xlu0 %1208
  %1212 = vset.pattern.permute.xlu0 0
  %1213 = vperm.xlu0 %1212, %v1195
  %v1214 = vpop.permute.xlu0 %1213
  %v1216 = vmul.f32 %v1075, %v1199
  %v1217 = vmul.f32 %v1076, %v1199
  %v1218 = vmul.f32 %v1077, %v1204
  %v1219 = vmul.f32 %v1078, %v1204
  %v1220 = vmul.f32 %v1079, %v1209
  %v1221 = vmul.f32 %v1080, %v1209
  %v1222 = vmul.f32 %v1081, %v1214
  %v1223 = vmul.f32 %v1082, %v1214
  %v1224 = vadd.f32 %v1216, %v933
  %v1225 = vadd.f32 %v1217, %v933
  %v1226 = vadd.f32 %v1218, %v938
  %v1227 = vadd.f32 %v1219, %v938
  %v1228 = vadd.f32 %v1220, %v943
  %v1229 = vadd.f32 %v1221, %v943
  %v1230 = vadd.f32 %v1222, %v948
  %v1231 = vadd.f32 %v1223, %v948
  %v1232 = vmul.f32 %v950, 0.5
  %v1233 = vmul.f32 %v951, 0.5
  %v1234 = vmul.f32 %v1224, 0.5
  %v1235 = vmul.f32 %v1225, 0.5
  %v1236 = vmul.f32 %v952, 0.5
  %v1237 = vmul.f32 %v953, 0.5
  %v1238 = vmul.f32 %v1226, 0.5
  %v1239 = vmul.f32 %v1227, 0.5
  %v1240 = vmul.f32 %v954, 0.5
  %v1241 = vmul.f32 %v955, 0.5
  %v1242 = vmul.f32 %v1228, 0.5
  %v1243 = vmul.f32 %v1229, 0.5
  %v1244 = vmul.f32 %v956, 0.5
  %v1245 = vmul.f32 %v957, 0.5
  %v1246 = vmul.f32 %v1230, 0.5
  %v1247 = vmul.f32 %v1231, 0.5
  %v1248 = vmul.f32 %v950, 0.70710677
  %v1249 = vmul.f32 %v951, 0.70710677
  %v1250 = vmul.f32 %v1224, 0.70710677
  %v1251 = vmul.f32 %v1225, 0.70710677
  %v1252 = vmul.f32 %v952, 0.70710677
  %v1253 = vmul.f32 %v953, 0.70710677
  %v1254 = vmul.f32 %v1226, 0.70710677
  %v1255 = vmul.f32 %v1227, 0.70710677
  %v1256 = vmul.f32 %v954, 0.70710677
  %v1257 = vmul.f32 %v955, 0.70710677
  %v1258 = vmul.f32 %v1228, 0.70710677
  %v1259 = vmul.f32 %v1229, 0.70710677
  %v1260 = vmul.f32 %v956, 0.70710677
  %v1261 = vmul.f32 %v957, 0.70710677
  %v1262 = vmul.f32 %v1230, 0.70710677
  %v1263 = vmul.f32 %v1231, 0.70710677
  %v1264 = verf.f32.pop %v1248
  %v1265 = verf.f32.pop %v1249
  %v1266 = verf.f32.pop %v1250
  %v1267 = verf.f32.pop %v1251
  %v1268 = verf.f32.pop %v1252
  %v1269 = verf.f32.pop %v1253
  %v1270 = verf.f32.pop %v1254
  %v1271 = verf.f32.pop %v1255
  %v1272 = verf.f32.pop %v1256
  %v1273 = verf.f32.pop %v1257
  %v1274 = verf.f32.pop %v1258
  %v1275 = verf.f32.pop %v1259
  %v1276 = verf.f32.pop %v1260
  %v1277 = verf.f32.pop %v1261
  %v1278 = verf.f32.pop %v1262
  %v1279 = verf.f32.pop %v1263
  %v1280 = vadd.f32 %v1264, 1.0
  %v1281 = vadd.f32 %v1265, 1.0
  %v1282 = vadd.f32 %v1266, 1.0
  %v1283 = vadd.f32 %v1267, 1.0
  %v1284 = vadd.f32 %v1268, 1.0
  %v1285 = vadd.f32 %v1269, 1.0
  %v1286 = vadd.f32 %v1270, 1.0
  %v1287 = vadd.f32 %v1271, 1.0
  %v1288 = vadd.f32 %v1272, 1.0
  %v1289 = vadd.f32 %v1273, 1.0
  %v1290 = vadd.f32 %v1274, 1.0
  %v1291 = vadd.f32 %v1275, 1.0
  %v1292 = vadd.f32 %v1276, 1.0
  %v1293 = vadd.f32 %v1277, 1.0
  %v1294 = vadd.f32 %v1278, 1.0
  %v1295 = vadd.f32 %v1279, 1.0
  %v1296 = vmul.f32 %v1232, %v1280
  %v1297 = vmul.f32 %v1233, %v1281
  %v1298 = vmul.f32 %v1234, %v1282
  %v1299 = vmul.f32 %v1235, %v1283
  %v1300 = vmul.f32 %v1236, %v1284
  %v1301 = vmul.f32 %v1237, %v1285
  %v1302 = vmul.f32 %v1238, %v1286
  %v1303 = vmul.f32 %v1239, %v1287
  %v1304 = vmul.f32 %v1240, %v1288
  %v1305 = vmul.f32 %v1241, %v1289
  %v1306 = vmul.f32 %v1242, %v1290
  %v1307 = vmul.f32 %v1243, %v1291
  %v1308 = vmul.f32 %v1244, %v1292
  %v1309 = vmul.f32 %v1245, %v1293
  %v1310 = vmul.f32 %v1246, %v1294
  %v1311 = vmul.f32 %v1247, %v1295
  %vm1312 = vcmp.gt.s32.totalorder %v105, 0
  %vm1313 = vcmp.gt.s32.totalorder %v106, 0
  %vm1314 = vcmp.gt.s32.totalorder %v107, 0
  %vm1315 = vcmp.gt.s32.totalorder %v108, 0
  %1316 = vrot.lane.b32.xlu0 %v1296, 1
  %v1317 = vpop.permute.xlu0 %1316
  %1318 = vrot.lane.b32.xlu0 %v1300, 1
  %v1319 = vpop.permute.xlu0 %1318
  %1320 = vrot.lane.b32.xlu0 %v1304, 1
  %v1321 = vpop.permute.xlu0 %1320
  %1322 = vrot.lane.b32.xlu0 %v1308, 1
  %v1323 = vpop.permute.xlu0 %1322
  %1324 = vrot.lane.b32.xlu0 %v1297, 1
  %v1325 = vpop.permute.xlu0 %1324
  %1326 = vrot.lane.b32.xlu0 %v1301, 1
  %v1327 = vpop.permute.xlu0 %1326
  %1328 = vrot.lane.b32.xlu0 %v1305, 1
  %v1329 = vpop.permute.xlu0 %1328
  %1330 = vrot.lane.b32.xlu0 %v1309, 1
  %v1331 = vpop.permute.xlu0 %1330
  %1332 = vrot.lane.b32.xlu0 %v1298, 1
  %v1333 = vpop.permute.xlu0 %1332
  %1334 = vrot.lane.b32.xlu0 %v1302, 1
  %v1335 = vpop.permute.xlu0 %1334
  %1336 = vrot.lane.b32.xlu0 %v1306, 1
  %v1337 = vpop.permute.xlu0 %1336
  %1338 = vrot.lane.b32.xlu0 %v1310, 1
  %v1339 = vpop.permute.xlu0 %1338
  %1340 = vrot.lane.b32.xlu0 %v1299, 1
  %v1341 = vpop.permute.xlu0 %1340
  %1342 = vrot.lane.b32.xlu0 %v1303, 1
  %v1343 = vpop.permute.xlu0 %1342
  %1344 = vrot.lane.b32.xlu0 %v1307, 1
  %v1345 = vpop.permute.xlu0 %1344
  %1346 = vrot.lane.b32.xlu0 %v1311, 1
  %v1347 = vpop.permute.xlu0 %1346
  %vm1348 = vcmp.lt.s32.totalorder %v101, 1
  %v1349 = vsel %vm1348, %v1333, %v1341
  %v1350 = vsel %vm1348, %v1335, %v1343
  %v1351 = vsel %vm1348, %v1337, %v1345
  %v1352 = vsel %vm1348, %v1339, %v1347
  %v1353 = vsel %vm1348, %v1325, %v1333
  %v1354 = vsel %vm1348, %v1327, %v1335
  %v1355 = vsel %vm1348, %v1329, %v1337
  %v1356 = vsel %vm1348, %v1331, %v1339
  %v1357 = vsel %vm1348, %v1317, %v1325
  %v1358 = vsel %vm1348, %v1319, %v1327
  %v1359 = vsel %vm1348, %v1321, %v1329
  %v1360 = vsel %vm1348, %v1323, %v1331
  %v1361 = vsel %vm1348, %v1341, %v1317
  %v1362 = vsel %vm1348, %v1343, %v1319
  %v1363 = vsel %vm1348, %v1345, %v1321
  %v1364 = vsel %vm1348, %v1347, %v1323
  %v1365 = vsel %vm1312, 1, 0
  %v1366 = vsel %vm1313, 1, 0
  %v1367 = vsel %vm1314, 1, 0
  %v1368 = vsel %vm1315, 1, 0
  %vm1369 = vcmp.eq.s32.totalorder %v1365, 1
  %vm1370 = vcmp.eq.s32.totalorder %v1366, 1
  %vm1371 = vcmp.eq.s32.totalorder %v1367, 1
  %vm1372 = vcmp.eq.s32.totalorder %v1368, 1
  %v1373 = vsel %vm1369, %v1361, 0.0
  %v1374 = vsel %vm1370, %v1357, 0.0
  %v1375 = vsel %vm1371, %v1353, 0.0
  %v1376 = vsel %vm1372, %v1349, 0.0
  %v1377 = vsel %vm1369, %v1362, 0.0
  %v1378 = vsel %vm1370, %v1358, 0.0
  %v1379 = vsel %vm1371, %v1354, 0.0
  %v1380 = vsel %vm1372, %v1350, 0.0
  %v1381 = vsel %vm1369, %v1363, 0.0
  %v1382 = vsel %vm1370, %v1359, 0.0
  %v1383 = vsel %vm1371, %v1355, 0.0
  %v1384 = vsel %vm1372, %v1351, 0.0
  %v1385 = vsel %vm1369, %v1364, 0.0
  %v1386 = vsel %vm1370, %v1360, 0.0
  %v1387 = vsel %vm1371, %v1356, 0.0
  %v1388 = vsel %vm1372, %v1352, 0.0
  %vm1389 = vcmp.lt.s32.totalorder %v105, 15
  %vm1390 = vcmp.lt.s32.totalorder %v106, 15
  %vm1391 = vcmp.lt.s32.totalorder %v107, 15
  %vm1392 = vcmp.lt.s32.totalorder %v108, 15
  %1393 = vrot.lane.b32.xlu0 %v1296, 127
  %v1394 = vpop.permute.xlu0 %1393
  %1395 = vrot.lane.b32.xlu0 %v1300, 127
  %v1396 = vpop.permute.xlu0 %1395
  %1397 = vrot.lane.b32.xlu0 %v1304, 127
  %v1398 = vpop.permute.xlu0 %1397
  %1399 = vrot.lane.b32.xlu0 %v1308, 127
  %v1400 = vpop.permute.xlu0 %1399
  %1401 = vrot.lane.b32.xlu0 %v1297, 127
  %v1402 = vpop.permute.xlu0 %1401
  %1403 = vrot.lane.b32.xlu0 %v1301, 127
  %v1404 = vpop.permute.xlu0 %1403
  %1405 = vrot.lane.b32.xlu0 %v1305, 127
  %v1406 = vpop.permute.xlu0 %1405
  %1407 = vrot.lane.b32.xlu0 %v1309, 127
  %v1408 = vpop.permute.xlu0 %1407
  %1409 = vrot.lane.b32.xlu0 %v1298, 127
  %v1410 = vpop.permute.xlu0 %1409
  %1411 = vrot.lane.b32.xlu0 %v1302, 127
  %v1412 = vpop.permute.xlu0 %1411
  %1413 = vrot.lane.b32.xlu0 %v1306, 127
  %v1414 = vpop.permute.xlu0 %1413
  %1415 = vrot.lane.b32.xlu0 %v1310, 127
  %v1416 = vpop.permute.xlu0 %1415
  %1417 = vrot.lane.b32.xlu0 %v1299, 127
  %v1418 = vpop.permute.xlu0 %1417
  %1419 = vrot.lane.b32.xlu0 %v1303, 127
  %v1420 = vpop.permute.xlu0 %1419
  %1421 = vrot.lane.b32.xlu0 %v1307, 127
  %v1422 = vpop.permute.xlu0 %1421
  %1423 = vrot.lane.b32.xlu0 %v1311, 127
  %v1424 = vpop.permute.xlu0 %1423
  %vm1425 = vcmp.lt.s32.totalorder %v101, 127
  %v1426 = vsel %vm1425, %v1410, %v1418
  %v1427 = vsel %vm1425, %v1412, %v1420
  %v1428 = vsel %vm1425, %v1414, %v1422
  %v1429 = vsel %vm1425, %v1416, %v1424
  %v1430 = vsel %vm1425, %v1402, %v1410
  %v1431 = vsel %vm1425, %v1404, %v1412
  %v1432 = vsel %vm1425, %v1406, %v1414
  %v1433 = vsel %vm1425, %v1408, %v1416
  %v1434 = vsel %vm1425, %v1394, %v1402
  %v1435 = vsel %vm1425, %v1396, %v1404
  %v1436 = vsel %vm1425, %v1398, %v1406
  %v1437 = vsel %vm1425, %v1400, %v1408
  %v1438 = vsel %vm1425, %v1418, %v1394
  %v1439 = vsel %vm1425, %v1420, %v1396
  %v1440 = vsel %vm1425, %v1422, %v1398
  %v1441 = vsel %vm1425, %v1424, %v1400
  %v1442 = vsel %vm1389, 1, 0
  %v1443 = vsel %vm1390, 1, 0
  %v1444 = vsel %vm1391, 1, 0
  %v1445 = vsel %vm1392, 1, 0
  %vm1446 = vcmp.eq.s32.totalorder %v1442, 1
  %vm1447 = vcmp.eq.s32.totalorder %v1443, 1
  %vm1448 = vcmp.eq.s32.totalorder %v1444, 1
  %vm1449 = vcmp.eq.s32.totalorder %v1445, 1
  %v1450 = vsel %vm1446, %v1434, 0.0
  %v1451 = vsel %vm1447, %v1430, 0.0
  %v1452 = vsel %vm1448, %v1426, 0.0
  %v1453 = vsel %vm1449, %v1438, 0.0
  %v1454 = vsel %vm1446, %v1435, 0.0
  %v1455 = vsel %vm1447, %v1431, 0.0
  %v1456 = vsel %vm1448, %v1427, 0.0
  %v1457 = vsel %vm1449, %v1439, 0.0
  %v1458 = vsel %vm1446, %v1436, 0.0
  %v1459 = vsel %vm1447, %v1432, 0.0
  %v1460 = vsel %vm1448, %v1428, 0.0
  %v1461 = vsel %vm1449, %v1440, 0.0
  %v1462 = vsel %vm1446, %v1437, 0.0
  %v1463 = vsel %vm1447, %v1433, 0.0
  %v1464 = vsel %vm1448, %v1429, 0.0
  %v1465 = vsel %vm1449, %v1441, 0.0
  %v1466 = vld [vmem:[%s12] sm:$0xff]
  %v1467 = vld [vmem:[%s12 + $0x8] sm:$0xff]
  %v1468 = vld [vmem:[%s12 + $0x10] sm:$0xff]
  %v1469 = vld [vmem:[%s12 + $0x18] sm:$0xff]
  %v1470 = vld [vmem:[%s12 + $0x20] sm:$0xff]
  %v1471 = vld [vmem:[%s12 + $0x28] sm:$0xff]
  %v1472 = vld [vmem:[%s12 + $0x30] sm:$0xff]
  %v1473 = vld [vmem:[%s12 + $0x38] sm:$0xff]
  %v1474 = vld [vmem:[%s12 + $0x40] sm:$0xff]
  %v1475 = vld [vmem:[%s12 + $0x48] sm:$0xff]
  %v1476 = vld [vmem:[%s12 + $0x50] sm:$0xff]
  %v1477 = vld [vmem:[%s12 + $0x58] sm:$0xff]
  %vm1478 = vcmask 785408
  %v1480 = vsel %vm1478, %v1466, 0
  %v1483 = vsel %vm1478, %v1467, 0
  %v1486 = vsel %vm1478, %v1468, 0
  %v1489 = vsel %vm1478, %v1469, 0
  %v1492 = vsel %vm1478, %v1470, 0
  %v1495 = vsel %vm1478, %v1471, 0
  %v1498 = vsel %vm1478, %v1472, 0
  %v1501 = vsel %vm1478, %v1473, 0
  %v1504 = vsel %vm1478, %v1474, 0
  %v1507 = vsel %vm1478, %v1475, 0
  %v1510 = vsel %vm1478, %v1476, 0
  %v1513 = vsel %vm1478, %v1477, 0
  %1515 = vmatprep.subr.mxu0 0.0
  %1516 = vmatpush1.msra.mxu0 0.0
  %1517 = vmatprep.subr.mxu0 0.0
  %1518 = vmatpush1.msra.mxu0 0.0
  %1519 = vmatprep.subr.mxu0 0.0
  %1520 = vmatpush1.msra.mxu0 0.0
  %1521 = vmatprep.subr.mxu0 0.0
  %1522 = vmatpush1.msra.mxu0 0.0
  %1523 = vmatprep.subr.mxu0 %v1463
  %1524 = vmatpush1.msra.mxu0 %v1462
  %1525 = vmatprep.subr.mxu0 %v1459
  %1526 = vmatpush1.msra.mxu0 %v1458
  %1527 = vmatprep.subr.mxu0 %v1455
  %1528 = vmatpush1.msra.mxu0 %v1454
  %1529 = vmatprep.subr.mxu0 %v1451
  %1530 = vmatpush1.msra.mxu0 %v1450
  %1531 = vmatprep.subr.mxu0 %v1309
  %1532 = vmatpush1.msra.mxu0 %v1308
  %1533 = vmatprep.subr.mxu0 %v1305
  %1534 = vmatpush1.msra.mxu0 %v1304
  %1535 = vmatprep.subr.mxu0 %v1301
  %1536 = vmatpush1.msra.mxu0 %v1300
  %1537 = vmatprep.subr.mxu0 %v1297
  %1538 = vmatpush1.msra.mxu0 %v1296
  %1539 = vmatprep.subr.mxu0 %v1386
  %1540 = vmatpush1.msra.mxu0 %v1385
  %1541 = vmatprep.subr.mxu0 %v1382
  %1542 = vmatpush1.msra.mxu0 %v1381
  %1543 = vmatprep.subr.mxu0 %v1378
  %1544 = vmatpush1.msra.mxu0 %v1377
  %1545 = vmatprep.subr.mxu0 %v1374
  %1546 = vmatpush1.msra.mxu0 %v1373
  %1547 = vmatprep.subr.mxu0 0.0
  %1548 = vmatpush2.msra.mxu0 0.0
  %1549 = vmatprep.subr.mxu0 0.0
  %1550 = vmatpush2.msra.mxu0 0.0
  %1551 = vmatprep.subr.mxu0 0.0
  %1552 = vmatpush2.msra.mxu0 0.0
  %1553 = vmatprep.subr.mxu0 0.0
  %1554 = vmatpush2.msra.mxu0 0.0
  %1555 = vmatprep.subr.mxu0 0.0
  %1556 = vmatpush2.msra.mxu0 0.0
  %1557 = vmatprep.subr.mxu0 0.0
  %1558 = vmatpush2.msra.mxu0 0.0
  %1559 = vmatprep.subr.mxu0 0.0
  %1560 = vmatpush2.msra.mxu0 0.0
  %1561 = vmatprep.subr.mxu0 0.0
  %1562 = vmatpush2.msra.mxu0 0.0
  %1563 = vmatprep.subr.mxu0 0.0
  %1564 = vmatpush2.msra.mxu0 0.0
  %1565 = vmatprep.subr.mxu0 0.0
  %1566 = vmatpush2.msra.mxu0 0.0
  %1567 = vmatprep.subr.mxu0 0.0
  %1568 = vmatpush2.msra.mxu0 0.0
  %1569 = vmatprep.subr.mxu0 0.0
  %1570 = vmatpush2.msra.mxu0 0.0
  %1571 = vmatprep.subr.mxu0 0.0
  %1572 = vmatpush2.msra.mxu0 0.0
  %1573 = vmatprep.subr.mxu0 0.0
  %1574 = vmatpush2.msra.mxu0 0.0
  %1575 = vmatprep.subr.mxu0 0.0
  %1576 = vmatpush2.msra.mxu0 0.0
  %1577 = vmatprep.subr.mxu0 0.0
  %1578 = vmatpush2.msra.mxu0 0.0
  %1579 = vmatprep.mubr.f32.mxu0 0.0
  %1580 = vmatmul.mubr.f32.gmra.mxu0 %v1480
  %v1581 = vpop.f32.mrf.mxu0
  %v1582 = vadd.f32 0.0, %v1581
  %v1583 = vpop.f32.mrf.mxu0
  %v1584 = vadd.f32 0.0, %v1583
  %1585 = vmatprep.mubr.f32.mxu0 0.0
  %1586 = vmatmul.mubr.f32.gmra.mxu0 %v1483
  %v1587 = vpop.f32.mrf.mxu0
  %v1588 = vadd.f32 0.0, %v1587
  %v1589 = vpop.f32.mrf.mxu0
  %v1590 = vadd.f32 0.0, %v1589
  %1591 = vmatprep.mubr.f32.mxu0 0.0
  %1592 = vmatmul.mubr.f32.gmra.mxu0 %v1486
  %v1593 = vpop.f32.mrf.mxu0
  %v1594 = vadd.f32 0.0, %v1593
  %v1595 = vpop.f32.mrf.mxu0
  %v1596 = vadd.f32 0.0, %v1595
  %1597 = vmatprep.mubr.f32.mxu0 0.0
  %1598 = vmatmul.mubr.f32.gmra.mxu0 %v1489
  %v1599 = vpop.f32.mrf.mxu0
  %v1600 = vadd.f32 0.0, %v1599
  %v1601 = vpop.f32.mrf.mxu0
  %v1602 = vadd.f32 0.0, %v1601
  %1603 = vmatprep.mubr.f32.mxu0 0.0
  %1604 = vmatmul.mubr.f32.gmra.mxu0 %v1492
  %v1605 = vpop.f32.mrf.mxu0
  %v1606 = vadd.f32 0.0, %v1605
  %v1607 = vpop.f32.mrf.mxu0
  %v1608 = vadd.f32 0.0, %v1607
  %1609 = vmatprep.mubr.f32.mxu0 0.0
  %1610 = vmatmul.mubr.f32.gmra.mxu0 %v1495
  %v1611 = vpop.f32.mrf.mxu0
  %v1612 = vadd.f32 0.0, %v1611
  %v1613 = vpop.f32.mrf.mxu0
  %v1614 = vadd.f32 0.0, %v1613
  %1615 = vmatprep.mubr.f32.mxu0 0.0
  %1616 = vmatmul.mubr.f32.gmra.mxu0 %v1498
  %v1617 = vpop.f32.mrf.mxu0
  %v1618 = vadd.f32 0.0, %v1617
  %v1619 = vpop.f32.mrf.mxu0
  %v1620 = vadd.f32 0.0, %v1619
  %1621 = vmatprep.mubr.f32.mxu0 0.0
  %1622 = vmatmul.mubr.f32.gmra.mxu0 %v1501
  %v1623 = vpop.f32.mrf.mxu0
  %v1624 = vadd.f32 0.0, %v1623
  %v1625 = vpop.f32.mrf.mxu0
  %v1626 = vadd.f32 0.0, %v1625
  %1627 = vmatprep.mubr.f32.mxu0 0.0
  %1628 = vmatmul.mubr.f32.gmra.mxu0 %v1504
  %v1629 = vpop.f32.mrf.mxu0
  %v1630 = vadd.f32 0.0, %v1629
  %v1631 = vpop.f32.mrf.mxu0
  %v1632 = vadd.f32 0.0, %v1631
  %1633 = vmatprep.mubr.f32.mxu0 0.0
  %1634 = vmatmul.mubr.f32.gmra.mxu0 %v1507
  %v1635 = vpop.f32.mrf.mxu0
  %v1636 = vadd.f32 0.0, %v1635
  %v1637 = vpop.f32.mrf.mxu0
  %v1638 = vadd.f32 0.0, %v1637
  %1639 = vmatprep.mubr.f32.mxu0 0.0
  %1640 = vmatmul.mubr.f32.gmra.mxu0 %v1510
  %v1641 = vpop.f32.mrf.mxu0
  %v1642 = vadd.f32 0.0, %v1641
  %v1643 = vpop.f32.mrf.mxu0
  %v1644 = vadd.f32 0.0, %v1643
  %1645 = vmatprep.mubr.f32.mxu0 0.0
  %1646 = vmatmul.mubr.f32.gmra.mxu0 %v1513
  %v1647 = vpop.f32.mrf.mxu0
  %v1648 = vadd.f32 0.0, %v1647
  %v1649 = vpop.f32.mrf.mxu0
  %v1650 = vadd.f32 0.0, %v1649
  %1651 = vdwg.mxu0
  %1652 = vmatprep.subr.mxu0 0.0
  %1653 = vmatpush1.msra.mxu0 0.0
  %1654 = vmatprep.subr.mxu0 0.0
  %1655 = vmatpush1.msra.mxu0 0.0
  %1656 = vmatprep.subr.mxu0 0.0
  %1657 = vmatpush1.msra.mxu0 0.0
  %1658 = vmatprep.subr.mxu0 0.0
  %1659 = vmatpush1.msra.mxu0 0.0
  %1660 = vmatprep.subr.mxu0 %v1465
  %1661 = vmatpush1.msra.mxu0 %v1464
  %1662 = vmatprep.subr.mxu0 %v1461
  %1663 = vmatpush1.msra.mxu0 %v1460
  %1664 = vmatprep.subr.mxu0 %v1457
  %1665 = vmatpush1.msra.mxu0 %v1456
  %1666 = vmatprep.subr.mxu0 %v1453
  %1667 = vmatpush1.msra.mxu0 %v1452
  %1668 = vmatprep.subr.mxu0 %v1311
  %1669 = vmatpush1.msra.mxu0 %v1310
  %1670 = vmatprep.subr.mxu0 %v1307
  %1671 = vmatpush1.msra.mxu0 %v1306
  %1672 = vmatprep.subr.mxu0 %v1303
  %1673 = vmatpush1.msra.mxu0 %v1302
  %1674 = vmatprep.subr.mxu0 %v1299
  %1675 = vmatpush1.msra.mxu0 %v1298
  %1676 = vmatprep.subr.mxu0 %v1388
  %1677 = vmatpush1.msra.mxu0 %v1387
  %1678 = vmatprep.subr.mxu0 %v1384
  %1679 = vmatpush1.msra.mxu0 %v1383
  %1680 = vmatprep.subr.mxu0 %v1380
  %1681 = vmatpush1.msra.mxu0 %v1379
  %1682 = vmatprep.subr.mxu0 %v1376
  %1683 = vmatpush1.msra.mxu0 %v1375
  %1684 = vmatprep.subr.mxu0 0.0
  %1685 = vmatpush2.msra.mxu0 0.0
  %1686 = vmatprep.subr.mxu0 0.0
  %1687 = vmatpush2.msra.mxu0 0.0
  %1688 = vmatprep.subr.mxu0 0.0
  %1689 = vmatpush2.msra.mxu0 0.0
  %1690 = vmatprep.subr.mxu0 0.0
  %1691 = vmatpush2.msra.mxu0 0.0
  %1692 = vmatprep.subr.mxu0 0.0
  %1693 = vmatpush2.msra.mxu0 0.0
  %1694 = vmatprep.subr.mxu0 0.0
  %1695 = vmatpush2.msra.mxu0 0.0
  %1696 = vmatprep.subr.mxu0 0.0
  %1697 = vmatpush2.msra.mxu0 0.0
  %1698 = vmatprep.subr.mxu0 0.0
  %1699 = vmatpush2.msra.mxu0 0.0
  %1700 = vmatprep.subr.mxu0 0.0
  %1701 = vmatpush2.msra.mxu0 0.0
  %1702 = vmatprep.subr.mxu0 0.0
  %1703 = vmatpush2.msra.mxu0 0.0
  %1704 = vmatprep.subr.mxu0 0.0
  %1705 = vmatpush2.msra.mxu0 0.0
  %1706 = vmatprep.subr.mxu0 0.0
  %1707 = vmatpush2.msra.mxu0 0.0
  %1708 = vmatprep.subr.mxu0 0.0
  %1709 = vmatpush2.msra.mxu0 0.0
  %1710 = vmatprep.subr.mxu0 0.0
  %1711 = vmatpush2.msra.mxu0 0.0
  %1712 = vmatprep.subr.mxu0 0.0
  %1713 = vmatpush2.msra.mxu0 0.0
  %1714 = vmatprep.subr.mxu0 0.0
  %1715 = vmatpush2.msra.mxu0 0.0
  %1716 = vmatprep.mubr.f32.mxu0 0.0
  %1717 = vmatmul.mubr.f32.gmra.mxu0 %v1480
  %v1718 = vpop.f32.mrf.mxu0
  %v1719 = vadd.f32 0.0, %v1718
  %v1720 = vpop.f32.mrf.mxu0
  %v1721 = vadd.f32 0.0, %v1720
  %1722 = vmatprep.mubr.f32.mxu0 0.0
  %1723 = vmatmul.mubr.f32.gmra.mxu0 %v1483
  %v1724 = vpop.f32.mrf.mxu0
  %v1725 = vadd.f32 0.0, %v1724
  %v1726 = vpop.f32.mrf.mxu0
  %v1727 = vadd.f32 0.0, %v1726
  %1728 = vmatprep.mubr.f32.mxu0 0.0
  %1729 = vmatmul.mubr.f32.gmra.mxu0 %v1486
  %v1730 = vpop.f32.mrf.mxu0
  %v1731 = vadd.f32 0.0, %v1730
  %v1732 = vpop.f32.mrf.mxu0
  %v1733 = vadd.f32 0.0, %v1732
  %1734 = vmatprep.mubr.f32.mxu0 0.0
  %1735 = vmatmul.mubr.f32.gmra.mxu0 %v1489
  %v1736 = vpop.f32.mrf.mxu0
  %v1737 = vadd.f32 0.0, %v1736
  %v1738 = vpop.f32.mrf.mxu0
  %v1739 = vadd.f32 0.0, %v1738
  %1740 = vmatprep.mubr.f32.mxu0 0.0
  %1741 = vmatmul.mubr.f32.gmra.mxu0 %v1492
  %v1742 = vpop.f32.mrf.mxu0
  %v1743 = vadd.f32 0.0, %v1742
  %v1744 = vpop.f32.mrf.mxu0
  %v1745 = vadd.f32 0.0, %v1744
  %1746 = vmatprep.mubr.f32.mxu0 0.0
  %1747 = vmatmul.mubr.f32.gmra.mxu0 %v1495
  %v1748 = vpop.f32.mrf.mxu0
  %v1749 = vadd.f32 0.0, %v1748
  %v1750 = vpop.f32.mrf.mxu0
  %v1751 = vadd.f32 0.0, %v1750
  %1752 = vmatprep.mubr.f32.mxu0 0.0
  %1753 = vmatmul.mubr.f32.gmra.mxu0 %v1498
  %v1754 = vpop.f32.mrf.mxu0
  %v1755 = vadd.f32 0.0, %v1754
  %v1756 = vpop.f32.mrf.mxu0
  %v1757 = vadd.f32 0.0, %v1756
  %1758 = vmatprep.mubr.f32.mxu0 0.0
  %1759 = vmatmul.mubr.f32.gmra.mxu0 %v1501
  %v1760 = vpop.f32.mrf.mxu0
  %v1761 = vadd.f32 0.0, %v1760
  %v1762 = vpop.f32.mrf.mxu0
  %v1763 = vadd.f32 0.0, %v1762
  %1764 = vmatprep.mubr.f32.mxu0 0.0
  %1765 = vmatmul.mubr.f32.gmra.mxu0 %v1504
  %v1766 = vpop.f32.mrf.mxu0
  %v1767 = vadd.f32 0.0, %v1766
  %v1768 = vpop.f32.mrf.mxu0
  %v1769 = vadd.f32 0.0, %v1768
  %1770 = vmatprep.mubr.f32.mxu0 0.0
  %1771 = vmatmul.mubr.f32.gmra.mxu0 %v1507
  %v1772 = vpop.f32.mrf.mxu0
  %v1773 = vadd.f32 0.0, %v1772
  %v1774 = vpop.f32.mrf.mxu0
  %v1775 = vadd.f32 0.0, %v1774
  %1776 = vmatprep.mubr.f32.mxu0 0.0
  %1777 = vmatmul.mubr.f32.gmra.mxu0 %v1510
  %v1778 = vpop.f32.mrf.mxu0
  %v1779 = vadd.f32 0.0, %v1778
  %v1780 = vpop.f32.mrf.mxu0
  %v1781 = vadd.f32 0.0, %v1780
  %1782 = vmatprep.mubr.f32.mxu0 0.0
  %1783 = vmatmul.mubr.f32.gmra.mxu0 %v1513
  %v1784 = vpop.f32.mrf.mxu0
  %v1785 = vadd.f32 0.0, %v1784
  %v1786 = vpop.f32.mrf.mxu0
  %v1787 = vadd.f32 0.0, %v1786
  %1788 = vdwg.mxu0
  %vm1789 = vcmp.gt.s32.totalorder %v113, 0
  %vm1790 = vcmp.gt.s32.totalorder %v114, 0
  %vm1791 = vcmp.gt.s32.totalorder %v115, 0
  %vm1792 = vcmp.gt.s32.totalorder %v116, 0
  %1793 = vrot.lane.b32.xlu0 %v1582, 16
  %v1794 = vpop.permute.xlu0 %1793
  %1795 = vrot.lane.b32.xlu0 %v1588, 16
  %v1796 = vpop.permute.xlu0 %1795
  %1797 = vrot.lane.b32.xlu0 %v1594, 16
  %v1798 = vpop.permute.xlu0 %1797
  %1799 = vrot.lane.b32.xlu0 %v1600, 16
  %v1800 = vpop.permute.xlu0 %1799
  %1801 = vrot.lane.b32.xlu0 %v1584, 16
  %v1802 = vpop.permute.xlu0 %1801
  %1803 = vrot.lane.b32.xlu0 %v1590, 16
  %v1804 = vpop.permute.xlu0 %1803
  %1805 = vrot.lane.b32.xlu0 %v1596, 16
  %v1806 = vpop.permute.xlu0 %1805
  %1807 = vrot.lane.b32.xlu0 %v1602, 16
  %v1808 = vpop.permute.xlu0 %1807
  %1809 = vrot.lane.b32.xlu0 %v1719, 16
  %v1810 = vpop.permute.xlu0 %1809
  %1811 = vrot.lane.b32.xlu0 %v1725, 16
  %v1812 = vpop.permute.xlu0 %1811
  %1813 = vrot.lane.b32.xlu0 %v1731, 16
  %v1814 = vpop.permute.xlu0 %1813
  %1815 = vrot.lane.b32.xlu0 %v1737, 16
  %v1816 = vpop.permute.xlu0 %1815
  %1817 = vrot.lane.b32.xlu0 %v1721, 16
  %v1818 = vpop.permute.xlu0 %1817
  %1819 = vrot.lane.b32.xlu0 %v1727, 16
  %v1820 = vpop.permute.xlu0 %1819
  %1821 = vrot.lane.b32.xlu0 %v1733, 16
  %v1822 = vpop.permute.xlu0 %1821
  %1823 = vrot.lane.b32.xlu0 %v1739, 16
  %v1824 = vpop.permute.xlu0 %1823
  %vm1825 = vcmp.lt.s32.totalorder %v101, 16
  %v1826 = vsel %vm1825, %v1810, %v1818
  %v1827 = vsel %vm1825, %v1812, %v1820
  %v1828 = vsel %vm1825, %v1814, %v1822
  %v1829 = vsel %vm1825, %v1816, %v1824
  %v1830 = vsel %vm1825, %v1802, %v1810
  %v1831 = vsel %vm1825, %v1804, %v1812
  %v1832 = vsel %vm1825, %v1806, %v1814
  %v1833 = vsel %vm1825, %v1808, %v1816
  %v1834 = vsel %vm1825, %v1794, %v1802
  %v1835 = vsel %vm1825, %v1796, %v1804
  %v1836 = vsel %vm1825, %v1798, %v1806
  %v1837 = vsel %vm1825, %v1800, %v1808
  %v1838 = vsel %vm1825, %v1818, %v1794
  %v1839 = vsel %vm1825, %v1820, %v1796
  %v1840 = vsel %vm1825, %v1822, %v1798
  %v1841 = vsel %vm1825, %v1824, %v1800
  %v1842 = vsel %vm1789, 1, 0
  %v1843 = vsel %vm1790, 1, 0
  %v1844 = vsel %vm1791, 1, 0
  %v1845 = vsel %vm1792, 1, 0
  %vm1846 = vcmp.eq.s32.totalorder %v1842, 1
  %vm1847 = vcmp.eq.s32.totalorder %v1843, 1
  %vm1848 = vcmp.eq.s32.totalorder %v1844, 1
  %vm1849 = vcmp.eq.s32.totalorder %v1845, 1
  %v1850 = vsel %vm1846, %v1838, 0.0
  %v1851 = vsel %vm1847, %v1834, 0.0
  %v1852 = vsel %vm1848, %v1830, 0.0
  %v1853 = vsel %vm1849, %v1826, 0.0
  %v1854 = vsel %vm1846, %v1839, 0.0
  %v1855 = vsel %vm1847, %v1835, 0.0
  %v1856 = vsel %vm1848, %v1831, 0.0
  %v1857 = vsel %vm1849, %v1827, 0.0
  %v1858 = vsel %vm1846, %v1840, 0.0
  %v1859 = vsel %vm1847, %v1836, 0.0
  %v1860 = vsel %vm1848, %v1832, 0.0
  %v1861 = vsel %vm1849, %v1828, 0.0
  %v1862 = vsel %vm1846, %v1841, 0.0
  %v1863 = vsel %vm1847, %v1837, 0.0
  %v1864 = vsel %vm1848, %v1833, 0.0
  %v1865 = vsel %vm1849, %v1829, 0.0
  %v1866 = vadd.f32 %v1606, %v1850
  %v1867 = vadd.f32 %v1608, %v1851
  %v1868 = vadd.f32 %v1743, %v1852
  %v1869 = vadd.f32 %v1745, %v1853
  %v1870 = vadd.f32 %v1612, %v1854
  %v1871 = vadd.f32 %v1614, %v1855
  %v1872 = vadd.f32 %v1749, %v1856
  %v1873 = vadd.f32 %v1751, %v1857
  %v1874 = vadd.f32 %v1618, %v1858
  %v1875 = vadd.f32 %v1620, %v1859
  %v1876 = vadd.f32 %v1755, %v1860
  %v1877 = vadd.f32 %v1757, %v1861
  %v1878 = vadd.f32 %v1624, %v1862
  %v1879 = vadd.f32 %v1626, %v1863
  %v1880 = vadd.f32 %v1761, %v1864
  %v1881 = vadd.f32 %v1763, %v1865
  %vm1882 = vcmp.lt.s32.totalorder %v113, 15
  %vm1883 = vcmp.lt.s32.totalorder %v114, 15
  %vm1884 = vcmp.lt.s32.totalorder %v115, 15
  %vm1885 = vcmp.lt.s32.totalorder %v116, 15
  %1886 = vrot.lane.b32.xlu0 %v1630, 112
  %v1887 = vpop.permute.xlu0 %1886
  %1888 = vrot.lane.b32.xlu0 %v1636, 112
  %v1889 = vpop.permute.xlu0 %1888
  %1890 = vrot.lane.b32.xlu0 %v1642, 112
  %v1891 = vpop.permute.xlu0 %1890
  %1892 = vrot.lane.b32.xlu0 %v1648, 112
  %v1893 = vpop.permute.xlu0 %1892
  %1894 = vrot.lane.b32.xlu0 %v1632, 112
  %v1895 = vpop.permute.xlu0 %1894
  %1896 = vrot.lane.b32.xlu0 %v1638, 112
  %v1897 = vpop.permute.xlu0 %1896
  %1898 = vrot.lane.b32.xlu0 %v1644, 112
  %v1899 = vpop.permute.xlu0 %1898
  %1900 = vrot.lane.b32.xlu0 %v1650, 112
  %v1901 = vpop.permute.xlu0 %1900
  %1902 = vrot.lane.b32.xlu0 %v1767, 112
  %v1903 = vpop.permute.xlu0 %1902
  %1904 = vrot.lane.b32.xlu0 %v1773, 112
  %v1905 = vpop.permute.xlu0 %1904
  %1906 = vrot.lane.b32.xlu0 %v1779, 112
  %v1907 = vpop.permute.xlu0 %1906
  %1908 = vrot.lane.b32.xlu0 %v1785, 112
  %v1909 = vpop.permute.xlu0 %1908
  %1910 = vrot.lane.b32.xlu0 %v1769, 112
  %v1911 = vpop.permute.xlu0 %1910
  %1912 = vrot.lane.b32.xlu0 %v1775, 112
  %v1913 = vpop.permute.xlu0 %1912
  %1914 = vrot.lane.b32.xlu0 %v1781, 112
  %v1915 = vpop.permute.xlu0 %1914
  %1916 = vrot.lane.b32.xlu0 %v1787, 112
  %v1917 = vpop.permute.xlu0 %1916
  %vm1918 = vcmp.lt.s32.totalorder %v101, 112
  %v1919 = vsel %vm1918, %v1903, %v1911
  %v1920 = vsel %vm1918, %v1905, %v1913
  %v1921 = vsel %vm1918, %v1907, %v1915
  %v1922 = vsel %vm1918, %v1909, %v1917
  %v1923 = vsel %vm1918, %v1895, %v1903
  %v1924 = vsel %vm1918, %v1897, %v1905
  %v1925 = vsel %vm1918, %v1899, %v1907
  %v1926 = vsel %vm1918, %v1901, %v1909
  %v1927 = vsel %vm1918, %v1887, %v1895
  %v1928 = vsel %vm1918, %v1889, %v1897
  %v1929 = vsel %vm1918, %v1891, %v1899
  %v1930 = vsel %vm1918, %v1893, %v1901
  %v1931 = vsel %vm1918, %v1911, %v1887
  %v1932 = vsel %vm1918, %v1913, %v1889
  %v1933 = vsel %vm1918, %v1915, %v1891
  %v1934 = vsel %vm1918, %v1917, %v1893
  %v1935 = vsel %vm1882, 1, 0
  %v1936 = vsel %vm1883, 1, 0
  %v1937 = vsel %vm1884, 1, 0
  %v1938 = vsel %vm1885, 1, 0
  %vm1939 = vcmp.eq.s32.totalorder %v1935, 1
  %vm1940 = vcmp.eq.s32.totalorder %v1936, 1
  %vm1941 = vcmp.eq.s32.totalorder %v1937, 1
  %vm1942 = vcmp.eq.s32.totalorder %v1938, 1
  %v1943 = vsel %vm1939, %v1927, 0.0
  %v1944 = vsel %vm1940, %v1923, 0.0
  %v1945 = vsel %vm1941, %v1919, 0.0
  %v1946 = vsel %vm1942, %v1931, 0.0
  %v1947 = vsel %vm1939, %v1928, 0.0
  %v1948 = vsel %vm1940, %v1924, 0.0
  %v1949 = vsel %vm1941, %v1920, 0.0
  %v1950 = vsel %vm1942, %v1932, 0.0
  %v1951 = vsel %vm1939, %v1929, 0.0
  %v1952 = vsel %vm1940, %v1925, 0.0
  %v1953 = vsel %vm1941, %v1921, 0.0
  %v1954 = vsel %vm1942, %v1933, 0.0
  %v1955 = vsel %vm1939, %v1930, 0.0
  %v1956 = vsel %vm1940, %v1926, 0.0
  %v1957 = vsel %vm1941, %v1922, 0.0
  %v1958 = vsel %vm1942, %v1934, 0.0
  %v1959 = vadd.f32 %v1866, %v1943
  %v1960 = vadd.f32 %v1867, %v1944
  %v1961 = vadd.f32 %v1868, %v1945
  %v1962 = vadd.f32 %v1869, %v1946
  %v1963 = vadd.f32 %v1870, %v1947
  %v1964 = vadd.f32 %v1871, %v1948
  %v1965 = vadd.f32 %v1872, %v1949
  %v1966 = vadd.f32 %v1873, %v1950
  %v1967 = vadd.f32 %v1874, %v1951
  %v1968 = vadd.f32 %v1875, %v1952
  %v1969 = vadd.f32 %v1876, %v1953
  %v1970 = vadd.f32 %v1877, %v1954
  %v1971 = vadd.f32 %v1878, %v1955
  %v1972 = vadd.f32 %v1879, %v1956
  %v1973 = vadd.f32 %v1880, %v1957
  %v1974 = vadd.f32 %v1881, %v1958
  %v1975 = vld [vmem:[%s10] sm:$0xff]
  %v1976 = vld [vmem:[%s10 + $0x8] sm:$0xff]
  %v1977 = vld [vmem:[%s10 + $0x10] sm:$0xff]
  %v1978 = vld [vmem:[%s10 + $0x18] sm:$0xff]
  %1980 = vset.pattern.permute.xlu0 0
  %1981 = vperm.xlu0 %1980, %v1975
  %v1982 = vpop.permute.xlu0 %1981
  %1985 = vset.pattern.permute.xlu0 0
  %1986 = vperm.xlu0 %1985, %v1976
  %v1987 = vpop.permute.xlu0 %1986
  %1990 = vset.pattern.permute.xlu0 0
  %1991 = vperm.xlu0 %1990, %v1977
  %v1992 = vpop.permute.xlu0 %1991
  %1995 = vset.pattern.permute.xlu0 0
  %1996 = vperm.xlu0 %1995, %v1978
  %v1997 = vpop.permute.xlu0 %1996
  %v1999 = vadd.f32 %v1959, %v1982
  %v2000 = vadd.f32 %v1960, %v1982
  %v2001 = vadd.f32 %v1961, %v1982
  %v2002 = vadd.f32 %v1962, %v1982
  %v2003 = vadd.f32 %v1963, %v1987
  %v2004 = vadd.f32 %v1964, %v1987
  %v2005 = vadd.f32 %v1965, %v1987
  %v2006 = vadd.f32 %v1966, %v1987
  %v2007 = vadd.f32 %v1967, %v1992
  %v2008 = vadd.f32 %v1968, %v1992
  %v2009 = vadd.f32 %v1969, %v1992
  %v2010 = vadd.f32 %v1970, %v1992
  %v2011 = vadd.f32 %v1971, %v1997
  %v2012 = vadd.f32 %v1972, %v1997
  %v2013 = vadd.f32 %v1973, %v1997
  %v2014 = vadd.f32 %v1974, %v1997
  %v2015 = vld [vmem:[%s8] sm:$0xff]
  %v2016 = vld [vmem:[%s8 + $0x8] sm:$0xff]
  %v2017 = vld [vmem:[%s8 + $0x10] sm:$0xff]
  %v2018 = vld [vmem:[%s8 + $0x18] sm:$0xff]
  %v2019 = vld [vmem:[%s9] sm:$0xff]
  %v2020 = vld [vmem:[%s9 + $0x8] sm:$0xff]
  %v2021 = vld [vmem:[%s9 + $0x10] sm:$0xff]
  %v2022 = vld [vmem:[%s9 + $0x18] sm:$0xff]
  %v2023 = vadd.f32 %v1999, %v2000
  %2024 = vadd.xlane.f32.xlu0 %v2023
  %v2025 = vpop.xlane.xlu0 %2024
  %v2026 = vadd.f32 %v2003, %v2004
  %2027 = vadd.xlane.f32.xlu0 %v2026
  %v2028 = vpop.xlane.xlu0 %2027
  %v2029 = vadd.f32 %v2007, %v2008
  %2030 = vadd.xlane.f32.xlu0 %v2029
  %v2031 = vpop.xlane.xlu0 %2030
  %v2032 = vadd.f32 %v2011, %v2012
  %2033 = vadd.xlane.f32.xlu0 %v2032
  %v2034 = vpop.xlane.xlu0 %2033
  %2035 = vmatprep.subr.mxu0 0.0
  %2036 = vmatpush1.msra.mxu0 0.0
  %2037 = vmatprep.subr.mxu0 0.0
  %2038 = vmatpush1.msra.mxu0 0.0
  %2039 = vmatprep.subr.mxu0 0.0
  %2040 = vmatpush1.msra.mxu0 0.0
  %2041 = vmatprep.subr.mxu0 0.0
  %2042 = vmatpush1.msra.mxu0 0.0
  %2043 = vmatprep.subr.mxu0 0.0
  %2044 = vmatpush1.msra.mxu0 0.0
  %2045 = vmatprep.subr.mxu0 0.0
  %2046 = vmatpush1.msra.mxu0 0.0
  %2047 = vmatprep.subr.mxu0 0.0
  %2048 = vmatpush1.msra.mxu0 0.0
  %2049 = vmatprep.subr.mxu0 0.0
  %2050 = vmatpush1.msra.mxu0 0.0
  %2051 = vmatprep.subr.mxu0 0.0
  %2052 = vmatpush1.msra.mxu0 0.0
  %2053 = vmatprep.subr.mxu0 0.0
  %2054 = vmatpush1.msra.mxu0 0.0
  %2055 = vmatprep.subr.mxu0 0.0
  %2056 = vmatpush1.msra.mxu0 0.0
  %2057 = vmatprep.subr.mxu0 0.0
  %2058 = vmatpush1.msra.mxu0 0.0
  %2059 = vmatprep.subr.mxu0 0.0
  %2060 = vmatpush1.msra.mxu0 %v2034
  %2061 = vmatprep.subr.mxu0 0.0
  %2062 = vmatpush1.msra.mxu0 %v2031
  %2063 = vmatprep.subr.mxu0 0.0
  %2064 = vmatpush1.msra.mxu0 %v2028
  %2065 = vmatprep.subr.mxu0 0.0
  %2066 = vmatpush1.msra.mxu0 %v2025
  %2067 = vmatprep.subr.mxu0 0.0
  %2068 = vmatpush2.msra.mxu0 0.0
  %2069 = vmatprep.subr.mxu0 0.0
  %2070 = vmatpush2.msra.mxu0 0.0
  %2071 = vmatprep.subr.mxu0 0.0
  %2072 = vmatpush2.msra.mxu0 0.0
  %2073 = vmatprep.subr.mxu0 0.0
  %2074 = vmatpush2.msra.mxu0 0.0
  %2075 = vmatprep.subr.mxu0 0.0
  %2076 = vmatpush2.msra.mxu0 0.0
  %2077 = vmatprep.subr.mxu0 0.0
  %2078 = vmatpush2.msra.mxu0 0.0
  %2079 = vmatprep.subr.mxu0 0.0
  %2080 = vmatpush2.msra.mxu0 0.0
  %2081 = vmatprep.subr.mxu0 0.0
  %2082 = vmatpush2.msra.mxu0 0.0
  %2083 = vmatprep.subr.mxu0 0.0
  %2084 = vmatpush2.msra.mxu0 0.0
  %2085 = vmatprep.subr.mxu0 0.0
  %2086 = vmatpush2.msra.mxu0 0.0
  %2087 = vmatprep.subr.mxu0 0.0
  %2088 = vmatpush2.msra.mxu0 0.0
  %2089 = vmatprep.subr.mxu0 0.0
  %2090 = vmatpush2.msra.mxu0 0.0
  %2091 = vmatprep.subr.mxu0 0.0
  %2092 = vmatpush2.msra.mxu0 0.0
  %2093 = vmatprep.subr.mxu0 0.0
  %2094 = vmatpush2.msra.mxu0 0.0
  %2095 = vmatprep.subr.mxu0 0.0
  %2096 = vmatpush2.msra.mxu0 0.0
  %2097 = vmatprep.subr.mxu0 0.0
  %2098 = vmatpush2.msra.mxu0 0.0
  %2099 = vmatprep.mubr.f32.mxu0 0.0
  %2100 = vmatmul.mubr.f32.gmra.mxu0 %v665
  %v2101 = vpop.f32.mrf.mxu0
  %v2102 = vadd.f32 0.0, %v2101
  %v2103 = vpop.f32.mrf.mxu0
  %2104 = vmatprep.mubr.f32.mxu0 0.0
  %2105 = vmatmul.mubr.f32.gmra.mxu0 %v668
  %v2106 = vpop.f32.mrf.mxu0
  %v2107 = vadd.f32 0.0, %v2106
  %v2108 = vpop.f32.mrf.mxu0
  %2109 = vmatprep.mubr.f32.mxu0 0.0
  %2110 = vmatmul.mubr.f32.gmra.mxu0 %v671
  %v2111 = vpop.f32.mrf.mxu0
  %v2112 = vadd.f32 0.0, %v2111
  %v2113 = vpop.f32.mrf.mxu0
  %2114 = vmatprep.mubr.f32.mxu0 0.0
  %2115 = vmatmul.mubr.f32.gmra.mxu0 %v674
  %v2116 = vpop.f32.mrf.mxu0
  %v2117 = vadd.f32 0.0, %v2116
  %v2118 = vpop.f32.mrf.mxu0
  %2119 = vdwg.mxu0
  %2121 = vset.pattern.permute.xlu0 0
  %2122 = vperm.xlu0 %2121, %v2102
  %v2123 = vpop.permute.xlu0 %2122
  %2126 = vset.pattern.permute.xlu0 0
  %2127 = vperm.xlu0 %2126, %v2107
  %v2128 = vpop.permute.xlu0 %2127
  %2131 = vset.pattern.permute.xlu0 0
  %2132 = vperm.xlu0 %2131, %v2112
  %v2133 = vpop.permute.xlu0 %2132
  %2136 = vset.pattern.permute.xlu0 0
  %2137 = vperm.xlu0 %2136, %v2117
  %v2138 = vpop.permute.xlu0 %2137
  %v2140 = vsub.f32 %v1999, %v2123
  %v2141 = vsub.f32 %v2000, %v2123
  %v2142 = vsub.f32 %v2003, %v2128
  %v2143 = vsub.f32 %v2004, %v2128
  %v2144 = vsub.f32 %v2007, %v2133
  %v2145 = vsub.f32 %v2008, %v2133
  %v2146 = vsub.f32 %v2011, %v2138
  %v2147 = vsub.f32 %v2012, %v2138
  %v2148 = vmul.f32 %v2140, %v2140
  %v2149 = vmul.f32 %v2141, %v2141
  %v2150 = vmul.f32 %v2142, %v2142
  %v2151 = vmul.f32 %v2143, %v2143
  %v2152 = vmul.f32 %v2144, %v2144
  %v2153 = vmul.f32 %v2145, %v2145
  %v2154 = vmul.f32 %v2146, %v2146
  %v2155 = vmul.f32 %v2147, %v2147
  %v2156 = vadd.f32 %v2148, %v2149
  %2157 = vadd.xlane.f32.xlu0 %v2156
  %v2158 = vpop.xlane.xlu0 %2157
  %v2159 = vadd.f32 %v2150, %v2151
  %2160 = vadd.xlane.f32.xlu0 %v2159
  %v2161 = vpop.xlane.xlu0 %2160
  %v2162 = vadd.f32 %v2152, %v2153
  %2163 = vadd.xlane.f32.xlu0 %v2162
  %v2164 = vpop.xlane.xlu0 %2163
  %v2165 = vadd.f32 %v2154, %v2155
  %2166 = vadd.xlane.f32.xlu0 %v2165
  %v2167 = vpop.xlane.xlu0 %2166
  %2168 = vmatprep.subr.mxu0 0.0
  %2169 = vmatpush1.msra.mxu0 0.0
  %2170 = vmatprep.subr.mxu0 0.0
  %2171 = vmatpush1.msra.mxu0 0.0
  %2172 = vmatprep.subr.mxu0 0.0
  %2173 = vmatpush1.msra.mxu0 0.0
  %2174 = vmatprep.subr.mxu0 0.0
  %2175 = vmatpush1.msra.mxu0 0.0
  %2176 = vmatprep.subr.mxu0 0.0
  %2177 = vmatpush1.msra.mxu0 0.0
  %2178 = vmatprep.subr.mxu0 0.0
  %2179 = vmatpush1.msra.mxu0 0.0
  %2180 = vmatprep.subr.mxu0 0.0
  %2181 = vmatpush1.msra.mxu0 0.0
  %2182 = vmatprep.subr.mxu0 0.0
  %2183 = vmatpush1.msra.mxu0 0.0
  %2184 = vmatprep.subr.mxu0 0.0
  %2185 = vmatpush1.msra.mxu0 0.0
  %2186 = vmatprep.subr.mxu0 0.0
  %2187 = vmatpush1.msra.mxu0 0.0
  %2188 = vmatprep.subr.mxu0 0.0
  %2189 = vmatpush1.msra.mxu0 0.0
  %2190 = vmatprep.subr.mxu0 0.0
  %2191 = vmatpush1.msra.mxu0 0.0
  %2192 = vmatprep.subr.mxu0 0.0
  %2193 = vmatpush1.msra.mxu0 %v2167
  %2194 = vmatprep.subr.mxu0 0.0
  %2195 = vmatpush1.msra.mxu0 %v2164
  %2196 = vmatprep.subr.mxu0 0.0
  %2197 = vmatpush1.msra.mxu0 %v2161
  %2198 = vmatprep.subr.mxu0 0.0
  %2199 = vmatpush1.msra.mxu0 %v2158
  %2200 = vmatprep.subr.mxu0 0.0
  %2201 = vmatpush2.msra.mxu0 0.0
  %2202 = vmatprep.subr.mxu0 0.0
  %2203 = vmatpush2.msra.mxu0 0.0
  %2204 = vmatprep.subr.mxu0 0.0
  %2205 = vmatpush2.msra.mxu0 0.0
  %2206 = vmatprep.subr.mxu0 0.0
  %2207 = vmatpush2.msra.mxu0 0.0
  %2208 = vmatprep.subr.mxu0 0.0
  %2209 = vmatpush2.msra.mxu0 0.0
  %2210 = vmatprep.subr.mxu0 0.0
  %2211 = vmatpush2.msra.mxu0 0.0
  %2212 = vmatprep.subr.mxu0 0.0
  %2213 = vmatpush2.msra.mxu0 0.0
  %2214 = vmatprep.subr.mxu0 0.0
  %2215 = vmatpush2.msra.mxu0 0.0
  %2216 = vmatprep.subr.mxu0 0.0
  %2217 = vmatpush2.msra.mxu0 0.0
  %2218 = vmatprep.subr.mxu0 0.0
  %2219 = vmatpush2.msra.mxu0 0.0
  %2220 = vmatprep.subr.mxu0 0.0
  %2221 = vmatpush2.msra.mxu0 0.0
  %2222 = vmatprep.subr.mxu0 0.0
  %2223 = vmatpush2.msra.mxu0 0.0
  %2224 = vmatprep.subr.mxu0 0.0
  %2225 = vmatpush2.msra.mxu0 0.0
  %2226 = vmatprep.subr.mxu0 0.0
  %2227 = vmatpush2.msra.mxu0 0.0
  %2228 = vmatprep.subr.mxu0 0.0
  %2229 = vmatpush2.msra.mxu0 0.0
  %2230 = vmatprep.subr.mxu0 0.0
  %2231 = vmatpush2.msra.mxu0 0.0
  %2232 = vmatprep.mubr.f32.mxu0 0.0
  %2233 = vmatmul.mubr.f32.gmra.mxu0 %v665
  %v2234 = vpop.f32.mrf.mxu0
  %v2235 = vadd.f32 1e-05, %v2234
  %v2236 = vpop.f32.mrf.mxu0
  %2237 = vmatprep.mubr.f32.mxu0 0.0
  %2238 = vmatmul.mubr.f32.gmra.mxu0 %v668
  %v2239 = vpop.f32.mrf.mxu0
  %v2240 = vadd.f32 1e-05, %v2239
  %v2241 = vpop.f32.mrf.mxu0
  %2242 = vmatprep.mubr.f32.mxu0 0.0
  %2243 = vmatmul.mubr.f32.gmra.mxu0 %v671
  %v2244 = vpop.f32.mrf.mxu0
  %v2245 = vadd.f32 1e-05, %v2244
  %v2246 = vpop.f32.mrf.mxu0
  %2247 = vmatprep.mubr.f32.mxu0 0.0
  %2248 = vmatmul.mubr.f32.gmra.mxu0 %v674
  %v2249 = vpop.f32.mrf.mxu0
  %v2250 = vadd.f32 1e-05, %v2249
  %v2251 = vpop.f32.mrf.mxu0
  %2252 = vdwg.mxu0
  %v2253 = vrsqrt.pop %v2235
  %v2254 = vrsqrt.pop %v2240
  %v2255 = vrsqrt.pop %v2245
  %v2256 = vrsqrt.pop %v2250
  %v2257 = vmul.f32 %v2015, %v2253
  %v2258 = vmul.f32 %v2016, %v2254
  %v2259 = vmul.f32 %v2017, %v2255
  %v2260 = vmul.f32 %v2018, %v2256
  %2262 = vset.pattern.permute.xlu0 0
  %2263 = vperm.xlu0 %2262, %v2257
  %v2264 = vpop.permute.xlu0 %2263
  %2267 = vset.pattern.permute.xlu0 0
  %2268 = vperm.xlu0 %2267, %v2258
  %v2269 = vpop.permute.xlu0 %2268
  %2272 = vset.pattern.permute.xlu0 0
  %2273 = vperm.xlu0 %2272, %v2259
  %v2274 = vpop.permute.xlu0 %2273
  %2277 = vset.pattern.permute.xlu0 0
  %2278 = vperm.xlu0 %2277, %v2260
  %v2279 = vpop.permute.xlu0 %2278
  %v2281 = vmul.f32 %v2140, %v2264
  %v2282 = vmul.f32 %v2141, %v2264
  %v2283 = vmul.f32 %v2142, %v2269
  %v2284 = vmul.f32 %v2143, %v2269
  %v2285 = vmul.f32 %v2144, %v2274
  %v2286 = vmul.f32 %v2145, %v2274
  %v2287 = vmul.f32 %v2146, %v2279
  %v2288 = vmul.f32 %v2147, %v2279
  %2290 = vset.pattern.permute.xlu0 0
  %2291 = vperm.xlu0 %2290, %v2019
  %v2292 = vpop.permute.xlu0 %2291
  %2295 = vset.pattern.permute.xlu0 0
  %2296 = vperm.xlu0 %2295, %v2020
  %v2297 = vpop.permute.xlu0 %2296
  %2300 = vset.pattern.permute.xlu0 0
  %2301 = vperm.xlu0 %2300, %v2021
  %v2302 = vpop.permute.xlu0 %2301
  %2305 = vset.pattern.permute.xlu0 0
  %2306 = vperm.xlu0 %2305, %v2022
  %v2307 = vpop.permute.xlu0 %2306
  %v2309 = vadd.f32 %v2281, %v2292
  %v2310 = vadd.f32 %v2282, %v2292
  %v2311 = vadd.f32 %v2283, %v2297
  %v2312 = vadd.f32 %v2284, %v2297
  %v2313 = vadd.f32 %v2285, %v2302
  %v2314 = vadd.f32 %v2286, %v2302
  %v2315 = vadd.f32 %v2287, %v2307
  %v2316 = vadd.f32 %v2288, %v2307
  %v2317 = vadd.f32 %v2001, %v2002
  %2318 = vadd.xlane.f32.xlu0 %v2317
  %v2319 = vpop.xlane.xlu0 %2318
  %v2320 = vadd.f32 %v2005, %v2006
  %2321 = vadd.xlane.f32.xlu0 %v2320
  %v2322 = vpop.xlane.xlu0 %2321
  %v2323 = vadd.f32 %v2009, %v2010
  %2324 = vadd.xlane.f32.xlu0 %v2323
  %v2325 = vpop.xlane.xlu0 %2324
  %v2326 = vadd.f32 %v2013, %v2014
  %2327 = vadd.xlane.f32.xlu0 %v2326
  %v2328 = vpop.xlane.xlu0 %2327
  %2329 = vmatprep.subr.mxu0 0.0
  %2330 = vmatpush1.msra.mxu0 0.0
  %2331 = vmatprep.subr.mxu0 0.0
  %2332 = vmatpush1.msra.mxu0 0.0
  %2333 = vmatprep.subr.mxu0 0.0
  %2334 = vmatpush1.msra.mxu0 0.0
  %2335 = vmatprep.subr.mxu0 0.0
  %2336 = vmatpush1.msra.mxu0 0.0
  %2337 = vmatprep.subr.mxu0 0.0
  %2338 = vmatpush1.msra.mxu0 0.0
  %2339 = vmatprep.subr.mxu0 0.0
  %2340 = vmatpush1.msra.mxu0 0.0
  %2341 = vmatprep.subr.mxu0 0.0
  %2342 = vmatpush1.msra.mxu0 0.0
  %2343 = vmatprep.subr.mxu0 0.0
  %2344 = vmatpush1.msra.mxu0 0.0
  %2345 = vmatprep.subr.mxu0 0.0
  %2346 = vmatpush1.msra.mxu0 0.0
  %2347 = vmatprep.subr.mxu0 0.0
  %2348 = vmatpush1.msra.mxu0 0.0
  %2349 = vmatprep.subr.mxu0 0.0
  %2350 = vmatpush1.msra.mxu0 0.0
  %2351 = vmatprep.subr.mxu0 0.0
  %2352 = vmatpush1.msra.mxu0 0.0
  %2353 = vmatprep.subr.mxu0 0.0
  %2354 = vmatpush1.msra.mxu0 %v2328
  %2355 = vmatprep.subr.mxu0 0.0
  %2356 = vmatpush1.msra.mxu0 %v2325
  %2357 = vmatprep.subr.mxu0 0.0
  %2358 = vmatpush1.msra.mxu0 %v2322
  %2359 = vmatprep.subr.mxu0 0.0
  %2360 = vmatpush1.msra.mxu0 %v2319
  %2361 = vmatprep.subr.mxu0 0.0
  %2362 = vmatpush2.msra.mxu0 0.0
  %2363 = vmatprep.subr.mxu0 0.0
  %2364 = vmatpush2.msra.mxu0 0.0
  %2365 = vmatprep.subr.mxu0 0.0
  %2366 = vmatpush2.msra.mxu0 0.0
  %2367 = vmatprep.subr.mxu0 0.0
  %2368 = vmatpush2.msra.mxu0 0.0
  %2369 = vmatprep.subr.mxu0 0.0
  %2370 = vmatpush2.msra.mxu0 0.0
  %2371 = vmatprep.subr.mxu0 0.0
  %2372 = vmatpush2.msra.mxu0 0.0
  %2373 = vmatprep.subr.mxu0 0.0
  %2374 = vmatpush2.msra.mxu0 0.0
  %2375 = vmatprep.subr.mxu0 0.0
  %2376 = vmatpush2.msra.mxu0 0.0
  %2377 = vmatprep.subr.mxu0 0.0
  %2378 = vmatpush2.msra.mxu0 0.0
  %2379 = vmatprep.subr.mxu0 0.0
  %2380 = vmatpush2.msra.mxu0 0.0
  %2381 = vmatprep.subr.mxu0 0.0
  %2382 = vmatpush2.msra.mxu0 0.0
  %2383 = vmatprep.subr.mxu0 0.0
  %2384 = vmatpush2.msra.mxu0 0.0
  %2385 = vmatprep.subr.mxu0 0.0
  %2386 = vmatpush2.msra.mxu0 0.0
  %2387 = vmatprep.subr.mxu0 0.0
  %2388 = vmatpush2.msra.mxu0 0.0
  %2389 = vmatprep.subr.mxu0 0.0
  %2390 = vmatpush2.msra.mxu0 0.0
  %2391 = vmatprep.subr.mxu0 0.0
  %2392 = vmatpush2.msra.mxu0 0.0
  %2393 = vmatprep.mubr.f32.mxu0 0.0
  %2394 = vmatmul.mubr.f32.gmra.mxu0 %v665
  %v2395 = vpop.f32.mrf.mxu0
  %v2396 = vadd.f32 0.0, %v2395
  %v2397 = vpop.f32.mrf.mxu0
  %2398 = vmatprep.mubr.f32.mxu0 0.0
  %2399 = vmatmul.mubr.f32.gmra.mxu0 %v668
  %v2400 = vpop.f32.mrf.mxu0
  %v2401 = vadd.f32 0.0, %v2400
  %v2402 = vpop.f32.mrf.mxu0
  %2403 = vmatprep.mubr.f32.mxu0 0.0
  %2404 = vmatmul.mubr.f32.gmra.mxu0 %v671
  %v2405 = vpop.f32.mrf.mxu0
  %v2406 = vadd.f32 0.0, %v2405
  %v2407 = vpop.f32.mrf.mxu0
  %2408 = vmatprep.mubr.f32.mxu0 0.0
  %2409 = vmatmul.mubr.f32.gmra.mxu0 %v674
  %v2410 = vpop.f32.mrf.mxu0
  %v2411 = vadd.f32 0.0, %v2410
  %v2412 = vpop.f32.mrf.mxu0
  %2413 = vdwg.mxu0
  %2415 = vset.pattern.permute.xlu0 0
  %2416 = vperm.xlu0 %2415, %v2396
  %v2417 = vpop.permute.xlu0 %2416
  %2420 = vset.pattern.permute.xlu0 0
  %2421 = vperm.xlu0 %2420, %v2401
  %v2422 = vpop.permute.xlu0 %2421
  %2425 = vset.pattern.permute.xlu0 0
  %2426 = vperm.xlu0 %2425, %v2406
  %v2427 = vpop.permute.xlu0 %2426
  %2430 = vset.pattern.permute.xlu0 0
  %2431 = vperm.xlu0 %2430, %v2411
  %v2432 = vpop.permute.xlu0 %2431
  %v2434 = vsub.f32 %v2001, %v2417
  %v2435 = vsub.f32 %v2002, %v2417
  %v2436 = vsub.f32 %v2005, %v2422
  %v2437 = vsub.f32 %v2006, %v2422
  %v2438 = vsub.f32 %v2009, %v2427
  %v2439 = vsub.f32 %v2010, %v2427
  %v2440 = vsub.f32 %v2013, %v2432
  %v2441 = vsub.f32 %v2014, %v2432
  %v2442 = vmul.f32 %v2434, %v2434
  %v2443 = vmul.f32 %v2435, %v2435
  %v2444 = vmul.f32 %v2436, %v2436
  %v2445 = vmul.f32 %v2437, %v2437
  %v2446 = vmul.f32 %v2438, %v2438
  %v2447 = vmul.f32 %v2439, %v2439
  %v2448 = vmul.f32 %v2440, %v2440
  %v2449 = vmul.f32 %v2441, %v2441
  %v2450 = vadd.f32 %v2442, %v2443
  %2451 = vadd.xlane.f32.xlu0 %v2450
  %v2452 = vpop.xlane.xlu0 %2451
  %v2453 = vadd.f32 %v2444, %v2445
  %2454 = vadd.xlane.f32.xlu0 %v2453
  %v2455 = vpop.xlane.xlu0 %2454
  %v2456 = vadd.f32 %v2446, %v2447
  %2457 = vadd.xlane.f32.xlu0 %v2456
  %v2458 = vpop.xlane.xlu0 %2457
  %v2459 = vadd.f32 %v2448, %v2449
  %2460 = vadd.xlane.f32.xlu0 %v2459
  %v2461 = vpop.xlane.xlu0 %2460
  %2462 = vmatprep.subr.mxu0 0.0
  %2463 = vmatpush1.msra.mxu0 0.0
  %2464 = vmatprep.subr.mxu0 0.0
  %2465 = vmatpush1.msra.mxu0 0.0
  %2466 = vmatprep.subr.mxu0 0.0
  %2467 = vmatpush1.msra.mxu0 0.0
  %2468 = vmatprep.subr.mxu0 0.0
  %2469 = vmatpush1.msra.mxu0 0.0
  %2470 = vmatprep.subr.mxu0 0.0
  %2471 = vmatpush1.msra.mxu0 0.0
  %2472 = vmatprep.subr.mxu0 0.0
  %2473 = vmatpush1.msra.mxu0 0.0
  %2474 = vmatprep.subr.mxu0 0.0
  %2475 = vmatpush1.msra.mxu0 0.0
  %2476 = vmatprep.subr.mxu0 0.0
  %2477 = vmatpush1.msra.mxu0 0.0
  %2478 = vmatprep.subr.mxu0 0.0
  %2479 = vmatpush1.msra.mxu0 0.0
  %2480 = vmatprep.subr.mxu0 0.0
  %2481 = vmatpush1.msra.mxu0 0.0
  %2482 = vmatprep.subr.mxu0 0.0
  %2483 = vmatpush1.msra.mxu0 0.0
  %2484 = vmatprep.subr.mxu0 0.0
  %2485 = vmatpush1.msra.mxu0 0.0
  %2486 = vmatprep.subr.mxu0 0.0
  %2487 = vmatpush1.msra.mxu0 %v2461
  %2488 = vmatprep.subr.mxu0 0.0
  %2489 = vmatpush1.msra.mxu0 %v2458
  %2490 = vmatprep.subr.mxu0 0.0
  %2491 = vmatpush1.msra.mxu0 %v2455
  %2492 = vmatprep.subr.mxu0 0.0
  %2493 = vmatpush1.msra.mxu0 %v2452
  %2494 = vmatprep.subr.mxu0 0.0
  %2495 = vmatpush2.msra.mxu0 0.0
  %2496 = vmatprep.subr.mxu0 0.0
  %2497 = vmatpush2.msra.mxu0 0.0
  %2498 = vmatprep.subr.mxu0 0.0
  %2499 = vmatpush2.msra.mxu0 0.0
  %2500 = vmatprep.subr.mxu0 0.0
  %2501 = vmatpush2.msra.mxu0 0.0
  %2502 = vmatprep.subr.mxu0 0.0
  %2503 = vmatpush2.msra.mxu0 0.0
  %2504 = vmatprep.subr.mxu0 0.0
  %2505 = vmatpush2.msra.mxu0 0.0
  %2506 = vmatprep.subr.mxu0 0.0
  %2507 = vmatpush2.msra.mxu0 0.0
  %2508 = vmatprep.subr.mxu0 0.0
  %2509 = vmatpush2.msra.mxu0 0.0
  %2510 = vmatprep.subr.mxu0 0.0
  %2511 = vmatpush2.msra.mxu0 0.0
  %2512 = vmatprep.subr.mxu0 0.0
  %2513 = vmatpush2.msra.mxu0 0.0
  %2514 = vmatprep.subr.mxu0 0.0
  %2515 = vmatpush2.msra.mxu0 0.0
  %2516 = vmatprep.subr.mxu0 0.0
  %2517 = vmatpush2.msra.mxu0 0.0
  %2518 = vmatprep.subr.mxu0 0.0
  %2519 = vmatpush2.msra.mxu0 0.0
  %2520 = vmatprep.subr.mxu0 0.0
  %2521 = vmatpush2.msra.mxu0 0.0
  %2522 = vmatprep.subr.mxu0 0.0
  %2523 = vmatpush2.msra.mxu0 0.0
  %2524 = vmatprep.subr.mxu0 0.0
  %2525 = vmatpush2.msra.mxu0 0.0
  %2526 = vmatprep.mubr.f32.mxu0 0.0
  %2527 = vmatmul.mubr.f32.gmra.mxu0 %v665
  %v2528 = vpop.f32.mrf.mxu0
  %v2529 = vadd.f32 1e-05, %v2528
  %v2530 = vpop.f32.mrf.mxu0
  %2531 = vmatprep.mubr.f32.mxu0 0.0
  %2532 = vmatmul.mubr.f32.gmra.mxu0 %v668
  %v2533 = vpop.f32.mrf.mxu0
  %v2534 = vadd.f32 1e-05, %v2533
  %v2535 = vpop.f32.mrf.mxu0
  %2536 = vmatprep.mubr.f32.mxu0 0.0
  %2537 = vmatmul.mubr.f32.gmra.mxu0 %v671
  %v2538 = vpop.f32.mrf.mxu0
  %v2539 = vadd.f32 1e-05, %v2538
  %v2540 = vpop.f32.mrf.mxu0
  %2541 = vmatprep.mubr.f32.mxu0 0.0
  %2542 = vmatmul.mubr.f32.gmra.mxu0 %v674
  %v2543 = vpop.f32.mrf.mxu0
  %v2544 = vadd.f32 1e-05, %v2543
  %v2545 = vpop.f32.mrf.mxu0
  %2546 = vdwg.mxu0
  %v2547 = vrsqrt.pop %v2529
  %v2548 = vrsqrt.pop %v2534
  %v2549 = vrsqrt.pop %v2539
  %v2550 = vrsqrt.pop %v2544
  %v2551 = vmul.f32 %v2015, %v2547
  %v2552 = vmul.f32 %v2016, %v2548
  %v2553 = vmul.f32 %v2017, %v2549
  %v2554 = vmul.f32 %v2018, %v2550
  %2556 = vset.pattern.permute.xlu0 0
  %2557 = vperm.xlu0 %2556, %v2551
  %v2558 = vpop.permute.xlu0 %2557
  %2561 = vset.pattern.permute.xlu0 0
  %2562 = vperm.xlu0 %2561, %v2552
  %v2563 = vpop.permute.xlu0 %2562
  %2566 = vset.pattern.permute.xlu0 0
  %2567 = vperm.xlu0 %2566, %v2553
  %v2568 = vpop.permute.xlu0 %2567
  %2571 = vset.pattern.permute.xlu0 0
  %2572 = vperm.xlu0 %2571, %v2554
  %v2573 = vpop.permute.xlu0 %2572
  %v2575 = vmul.f32 %v2434, %v2558
  %v2576 = vmul.f32 %v2435, %v2558
  %v2577 = vmul.f32 %v2436, %v2563
  %v2578 = vmul.f32 %v2437, %v2563
  %v2579 = vmul.f32 %v2438, %v2568
  %v2580 = vmul.f32 %v2439, %v2568
  %v2581 = vmul.f32 %v2440, %v2573
  %v2582 = vmul.f32 %v2441, %v2573
  %v2583 = vadd.f32 %v2575, %v2292
  %v2584 = vadd.f32 %v2576, %v2292
  %v2585 = vadd.f32 %v2577, %v2297
  %v2586 = vadd.f32 %v2578, %v2297
  %v2587 = vadd.f32 %v2579, %v2302
  %v2588 = vadd.f32 %v2580, %v2302
  %v2589 = vadd.f32 %v2581, %v2307
  %v2590 = vadd.f32 %v2582, %v2307
  %v2591 = vmul.f32 %v2309, 0.5
  %v2592 = vmul.f32 %v2310, 0.5
  %v2593 = vmul.f32 %v2583, 0.5
  %v2594 = vmul.f32 %v2584, 0.5
  %v2595 = vmul.f32 %v2311, 0.5
  %v2596 = vmul.f32 %v2312, 0.5
  %v2597 = vmul.f32 %v2585, 0.5
  %v2598 = vmul.f32 %v2586, 0.5
  %v2599 = vmul.f32 %v2313, 0.5
  %v2600 = vmul.f32 %v2314, 0.5
  %v2601 = vmul.f32 %v2587, 0.5
  %v2602 = vmul.f32 %v2588, 0.5
  %v2603 = vmul.f32 %v2315, 0.5
  %v2604 = vmul.f32 %v2316, 0.5
  %v2605 = vmul.f32 %v2589, 0.5
  %v2606 = vmul.f32 %v2590, 0.5
  %v2607 = vmul.f32 %v2309, 0.70710677
  %v2608 = vmul.f32 %v2310, 0.70710677
  %v2609 = vmul.f32 %v2583, 0.70710677
  %v2610 = vmul.f32 %v2584, 0.70710677
  %v2611 = vmul.f32 %v2311, 0.70710677
  %v2612 = vmul.f32 %v2312, 0.70710677
  %v2613 = vmul.f32 %v2585, 0.70710677
  %v2614 = vmul.f32 %v2586, 0.70710677
  %v2615 = vmul.f32 %v2313, 0.70710677
  %v2616 = vmul.f32 %v2314, 0.70710677
  %v2617 = vmul.f32 %v2587, 0.70710677
  %v2618 = vmul.f32 %v2588, 0.70710677
  %v2619 = vmul.f32 %v2315, 0.70710677
  %v2620 = vmul.f32 %v2316, 0.70710677
  %v2621 = vmul.f32 %v2589, 0.70710677
  %v2622 = vmul.f32 %v2590, 0.70710677
  %v2623 = verf.f32.pop %v2607
  %v2624 = verf.f32.pop %v2608
  %v2625 = verf.f32.pop %v2609
  %v2626 = verf.f32.pop %v2610
  %v2627 = verf.f32.pop %v2611
  %v2628 = verf.f32.pop %v2612
  %v2629 = verf.f32.pop %v2613
  %v2630 = verf.f32.pop %v2614
  %v2631 = verf.f32.pop %v2615
  %v2632 = verf.f32.pop %v2616
  %v2633 = verf.f32.pop %v2617
  %v2634 = verf.f32.pop %v2618
  %v2635 = verf.f32.pop %v2619
  %v2636 = verf.f32.pop %v2620
  %v2637 = verf.f32.pop %v2621
  %v2638 = verf.f32.pop %v2622
  %v2639 = vadd.f32 %v2623, 1.0
  %v2640 = vadd.f32 %v2624, 1.0
  %v2641 = vadd.f32 %v2625, 1.0
  %v2642 = vadd.f32 %v2626, 1.0
  %v2643 = vadd.f32 %v2627, 1.0
  %v2644 = vadd.f32 %v2628, 1.0
  %v2645 = vadd.f32 %v2629, 1.0
  %v2646 = vadd.f32 %v2630, 1.0
  %v2647 = vadd.f32 %v2631, 1.0
  %v2648 = vadd.f32 %v2632, 1.0
  %v2649 = vadd.f32 %v2633, 1.0
  %v2650 = vadd.f32 %v2634, 1.0
  %v2651 = vadd.f32 %v2635, 1.0
  %v2652 = vadd.f32 %v2636, 1.0
  %v2653 = vadd.f32 %v2637, 1.0
  %v2654 = vadd.f32 %v2638, 1.0
  %v2655 = vmul.f32 %v2591, %v2639
  %v2656 = vmul.f32 %v2592, %v2640
  %v2657 = vmul.f32 %v2593, %v2641
  %v2658 = vmul.f32 %v2594, %v2642
  %v2659 = vmul.f32 %v2595, %v2643
  %v2660 = vmul.f32 %v2596, %v2644
  %v2661 = vmul.f32 %v2597, %v2645
  %v2662 = vmul.f32 %v2598, %v2646
  %v2663 = vmul.f32 %v2599, %v2647
  %v2664 = vmul.f32 %v2600, %v2648
  %v2665 = vmul.f32 %v2601, %v2649
  %v2666 = vmul.f32 %v2602, %v2650
  %v2667 = vmul.f32 %v2603, %v2651
  %v2668 = vmul.f32 %v2604, %v2652
  %v2669 = vmul.f32 %v2605, %v2653
  %v2670 = vmul.f32 %v2606, %v2654
  %v2671 = vadd.f32 %v2655, %v532
  %v2672 = vadd.f32 %v2656, %v534
  %v2673 = vadd.f32 %v2657, %v621
  %v2674 = vadd.f32 %v2658, %v623
  %v2675 = vadd.f32 %v2659, %v538
  %v2676 = vadd.f32 %v2660, %v540
  %v2677 = vadd.f32 %v2661, %v627
  %v2678 = vadd.f32 %v2662, %v629
  %v2679 = vadd.f32 %v2663, %v544
  %v2680 = vadd.f32 %v2664, %v546
  %v2681 = vadd.f32 %v2665, %v633
  %v2682 = vadd.f32 %v2666, %v635
  %v2683 = vadd.f32 %v2667, %v550
  %v2684 = vadd.f32 %v2668, %v552
  %v2685 = vadd.f32 %v2669, %v639
  %v2686 = vadd.f32 %v2670, %v641
  %v2687 = vld [vmem:[%s13] sm:$0xf]
  %v2688 = vld [vmem:[%s14] sm:$0xf]
  %v2689 = vld [vmem:[%s15] sm:$0xff]
  %v2690 = vld [vmem:[%s15 + $0x8] sm:$0xff]
  %v2691 = vld [vmem:[%s15 + $0x10] sm:$0xff]
  %v2692 = vld [vmem:[%s15 + $0x18] sm:$0xff]
  %v2693 = vld [vmem:[%s16] sm:$0xff]
  %v2694 = vld [vmem:[%s16 + $0x8] sm:$0xff]
  %v2695 = vld [vmem:[%s16 + $0x10] sm:$0xff]
  %v2696 = vld [vmem:[%s16 + $0x18] sm:$0xff]
  %v2697 = vadd.f32 %v2671, %v2672
  %2698 = vadd.xlane.f32.xlu0 %v2697
  %v2699 = vpop.xlane.xlu0 %2698
  %v2700 = vadd.f32 %v2675, %v2676
  %2701 = vadd.xlane.f32.xlu0 %v2700
  %v2702 = vpop.xlane.xlu0 %2701
  %v2703 = vadd.f32 %v2679, %v2680
  %2704 = vadd.xlane.f32.xlu0 %v2703
  %v2705 = vpop.xlane.xlu0 %2704
  %v2706 = vadd.f32 %v2683, %v2684
  %2707 = vadd.xlane.f32.xlu0 %v2706
  %v2708 = vpop.xlane.xlu0 %2707
  %v2709 = vrcp.pop 256.0
  %v2710 = vmul.f32 %v2699, %v2709
  %v2711 = vmul.f32 %v2702, %v2709
  %v2712 = vmul.f32 %v2705, %v2709
  %v2713 = vmul.f32 %v2708, %v2709
  %v2714 = vmax.f32 %v2671, %v2672
  %2715 = vmax.xlane.f32.xlu0 %v2714
  %v2716 = vpop.xlane.xlu0 %2715
  %v2717 = vmax.f32 %v2675, %v2676
  %2718 = vmax.xlane.f32.xlu0 %v2717
  %v2719 = vpop.xlane.xlu0 %2718
  %v2720 = vmax.f32 %v2679, %v2680
  %2721 = vmax.xlane.f32.xlu0 %v2720
  %v2722 = vpop.xlane.xlu0 %2721
  %v2723 = vmax.f32 %v2683, %v2684
  %2724 = vmax.xlane.f32.xlu0 %v2723
  %v2725 = vpop.xlane.xlu0 %2724
  %v2727 = vsel %vm663, %v2687, 0
  %2729 = vmatprep.subr.mxu0 0.0
  %2730 = vmatpush1.msra.mxu0 0.0
  %2731 = vmatprep.subr.mxu0 0.0
  %2732 = vmatpush1.msra.mxu0 0.0
  %2733 = vmatprep.subr.mxu0 0.0
  %2734 = vmatpush1.msra.mxu0 0.0
  %2735 = vmatprep.subr.mxu0 0.0
  %2736 = vmatpush1.msra.mxu0 0.0
  %2737 = vmatprep.subr.mxu0 0.0
  %2738 = vmatpush1.msra.mxu0 0.0
  %2739 = vmatprep.subr.mxu0 0.0
  %2740 = vmatpush1.msra.mxu0 0.0
  %2741 = vmatprep.subr.mxu0 0.0
  %2742 = vmatpush1.msra.mxu0 0.0
  %2743 = vmatprep.subr.mxu0 0.0
  %2744 = vmatpush1.msra.mxu0 0.0
  %2745 = vmatprep.subr.mxu0 0.0
  %2746 = vmatpush1.msra.mxu0 0.0
  %2747 = vmatprep.subr.mxu0 0.0
  %2748 = vmatpush1.msra.mxu0 0.0
  %2749 = vmatprep.subr.mxu0 0.0
  %2750 = vmatpush1.msra.mxu0 0.0
  %2751 = vmatprep.subr.mxu0 0.0
  %2752 = vmatpush1.msra.mxu0 0.0
  %2753 = vmatprep.subr.mxu0 0.0
  %2754 = vmatpush1.msra.mxu0 %v2713
  %2755 = vmatprep.subr.mxu0 0.0
  %2756 = vmatpush1.msra.mxu0 %v2712
  %2757 = vmatprep.subr.mxu0 0.0
  %2758 = vmatpush1.msra.mxu0 %v2711
  %2759 = vmatprep.subr.mxu0 0.0
  %2760 = vmatpush1.msra.mxu0 %v2710
  %2761 = vmatprep.subr.mxu0 0.0
  %2762 = vmatpush2.msra.mxu0 0.0
  %2763 = vmatprep.subr.mxu0 0.0
  %2764 = vmatpush2.msra.mxu0 0.0
  %2765 = vmatprep.subr.mxu0 0.0
  %2766 = vmatpush2.msra.mxu0 0.0
  %2767 = vmatprep.subr.mxu0 0.0
  %2768 = vmatpush2.msra.mxu0 0.0
  %2769 = vmatprep.subr.mxu0 0.0
  %2770 = vmatpush2.msra.mxu0 0.0
  %2771 = vmatprep.subr.mxu0 0.0
  %2772 = vmatpush2.msra.mxu0 0.0
  %2773 = vmatprep.subr.mxu0 0.0
  %2774 = vmatpush2.msra.mxu0 0.0
  %2775 = vmatprep.subr.mxu0 0.0
  %2776 = vmatpush2.msra.mxu0 0.0
  %2777 = vmatprep.subr.mxu0 0.0
  %2778 = vmatpush2.msra.mxu0 0.0
  %2779 = vmatprep.subr.mxu0 0.0
  %2780 = vmatpush2.msra.mxu0 0.0
  %2781 = vmatprep.subr.mxu0 0.0
  %2782 = vmatpush2.msra.mxu0 0.0
  %2783 = vmatprep.subr.mxu0 0.0
  %2784 = vmatpush2.msra.mxu0 0.0
  %2785 = vmatprep.subr.mxu0 0.0
  %2786 = vmatpush2.msra.mxu0 0.0
  %2787 = vmatprep.subr.mxu0 0.0
  %2788 = vmatpush2.msra.mxu0 0.0
  %2789 = vmatprep.subr.mxu0 0.0
  %2790 = vmatpush2.msra.mxu0 0.0
  %2791 = vmatprep.subr.mxu0 0.0
  %2792 = vmatpush2.msra.mxu0 0.0
  %2793 = vmatprep.mubr.f32.mxu0 0.0
  %2794 = vmatmul.mubr.f32.gmra.mxu0 %v2727
  %v2795 = vpop.f32.mrf.mxu0
  %v2796 = vadd.f32 %v2688, %v2795
  %v2797 = vpop.f32.mrf.mxu0
  %2798 = vdwg.mxu0
  %v2799 = vmax.f32 %v2796, 0.0
  %vm2800 = vcmask 31744
  %v2802 = vsel %vm2800, %v2689, 0
  %v2805 = vsel %vm2800, %v2690, 0
  %v2808 = vsel %vm2800, %v2691, 0
  %v2811 = vsel %vm2800, %v2692, 0
  %vm2813 = vcmask 1043456
  %v2815 = vsel %vm2813, %v2799, 0
  %2817 = vmatprep.subr.mxu0 0.0
  %2818 = vmatpush1.msra.mxu0 0.0
  %2819 = vmatprep.subr.mxu0 0.0
  %2820 = vmatpush1.msra.mxu0 0.0
  %2821 = vmatprep.subr.mxu0 0.0
  %2822 = vmatpush1.msra.mxu0 0.0
  %2823 = vmatprep.subr.mxu0 0.0
  %2824 = vmatpush1.msra.mxu0 0.0
  %2825 = vmatprep.subr.mxu0 0.0
  %2826 = vmatpush1.msra.mxu0 0.0
  %2827 = vmatprep.subr.mxu0 0.0
  %2828 = vmatpush1.msra.mxu0 0.0
  %2829 = vmatprep.subr.mxu0 0.0
  %2830 = vmatpush1.msra.mxu0 0.0
  %2831 = vmatprep.subr.mxu0 0.0
  %2832 = vmatpush1.msra.mxu0 0.0
  %2833 = vmatprep.subr.mxu0 0.0
  %2834 = vmatpush1.msra.mxu0 0.0
  %2835 = vmatprep.subr.mxu0 0.0
  %2836 = vmatpush1.msra.mxu0 0.0
  %2837 = vmatprep.subr.mxu0 0.0
  %2838 = vmatpush1.msra.mxu0 0.0
  %2839 = vmatprep.subr.mxu0 0.0
  %2840 = vmatpush1.msra.mxu0 0.0
  %2841 = vmatprep.subr.mxu0 0.0
  %2842 = vmatpush1.msra.mxu0 0.0
  %2843 = vmatprep.subr.mxu0 0.0
  %2844 = vmatpush1.msra.mxu0 0.0
  %2845 = vmatprep.subr.mxu0 0.0
  %2846 = vmatpush1.msra.mxu0 0.0
  %2847 = vmatprep.subr.mxu0 0.0
  %2848 = vmatpush1.msra.mxu0 %v2815
  %2849 = vmatprep.subr.mxu0 0.0
  %2850 = vmatpush2.msra.mxu0 0.0
  %2851 = vmatprep.subr.mxu0 0.0
  %2852 = vmatpush2.msra.mxu0 0.0
  %2853 = vmatprep.subr.mxu0 0.0
  %2854 = vmatpush2.msra.mxu0 0.0
  %2855 = vmatprep.subr.mxu0 0.0
  %2856 = vmatpush2.msra.mxu0 0.0
  %2857 = vmatprep.subr.mxu0 0.0
  %2858 = vmatpush2.msra.mxu0 0.0
  %2859 = vmatprep.subr.mxu0 0.0
  %2860 = vmatpush2.msra.mxu0 0.0
  %2861 = vmatprep.subr.mxu0 0.0
  %2862 = vmatpush2.msra.mxu0 0.0
  %2863 = vmatprep.subr.mxu0 0.0
  %2864 = vmatpush2.msra.mxu0 0.0
  %2865 = vmatprep.subr.mxu0 0.0
  %2866 = vmatpush2.msra.mxu0 0.0
  %2867 = vmatprep.subr.mxu0 0.0
  %2868 = vmatpush2.msra.mxu0 0.0
  %2869 = vmatprep.subr.mxu0 0.0
  %2870 = vmatpush2.msra.mxu0 0.0
  %2871 = vmatprep.subr.mxu0 0.0
  %2872 = vmatpush2.msra.mxu0 0.0
  %2873 = vmatprep.subr.mxu0 0.0
  %2874 = vmatpush2.msra.mxu0 0.0
  %2875 = vmatprep.subr.mxu0 0.0
  %2876 = vmatpush2.msra.mxu0 0.0
  %2877 = vmatprep.subr.mxu0 0.0
  %2878 = vmatpush2.msra.mxu0 0.0
  %2879 = vmatprep.subr.mxu0 0.0
  %2880 = vmatpush2.msra.mxu0 0.0
  %2881 = vmatprep.mubr.f32.mxu0 0.0
  %2882 = vmatmul.mubr.f32.gmra.mxu0 %v2802
  %v2883 = vpop.f32.mrf.mxu0
  %v2884 = vadd.f32 %v2693, %v2883
  %v2885 = vpop.f32.mrf.mxu0
  %2886 = vmatprep.mubr.f32.mxu0 0.0
  %2887 = vmatmul.mubr.f32.gmra.mxu0 %v2805
  %v2888 = vpop.f32.mrf.mxu0
  %v2889 = vadd.f32 %v2694, %v2888
  %v2890 = vpop.f32.mrf.mxu0
  %2891 = vmatprep.mubr.f32.mxu0 0.0
  %2892 = vmatmul.mubr.f32.gmra.mxu0 %v2808
  %v2893 = vpop.f32.mrf.mxu0
  %v2894 = vadd.f32 %v2695, %v2893
  %v2895 = vpop.f32.mrf.mxu0
  %2896 = vmatprep.mubr.f32.mxu0 0.0
  %2897 = vmatmul.mubr.f32.gmra.mxu0 %v2811
  %v2898 = vpop.f32.mrf.mxu0
  %v2899 = vadd.f32 %v2696, %v2898
  %v2900 = vpop.f32.mrf.mxu0
  %2901 = vdwg.mxu0
  %2902 = vmatprep.subr.mxu0 0.0
  %2903 = vmatpush1.msra.mxu0 0.0
  %2904 = vmatprep.subr.mxu0 0.0
  %2905 = vmatpush1.msra.mxu0 0.0
  %2906 = vmatprep.subr.mxu0 0.0
  %2907 = vmatpush1.msra.mxu0 0.0
  %2908 = vmatprep.subr.mxu0 0.0
  %2909 = vmatpush1.msra.mxu0 0.0
  %2910 = vmatprep.subr.mxu0 0.0
  %2911 = vmatpush1.msra.mxu0 0.0
  %2912 = vmatprep.subr.mxu0 0.0
  %2913 = vmatpush1.msra.mxu0 0.0
  %2914 = vmatprep.subr.mxu0 0.0
  %2915 = vmatpush1.msra.mxu0 0.0
  %2916 = vmatprep.subr.mxu0 0.0
  %2917 = vmatpush1.msra.mxu0 0.0
  %2918 = vmatprep.subr.mxu0 0.0
  %2919 = vmatpush1.msra.mxu0 0.0
  %2920 = vmatprep.subr.mxu0 0.0
  %2921 = vmatpush1.msra.mxu0 0.0
  %2922 = vmatprep.subr.mxu0 0.0
  %2923 = vmatpush1.msra.mxu0 0.0
  %2924 = vmatprep.subr.mxu0 0.0
  %2925 = vmatpush1.msra.mxu0 0.0
  %2926 = vmatprep.subr.mxu0 0.0
  %2927 = vmatpush1.msra.mxu0 %v2725
  %2928 = vmatprep.subr.mxu0 0.0
  %2929 = vmatpush1.msra.mxu0 %v2722
  %2930 = vmatprep.subr.mxu0 0.0
  %2931 = vmatpush1.msra.mxu0 %v2719
  %2932 = vmatprep.subr.mxu0 0.0
  %2933 = vmatpush1.msra.mxu0 %v2716
  %2934 = vmatprep.subr.mxu0 0.0
  %2935 = vmatpush2.msra.mxu0 0.0
  %2936 = vmatprep.subr.mxu0 0.0
  %2937 = vmatpush2.msra.mxu0 0.0
  %2938 = vmatprep.subr.mxu0 0.0
  %2939 = vmatpush2.msra.mxu0 0.0
  %2940 = vmatprep.subr.mxu0 0.0
  %2941 = vmatpush2.msra.mxu0 0.0
  %2942 = vmatprep.subr.mxu0 0.0
  %2943 = vmatpush2.msra.mxu0 0.0
  %2944 = vmatprep.subr.mxu0 0.0
  %2945 = vmatpush2.msra.mxu0 0.0
  %2946 = vmatprep.subr.mxu0 0.0
  %2947 = vmatpush2.msra.mxu0 0.0
  %2948 = vmatprep.subr.mxu0 0.0
  %2949 = vmatpush2.msra.mxu0 0.0
  %2950 = vmatprep.subr.mxu0 0.0
  %2951 = vmatpush2.msra.mxu0 0.0
  %2952 = vmatprep.subr.mxu0 0.0
  %2953 = vmatpush2.msra.mxu0 0.0
  %2954 = vmatprep.subr.mxu0 0.0
  %2955 = vmatpush2.msra.mxu0 0.0
  %2956 = vmatprep.subr.mxu0 0.0
  %2957 = vmatpush2.msra.mxu0 0.0
  %2958 = vmatprep.subr.mxu0 0.0
  %2959 = vmatpush2.msra.mxu0 0.0
  %2960 = vmatprep.subr.mxu0 0.0
  %2961 = vmatpush2.msra.mxu0 0.0
  %2962 = vmatprep.subr.mxu0 0.0
  %2963 = vmatpush2.msra.mxu0 0.0
  %2964 = vmatprep.subr.mxu0 0.0
  %2965 = vmatpush2.msra.mxu0 0.0
  %2966 = vmatprep.mubr.f32.mxu0 0.0
  %2967 = vmatmul.mubr.f32.gmra.mxu0 %v2727
  %v2968 = vpop.f32.mrf.mxu0
  %v2969 = vadd.f32 %v2688, %v2968
  %v2970 = vpop.f32.mrf.mxu0
  %2971 = vdwg.mxu0
  %v2972 = vmax.f32 %v2969, 0.0
  %v2974 = vsel %vm2813, %v2972, 0
  %2976 = vmatprep.subr.mxu0 0.0
  %2977 = vmatpush1.msra.mxu0 0.0
  %2978 = vmatprep.subr.mxu0 0.0
  %2979 = vmatpush1.msra.mxu0 0.0
  %2980 = vmatprep.subr.mxu0 0.0
  %2981 = vmatpush1.msra.mxu0 0.0
  %2982 = vmatprep.subr.mxu0 0.0
  %2983 = vmatpush1.msra.mxu0 0.0
  %2984 = vmatprep.subr.mxu0 0.0
  %2985 = vmatpush1.msra.mxu0 0.0
  %2986 = vmatprep.subr.mxu0 0.0
  %2987 = vmatpush1.msra.mxu0 0.0
  %2988 = vmatprep.subr.mxu0 0.0
  %2989 = vmatpush1.msra.mxu0 0.0
  %2990 = vmatprep.subr.mxu0 0.0
  %2991 = vmatpush1.msra.mxu0 0.0
  %2992 = vmatprep.subr.mxu0 0.0
  %2993 = vmatpush1.msra.mxu0 0.0
  %2994 = vmatprep.subr.mxu0 0.0
  %2995 = vmatpush1.msra.mxu0 0.0
  %2996 = vmatprep.subr.mxu0 0.0
  %2997 = vmatpush1.msra.mxu0 0.0
  %2998 = vmatprep.subr.mxu0 0.0
  %2999 = vmatpush1.msra.mxu0 0.0
  %3000 = vmatprep.subr.mxu0 0.0
  %3001 = vmatpush1.msra.mxu0 0.0
  %3002 = vmatprep.subr.mxu0 0.0
  %3003 = vmatpush1.msra.mxu0 0.0
  %3004 = vmatprep.subr.mxu0 0.0
  %3005 = vmatpush1.msra.mxu0 0.0
  %3006 = vmatprep.subr.mxu0 0.0
  %3007 = vmatpush1.msra.mxu0 %v2974
  %3008 = vmatprep.subr.mxu0 0.0
  %3009 = vmatpush2.msra.mxu0 0.0
  %3010 = vmatprep.subr.mxu0 0.0
  %3011 = vmatpush2.msra.mxu0 0.0
  %3012 = vmatprep.subr.mxu0 0.0
  %3013 = vmatpush2.msra.mxu0 0.0
  %3014 = vmatprep.subr.mxu0 0.0
  %3015 = vmatpush2.msra.mxu0 0.0
  %3016 = vmatprep.subr.mxu0 0.0
  %3017 = vmatpush2.msra.mxu0 0.0
  %3018 = vmatprep.subr.mxu0 0.0
  %3019 = vmatpush2.msra.mxu0 0.0
  %3020 = vmatprep.subr.mxu0 0.0
  %3021 = vmatpush2.msra.mxu0 0.0
  %3022 = vmatprep.subr.mxu0 0.0
  %3023 = vmatpush2.msra.mxu0 0.0
  %3024 = vmatprep.subr.mxu0 0.0
  %3025 = vmatpush2.msra.mxu0 0.0
  %3026 = vmatprep.subr.mxu0 0.0
  %3027 = vmatpush2.msra.mxu0 0.0
  %3028 = vmatprep.subr.mxu0 0.0
  %3029 = vmatpush2.msra.mxu0 0.0
  %3030 = vmatprep.subr.mxu0 0.0
  %3031 = vmatpush2.msra.mxu0 0.0
  %3032 = vmatprep.subr.mxu0 0.0
  %3033 = vmatpush2.msra.mxu0 0.0
  %3034 = vmatprep.subr.mxu0 0.0
  %3035 = vmatpush2.msra.mxu0 0.0
  %3036 = vmatprep.subr.mxu0 0.0
  %3037 = vmatpush2.msra.mxu0 0.0
  %3038 = vmatprep.subr.mxu0 0.0
  %3039 = vmatpush2.msra.mxu0 0.0
  %3040 = vmatprep.mubr.f32.mxu0 0.0
  %3041 = vmatmul.mubr.f32.gmra.mxu0 %v2802
  %v3042 = vpop.f32.mrf.mxu0
  %v3043 = vadd.f32 %v2693, %v3042
  %v3044 = vpop.f32.mrf.mxu0
  %3045 = vmatprep.mubr.f32.mxu0 0.0
  %3046 = vmatmul.mubr.f32.gmra.mxu0 %v2805
  %v3047 = vpop.f32.mrf.mxu0
  %v3048 = vadd.f32 %v2694, %v3047
  %v3049 = vpop.f32.mrf.mxu0
  %3050 = vmatprep.mubr.f32.mxu0 0.0
  %3051 = vmatmul.mubr.f32.gmra.mxu0 %v2808
  %v3052 = vpop.f32.mrf.mxu0
  %v3053 = vadd.f32 %v2695, %v3052
  %v3054 = vpop.f32.mrf.mxu0
  %3055 = vmatprep.mubr.f32.mxu0 0.0
  %3056 = vmatmul.mubr.f32.gmra.mxu0 %v2811
  %v3057 = vpop.f32.mrf.mxu0
  %v3058 = vadd.f32 %v2696, %v3057
  %v3059 = vpop.f32.mrf.mxu0
  %3060 = vdwg.mxu0
  %v3061 = vadd.f32 %v2884, %v3043
  %v3062 = vadd.f32 %v2889, %v3048
  %v3063 = vadd.f32 %v2894, %v3053
  %v3064 = vadd.f32 %v2899, %v3058
  %v3065 = vxor.u32 %v3061, 2147483648
  %v3066 = vxor.u32 %v3062, 2147483648
  %v3067 = vxor.u32 %v3063, 2147483648
  %v3068 = vxor.u32 %v3064, 2147483648
  %v3069 = vmul.f32 %v3065, 1.442695
  %v3070 = vpow.pop %v3069
  %v3071 = vmul.f32 %v3066, 1.442695
  %v3072 = vpow.pop %v3071
  %v3073 = vmul.f32 %v3067, 1.442695
  %v3074 = vpow.pop %v3073
  %v3075 = vmul.f32 %v3068, 1.442695
  %v3076 = vpow.pop %v3075
  %v3077 = vadd.f32 %v3070, 1.0
  %v3078 = vadd.f32 %v3072, 1.0
  %v3079 = vadd.f32 %v3074, 1.0
  %v3080 = vadd.f32 %v3076, 1.0
  %v3081 = vrcp.pop %v3077
  %v3082 = vmul.f32 1.0, %v3081
  %v3083 = vrcp.pop %v3078
  %v3084 = vmul.f32 1.0, %v3083
  %v3085 = vrcp.pop %v3079
  %v3086 = vmul.f32 1.0, %v3085
  %v3087 = vrcp.pop %v3080
  %v3088 = vmul.f32 1.0, %v3087
  %3090 = vset.pattern.permute.xlu0 0
  %3091 = vperm.xlu0 %3090, %v3082
  %v3092 = vpop.permute.xlu0 %3091
  %3095 = vset.pattern.permute.xlu0 0
  %3096 = vperm.xlu0 %3095, %v3084
  %v3097 = vpop.permute.xlu0 %3096
  %3100 = vset.pattern.permute.xlu0 0
  %3101 = vperm.xlu0 %3100, %v3086
  %v3102 = vpop.permute.xlu0 %3101
  %3105 = vset.pattern.permute.xlu0 0
  %3106 = vperm.xlu0 %3105, %v3088
  %v3107 = vpop.permute.xlu0 %3106
  %v3109 = vmul.f32 %v2671, %v3092
  %v3110 = vmul.f32 %v2672, %v3092
  %v3111 = vmul.f32 %v2675, %v3097
  %v3112 = vmul.f32 %v2676, %v3097
  %v3113 = vmul.f32 %v2679, %v3102
  %v3114 = vmul.f32 %v2680, %v3102
  %v3115 = vmul.f32 %v2683, %v3107
  %v3116 = vmul.f32 %v2684, %v3107
  %v3117 = vadd.f32 %v2673, %v2674
  %3118 = vadd.xlane.f32.xlu0 %v3117
  %v3119 = vpop.xlane.xlu0 %3118
  %v3120 = vadd.f32 %v2677, %v2678
  %3121 = vadd.xlane.f32.xlu0 %v3120
  %v3122 = vpop.xlane.xlu0 %3121
  %v3123 = vadd.f32 %v2681, %v2682
  %3124 = vadd.xlane.f32.xlu0 %v3123
  %v3125 = vpop.xlane.xlu0 %3124
  %v3126 = vadd.f32 %v2685, %v2686
  %3127 = vadd.xlane.f32.xlu0 %v3126
  %v3128 = vpop.xlane.xlu0 %3127
  %v3129 = vmul.f32 %v3119, %v2709
  %v3130 = vmul.f32 %v3122, %v2709
  %v3131 = vmul.f32 %v3125, %v2709
  %v3132 = vmul.f32 %v3128, %v2709
  %v3133 = vmax.f32 %v2673, %v2674
  %3134 = vmax.xlane.f32.xlu0 %v3133
  %v3135 = vpop.xlane.xlu0 %3134
  %v3136 = vmax.f32 %v2677, %v2678
  %3137 = vmax.xlane.f32.xlu0 %v3136
  %v3138 = vpop.xlane.xlu0 %3137
  %v3139 = vmax.f32 %v2681, %v2682
  %3140 = vmax.xlane.f32.xlu0 %v3139
  %v3141 = vpop.xlane.xlu0 %3140
  %v3142 = vmax.f32 %v2685, %v2686
  %3143 = vmax.xlane.f32.xlu0 %v3142
  %v3144 = vpop.xlane.xlu0 %3143
  %3145 = vmatprep.subr.mxu0 0.0
  %3146 = vmatpush1.msra.mxu0 0.0
  %3147 = vmatprep.subr.mxu0 0.0
  %3148 = vmatpush1.msra.mxu0 0.0
  %3149 = vmatprep.subr.mxu0 0.0
  %3150 = vmatpush1.msra.mxu0 0.0
  %3151 = vmatprep.subr.mxu0 0.0
  %3152 = vmatpush1.msra.mxu0 0.0
  %3153 = vmatprep.subr.mxu0 0.0
  %3154 = vmatpush1.msra.mxu0 0.0
  %3155 = vmatprep.subr.mxu0 0.0
  %3156 = vmatpush1.msra.mxu0 0.0
  %3157 = vmatprep.subr.mxu0 0.0
  %3158 = vmatpush1.msra.mxu0 0.0
  %3159 = vmatprep.subr.mxu0 0.0
  %3160 = vmatpush1.msra.mxu0 0.0
  %3161 = vmatprep.subr.mxu0 0.0
  %3162 = vmatpush1.msra.mxu0 0.0
  %3163 = vmatprep.subr.mxu0 0.0
  %3164 = vmatpush1.msra.mxu0 0.0
  %3165 = vmatprep.subr.mxu0 0.0
  %3166 = vmatpush1.msra.mxu0 0.0
  %3167 = vmatprep.subr.mxu0 0.0
  %3168 = vmatpush1.msra.mxu0 0.0
  %3169 = vmatprep.subr.mxu0 0.0
  %3170 = vmatpush1.msra.mxu0 %v3132
  %3171 = vmatprep.subr.mxu0 0.0
  %3172 = vmatpush1.msra.mxu0 %v3131
  %3173 = vmatprep.subr.mxu0 0.0
  %3174 = vmatpush1.msra.mxu0 %v3130
  %3175 = vmatprep.subr.mxu0 0.0
  %3176 = vmatpush1.msra.mxu0 %v3129
  %3177 = vmatprep.subr.mxu0 0.0
  %3178 = vmatpush2.msra.mxu0 0.0
  %3179 = vmatprep.subr.mxu0 0.0
  %3180 = vmatpush2.msra.mxu0 0.0
  %3181 = vmatprep.subr.mxu0 0.0
  %3182 = vmatpush2.msra.mxu0 0.0
  %3183 = vmatprep.subr.mxu0 0.0
  %3184 = vmatpush2.msra.mxu0 0.0
  %3185 = vmatprep.subr.mxu0 0.0
  %3186 = vmatpush2.msra.mxu0 0.0
  %3187 = vmatprep.subr.mxu0 0.0
  %3188 = vmatpush2.msra.mxu0 0.0
  %3189 = vmatprep.subr.mxu0 0.0
  %3190 = vmatpush2.msra.mxu0 0.0
  %3191 = vmatprep.subr.mxu0 0.0
  %3192 = vmatpush2.msra.mxu0 0.0
  %3193 = vmatprep.subr.mxu0 0.0
  %3194 = vmatpush2.msra.mxu0 0.0
  %3195 = vmatprep.subr.mxu0 0.0
  %3196 = vmatpush2.msra.mxu0 0.0
  %3197 = vmatprep.subr.mxu0 0.0
  %3198 = vmatpush2.msra.mxu0 0.0
  %3199 = vmatprep.subr.mxu0 0.0
  %3200 = vmatpush2.msra.mxu0 0.0
  %3201 = vmatprep.subr.mxu0 0.0
  %3202 = vmatpush2.msra.mxu0 0.0
  %3203 = vmatprep.subr.mxu0 0.0
  %3204 = vmatpush2.msra.mxu0 0.0
  %3205 = vmatprep.subr.mxu0 0.0
  %3206 = vmatpush2.msra.mxu0 0.0
  %3207 = vmatprep.subr.mxu0 0.0
  %3208 = vmatpush2.msra.mxu0 0.0
  %3209 = vmatprep.mubr.f32.mxu0 0.0
  %3210 = vmatmul.mubr.f32.gmra.mxu0 %v2727
  %v3211 = vpop.f32.mrf.mxu0
  %v3212 = vadd.f32 %v2688, %v3211
  %v3213 = vpop.f32.mrf.mxu0
  %3214 = vdwg.mxu0
  %v3215 = vmax.f32 %v3212, 0.0
  %v3217 = vsel %vm2813, %v3215, 0
  %3219 = vmatprep.subr.mxu0 0.0
  %3220 = vmatpush1.msra.mxu0 0.0
  %3221 = vmatprep.subr.mxu0 0.0
  %3222 = vmatpush1.msra.mxu0 0.0
  %3223 = vmatprep.subr.mxu0 0.0
  %3224 = vmatpush1.msra.mxu0 0.0
  %3225 = vmatprep.subr.mxu0 0.0
  %3226 = vmatpush1.msra.mxu0 0.0
  %3227 = vmatprep.subr.mxu0 0.0
  %3228 = vmatpush1.msra.mxu0 0.0
  %3229 = vmatprep.subr.mxu0 0.0
  %3230 = vmatpush1.msra.mxu0 0.0
  %3231 = vmatprep.subr.mxu0 0.0
  %3232 = vmatpush1.msra.mxu0 0.0
  %3233 = vmatprep.subr.mxu0 0.0
  %3234 = vmatpush1.msra.mxu0 0.0
  %3235 = vmatprep.subr.mxu0 0.0
  %3236 = vmatpush1.msra.mxu0 0.0
  %3237 = vmatprep.subr.mxu0 0.0
  %3238 = vmatpush1.msra.mxu0 0.0
  %3239 = vmatprep.subr.mxu0 0.0
  %3240 = vmatpush1.msra.mxu0 0.0
  %3241 = vmatprep.subr.mxu0 0.0
  %3242 = vmatpush1.msra.mxu0 0.0
  %3243 = vmatprep.subr.mxu0 0.0
  %3244 = vmatpush1.msra.mxu0 0.0
  %3245 = vmatprep.subr.mxu0 0.0
  %3246 = vmatpush1.msra.mxu0 0.0
  %3247 = vmatprep.subr.mxu0 0.0
  %3248 = vmatpush1.msra.mxu0 0.0
  %3249 = vmatprep.subr.mxu0 0.0
  %3250 = vmatpush1.msra.mxu0 %v3217
  %3251 = vmatprep.subr.mxu0 0.0
  %3252 = vmatpush2.msra.mxu0 0.0
  %3253 = vmatprep.subr.mxu0 0.0
  %3254 = vmatpush2.msra.mxu0 0.0
  %3255 = vmatprep.subr.mxu0 0.0
  %3256 = vmatpush2.msra.mxu0 0.0
  %3257 = vmatprep.subr.mxu0 0.0
  %3258 = vmatpush2.msra.mxu0 0.0
  %3259 = vmatprep.subr.mxu0 0.0
  %3260 = vmatpush2.msra.mxu0 0.0
  %3261 = vmatprep.subr.mxu0 0.0
  %3262 = vmatpush2.msra.mxu0 0.0
  %3263 = vmatprep.subr.mxu0 0.0
  %3264 = vmatpush2.msra.mxu0 0.0
  %3265 = vmatprep.subr.mxu0 0.0
  %3266 = vmatpush2.msra.mxu0 0.0
  %3267 = vmatprep.subr.mxu0 0.0
  %3268 = vmatpush2.msra.mxu0 0.0
  %3269 = vmatprep.subr.mxu0 0.0
  %3270 = vmatpush2.msra.mxu0 0.0
  %3271 = vmatprep.subr.mxu0 0.0
  %3272 = vmatpush2.msra.mxu0 0.0
  %3273 = vmatprep.subr.mxu0 0.0
  %3274 = vmatpush2.msra.mxu0 0.0
  %3275 = vmatprep.subr.mxu0 0.0
  %3276 = vmatpush2.msra.mxu0 0.0
  %3277 = vmatprep.subr.mxu0 0.0
  %3278 = vmatpush2.msra.mxu0 0.0
  %3279 = vmatprep.subr.mxu0 0.0
  %3280 = vmatpush2.msra.mxu0 0.0
  %3281 = vmatprep.subr.mxu0 0.0
  %3282 = vmatpush2.msra.mxu0 0.0
  %3283 = vmatprep.mubr.f32.mxu0 0.0
  %3284 = vmatmul.mubr.f32.gmra.mxu0 %v2802
  %v3285 = vpop.f32.mrf.mxu0
  %v3286 = vadd.f32 %v2693, %v3285
  %v3287 = vpop.f32.mrf.mxu0
  %3288 = vmatprep.mubr.f32.mxu0 0.0
  %3289 = vmatmul.mubr.f32.gmra.mxu0 %v2805
  %v3290 = vpop.f32.mrf.mxu0
  %v3291 = vadd.f32 %v2694, %v3290
  %v3292 = vpop.f32.mrf.mxu0
  %3293 = vmatprep.mubr.f32.mxu0 0.0
  %3294 = vmatmul.mubr.f32.gmra.mxu0 %v2808
  %v3295 = vpop.f32.mrf.mxu0
  %v3296 = vadd.f32 %v2695, %v3295
  %v3297 = vpop.f32.mrf.mxu0
  %3298 = vmatprep.mubr.f32.mxu0 0.0
  %3299 = vmatmul.mubr.f32.gmra.mxu0 %v2811
  %v3300 = vpop.f32.mrf.mxu0
  %v3301 = vadd.f32 %v2696, %v3300
  %v3302 = vpop.f32.mrf.mxu0
  %3303 = vdwg.mxu0
  %3304 = vmatprep.subr.mxu0 0.0
  %3305 = vmatpush1.msra.mxu0 0.0
  %3306 = vmatprep.subr.mxu0 0.0
  %3307 = vmatpush1.msra.mxu0 0.0
  %3308 = vmatprep.subr.mxu0 0.0
  %3309 = vmatpush1.msra.mxu0 0.0
  %3310 = vmatprep.subr.mxu0 0.0
  %3311 = vmatpush1.msra.mxu0 0.0
  %3312 = vmatprep.subr.mxu0 0.0
  %3313 = vmatpush1.msra.mxu0 0.0
  %3314 = vmatprep.subr.mxu0 0.0
  %3315 = vmatpush1.msra.mxu0 0.0
  %3316 = vmatprep.subr.mxu0 0.0
  %3317 = vmatpush1.msra.mxu0 0.0
  %3318 = vmatprep.subr.mxu0 0.0
  %3319 = vmatpush1.msra.mxu0 0.0
  %3320 = vmatprep.subr.mxu0 0.0
  %3321 = vmatpush1.msra.mxu0 0.0
  %3322 = vmatprep.subr.mxu0 0.0
  %3323 = vmatpush1.msra.mxu0 0.0
  %3324 = vmatprep.subr.mxu0 0.0
  %3325 = vmatpush1.msra.mxu0 0.0
  %3326 = vmatprep.subr.mxu0 0.0
  %3327 = vmatpush1.msra.mxu0 0.0
  %3328 = vmatprep.subr.mxu0 0.0
  %3329 = vmatpush1.msra.mxu0 %v3144
  %3330 = vmatprep.subr.mxu0 0.0
  %3331 = vmatpush1.msra.mxu0 %v3141
  %3332 = vmatprep.subr.mxu0 0.0
  %3333 = vmatpush1.msra.mxu0 %v3138
  %3334 = vmatprep.subr.mxu0 0.0
  %3335 = vmatpush1.msra.mxu0 %v3135
  %3336 = vmatprep.subr.mxu0 0.0
  %3337 = vmatpush2.msra.mxu0 0.0
  %3338 = vmatprep.subr.mxu0 0.0
  %3339 = vmatpush2.msra.mxu0 0.0
  %3340 = vmatprep.subr.mxu0 0.0
  %3341 = vmatpush2.msra.mxu0 0.0
  %3342 = vmatprep.subr.mxu0 0.0
  %3343 = vmatpush2.msra.mxu0 0.0
  %3344 = vmatprep.subr.mxu0 0.0
  %3345 = vmatpush2.msra.mxu0 0.0
  %3346 = vmatprep.subr.mxu0 0.0
  %3347 = vmatpush2.msra.mxu0 0.0
  %3348 = vmatprep.subr.mxu0 0.0
  %3349 = vmatpush2.msra.mxu0 0.0
  %3350 = vmatprep.subr.mxu0 0.0
  %3351 = vmatpush2.msra.mxu0 0.0
  %3352 = vmatprep.subr.mxu0 0.0
  %3353 = vmatpush2.msra.mxu0 0.0
  %3354 = vmatprep.subr.mxu0 0.0
  %3355 = vmatpush2.msra.mxu0 0.0
  %3356 = vmatprep.subr.mxu0 0.0
  %3357 = vmatpush2.msra.mxu0 0.0
  %3358 = vmatprep.subr.mxu0 0.0
  %3359 = vmatpush2.msra.mxu0 0.0
  %3360 = vmatprep.subr.mxu0 0.0
  %3361 = vmatpush2.msra.mxu0 0.0
  %3362 = vmatprep.subr.mxu0 0.0
  %3363 = vmatpush2.msra.mxu0 0.0
  %3364 = vmatprep.subr.mxu0 0.0
  %3365 = vmatpush2.msra.mxu0 0.0
  %3366 = vmatprep.subr.mxu0 0.0
  %3367 = vmatpush2.msra.mxu0 0.0
  %3368 = vmatprep.mubr.f32.mxu0 0.0
  %3369 = vmatmul.mubr.f32.gmra.mxu0 %v2727
  %v3370 = vpop.f32.mrf.mxu0
  %v3371 = vadd.f32 %v2688, %v3370
  %v3372 = vpop.f32.mrf.mxu0
  %3373 = vdwg.mxu0
  %v3374 = vmax.f32 %v3371, 0.0
  %v3376 = vsel %vm2813, %v3374, 0
  %3378 = vmatprep.subr.mxu0 0.0
  %3379 = vmatpush1.msra.mxu0 0.0
  %3380 = vmatprep.subr.mxu0 0.0
  %3381 = vmatpush1.msra.mxu0 0.0
  %3382 = vmatprep.subr.mxu0 0.0
  %3383 = vmatpush1.msra.mxu0 0.0
  %3384 = vmatprep.subr.mxu0 0.0
  %3385 = vmatpush1.msra.mxu0 0.0
  %3386 = vmatprep.subr.mxu0 0.0
  %3387 = vmatpush1.msra.mxu0 0.0
  %3388 = vmatprep.subr.mxu0 0.0
  %3389 = vmatpush1.msra.mxu0 0.0
  %3390 = vmatprep.subr.mxu0 0.0
  %3391 = vmatpush1.msra.mxu0 0.0
  %3392 = vmatprep.subr.mxu0 0.0
  %3393 = vmatpush1.msra.mxu0 0.0
  %3394 = vmatprep.subr.mxu0 0.0
  %3395 = vmatpush1.msra.mxu0 0.0
  %3396 = vmatprep.subr.mxu0 0.0
  %3397 = vmatpush1.msra.mxu0 0.0
  %3398 = vmatprep.subr.mxu0 0.0
  %3399 = vmatpush1.msra.mxu0 0.0
  %3400 = vmatprep.subr.mxu0 0.0
  %3401 = vmatpush1.msra.mxu0 0.0
  %3402 = vmatprep.subr.mxu0 0.0
  %3403 = vmatpush1.msra.mxu0 0.0
  %3404 = vmatprep.subr.mxu0 0.0
  %3405 = vmatpush1.msra.mxu0 0.0
  %3406 = vmatprep.subr.mxu0 0.0
  %3407 = vmatpush1.msra.mxu0 0.0
  %3408 = vmatprep.subr.mxu0 0.0
  %3409 = vmatpush1.msra.mxu0 %v3376
  %3410 = vmatprep.subr.mxu0 0.0
  %3411 = vmatpush2.msra.mxu0 0.0
  %3412 = vmatprep.subr.mxu0 0.0
  %3413 = vmatpush2.msra.mxu0 0.0
  %3414 = vmatprep.subr.mxu0 0.0
  %3415 = vmatpush2.msra.mxu0 0.0
  %3416 = vmatprep.subr.mxu0 0.0
  %3417 = vmatpush2.msra.mxu0 0.0
  %3418 = vmatprep.subr.mxu0 0.0
  %3419 = vmatpush2.msra.mxu0 0.0
  %3420 = vmatprep.subr.mxu0 0.0
  %3421 = vmatpush2.msra.mxu0 0.0
  %3422 = vmatprep.subr.mxu0 0.0
  %3423 = vmatpush2.msra.mxu0 0.0
  %3424 = vmatprep.subr.mxu0 0.0
  %3425 = vmatpush2.msra.mxu0 0.0
  %3426 = vmatprep.subr.mxu0 0.0
  %3427 = vmatpush2.msra.mxu0 0.0
  %3428 = vmatprep.subr.mxu0 0.0
  %3429 = vmatpush2.msra.mxu0 0.0
  %3430 = vmatprep.subr.mxu0 0.0
  %3431 = vmatpush2.msra.mxu0 0.0
  %3432 = vmatprep.subr.mxu0 0.0
  %3433 = vmatpush2.msra.mxu0 0.0
  %3434 = vmatprep.subr.mxu0 0.0
  %3435 = vmatpush2.msra.mxu0 0.0
  %3436 = vmatprep.subr.mxu0 0.0
  %3437 = vmatpush2.msra.mxu0 0.0
  %3438 = vmatprep.subr.mxu0 0.0
  %3439 = vmatpush2.msra.mxu0 0.0
  %3440 = vmatprep.subr.mxu0 0.0
  %3441 = vmatpush2.msra.mxu0 0.0
  %3442 = vmatprep.mubr.f32.mxu0 0.0
  %3443 = vmatmul.mubr.f32.gmra.mxu0 %v2802
  %v3444 = vpop.f32.mrf.mxu0
  %v3445 = vadd.f32 %v2693, %v3444
  %v3446 = vpop.f32.mrf.mxu0
  %3447 = vmatprep.mubr.f32.mxu0 0.0
  %3448 = vmatmul.mubr.f32.gmra.mxu0 %v2805
  %v3449 = vpop.f32.mrf.mxu0
  %v3450 = vadd.f32 %v2694, %v3449
  %v3451 = vpop.f32.mrf.mxu0
  %3452 = vmatprep.mubr.f32.mxu0 0.0
  %3453 = vmatmul.mubr.f32.gmra.mxu0 %v2808
  %v3454 = vpop.f32.mrf.mxu0
  %v3455 = vadd.f32 %v2695, %v3454
  %v3456 = vpop.f32.mrf.mxu0
  %3457 = vmatprep.mubr.f32.mxu0 0.0
  %3458 = vmatmul.mubr.f32.gmra.mxu0 %v2811
  %v3459 = vpop.f32.mrf.mxu0
  %v3460 = vadd.f32 %v2696, %v3459
  %v3461 = vpop.f32.mrf.mxu0
  %3462 = vdwg.mxu0
  %v3463 = vadd.f32 %v3286, %v3445
  %v3464 = vadd.f32 %v3291, %v3450
  %v3465 = vadd.f32 %v3296, %v3455
  %v3466 = vadd.f32 %v3301, %v3460
  %v3467 = vxor.u32 %v3463, 2147483648
  %v3468 = vxor.u32 %v3464, 2147483648
  %v3469 = vxor.u32 %v3465, 2147483648
  %v3470 = vxor.u32 %v3466, 2147483648
  %v3471 = vmul.f32 %v3467, 1.442695
  %v3472 = vpow.pop %v3471
  %v3473 = vmul.f32 %v3468, 1.442695
  %v3474 = vpow.pop %v3473
  %v3475 = vmul.f32 %v3469, 1.442695
  %v3476 = vpow.pop %v3475
  %v3477 = vmul.f32 %v3470, 1.442695
  %v3478 = vpow.pop %v3477
  %v3479 = vadd.f32 %v3472, 1.0
  %v3480 = vadd.f32 %v3474, 1.0
  %v3481 = vadd.f32 %v3476, 1.0
  %v3482 = vadd.f32 %v3478, 1.0
  %v3483 = vrcp.pop %v3479
  %v3484 = vmul.f32 1.0, %v3483
  %v3485 = vrcp.pop %v3480
  %v3486 = vmul.f32 1.0, %v3485
  %v3487 = vrcp.pop %v3481
  %v3488 = vmul.f32 1.0, %v3487
  %v3489 = vrcp.pop %v3482
  %v3490 = vmul.f32 1.0, %v3489
  %3492 = vset.pattern.permute.xlu0 0
  %3493 = vperm.xlu0 %3492, %v3484
  %v3494 = vpop.permute.xlu0 %3493
  %3497 = vset.pattern.permute.xlu0 0
  %3498 = vperm.xlu0 %3497, %v3486
  %v3499 = vpop.permute.xlu0 %3498
  %3502 = vset.pattern.permute.xlu0 0
  %3503 = vperm.xlu0 %3502, %v3488
  %v3504 = vpop.permute.xlu0 %3503
  %3507 = vset.pattern.permute.xlu0 0
  %3508 = vperm.xlu0 %3507, %v3490
  %v3509 = vpop.permute.xlu0 %3508
  %v3511 = vmul.f32 %v2673, %v3494
  %v3512 = vmul.f32 %v2674, %v3494
  %v3513 = vmul.f32 %v2677, %v3499
  %v3514 = vmul.f32 %v2678, %v3499
  %v3515 = vmul.f32 %v2681, %v3504
  %v3516 = vmul.f32 %v2682, %v3504
  %v3517 = vmul.f32 %v2685, %v3509
  %v3518 = vmul.f32 %v2686, %v3509
  %v3519 = vadd.f32 %v3109, %v3111
  %v3520 = vadd.f32 %v3519, %v3113
  %v3521 = vadd.f32 %v3520, %v3115
  %v3522 = vrot.slane %v3521, 4
  %v3523 = vadd.f32 %v3521, %v3522
  %v3524 = vrot.slane %v3523, 2
  %v3525 = vadd.f32 %v3523, %v3524
  %v3526 = vrot.slane %v3525, 1
  %v3527 = vadd.f32 %v3525, %v3526
  %v3528 = vadd.f32 %v3110, %v3112
  %v3529 = vadd.f32 %v3528, %v3114
  %v3530 = vadd.f32 %v3529, %v3116
  %v3531 = vrot.slane %v3530, 4
  %v3532 = vadd.f32 %v3530, %v3531
  %v3533 = vrot.slane %v3532, 2
  %v3534 = vadd.f32 %v3532, %v3533
  %v3535 = vrot.slane %v3534, 1
  %v3536 = vadd.f32 %v3534, %v3535
  %v3537 = vadd.f32 %v3511, %v3513
  %v3538 = vadd.f32 %v3537, %v3515
  %v3539 = vadd.f32 %v3538, %v3517
  %v3540 = vrot.slane %v3539, 4
  %v3541 = vadd.f32 %v3539, %v3540
  %v3542 = vrot.slane %v3541, 2
  %v3543 = vadd.f32 %v3541, %v3542
  %v3544 = vrot.slane %v3543, 1
  %v3545 = vadd.f32 %v3543, %v3544
  %v3546 = vadd.f32 %v3512, %v3514
  %v3547 = vadd.f32 %v3546, %v3516
  %v3548 = vadd.f32 %v3547, %v3518
  %v3549 = vrot.slane %v3548, 4
  %v3550 = vadd.f32 %v3548, %v3549
  %v3551 = vrot.slane %v3550, 2
  %v3552 = vadd.f32 %v3550, %v3551
  %v3553 = vrot.slane %v3552, 1
  %v3554 = vadd.f32 %v3552, %v3553
  %v3555 = vrcp.pop 32.0
  %v3556 = vmul.f32 %v3527, %v3555
  %v3557 = vmul.f32 %v3536, %v3555
  %v3558 = vmul.f32 %v3545, %v3555
  %v3559 = vmul.f32 %v3554, %v3555
  %v3560 = vmax.f32 %v3109, %v3111
  %v3561 = vmax.f32 %v3560, %v3113
  %v3562 = vmax.f32 %v3561, %v3115
  %v3563 = vrot.slane %v3562, 4
  %v3564 = vmax.f32 %v3562, %v3563
  %v3565 = vrot.slane %v3564, 2
  %v3566 = vmax.f32 %v3564, %v3565
  %v3567 = vrot.slane %v3566, 1
  %v3568 = vmax.f32 %v3566, %v3567
  %v3569 = vmax.f32 %v3110, %v3112
  %v3570 = vmax.f32 %v3569, %v3114
  %v3571 = vmax.f32 %v3570, %v3116
  %v3572 = vrot.slane %v3571, 4
  %v3573 = vmax.f32 %v3571, %v3572
  %v3574 = vrot.slane %v3573, 2
  %v3575 = vmax.f32 %v3573, %v3574
  %v3576 = vrot.slane %v3575, 1
  %v3577 = vmax.f32 %v3575, %v3576
  %v3578 = vmax.f32 %v3511, %v3513
  %v3579 = vmax.f32 %v3578, %v3515
  %v3580 = vmax.f32 %v3579, %v3517
  %v3581 = vrot.slane %v3580, 4
  %v3582 = vmax.f32 %v3580, %v3581
  %v3583 = vrot.slane %v3582, 2
  %v3584 = vmax.f32 %v3582, %v3583
  %v3585 = vrot.slane %v3584, 1
  %v3586 = vmax.f32 %v3584, %v3585
  %v3587 = vmax.f32 %v3512, %v3514
  %v3588 = vmax.f32 %v3587, %v3516
  %v3589 = vmax.f32 %v3588, %v3518
  %v3590 = vrot.slane %v3589, 4
  %v3591 = vmax.f32 %v3589, %v3590
  %v3592 = vrot.slane %v3591, 2
  %v3593 = vmax.f32 %v3591, %v3592
  %v3594 = vrot.slane %v3593, 1
  %v3595 = vmax.f32 %v3593, %v3594
  %v3596 = vlaneseq
  %v3597 = vshrl.u32 %v3596, 7
  %vm3598 = vcmp.eq.s32.totalorder %v3597, 0
  %v3599 = vsel %vm3598, %v3556, %v3568
  %v3600 = vsel %vm3598, %v3557, %v3577
  %v3601 = vsel %vm3598, %v3558, %v3586
  %v3602 = vsel %vm3598, %v3559, %v3595
  %v3603 = vadd.s32 %v105, 4294967293
  %v3604 = vadd.s32 %v106, 4294967293
  %v3605 = vadd.s32 %v107, 4294967293
  %v3606 = vadd.s32 %v108, 4294967293
  %vm3607 = vcmp.ge.s32.totalorder %v3603, 0
  %vm3608 = vcmp.ge.s32.totalorder %v3604, 0
  %vm3609 = vcmp.ge.s32.totalorder %v3605, 0
  %vm3610 = vcmp.ge.s32.totalorder %v3606, 0
  %vm3611 = vcmp.lt.s32.totalorder %v3603, 16
  %vm3612 = vcmp.lt.s32.totalorder %v3604, 16
  %vm3613 = vcmp.lt.s32.totalorder %v3605, 16
  %vm3614 = vcmp.lt.s32.totalorder %v3606, 16
  %vm3615 = vmand %vm3607, %vm3611
  %vm3616 = vmand %vm3608, %vm3612
  %vm3617 = vmand %vm3609, %vm3613
  %vm3618 = vmand %vm3610, %vm3614
  %3619 = vrot.lane.b32.xlu0 %v3599, 3
  %v3620 = vpop.permute.xlu0 %3619
  %3621 = vrot.lane.b32.xlu0 %v3600, 3
  %v3622 = vpop.permute.xlu0 %3621
  %3623 = vrot.lane.b32.xlu0 %v3601, 3
  %v3624 = vpop.permute.xlu0 %3623
  %3625 = vrot.lane.b32.xlu0 %v3602, 3
  %v3626 = vpop.permute.xlu0 %3625
  %vm3627 = vcmp.lt.s32.totalorder %v101, 3
  %v3628 = vsel %vm3627, %v3624, %v3626
  %v3629 = vsel %vm3627, %v3622, %v3624
  %v3630 = vsel %vm3627, %v3620, %v3622
  %v3631 = vsel %vm3627, %v3626, %v3620
  %v3632 = vsel %vm3615, 1, 0
  %v3633 = vsel %vm3616, 1, 0
  %v3634 = vsel %vm3617, 1, 0
  %v3635 = vsel %vm3618, 1, 0
  %vm3636 = vcmp.eq.s32.totalorder %v3632, 1
  %vm3637 = vcmp.eq.s32.totalorder %v3633, 1
  %vm3638 = vcmp.eq.s32.totalorder %v3634, 1
  %vm3639 = vcmp.eq.s32.totalorder %v3635, 1
  %v3640 = vsel %vm3636, %v3631, 0.0
  %v3641 = vsel %vm3637, %v3630, 0.0
  %v3642 = vsel %vm3638, %v3629, 0.0
  %v3643 = vsel %vm3639, %v3628, 0.0
  %v3644 = vld [vmem:[%s17] sm:$0x7f]
  %v3645 = vadd.s32 %v105, 4294967294
  %v3646 = vadd.s32 %v106, 4294967294
  %v3647 = vadd.s32 %v107, 4294967294
  %v3648 = vadd.s32 %v108, 4294967294
  %vm3649 = vcmp.ge.s32.totalorder %v3645, 0
  %vm3650 = vcmp.ge.s32.totalorder %v3646, 0
  %vm3651 = vcmp.ge.s32.totalorder %v3647, 0
  %vm3652 = vcmp.ge.s32.totalorder %v3648, 0
  %vm3653 = vcmp.lt.s32.totalorder %v3645, 16
  %vm3654 = vcmp.lt.s32.totalorder %v3646, 16
  %vm3655 = vcmp.lt.s32.totalorder %v3647, 16
  %vm3656 = vcmp.lt.s32.totalorder %v3648, 16
  %vm3657 = vmand %vm3649, %vm3653
  %vm3658 = vmand %vm3650, %vm3654
  %vm3659 = vmand %vm3651, %vm3655
  %vm3660 = vmand %vm3652, %vm3656
  %3661 = vrot.lane.b32.xlu0 %v3599, 2
  %v3662 = vpop.permute.xlu0 %3661
  %3663 = vrot.lane.b32.xlu0 %v3600, 2
  %v3664 = vpop.permute.xlu0 %3663
  %3665 = vrot.lane.b32.xlu0 %v3601, 2
  %v3666 = vpop.permute.xlu0 %3665
  %3667 = vrot.lane.b32.xlu0 %v3602, 2
  %v3668 = vpop.permute.xlu0 %3667
  %vm3669 = vcmp.lt.s32.totalorder %v101, 2
  %v3670 = vsel %vm3669, %v3666, %v3668
  %v3671 = vsel %vm3669, %v3664, %v3666
  %v3672 = vsel %vm3669, %v3662, %v3664
  %v3673 = vsel %vm3669, %v3668, %v3662
  %v3674 = vsel %vm3657, 1, 0
  %v3675 = vsel %vm3658, 1, 0
  %v3676 = vsel %vm3659, 1, 0
  %v3677 = vsel %vm3660, 1, 0
  %vm3678 = vcmp.eq.s32.totalorder %v3674, 1
  %vm3679 = vcmp.eq.s32.totalorder %v3675, 1
  %vm3680 = vcmp.eq.s32.totalorder %v3676, 1
  %vm3681 = vcmp.eq.s32.totalorder %v3677, 1
  %v3682 = vsel %vm3678, %v3673, 0.0
  %v3683 = vsel %vm3679, %v3672, 0.0
  %v3684 = vsel %vm3680, %v3671, 0.0
  %v3685 = vsel %vm3681, %v3670, 0.0
  %s3686 = scalar_lea.vmem %s17, 8
  %v3687 = vld [vmem:[%s3686] sm:$0x7f]
  %vm3688 = vcmask 15360
  %v3690 = vsel %vm3688, %v3687, 0
  %vm3692 = vcmask 1041408
  %v3694 = vsel %vm3692, %v3682, 0
  %v3697 = vsel %vm3692, %v3683, 0
  %v3700 = vsel %vm3692, %v3684, 0
  %v3703 = vsel %vm3692, %v3685, 0
  %3705 = vmatprep.subr.mxu0 0.0
  %3706 = vmatpush1.msra.mxu0 0.0
  %3707 = vmatprep.subr.mxu0 0.0
  %3708 = vmatpush1.msra.mxu0 0.0
  %3709 = vmatprep.subr.mxu0 0.0
  %3710 = vmatpush1.msra.mxu0 0.0
  %3711 = vmatprep.subr.mxu0 0.0
  %3712 = vmatpush1.msra.mxu0 0.0
  %3713 = vmatprep.subr.mxu0 0.0
  %3714 = vmatpush1.msra.mxu0 0.0
  %3715 = vmatprep.subr.mxu0 0.0
  %3716 = vmatpush1.msra.mxu0 0.0
  %3717 = vmatprep.subr.mxu0 0.0
  %3718 = vmatpush1.msra.mxu0 0.0
  %3719 = vmatprep.subr.mxu0 0.0
  %3720 = vmatpush1.msra.mxu0 0.0
  %3721 = vmatprep.subr.mxu0 0.0
  %3722 = vmatpush1.msra.mxu0 0.0
  %3723 = vmatprep.subr.mxu0 0.0
  %3724 = vmatpush1.msra.mxu0 0.0
  %3725 = vmatprep.subr.mxu0 0.0
  %3726 = vmatpush1.msra.mxu0 0.0
  %3727 = vmatprep.subr.mxu0 0.0
  %3728 = vmatpush1.msra.mxu0 0.0
  %3729 = vmatprep.subr.mxu0 0.0
  %3730 = vmatpush1.msra.mxu0 0.0
  %3731 = vmatprep.subr.mxu0 0.0
  %3732 = vmatpush1.msra.mxu0 0.0
  %3733 = vmatprep.subr.mxu0 0.0
  %3734 = vmatpush1.msra.mxu0 0.0
  %3735 = vmatprep.subr.mxu0 %v3697
  %3736 = vmatpush1.msra.mxu0 %v3694
  %3737 = vmatprep.subr.mxu0 0.0
  %3738 = vmatpush2.msra.mxu0 0.0
  %3739 = vmatprep.subr.mxu0 0.0
  %3740 = vmatpush2.msra.mxu0 0.0
  %3741 = vmatprep.subr.mxu0 0.0
  %3742 = vmatpush2.msra.mxu0 0.0
  %3743 = vmatprep.subr.mxu0 0.0
  %3744 = vmatpush2.msra.mxu0 0.0
  %3745 = vmatprep.subr.mxu0 0.0
  %3746 = vmatpush2.msra.mxu0 0.0
  %3747 = vmatprep.subr.mxu0 0.0
  %3748 = vmatpush2.msra.mxu0 0.0
  %3749 = vmatprep.subr.mxu0 0.0
  %3750 = vmatpush2.msra.mxu0 0.0
  %3751 = vmatprep.subr.mxu0 0.0
  %3752 = vmatpush2.msra.mxu0 0.0
  %3753 = vmatprep.subr.mxu0 0.0
  %3754 = vmatpush2.msra.mxu0 0.0
  %3755 = vmatprep.subr.mxu0 0.0
  %3756 = vmatpush2.msra.mxu0 0.0
  %3757 = vmatprep.subr.mxu0 0.0
  %3758 = vmatpush2.msra.mxu0 0.0
  %3759 = vmatprep.subr.mxu0 0.0
  %3760 = vmatpush2.msra.mxu0 0.0
  %3761 = vmatprep.subr.mxu0 0.0
  %3762 = vmatpush2.msra.mxu0 0.0
  %3763 = vmatprep.subr.mxu0 0.0
  %3764 = vmatpush2.msra.mxu0 0.0
  %3765 = vmatprep.subr.mxu0 0.0
  %3766 = vmatpush2.msra.mxu0 0.0
  %3767 = vmatprep.subr.mxu0 0.0
  %3768 = vmatpush2.msra.mxu0 0.0
  %3769 = vmatprep.mubr.f32.mxu0 0.0
  %3770 = vmatmul.mubr.f32.gmra.mxu0 %v3690
  %v3771 = vpop.f32.mrf.mxu0
  %v3772 = vadd.f32 0.0, %v3771
  %v3773 = vpop.f32.mrf.mxu0
  %v3774 = vadd.f32 0.0, %v3773
  %3775 = vdwg.mxu0
  %3776 = vmatprep.subr.mxu0 0.0
  %3777 = vmatpush1.msra.mxu0 0.0
  %3778 = vmatprep.subr.mxu0 0.0
  %3779 = vmatpush1.msra.mxu0 0.0
  %3780 = vmatprep.subr.mxu0 0.0
  %3781 = vmatpush1.msra.mxu0 0.0
  %3782 = vmatprep.subr.mxu0 0.0
  %3783 = vmatpush1.msra.mxu0 0.0
  %3784 = vmatprep.subr.mxu0 0.0
  %3785 = vmatpush1.msra.mxu0 0.0
  %3786 = vmatprep.subr.mxu0 0.0
  %3787 = vmatpush1.msra.mxu0 0.0
  %3788 = vmatprep.subr.mxu0 0.0
  %3789 = vmatpush1.msra.mxu0 0.0
  %3790 = vmatprep.subr.mxu0 0.0
  %3791 = vmatpush1.msra.mxu0 0.0
  %3792 = vmatprep.subr.mxu0 0.0
  %3793 = vmatpush1.msra.mxu0 0.0
  %3794 = vmatprep.subr.mxu0 0.0
  %3795 = vmatpush1.msra.mxu0 0.0
  %3796 = vmatprep.subr.mxu0 0.0
  %3797 = vmatpush1.msra.mxu0 0.0
  %3798 = vmatprep.subr.mxu0 0.0
  %3799 = vmatpush1.msra.mxu0 0.0
  %3800 = vmatprep.subr.mxu0 0.0
  %3801 = vmatpush1.msra.mxu0 0.0
  %3802 = vmatprep.subr.mxu0 0.0
  %3803 = vmatpush1.msra.mxu0 0.0
  %3804 = vmatprep.subr.mxu0 0.0
  %3805 = vmatpush1.msra.mxu0 0.0
  %3806 = vmatprep.subr.mxu0 %v3703
  %3807 = vmatpush1.msra.mxu0 %v3700
  %3808 = vmatprep.subr.mxu0 0.0
  %3809 = vmatpush2.msra.mxu0 0.0
  %3810 = vmatprep.subr.mxu0 0.0
  %3811 = vmatpush2.msra.mxu0 0.0
  %3812 = vmatprep.subr.mxu0 0.0
  %3813 = vmatpush2.msra.mxu0 0.0
  %3814 = vmatprep.subr.mxu0 0.0
  %3815 = vmatpush2.msra.mxu0 0.0
  %3816 = vmatprep.subr.mxu0 0.0
  %3817 = vmatpush2.msra.mxu0 0.0
  %3818 = vmatprep.subr.mxu0 0.0
  %3819 = vmatpush2.msra.mxu0 0.0
  %3820 = vmatprep.subr.mxu0 0.0
  %3821 = vmatpush2.msra.mxu0 0.0
  %3822 = vmatprep.subr.mxu0 0.0
  %3823 = vmatpush2.msra.mxu0 0.0
  %3824 = vmatprep.subr.mxu0 0.0
  %3825 = vmatpush2.msra.mxu0 0.0
  %3826 = vmatprep.subr.mxu0 0.0
  %3827 = vmatpush2.msra.mxu0 0.0
  %3828 = vmatprep.subr.mxu0 0.0
  %3829 = vmatpush2.msra.mxu0 0.0
  %3830 = vmatprep.subr.mxu0 0.0
  %3831 = vmatpush2.msra.mxu0 0.0
  %3832 = vmatprep.subr.mxu0 0.0
  %3833 = vmatpush2.msra.mxu0 0.0
  %3834 = vmatprep.subr.mxu0 0.0
  %3835 = vmatpush2.msra.mxu0 0.0
  %3836 = vmatprep.subr.mxu0 0.0
  %3837 = vmatpush2.msra.mxu0 0.0
  %3838 = vmatprep.subr.mxu0 0.0
  %3839 = vmatpush2.msra.mxu0 0.0
  %3840 = vmatprep.mubr.f32.mxu0 0.0
  %3841 = vmatmul.mubr.f32.gmra.mxu0 %v3690
  %v3842 = vpop.f32.mrf.mxu0
  %v3843 = vadd.f32 0.0, %v3842
  %v3844 = vpop.f32.mrf.mxu0
  %v3845 = vadd.f32 0.0, %v3844
  %3846 = vdwg.mxu0
  %v3848 = vsel %vm3688, %v3644, 0
  %v3851 = vsel %vm3692, %v3640, 0
  %v3854 = vsel %vm3692, %v3641, 0
  %v3857 = vsel %vm3692, %v3642, 0
  %v3860 = vsel %vm3692, %v3643, 0
  %3862 = vmatprep.subr.mxu0 0.0
  %3863 = vmatpush1.msra.mxu0 0.0
  %3864 = vmatprep.subr.mxu0 0.0
  %3865 = vmatpush1.msra.mxu0 0.0
  %3866 = vmatprep.subr.mxu0 0.0
  %3867 = vmatpush1.msra.mxu0 0.0
  %3868 = vmatprep.subr.mxu0 0.0
  %3869 = vmatpush1.msra.mxu0 0.0
  %3870 = vmatprep.subr.mxu0 0.0
  %3871 = vmatpush1.msra.mxu0 0.0
  %3872 = vmatprep.subr.mxu0 0.0
  %3873 = vmatpush1.msra.mxu0 0.0
  %3874 = vmatprep.subr.mxu0 0.0
  %3875 = vmatpush1.msra.mxu0 0.0
  %3876 = vmatprep.subr.mxu0 0.0
  %3877 = vmatpush1.msra.mxu0 0.0
  %3878 = vmatprep.subr.mxu0 0.0
  %3879 = vmatpush1.msra.mxu0 0.0
  %3880 = vmatprep.subr.mxu0 0.0
  %3881 = vmatpush1.msra.mxu0 0.0
  %3882 = vmatprep.subr.mxu0 0.0
  %3883 = vmatpush1.msra.mxu0 0.0
  %3884 = vmatprep.subr.mxu0 0.0
  %3885 = vmatpush1.msra.mxu0 0.0
  %3886 = vmatprep.subr.mxu0 0.0
  %3887 = vmatpush1.msra.mxu0 0.0
  %3888 = vmatprep.subr.mxu0 0.0
  %3889 = vmatpush1.msra.mxu0 0.0
  %3890 = vmatprep.subr.mxu0 0.0
  %3891 = vmatpush1.msra.mxu0 0.0
  %3892 = vmatprep.subr.mxu0 %v3854
  %3893 = vmatpush1.msra.mxu0 %v3851
  %3894 = vmatprep.subr.mxu0 0.0
  %3895 = vmatpush2.msra.mxu0 0.0
  %3896 = vmatprep.subr.mxu0 0.0
  %3897 = vmatpush2.msra.mxu0 0.0
  %3898 = vmatprep.subr.mxu0 0.0
  %3899 = vmatpush2.msra.mxu0 0.0
  %3900 = vmatprep.subr.mxu0 0.0
  %3901 = vmatpush2.msra.mxu0 0.0
  %3902 = vmatprep.subr.mxu0 0.0
  %3903 = vmatpush2.msra.mxu0 0.0
  %3904 = vmatprep.subr.mxu0 0.0
  %3905 = vmatpush2.msra.mxu0 0.0
  %3906 = vmatprep.subr.mxu0 0.0
  %3907 = vmatpush2.msra.mxu0 0.0
  %3908 = vmatprep.subr.mxu0 0.0
  %3909 = vmatpush2.msra.mxu0 0.0
  %3910 = vmatprep.subr.mxu0 0.0
  %3911 = vmatpush2.msra.mxu0 0.0
  %3912 = vmatprep.subr.mxu0 0.0
  %3913 = vmatpush2.msra.mxu0 0.0
  %3914 = vmatprep.subr.mxu0 0.0
  %3915 = vmatpush2.msra.mxu0 0.0
  %3916 = vmatprep.subr.mxu0 0.0
  %3917 = vmatpush2.msra.mxu0 0.0
  %3918 = vmatprep.subr.mxu0 0.0
  %3919 = vmatpush2.msra.mxu0 0.0
  %3920 = vmatprep.subr.mxu0 0.0
  %3921 = vmatpush2.msra.mxu0 0.0
  %3922 = vmatprep.subr.mxu0 0.0
  %3923 = vmatpush2.msra.mxu0 0.0
  %3924 = vmatprep.subr.mxu0 0.0
  %3925 = vmatpush2.msra.mxu0 0.0
  %3926 = vmatprep.mubr.f32.mxu0 0.0
  %3927 = vmatmul.mubr.f32.gmra.mxu0 %v3848
  %v3928 = vpop.f32.mrf.mxu0
  %v3929 = vadd.f32 %v3772, %v3928
  %v3930 = vpop.f32.mrf.mxu0
  %v3931 = vadd.f32 %v3774, %v3930
  %3932 = vdwg.mxu0
  %3933 = vmatprep.subr.mxu0 0.0
  %3934 = vmatpush1.msra.mxu0 0.0
  %3935 = vmatprep.subr.mxu0 0.0
  %3936 = vmatpush1.msra.mxu0 0.0
  %3937 = vmatprep.subr.mxu0 0.0
  %3938 = vmatpush1.msra.mxu0 0.0
  %3939 = vmatprep.subr.mxu0 0.0
  %3940 = vmatpush1.msra.mxu0 0.0
  %3941 = vmatprep.subr.mxu0 0.0
  %3942 = vmatpush1.msra.mxu0 0.0
  %3943 = vmatprep.subr.mxu0 0.0
  %3944 = vmatpush1.msra.mxu0 0.0
  %3945 = vmatprep.subr.mxu0 0.0
  %3946 = vmatpush1.msra.mxu0 0.0
  %3947 = vmatprep.subr.mxu0 0.0
  %3948 = vmatpush1.msra.mxu0 0.0
  %3949 = vmatprep.subr.mxu0 0.0
  %3950 = vmatpush1.msra.mxu0 0.0
  %3951 = vmatprep.subr.mxu0 0.0
  %3952 = vmatpush1.msra.mxu0 0.0
  %3953 = vmatprep.subr.mxu0 0.0
  %3954 = vmatpush1.msra.mxu0 0.0
  %3955 = vmatprep.subr.mxu0 0.0
  %3956 = vmatpush1.msra.mxu0 0.0
  %3957 = vmatprep.subr.mxu0 0.0
  %3958 = vmatpush1.msra.mxu0 0.0
  %3959 = vmatprep.subr.mxu0 0.0
  %3960 = vmatpush1.msra.mxu0 0.0
  %3961 = vmatprep.subr.mxu0 0.0
  %3962 = vmatpush1.msra.mxu0 0.0
  %3963 = vmatprep.subr.mxu0 %v3860
  %3964 = vmatpush1.msra.mxu0 %v3857
  %3965 = vmatprep.subr.mxu0 0.0
  %3966 = vmatpush2.msra.mxu0 0.0
  %3967 = vmatprep.subr.mxu0 0.0
  %3968 = vmatpush2.msra.mxu0 0.0
  %3969 = vmatprep.subr.mxu0 0.0
  %3970 = vmatpush2.msra.mxu0 0.0
  %3971 = vmatprep.subr.mxu0 0.0
  %3972 = vmatpush2.msra.mxu0 0.0
  %3973 = vmatprep.subr.mxu0 0.0
  %3974 = vmatpush2.msra.mxu0 0.0
  %3975 = vmatprep.subr.mxu0 0.0
  %3976 = vmatpush2.msra.mxu0 0.0
  %3977 = vmatprep.subr.mxu0 0.0
  %3978 = vmatpush2.msra.mxu0 0.0
  %3979 = vmatprep.subr.mxu0 0.0
  %3980 = vmatpush2.msra.mxu0 0.0
  %3981 = vmatprep.subr.mxu0 0.0
  %3982 = vmatpush2.msra.mxu0 0.0
  %3983 = vmatprep.subr.mxu0 0.0
  %3984 = vmatpush2.msra.mxu0 0.0
  %3985 = vmatprep.subr.mxu0 0.0
  %3986 = vmatpush2.msra.mxu0 0.0
  %3987 = vmatprep.subr.mxu0 0.0
  %3988 = vmatpush2.msra.mxu0 0.0
  %3989 = vmatprep.subr.mxu0 0.0
  %3990 = vmatpush2.msra.mxu0 0.0
  %3991 = vmatprep.subr.mxu0 0.0
  %3992 = vmatpush2.msra.mxu0 0.0
  %3993 = vmatprep.subr.mxu0 0.0
  %3994 = vmatpush2.msra.mxu0 0.0
  %3995 = vmatprep.subr.mxu0 0.0
  %3996 = vmatpush2.msra.mxu0 0.0
  %3997 = vmatprep.mubr.f32.mxu0 0.0
  %3998 = vmatmul.mubr.f32.gmra.mxu0 %v3848
  %v3999 = vpop.f32.mrf.mxu0
  %v4000 = vadd.f32 %v3843, %v3999
  %v4001 = vpop.f32.mrf.mxu0
  %v4002 = vadd.f32 %v3845, %v4001
  %4003 = vdwg.mxu0
  %v4004 = vadd.s32 %v105, 4294967295
  %v4005 = vadd.s32 %v106, 4294967295
  %v4006 = vadd.s32 %v107, 4294967295
  %v4007 = vadd.s32 %v108, 4294967295
  %vm4008 = vcmp.ge.s32.totalorder %v4004, 0
  %vm4009 = vcmp.ge.s32.totalorder %v4005, 0
  %vm4010 = vcmp.ge.s32.totalorder %v4006, 0
  %vm4011 = vcmp.ge.s32.totalorder %v4007, 0
  %vm4012 = vcmp.lt.s32.totalorder %v4004, 16
  %vm4013 = vcmp.lt.s32.totalorder %v4005, 16
  %vm4014 = vcmp.lt.s32.totalorder %v4006, 16
  %vm4015 = vcmp.lt.s32.totalorder %v4007, 16
  %vm4016 = vmand %vm4008, %vm4012
  %vm4017 = vmand %vm4009, %vm4013
  %vm4018 = vmand %vm4010, %vm4014
  %vm4019 = vmand %vm4011, %vm4015
  %4020 = vrot.lane.b32.xlu0 %v3599, 1
  %v4021 = vpop.permute.xlu0 %4020
  %4022 = vrot.lane.b32.xlu0 %v3600, 1
  %v4023 = vpop.permute.xlu0 %4022
  %4024 = vrot.lane.b32.xlu0 %v3601, 1
  %v4025 = vpop.permute.xlu0 %4024
  %4026 = vrot.lane.b32.xlu0 %v3602, 1
  %v4027 = vpop.permute.xlu0 %4026
  %v4028 = vsel %vm1348, %v4025, %v4027
  %v4029 = vsel %vm1348, %v4023, %v4025
  %v4030 = vsel %vm1348, %v4021, %v4023
  %v4031 = vsel %vm1348, %v4027, %v4021
  %v4032 = vsel %vm4016, 1, 0
  %v4033 = vsel %vm4017, 1, 0
  %v4034 = vsel %vm4018, 1, 0
  %v4035 = vsel %vm4019, 1, 0
  %vm4036 = vcmp.eq.s32.totalorder %v4032, 1
  %vm4037 = vcmp.eq.s32.totalorder %v4033, 1
  %vm4038 = vcmp.eq.s32.totalorder %v4034, 1
  %vm4039 = vcmp.eq.s32.totalorder %v4035, 1
  %v4040 = vsel %vm4036, %v4031, 0.0
  %v4041 = vsel %vm4037, %v4030, 0.0
  %v4042 = vsel %vm4038, %v4029, 0.0
  %v4043 = vsel %vm4039, %v4028, 0.0
  %s4044 = scalar_lea.vmem %s17, 16
  %v4045 = vld [vmem:[%s4044] sm:$0x7f]
  %v4047 = vsel %vm3688, %v4045, 0
  %v4050 = vsel %vm3692, %v4040, 0
  %v4053 = vsel %vm3692, %v4041, 0
  %v4056 = vsel %vm3692, %v4042, 0
  %v4059 = vsel %vm3692, %v4043, 0
  %4061 = vmatprep.subr.mxu0 0.0
  %4062 = vmatpush1.msra.mxu0 0.0
  %4063 = vmatprep.subr.mxu0 0.0
  %4064 = vmatpush1.msra.mxu0 0.0
  %4065 = vmatprep.subr.mxu0 0.0
  %4066 = vmatpush1.msra.mxu0 0.0
  %4067 = vmatprep.subr.mxu0 0.0
  %4068 = vmatpush1.msra.mxu0 0.0
  %4069 = vmatprep.subr.mxu0 0.0
  %4070 = vmatpush1.msra.mxu0 0.0
  %4071 = vmatprep.subr.mxu0 0.0
  %4072 = vmatpush1.msra.mxu0 0.0
  %4073 = vmatprep.subr.mxu0 0.0
  %4074 = vmatpush1.msra.mxu0 0.0
  %4075 = vmatprep.subr.mxu0 0.0
  %4076 = vmatpush1.msra.mxu0 0.0
  %4077 = vmatprep.subr.mxu0 0.0
  %4078 = vmatpush1.msra.mxu0 0.0
  %4079 = vmatprep.subr.mxu0 0.0
  %4080 = vmatpush1.msra.mxu0 0.0
  %4081 = vmatprep.subr.mxu0 0.0
  %4082 = vmatpush1.msra.mxu0 0.0
  %4083 = vmatprep.subr.mxu0 0.0
  %4084 = vmatpush1.msra.mxu0 0.0
  %4085 = vmatprep.subr.mxu0 0.0
  %4086 = vmatpush1.msra.mxu0 0.0
  %4087 = vmatprep.subr.mxu0 0.0
  %4088 = vmatpush1.msra.mxu0 0.0
  %4089 = vmatprep.subr.mxu0 0.0
  %4090 = vmatpush1.msra.mxu0 0.0
  %4091 = vmatprep.subr.mxu0 %v4053
  %4092 = vmatpush1.msra.mxu0 %v4050
  %4093 = vmatprep.subr.mxu0 0.0
  %4094 = vmatpush2.msra.mxu0 0.0
  %4095 = vmatprep.subr.mxu0 0.0
  %4096 = vmatpush2.msra.mxu0 0.0
  %4097 = vmatprep.subr.mxu0 0.0
  %4098 = vmatpush2.msra.mxu0 0.0
  %4099 = vmatprep.subr.mxu0 0.0
  %4100 = vmatpush2.msra.mxu0 0.0
  %4101 = vmatprep.subr.mxu0 0.0
  %4102 = vmatpush2.msra.mxu0 0.0
  %4103 = vmatprep.subr.mxu0 0.0
  %4104 = vmatpush2.msra.mxu0 0.0
  %4105 = vmatprep.subr.mxu0 0.0
  %4106 = vmatpush2.msra.mxu0 0.0
  %4107 = vmatprep.subr.mxu0 0.0
  %4108 = vmatpush2.msra.mxu0 0.0
  %4109 = vmatprep.subr.mxu0 0.0
  %4110 = vmatpush2.msra.mxu0 0.0
  %4111 = vmatprep.subr.mxu0 0.0
  %4112 = vmatpush2.msra.mxu0 0.0
  %4113 = vmatprep.subr.mxu0 0.0
  %4114 = vmatpush2.msra.mxu0 0.0
  %4115 = vmatprep.subr.mxu0 0.0
  %4116 = vmatpush2.msra.mxu0 0.0
  %4117 = vmatprep.subr.mxu0 0.0
  %4118 = vmatpush2.msra.mxu0 0.0
  %4119 = vmatprep.subr.mxu0 0.0
  %4120 = vmatpush2.msra.mxu0 0.0
  %4121 = vmatprep.subr.mxu0 0.0
  %4122 = vmatpush2.msra.mxu0 0.0
  %4123 = vmatprep.subr.mxu0 0.0
  %4124 = vmatpush2.msra.mxu0 0.0
  %4125 = vmatprep.mubr.f32.mxu0 0.0
  %4126 = vmatmul.mubr.f32.gmra.mxu0 %v4047
  %v4127 = vpop.f32.mrf.mxu0
  %v4128 = vadd.f32 0.0, %v4127
  %v4129 = vpop.f32.mrf.mxu0
  %v4130 = vadd.f32 0.0, %v4129
  %4131 = vdwg.mxu0
  %4132 = vmatprep.subr.mxu0 0.0
  %4133 = vmatpush1.msra.mxu0 0.0
  %4134 = vmatprep.subr.mxu0 0.0
  %4135 = vmatpush1.msra.mxu0 0.0
  %4136 = vmatprep.subr.mxu0 0.0
  %4137 = vmatpush1.msra.mxu0 0.0
  %4138 = vmatprep.subr.mxu0 0.0
  %4139 = vmatpush1.msra.mxu0 0.0
  %4140 = vmatprep.subr.mxu0 0.0
  %4141 = vmatpush1.msra.mxu0 0.0
  %4142 = vmatprep.subr.mxu0 0.0
  %4143 = vmatpush1.msra.mxu0 0.0
  %4144 = vmatprep.subr.mxu0 0.0
  %4145 = vmatpush1.msra.mxu0 0.0
  %4146 = vmatprep.subr.mxu0 0.0
  %4147 = vmatpush1.msra.mxu0 0.0
  %4148 = vmatprep.subr.mxu0 0.0
  %4149 = vmatpush1.msra.mxu0 0.0
  %4150 = vmatprep.subr.mxu0 0.0
  %4151 = vmatpush1.msra.mxu0 0.0
  %4152 = vmatprep.subr.mxu0 0.0
  %4153 = vmatpush1.msra.mxu0 0.0
  %4154 = vmatprep.subr.mxu0 0.0
  %4155 = vmatpush1.msra.mxu0 0.0
  %4156 = vmatprep.subr.mxu0 0.0
  %4157 = vmatpush1.msra.mxu0 0.0
  %4158 = vmatprep.subr.mxu0 0.0
  %4159 = vmatpush1.msra.mxu0 0.0
  %4160 = vmatprep.subr.mxu0 0.0
  %4161 = vmatpush1.msra.mxu0 0.0
  %4162 = vmatprep.subr.mxu0 %v4059
  %4163 = vmatpush1.msra.mxu0 %v4056
  %4164 = vmatprep.subr.mxu0 0.0
  %4165 = vmatpush2.msra.mxu0 0.0
  %4166 = vmatprep.subr.mxu0 0.0
  %4167 = vmatpush2.msra.mxu0 0.0
  %4168 = vmatprep.subr.mxu0 0.0
  %4169 = vmatpush2.msra.mxu0 0.0
  %4170 = vmatprep.subr.mxu0 0.0
  %4171 = vmatpush2.msra.mxu0 0.0
  %4172 = vmatprep.subr.mxu0 0.0
  %4173 = vmatpush2.msra.mxu0 0.0
  %4174 = vmatprep.subr.mxu0 0.0
  %4175 = vmatpush2.msra.mxu0 0.0
  %4176 = vmatprep.subr.mxu0 0.0
  %4177 = vmatpush2.msra.mxu0 0.0
  %4178 = vmatprep.subr.mxu0 0.0
  %4179 = vmatpush2.msra.mxu0 0.0
  %4180 = vmatprep.subr.mxu0 0.0
  %4181 = vmatpush2.msra.mxu0 0.0
  %4182 = vmatprep.subr.mxu0 0.0
  %4183 = vmatpush2.msra.mxu0 0.0
  %4184 = vmatprep.subr.mxu0 0.0
  %4185 = vmatpush2.msra.mxu0 0.0
  %4186 = vmatprep.subr.mxu0 0.0
  %4187 = vmatpush2.msra.mxu0 0.0
  %4188 = vmatprep.subr.mxu0 0.0
  %4189 = vmatpush2.msra.mxu0 0.0
  %4190 = vmatprep.subr.mxu0 0.0
  %4191 = vmatpush2.msra.mxu0 0.0
  %4192 = vmatprep.subr.mxu0 0.0
  %4193 = vmatpush2.msra.mxu0 0.0
  %4194 = vmatprep.subr.mxu0 0.0
  %4195 = vmatpush2.msra.mxu0 0.0
  %4196 = vmatprep.mubr.f32.mxu0 0.0
  %4197 = vmatmul.mubr.f32.gmra.mxu0 %v4047
  %v4198 = vpop.f32.mrf.mxu0
  %v4199 = vadd.f32 0.0, %v4198
  %v4200 = vpop.f32.mrf.mxu0
  %v4201 = vadd.f32 0.0, %v4200
  %4202 = vdwg.mxu0
  %v4203 = vadd.f32 %v3929, %v4128
  %v4204 = vadd.f32 %v3931, %v4130
  %v4205 = vadd.f32 %v4000, %v4199
  %v4206 = vadd.f32 %v4002, %v4201
  %s4207 = scalar_lea.vmem %s17, 24
  %v4208 = vld [vmem:[%s4207] sm:$0x7f]
  %v4210 = vsel %vm3688, %v4208, 0
  %v4213 = vsel %vm3692, %v3599, 0
  %v4216 = vsel %vm3692, %v3600, 0
  %v4219 = vsel %vm3692, %v3601, 0
  %v4222 = vsel %vm3692, %v3602, 0
  %4224 = vmatprep.subr.mxu0 0.0
  %4225 = vmatpush1.msra.mxu0 0.0
  %4226 = vmatprep.subr.mxu0 0.0
  %4227 = vmatpush1.msra.mxu0 0.0
  %4228 = vmatprep.subr.mxu0 0.0
  %4229 = vmatpush1.msra.mxu0 0.0
  %4230 = vmatprep.subr.mxu0 0.0
  %4231 = vmatpush1.msra.mxu0 0.0
  %4232 = vmatprep.subr.mxu0 0.0
  %4233 = vmatpush1.msra.mxu0 0.0
  %4234 = vmatprep.subr.mxu0 0.0
  %4235 = vmatpush1.msra.mxu0 0.0
  %4236 = vmatprep.subr.mxu0 0.0
  %4237 = vmatpush1.msra.mxu0 0.0
  %4238 = vmatprep.subr.mxu0 0.0
  %4239 = vmatpush1.msra.mxu0 0.0
  %4240 = vmatprep.subr.mxu0 0.0
  %4241 = vmatpush1.msra.mxu0 0.0
  %4242 = vmatprep.subr.mxu0 0.0
  %4243 = vmatpush1.msra.mxu0 0.0
  %4244 = vmatprep.subr.mxu0 0.0
  %4245 = vmatpush1.msra.mxu0 0.0
  %4246 = vmatprep.subr.mxu0 0.0
  %4247 = vmatpush1.msra.mxu0 0.0
  %4248 = vmatprep.subr.mxu0 0.0
  %4249 = vmatpush1.msra.mxu0 0.0
  %4250 = vmatprep.subr.mxu0 0.0
  %4251 = vmatpush1.msra.mxu0 0.0
  %4252 = vmatprep.subr.mxu0 0.0
  %4253 = vmatpush1.msra.mxu0 0.0
  %4254 = vmatprep.subr.mxu0 %v4216
  %4255 = vmatpush1.msra.mxu0 %v4213
  %4256 = vmatprep.subr.mxu0 0.0
  %4257 = vmatpush2.msra.mxu0 0.0
  %4258 = vmatprep.subr.mxu0 0.0
  %4259 = vmatpush2.msra.mxu0 0.0
  %4260 = vmatprep.subr.mxu0 0.0
  %4261 = vmatpush2.msra.mxu0 0.0
  %4262 = vmatprep.subr.mxu0 0.0
  %4263 = vmatpush2.msra.mxu0 0.0
  %4264 = vmatprep.subr.mxu0 0.0
  %4265 = vmatpush2.msra.mxu0 0.0
  %4266 = vmatprep.subr.mxu0 0.0
  %4267 = vmatpush2.msra.mxu0 0.0
  %4268 = vmatprep.subr.mxu0 0.0
  %4269 = vmatpush2.msra.mxu0 0.0
  %4270 = vmatprep.subr.mxu0 0.0
  %4271 = vmatpush2.msra.mxu0 0.0
  %4272 = vmatprep.subr.mxu0 0.0
  %4273 = vmatpush2.msra.mxu0 0.0
  %4274 = vmatprep.subr.mxu0 0.0
  %4275 = vmatpush2.msra.mxu0 0.0
  %4276 = vmatprep.subr.mxu0 0.0
  %4277 = vmatpush2.msra.mxu0 0.0
  %4278 = vmatprep.subr.mxu0 0.0
  %4279 = vmatpush2.msra.mxu0 0.0
  %4280 = vmatprep.subr.mxu0 0.0
  %4281 = vmatpush2.msra.mxu0 0.0
  %4282 = vmatprep.subr.mxu0 0.0
  %4283 = vmatpush2.msra.mxu0 0.0
  %4284 = vmatprep.subr.mxu0 0.0
  %4285 = vmatpush2.msra.mxu0 0.0
  %4286 = vmatprep.subr.mxu0 0.0
  %4287 = vmatpush2.msra.mxu0 0.0
  %4288 = vmatprep.mubr.f32.mxu0 0.0
  %4289 = vmatmul.mubr.f32.gmra.mxu0 %v4210
  %v4290 = vpop.f32.mrf.mxu0
  %v4291 = vadd.f32 0.0, %v4290
  %v4292 = vpop.f32.mrf.mxu0
  %v4293 = vadd.f32 0.0, %v4292
  %4294 = vdwg.mxu0
  %4295 = vmatprep.subr.mxu0 0.0
  %4296 = vmatpush1.msra.mxu0 0.0
  %4297 = vmatprep.subr.mxu0 0.0
  %4298 = vmatpush1.msra.mxu0 0.0
  %4299 = vmatprep.subr.mxu0 0.0
  %4300 = vmatpush1.msra.mxu0 0.0
  %4301 = vmatprep.subr.mxu0 0.0
  %4302 = vmatpush1.msra.mxu0 0.0
  %4303 = vmatprep.subr.mxu0 0.0
  %4304 = vmatpush1.msra.mxu0 0.0
  %4305 = vmatprep.subr.mxu0 0.0
  %4306 = vmatpush1.msra.mxu0 0.0
  %4307 = vmatprep.subr.mxu0 0.0
  %4308 = vmatpush1.msra.mxu0 0.0
  %4309 = vmatprep.subr.mxu0 0.0
  %4310 = vmatpush1.msra.mxu0 0.0
  %4311 = vmatprep.subr.mxu0 0.0
  %4312 = vmatpush1.msra.mxu0 0.0
  %4313 = vmatprep.subr.mxu0 0.0
  %4314 = vmatpush1.msra.mxu0 0.0
  %4315 = vmatprep.subr.mxu0 0.0
  %4316 = vmatpush1.msra.mxu0 0.0
  %4317 = vmatprep.subr.mxu0 0.0
  %4318 = vmatpush1.msra.mxu0 0.0
  %4319 = vmatprep.subr.mxu0 0.0
  %4320 = vmatpush1.msra.mxu0 0.0
  %4321 = vmatprep.subr.mxu0 0.0
  %4322 = vmatpush1.msra.mxu0 0.0
  %4323 = vmatprep.subr.mxu0 0.0
  %4324 = vmatpush1.msra.mxu0 0.0
  %4325 = vmatprep.subr.mxu0 %v4222
  %4326 = vmatpush1.msra.mxu0 %v4219
  %4327 = vmatprep.subr.mxu0 0.0
  %4328 = vmatpush2.msra.mxu0 0.0
  %4329 = vmatprep.subr.mxu0 0.0
  %4330 = vmatpush2.msra.mxu0 0.0
  %4331 = vmatprep.subr.mxu0 0.0
  %4332 = vmatpush2.msra.mxu0 0.0
  %4333 = vmatprep.subr.mxu0 0.0
  %4334 = vmatpush2.msra.mxu0 0.0
  %4335 = vmatprep.subr.mxu0 0.0
  %4336 = vmatpush2.msra.mxu0 0.0
  %4337 = vmatprep.subr.mxu0 0.0
  %4338 = vmatpush2.msra.mxu0 0.0
  %4339 = vmatprep.subr.mxu0 0.0
  %4340 = vmatpush2.msra.mxu0 0.0
  %4341 = vmatprep.subr.mxu0 0.0
  %4342 = vmatpush2.msra.mxu0 0.0
  %4343 = vmatprep.subr.mxu0 0.0
  %4344 = vmatpush2.msra.mxu0 0.0
  %4345 = vmatprep.subr.mxu0 0.0
  %4346 = vmatpush2.msra.mxu0 0.0
  %4347 = vmatprep.subr.mxu0 0.0
  %4348 = vmatpush2.msra.mxu0 0.0
  %4349 = vmatprep.subr.mxu0 0.0
  %4350 = vmatpush2.msra.mxu0 0.0
  %4351 = vmatprep.subr.mxu0 0.0
  %4352 = vmatpush2.msra.mxu0 0.0
  %4353 = vmatprep.subr.mxu0 0.0
  %4354 = vmatpush2.msra.mxu0 0.0
  %4355 = vmatprep.subr.mxu0 0.0
  %4356 = vmatpush2.msra.mxu0 0.0
  %4357 = vmatprep.subr.mxu0 0.0
  %4358 = vmatpush2.msra.mxu0 0.0
  %4359 = vmatprep.mubr.f32.mxu0 0.0
  %4360 = vmatmul.mubr.f32.gmra.mxu0 %v4210
  %v4361 = vpop.f32.mrf.mxu0
  %v4362 = vadd.f32 0.0, %v4361
  %v4363 = vpop.f32.mrf.mxu0
  %v4364 = vadd.f32 0.0, %v4363
  %4365 = vdwg.mxu0
  %v4366 = vadd.f32 %v4203, %v4291
  %v4367 = vadd.f32 %v4204, %v4293
  %v4368 = vadd.f32 %v4205, %v4362
  %v4369 = vadd.f32 %v4206, %v4364
  %v4370 = vadd.s32 %v105, 1
  %v4371 = vadd.s32 %v106, 1
  %v4372 = vadd.s32 %v107, 1
  %v4373 = vadd.s32 %v108, 1
  %vm4374 = vcmp.ge.s32.totalorder %v4370, 0
  %vm4375 = vcmp.ge.s32.totalorder %v4371, 0
  %vm4376 = vcmp.ge.s32.totalorder %v4372, 0
  %vm4377 = vcmp.ge.s32.totalorder %v4373, 0
  %vm4378 = vcmp.lt.s32.totalorder %v4370, 16
  %vm4379 = vcmp.lt.s32.totalorder %v4371, 16
  %vm4380 = vcmp.lt.s32.totalorder %v4372, 16
  %vm4381 = vcmp.lt.s32.totalorder %v4373, 16
  %vm4382 = vmand %vm4374, %vm4378
  %vm4383 = vmand %vm4375, %vm4379
  %vm4384 = vmand %vm4376, %vm4380
  %vm4385 = vmand %vm4377, %vm4381
  %4386 = vrot.lane.b32.xlu0 %v3599, 127
  %v4387 = vpop.permute.xlu0 %4386
  %4388 = vrot.lane.b32.xlu0 %v3600, 127
  %v4389 = vpop.permute.xlu0 %4388
  %4390 = vrot.lane.b32.xlu0 %v3601, 127
  %v4391 = vpop.permute.xlu0 %4390
  %4392 = vrot.lane.b32.xlu0 %v3602, 127
  %v4393 = vpop.permute.xlu0 %4392
  %v4394 = vsel %vm1425, %v4391, %v4393
  %v4395 = vsel %vm1425, %v4389, %v4391
  %v4396 = vsel %vm1425, %v4387, %v4389
  %v4397 = vsel %vm1425, %v4393, %v4387
  %v4398 = vsel %vm4382, 1, 0
  %v4399 = vsel %vm4383, 1, 0
  %v4400 = vsel %vm4384, 1, 0
  %v4401 = vsel %vm4385, 1, 0
  %vm4402 = vcmp.eq.s32.totalorder %v4398, 1
  %vm4403 = vcmp.eq.s32.totalorder %v4399, 1
  %vm4404 = vcmp.eq.s32.totalorder %v4400, 1
  %vm4405 = vcmp.eq.s32.totalorder %v4401, 1
  %v4406 = vsel %vm4402, %v4396, 0.0
  %v4407 = vsel %vm4403, %v4395, 0.0
  %v4408 = vsel %vm4404, %v4394, 0.0
  %v4409 = vsel %vm4405, %v4397, 0.0
  %s4410 = scalar_lea.vmem %s17, 32
  %v4411 = vld [vmem:[%s4410] sm:$0x7f]
  %v4413 = vsel %vm3688, %v4411, 0
  %v4416 = vsel %vm3692, %v4406, 0
  %v4419 = vsel %vm3692, %v4407, 0
  %v4422 = vsel %vm3692, %v4408, 0
  %v4425 = vsel %vm3692, %v4409, 0
  %4427 = vmatprep.subr.mxu0 0.0
  %4428 = vmatpush1.msra.mxu0 0.0
  %4429 = vmatprep.subr.mxu0 0.0
  %4430 = vmatpush1.msra.mxu0 0.0
  %4431 = vmatprep.subr.mxu0 0.0
  %4432 = vmatpush1.msra.mxu0 0.0
  %4433 = vmatprep.subr.mxu0 0.0
  %4434 = vmatpush1.msra.mxu0 0.0
  %4435 = vmatprep.subr.mxu0 0.0
  %4436 = vmatpush1.msra.mxu0 0.0
  %4437 = vmatprep.subr.mxu0 0.0
  %4438 = vmatpush1.msra.mxu0 0.0
  %4439 = vmatprep.subr.mxu0 0.0
  %4440 = vmatpush1.msra.mxu0 0.0
  %4441 = vmatprep.subr.mxu0 0.0
  %4442 = vmatpush1.msra.mxu0 0.0
  %4443 = vmatprep.subr.mxu0 0.0
  %4444 = vmatpush1.msra.mxu0 0.0
  %4445 = vmatprep.subr.mxu0 0.0
  %4446 = vmatpush1.msra.mxu0 0.0
  %4447 = vmatprep.subr.mxu0 0.0
  %4448 = vmatpush1.msra.mxu0 0.0
  %4449 = vmatprep.subr.mxu0 0.0
  %4450 = vmatpush1.msra.mxu0 0.0
  %4451 = vmatprep.subr.mxu0 0.0
  %4452 = vmatpush1.msra.mxu0 0.0
  %4453 = vmatprep.subr.mxu0 0.0
  %4454 = vmatpush1.msra.mxu0 0.0
  %4455 = vmatprep.subr.mxu0 0.0
  %4456 = vmatpush1.msra.mxu0 0.0
  %4457 = vmatprep.subr.mxu0 %v4419
  %4458 = vmatpush1.msra.mxu0 %v4416
  %4459 = vmatprep.subr.mxu0 0.0
  %4460 = vmatpush2.msra.mxu0 0.0
  %4461 = vmatprep.subr.mxu0 0.0
  %4462 = vmatpush2.msra.mxu0 0.0
  %4463 = vmatprep.subr.mxu0 0.0
  %4464 = vmatpush2.msra.mxu0 0.0
  %4465 = vmatprep.subr.mxu0 0.0
  %4466 = vmatpush2.msra.mxu0 0.0
  %4467 = vmatprep.subr.mxu0 0.0
  %4468 = vmatpush2.msra.mxu0 0.0
  %4469 = vmatprep.subr.mxu0 0.0
  %4470 = vmatpush2.msra.mxu0 0.0
  %4471 = vmatprep.subr.mxu0 0.0
  %4472 = vmatpush2.msra.mxu0 0.0
  %4473 = vmatprep.subr.mxu0 0.0
  %4474 = vmatpush2.msra.mxu0 0.0
  %4475 = vmatprep.subr.mxu0 0.0
  %4476 = vmatpush2.msra.mxu0 0.0
  %4477 = vmatprep.subr.mxu0 0.0
  %4478 = vmatpush2.msra.mxu0 0.0
  %4479 = vmatprep.subr.mxu0 0.0
  %4480 = vmatpush2.msra.mxu0 0.0
  %4481 = vmatprep.subr.mxu0 0.0
  %4482 = vmatpush2.msra.mxu0 0.0
  %4483 = vmatprep.subr.mxu0 0.0
  %4484 = vmatpush2.msra.mxu0 0.0
  %4485 = vmatprep.subr.mxu0 0.0
  %4486 = vmatpush2.msra.mxu0 0.0
  %4487 = vmatprep.subr.mxu0 0.0
  %4488 = vmatpush2.msra.mxu0 0.0
  %4489 = vmatprep.subr.mxu0 0.0
  %4490 = vmatpush2.msra.mxu0 0.0
  %4491 = vmatprep.mubr.f32.mxu0 0.0
  %4492 = vmatmul.mubr.f32.gmra.mxu0 %v4413
  %v4493 = vpop.f32.mrf.mxu0
  %v4494 = vadd.f32 0.0, %v4493
  %v4495 = vpop.f32.mrf.mxu0
  %v4496 = vadd.f32 0.0, %v4495
  %4497 = vdwg.mxu0
  %4498 = vmatprep.subr.mxu0 0.0
  %4499 = vmatpush1.msra.mxu0 0.0
  %4500 = vmatprep.subr.mxu0 0.0
  %4501 = vmatpush1.msra.mxu0 0.0
  %4502 = vmatprep.subr.mxu0 0.0
  %4503 = vmatpush1.msra.mxu0 0.0
  %4504 = vmatprep.subr.mxu0 0.0
  %4505 = vmatpush1.msra.mxu0 0.0
  %4506 = vmatprep.subr.mxu0 0.0
  %4507 = vmatpush1.msra.mxu0 0.0
  %4508 = vmatprep.subr.mxu0 0.0
  %4509 = vmatpush1.msra.mxu0 0.0
  %4510 = vmatprep.subr.mxu0 0.0
  %4511 = vmatpush1.msra.mxu0 0.0
  %4512 = vmatprep.subr.mxu0 0.0
  %4513 = vmatpush1.msra.mxu0 0.0
  %4514 = vmatprep.subr.mxu0 0.0
  %4515 = vmatpush1.msra.mxu0 0.0
  %4516 = vmatprep.subr.mxu0 0.0
  %4517 = vmatpush1.msra.mxu0 0.0
  %4518 = vmatprep.subr.mxu0 0.0
  %4519 = vmatpush1.msra.mxu0 0.0
  %4520 = vmatprep.subr.mxu0 0.0
  %4521 = vmatpush1.msra.mxu0 0.0
  %4522 = vmatprep.subr.mxu0 0.0
  %4523 = vmatpush1.msra.mxu0 0.0
  %4524 = vmatprep.subr.mxu0 0.0
  %4525 = vmatpush1.msra.mxu0 0.0
  %4526 = vmatprep.subr.mxu0 0.0
  %4527 = vmatpush1.msra.mxu0 0.0
  %4528 = vmatprep.subr.mxu0 %v4425
  %4529 = vmatpush1.msra.mxu0 %v4422
  %4530 = vmatprep.subr.mxu0 0.0
  %4531 = vmatpush2.msra.mxu0 0.0
  %4532 = vmatprep.subr.mxu0 0.0
  %4533 = vmatpush2.msra.mxu0 0.0
  %4534 = vmatprep.subr.mxu0 0.0
  %4535 = vmatpush2.msra.mxu0 0.0
  %4536 = vmatprep.subr.mxu0 0.0
  %4537 = vmatpush2.msra.mxu0 0.0
  %4538 = vmatprep.subr.mxu0 0.0
  %4539 = vmatpush2.msra.mxu0 0.0
  %4540 = vmatprep.subr.mxu0 0.0
  %4541 = vmatpush2.msra.mxu0 0.0
  %4542 = vmatprep.subr.mxu0 0.0
  %4543 = vmatpush2.msra.mxu0 0.0
  %4544 = vmatprep.subr.mxu0 0.0
  %4545 = vmatpush2.msra.mxu0 0.0
  %4546 = vmatprep.subr.mxu0 0.0
  %4547 = vmatpush2.msra.mxu0 0.0
  %4548 = vmatprep.subr.mxu0 0.0
  %4549 = vmatpush2.msra.mxu0 0.0
  %4550 = vmatprep.subr.mxu0 0.0
  %4551 = vmatpush2.msra.mxu0 0.0
  %4552 = vmatprep.subr.mxu0 0.0
  %4553 = vmatpush2.msra.mxu0 0.0
  %4554 = vmatprep.subr.mxu0 0.0
  %4555 = vmatpush2.msra.mxu0 0.0
  %4556 = vmatprep.subr.mxu0 0.0
  %4557 = vmatpush2.msra.mxu0 0.0
  %4558 = vmatprep.subr.mxu0 0.0
  %4559 = vmatpush2.msra.mxu0 0.0
  %4560 = vmatprep.subr.mxu0 0.0
  %4561 = vmatpush2.msra.mxu0 0.0
  %4562 = vmatprep.mubr.f32.mxu0 0.0
  %4563 = vmatmul.mubr.f32.gmra.mxu0 %v4413
  %v4564 = vpop.f32.mrf.mxu0
  %v4565 = vadd.f32 0.0, %v4564
  %v4566 = vpop.f32.mrf.mxu0
  %v4567 = vadd.f32 0.0, %v4566
  %4568 = vdwg.mxu0
  %v4569 = vadd.f32 %v4366, %v4494
  %v4570 = vadd.f32 %v4367, %v4496
  %v4571 = vadd.f32 %v4368, %v4565
  %v4572 = vadd.f32 %v4369, %v4567
  %v4573 = vadd.s32 %v105, 2
  %v4574 = vadd.s32 %v106, 2
  %v4575 = vadd.s32 %v107, 2
  %v4576 = vadd.s32 %v108, 2
  %vm4577 = vcmp.ge.s32.totalorder %v4573, 0
  %vm4578 = vcmp.ge.s32.totalorder %v4574, 0
  %vm4579 = vcmp.ge.s32.totalorder %v4575, 0
  %vm4580 = vcmp.ge.s32.totalorder %v4576, 0
  %vm4581 = vcmp.lt.s32.totalorder %v4573, 16
  %vm4582 = vcmp.lt.s32.totalorder %v4574, 16
  %vm4583 = vcmp.lt.s32.totalorder %v4575, 16
  %vm4584 = vcmp.lt.s32.totalorder %v4576, 16
  %vm4585 = vmand %vm4577, %vm4581
  %vm4586 = vmand %vm4578, %vm4582
  %vm4587 = vmand %vm4579, %vm4583
  %vm4588 = vmand %vm4580, %vm4584
  %4589 = vrot.lane.b32.xlu0 %v3599, 126
  %v4590 = vpop.permute.xlu0 %4589
  %4591 = vrot.lane.b32.xlu0 %v3600, 126
  %v4592 = vpop.permute.xlu0 %4591
  %4593 = vrot.lane.b32.xlu0 %v3601, 126
  %v4594 = vpop.permute.xlu0 %4593
  %4595 = vrot.lane.b32.xlu0 %v3602, 126
  %v4596 = vpop.permute.xlu0 %4595
  %vm4597 = vcmp.lt.s32.totalorder %v101, 126
  %v4598 = vsel %vm4597, %v4594, %v4596
  %v4599 = vsel %vm4597, %v4592, %v4594
  %v4600 = vsel %vm4597, %v4590, %v4592
  %v4601 = vsel %vm4597, %v4596, %v4590
  %v4602 = vsel %vm4585, 1, 0
  %v4603 = vsel %vm4586, 1, 0
  %v4604 = vsel %vm4587, 1, 0
  %v4605 = vsel %vm4588, 1, 0
  %vm4606 = vcmp.eq.s32.totalorder %v4602, 1
  %vm4607 = vcmp.eq.s32.totalorder %v4603, 1
  %vm4608 = vcmp.eq.s32.totalorder %v4604, 1
  %vm4609 = vcmp.eq.s32.totalorder %v4605, 1
  %v4610 = vsel %vm4606, %v4600, 0.0
  %v4611 = vsel %vm4607, %v4599, 0.0
  %v4612 = vsel %vm4608, %v4598, 0.0
  %v4613 = vsel %vm4609, %v4601, 0.0
  %s4614 = scalar_lea.vmem %s17, 40
  %v4615 = vld [vmem:[%s4614] sm:$0x7f]
  %v4617 = vsel %vm3688, %v4615, 0
  %v4620 = vsel %vm3692, %v4610, 0
  %v4623 = vsel %vm3692, %v4611, 0
  %v4626 = vsel %vm3692, %v4612, 0
  %v4629 = vsel %vm3692, %v4613, 0
  %4631 = vmatprep.subr.mxu0 0.0
  %4632 = vmatpush1.msra.mxu0 0.0
  %4633 = vmatprep.subr.mxu0 0.0
  %4634 = vmatpush1.msra.mxu0 0.0
  %4635 = vmatprep.subr.mxu0 0.0
  %4636 = vmatpush1.msra.mxu0 0.0
  %4637 = vmatprep.subr.mxu0 0.0
  %4638 = vmatpush1.msra.mxu0 0.0
  %4639 = vmatprep.subr.mxu0 0.0
  %4640 = vmatpush1.msra.mxu0 0.0
  %4641 = vmatprep.subr.mxu0 0.0
  %4642 = vmatpush1.msra.mxu0 0.0
  %4643 = vmatprep.subr.mxu0 0.0
  %4644 = vmatpush1.msra.mxu0 0.0
  %4645 = vmatprep.subr.mxu0 0.0
  %4646 = vmatpush1.msra.mxu0 0.0
  %4647 = vmatprep.subr.mxu0 0.0
  %4648 = vmatpush1.msra.mxu0 0.0
  %4649 = vmatprep.subr.mxu0 0.0
  %4650 = vmatpush1.msra.mxu0 0.0
  %4651 = vmatprep.subr.mxu0 0.0
  %4652 = vmatpush1.msra.mxu0 0.0
  %4653 = vmatprep.subr.mxu0 0.0
  %4654 = vmatpush1.msra.mxu0 0.0
  %4655 = vmatprep.subr.mxu0 0.0
  %4656 = vmatpush1.msra.mxu0 0.0
  %4657 = vmatprep.subr.mxu0 0.0
  %4658 = vmatpush1.msra.mxu0 0.0
  %4659 = vmatprep.subr.mxu0 0.0
  %4660 = vmatpush1.msra.mxu0 0.0
  %4661 = vmatprep.subr.mxu0 %v4623
  %4662 = vmatpush1.msra.mxu0 %v4620
  %4663 = vmatprep.subr.mxu0 0.0
  %4664 = vmatpush2.msra.mxu0 0.0
  %4665 = vmatprep.subr.mxu0 0.0
  %4666 = vmatpush2.msra.mxu0 0.0
  %4667 = vmatprep.subr.mxu0 0.0
  %4668 = vmatpush2.msra.mxu0 0.0
  %4669 = vmatprep.subr.mxu0 0.0
  %4670 = vmatpush2.msra.mxu0 0.0
  %4671 = vmatprep.subr.mxu0 0.0
  %4672 = vmatpush2.msra.mxu0 0.0
  %4673 = vmatprep.subr.mxu0 0.0
  %4674 = vmatpush2.msra.mxu0 0.0
  %4675 = vmatprep.subr.mxu0 0.0
  %4676 = vmatpush2.msra.mxu0 0.0
  %4677 = vmatprep.subr.mxu0 0.0
  %4678 = vmatpush2.msra.mxu0 0.0
  %4679 = vmatprep.subr.mxu0 0.0
  %4680 = vmatpush2.msra.mxu0 0.0
  %4681 = vmatprep.subr.mxu0 0.0
  %4682 = vmatpush2.msra.mxu0 0.0
  %4683 = vmatprep.subr.mxu0 0.0
  %4684 = vmatpush2.msra.mxu0 0.0
  %4685 = vmatprep.subr.mxu0 0.0
  %4686 = vmatpush2.msra.mxu0 0.0
  %4687 = vmatprep.subr.mxu0 0.0
  %4688 = vmatpush2.msra.mxu0 0.0
  %4689 = vmatprep.subr.mxu0 0.0
  %4690 = vmatpush2.msra.mxu0 0.0
  %4691 = vmatprep.subr.mxu0 0.0
  %4692 = vmatpush2.msra.mxu0 0.0
  %4693 = vmatprep.subr.mxu0 0.0
  %4694 = vmatpush2.msra.mxu0 0.0
  %4695 = vmatprep.mubr.f32.mxu0 0.0
  %4696 = vmatmul.mubr.f32.gmra.mxu0 %v4617
  %v4697 = vpop.f32.mrf.mxu0
  %v4698 = vadd.f32 0.0, %v4697
  %v4699 = vpop.f32.mrf.mxu0
  %v4700 = vadd.f32 0.0, %v4699
  %4701 = vdwg.mxu0
  %4702 = vmatprep.subr.mxu0 0.0
  %4703 = vmatpush1.msra.mxu0 0.0
  %4704 = vmatprep.subr.mxu0 0.0
  %4705 = vmatpush1.msra.mxu0 0.0
  %4706 = vmatprep.subr.mxu0 0.0
  %4707 = vmatpush1.msra.mxu0 0.0
  %4708 = vmatprep.subr.mxu0 0.0
  %4709 = vmatpush1.msra.mxu0 0.0
  %4710 = vmatprep.subr.mxu0 0.0
  %4711 = vmatpush1.msra.mxu0 0.0
  %4712 = vmatprep.subr.mxu0 0.0
  %4713 = vmatpush1.msra.mxu0 0.0
  %4714 = vmatprep.subr.mxu0 0.0
  %4715 = vmatpush1.msra.mxu0 0.0
  %4716 = vmatprep.subr.mxu0 0.0
  %4717 = vmatpush1.msra.mxu0 0.0
  %4718 = vmatprep.subr.mxu0 0.0
  %4719 = vmatpush1.msra.mxu0 0.0
  %4720 = vmatprep.subr.mxu0 0.0
  %4721 = vmatpush1.msra.mxu0 0.0
  %4722 = vmatprep.subr.mxu0 0.0
  %4723 = vmatpush1.msra.mxu0 0.0
  %4724 = vmatprep.subr.mxu0 0.0
  %4725 = vmatpush1.msra.mxu0 0.0
  %4726 = vmatprep.subr.mxu0 0.0
  %4727 = vmatpush1.msra.mxu0 0.0
  %4728 = vmatprep.subr.mxu0 0.0
  %4729 = vmatpush1.msra.mxu0 0.0
  %4730 = vmatprep.subr.mxu0 0.0
  %4731 = vmatpush1.msra.mxu0 0.0
  %4732 = vmatprep.subr.mxu0 %v4629
  %4733 = vmatpush1.msra.mxu0 %v4626
  %4734 = vmatprep.subr.mxu0 0.0
  %4735 = vmatpush2.msra.mxu0 0.0
  %4736 = vmatprep.subr.mxu0 0.0
  %4737 = vmatpush2.msra.mxu0 0.0
  %4738 = vmatprep.subr.mxu0 0.0
  %4739 = vmatpush2.msra.mxu0 0.0
  %4740 = vmatprep.subr.mxu0 0.0
  %4741 = vmatpush2.msra.mxu0 0.0
  %4742 = vmatprep.subr.mxu0 0.0
  %4743 = vmatpush2.msra.mxu0 0.0
  %4744 = vmatprep.subr.mxu0 0.0
  %4745 = vmatpush2.msra.mxu0 0.0
  %4746 = vmatprep.subr.mxu0 0.0
  %4747 = vmatpush2.msra.mxu0 0.0
  %4748 = vmatprep.subr.mxu0 0.0
  %4749 = vmatpush2.msra.mxu0 0.0
  %4750 = vmatprep.subr.mxu0 0.0
  %4751 = vmatpush2.msra.mxu0 0.0
  %4752 = vmatprep.subr.mxu0 0.0
  %4753 = vmatpush2.msra.mxu0 0.0
  %4754 = vmatprep.subr.mxu0 0.0
  %4755 = vmatpush2.msra.mxu0 0.0
  %4756 = vmatprep.subr.mxu0 0.0
  %4757 = vmatpush2.msra.mxu0 0.0
  %4758 = vmatprep.subr.mxu0 0.0
  %4759 = vmatpush2.msra.mxu0 0.0
  %4760 = vmatprep.subr.mxu0 0.0
  %4761 = vmatpush2.msra.mxu0 0.0
  %4762 = vmatprep.subr.mxu0 0.0
  %4763 = vmatpush2.msra.mxu0 0.0
  %4764 = vmatprep.subr.mxu0 0.0
  %4765 = vmatpush2.msra.mxu0 0.0
  %4766 = vmatprep.mubr.f32.mxu0 0.0
  %4767 = vmatmul.mubr.f32.gmra.mxu0 %v4617
  %v4768 = vpop.f32.mrf.mxu0
  %v4769 = vadd.f32 0.0, %v4768
  %v4770 = vpop.f32.mrf.mxu0
  %v4771 = vadd.f32 0.0, %v4770
  %4772 = vdwg.mxu0
  %v4773 = vadd.f32 %v4569, %v4698
  %v4774 = vadd.f32 %v4570, %v4700
  %v4775 = vadd.f32 %v4571, %v4769
  %v4776 = vadd.f32 %v4572, %v4771
  %v4777 = vadd.s32 %v105, 3
  %v4778 = vadd.s32 %v106, 3
  %v4779 = vadd.s32 %v107, 3
  %v4780 = vadd.s32 %v108, 3
  %vm4781 = vcmp.ge.s32.totalorder %v4777, 0
  %vm4782 = vcmp.ge.s32.totalorder %v4778, 0
  %vm4783 = vcmp.ge.s32.totalorder %v4779, 0
  %vm4784 = vcmp.ge.s32.totalorder %v4780, 0
  %vm4785 = vcmp.lt.s32.totalorder %v4777, 16
  %vm4786 = vcmp.lt.s32.totalorder %v4778, 16
  %vm4787 = vcmp.lt.s32.totalorder %v4779, 16
  %vm4788 = vcmp.lt.s32.totalorder %v4780, 16
  %vm4789 = vmand %vm4781, %vm4785
  %vm4790 = vmand %vm4782, %vm4786
  %vm4791 = vmand %vm4783, %vm4787
  %vm4792 = vmand %vm4784, %vm4788
  %4793 = vrot.lane.b32.xlu0 %v3599, 125
  %v4794 = vpop.permute.xlu0 %4793
  %4795 = vrot.lane.b32.xlu0 %v3600, 125
  %v4796 = vpop.permute.xlu0 %4795
  %4797 = vrot.lane.b32.xlu0 %v3601, 125
  %v4798 = vpop.permute.xlu0 %4797
  %4799 = vrot.lane.b32.xlu0 %v3602, 125
  %v4800 = vpop.permute.xlu0 %4799
  %vm4801 = vcmp.lt.s32.totalorder %v101, 125
  %v4802 = vsel %vm4801, %v4798, %v4800
  %v4803 = vsel %vm4801, %v4796, %v4798
  %v4804 = vsel %vm4801, %v4794, %v4796
  %v4805 = vsel %vm4801, %v4800, %v4794
  %v4806 = vsel %vm4789, 1, 0
  %v4807 = vsel %vm4790, 1, 0
  %v4808 = vsel %vm4791, 1, 0
  %v4809 = vsel %vm4792, 1, 0
  %vm4810 = vcmp.eq.s32.totalorder %v4806, 1
  %vm4811 = vcmp.eq.s32.totalorder %v4807, 1
  %vm4812 = vcmp.eq.s32.totalorder %v4808, 1
  %vm4813 = vcmp.eq.s32.totalorder %v4809, 1
  %v4814 = vsel %vm4810, %v4804, 0.0
  %v4815 = vsel %vm4811, %v4803, 0.0
  %v4816 = vsel %vm4812, %v4802, 0.0
  %v4817 = vsel %vm4813, %v4805, 0.0
  %s4818 = scalar_lea.vmem %s17, 48
  %v4819 = vld [vmem:[%s4818] sm:$0x7f]
  %v4821 = vsel %vm3688, %v4819, 0
  %v4824 = vsel %vm3692, %v4814, 0
  %v4827 = vsel %vm3692, %v4815, 0
  %v4830 = vsel %vm3692, %v4816, 0
  %v4833 = vsel %vm3692, %v4817, 0
  %4835 = vmatprep.subr.mxu0 0.0
  %4836 = vmatpush1.msra.mxu0 0.0
  %4837 = vmatprep.subr.mxu0 0.0
  %4838 = vmatpush1.msra.mxu0 0.0
  %4839 = vmatprep.subr.mxu0 0.0
  %4840 = vmatpush1.msra.mxu0 0.0
  %4841 = vmatprep.subr.mxu0 0.0
  %4842 = vmatpush1.msra.mxu0 0.0
  %4843 = vmatprep.subr.mxu0 0.0
  %4844 = vmatpush1.msra.mxu0 0.0
  %4845 = vmatprep.subr.mxu0 0.0
  %4846 = vmatpush1.msra.mxu0 0.0
  %4847 = vmatprep.subr.mxu0 0.0
  %4848 = vmatpush1.msra.mxu0 0.0
  %4849 = vmatprep.subr.mxu0 0.0
  %4850 = vmatpush1.msra.mxu0 0.0
  %4851 = vmatprep.subr.mxu0 0.0
  %4852 = vmatpush1.msra.mxu0 0.0
  %4853 = vmatprep.subr.mxu0 0.0
  %4854 = vmatpush1.msra.mxu0 0.0
  %4855 = vmatprep.subr.mxu0 0.0
  %4856 = vmatpush1.msra.mxu0 0.0
  %4857 = vmatprep.subr.mxu0 0.0
  %4858 = vmatpush1.msra.mxu0 0.0
  %4859 = vmatprep.subr.mxu0 0.0
  %4860 = vmatpush1.msra.mxu0 0.0
  %4861 = vmatprep.subr.mxu0 0.0
  %4862 = vmatpush1.msra.mxu0 0.0
  %4863 = vmatprep.subr.mxu0 0.0
  %4864 = vmatpush1.msra.mxu0 0.0
  %4865 = vmatprep.subr.mxu0 %v4827
  %4866 = vmatpush1.msra.mxu0 %v4824
  %4867 = vmatprep.subr.mxu0 0.0
  %4868 = vmatpush2.msra.mxu0 0.0
  %4869 = vmatprep.subr.mxu0 0.0
  %4870 = vmatpush2.msra.mxu0 0.0
  %4871 = vmatprep.subr.mxu0 0.0
  %4872 = vmatpush2.msra.mxu0 0.0
  %4873 = vmatprep.subr.mxu0 0.0
  %4874 = vmatpush2.msra.mxu0 0.0
  %4875 = vmatprep.subr.mxu0 0.0
  %4876 = vmatpush2.msra.mxu0 0.0
  %4877 = vmatprep.subr.mxu0 0.0
  %4878 = vmatpush2.msra.mxu0 0.0
  %4879 = vmatprep.subr.mxu0 0.0
  %4880 = vmatpush2.msra.mxu0 0.0
  %4881 = vmatprep.subr.mxu0 0.0
  %4882 = vmatpush2.msra.mxu0 0.0
  %4883 = vmatprep.subr.mxu0 0.0
  %4884 = vmatpush2.msra.mxu0 0.0
  %4885 = vmatprep.subr.mxu0 0.0
  %4886 = vmatpush2.msra.mxu0 0.0
  %4887 = vmatprep.subr.mxu0 0.0
  %4888 = vmatpush2.msra.mxu0 0.0
  %4889 = vmatprep.subr.mxu0 0.0
  %4890 = vmatpush2.msra.mxu0 0.0
  %4891 = vmatprep.subr.mxu0 0.0
  %4892 = vmatpush2.msra.mxu0 0.0
  %4893 = vmatprep.subr.mxu0 0.0
  %4894 = vmatpush2.msra.mxu0 0.0
  %4895 = vmatprep.subr.mxu0 0.0
  %4896 = vmatpush2.msra.mxu0 0.0
  %4897 = vmatprep.subr.mxu0 0.0
  %4898 = vmatpush2.msra.mxu0 0.0
  %4899 = vmatprep.mubr.f32.mxu0 0.0
  %4900 = vmatmul.mubr.f32.gmra.mxu0 %v4821
  %v4901 = vpop.f32.mrf.mxu0
  %v4902 = vadd.f32 0.0, %v4901
  %v4903 = vpop.f32.mrf.mxu0
  %v4904 = vadd.f32 0.0, %v4903
  %4905 = vdwg.mxu0
  %4906 = vmatprep.subr.mxu0 0.0
  %4907 = vmatpush1.msra.mxu0 0.0
  %4908 = vmatprep.subr.mxu0 0.0
  %4909 = vmatpush1.msra.mxu0 0.0
  %4910 = vmatprep.subr.mxu0 0.0
  %4911 = vmatpush1.msra.mxu0 0.0
  %4912 = vmatprep.subr.mxu0 0.0
  %4913 = vmatpush1.msra.mxu0 0.0
  %4914 = vmatprep.subr.mxu0 0.0
  %4915 = vmatpush1.msra.mxu0 0.0
  %4916 = vmatprep.subr.mxu0 0.0
  %4917 = vmatpush1.msra.mxu0 0.0
  %4918 = vmatprep.subr.mxu0 0.0
  %4919 = vmatpush1.msra.mxu0 0.0
  %4920 = vmatprep.subr.mxu0 0.0
  %4921 = vmatpush1.msra.mxu0 0.0
  %4922 = vmatprep.subr.mxu0 0.0
  %4923 = vmatpush1.msra.mxu0 0.0
  %4924 = vmatprep.subr.mxu0 0.0
  %4925 = vmatpush1.msra.mxu0 0.0
  %4926 = vmatprep.subr.mxu0 0.0
  %4927 = vmatpush1.msra.mxu0 0.0
  %4928 = vmatprep.subr.mxu0 0.0
  %4929 = vmatpush1.msra.mxu0 0.0
  %4930 = vmatprep.subr.mxu0 0.0
  %4931 = vmatpush1.msra.mxu0 0.0
  %4932 = vmatprep.subr.mxu0 0.0
  %4933 = vmatpush1.msra.mxu0 0.0
  %4934 = vmatprep.subr.mxu0 0.0
  %4935 = vmatpush1.msra.mxu0 0.0
  %4936 = vmatprep.subr.mxu0 %v4833
  %4937 = vmatpush1.msra.mxu0 %v4830
  %4938 = vmatprep.subr.mxu0 0.0
  %4939 = vmatpush2.msra.mxu0 0.0
  %4940 = vmatprep.subr.mxu0 0.0
  %4941 = vmatpush2.msra.mxu0 0.0
  %4942 = vmatprep.subr.mxu0 0.0
  %4943 = vmatpush2.msra.mxu0 0.0
  %4944 = vmatprep.subr.mxu0 0.0
  %4945 = vmatpush2.msra.mxu0 0.0
  %4946 = vmatprep.subr.mxu0 0.0
  %4947 = vmatpush2.msra.mxu0 0.0
  %4948 = vmatprep.subr.mxu0 0.0
  %4949 = vmatpush2.msra.mxu0 0.0
  %4950 = vmatprep.subr.mxu0 0.0
  %4951 = vmatpush2.msra.mxu0 0.0
  %4952 = vmatprep.subr.mxu0 0.0
  %4953 = vmatpush2.msra.mxu0 0.0
  %4954 = vmatprep.subr.mxu0 0.0
  %4955 = vmatpush2.msra.mxu0 0.0
  %4956 = vmatprep.subr.mxu0 0.0
  %4957 = vmatpush2.msra.mxu0 0.0
  %4958 = vmatprep.subr.mxu0 0.0
  %4959 = vmatpush2.msra.mxu0 0.0
  %4960 = vmatprep.subr.mxu0 0.0
  %4961 = vmatpush2.msra.mxu0 0.0
  %4962 = vmatprep.subr.mxu0 0.0
  %4963 = vmatpush2.msra.mxu0 0.0
  %4964 = vmatprep.subr.mxu0 0.0
  %4965 = vmatpush2.msra.mxu0 0.0
  %4966 = vmatprep.subr.mxu0 0.0
  %4967 = vmatpush2.msra.mxu0 0.0
  %4968 = vmatprep.subr.mxu0 0.0
  %4969 = vmatpush2.msra.mxu0 0.0
  %4970 = vmatprep.mubr.f32.mxu0 0.0
  %4971 = vmatmul.mubr.f32.gmra.mxu0 %v4821
  %v4972 = vpop.f32.mrf.mxu0
  %v4973 = vadd.f32 0.0, %v4972
  %v4974 = vpop.f32.mrf.mxu0
  %v4975 = vadd.f32 0.0, %v4974
  %4976 = vdwg.mxu0
  %v4977 = vadd.f32 %v4773, %v4902
  %v4978 = vadd.f32 %v4774, %v4904
  %v4979 = vadd.f32 %v4775, %v4973
  %v4980 = vadd.f32 %v4776, %v4975
  %v4981 = vadd.s32 %v113, 4294967293
  %v4982 = vadd.s32 %v114, 4294967293
  %v4983 = vadd.s32 %v115, 4294967293
  %v4984 = vadd.s32 %v116, 4294967293
  %vm4985 = vcmp.ge.s32.totalorder %v4981, 0
  %vm4986 = vcmp.ge.s32.totalorder %v4982, 0
  %vm4987 = vcmp.ge.s32.totalorder %v4983, 0
  %vm4988 = vcmp.ge.s32.totalorder %v4984, 0
  %vm4989 = vcmp.lt.s32.totalorder %v4981, 16
  %vm4990 = vcmp.lt.s32.totalorder %v4982, 16
  %vm4991 = vcmp.lt.s32.totalorder %v4983, 16
  %vm4992 = vcmp.lt.s32.totalorder %v4984, 16
  %vm4993 = vmand %vm4985, %vm4989
  %vm4994 = vmand %vm4986, %vm4990
  %vm4995 = vmand %vm4987, %vm4991
  %vm4996 = vmand %vm4988, %vm4992
  %4997 = vrot.lane.b32.xlu0 %v4977, 48
  %v4998 = vpop.permute.xlu0 %4997
  %4999 = vrot.lane.b32.xlu0 %v4978, 48
  %v5000 = vpop.permute.xlu0 %4999
  %5001 = vrot.lane.b32.xlu0 %v4979, 48
  %v5002 = vpop.permute.xlu0 %5001
  %5003 = vrot.lane.b32.xlu0 %v4980, 48
  %v5004 = vpop.permute.xlu0 %5003
  %vm5005 = vcmp.lt.s32.totalorder %v101, 48
  %v5006 = vsel %vm5005, %v5002, %v5004
  %v5007 = vsel %vm5005, %v5000, %v5002
  %v5008 = vsel %vm5005, %v4998, %v5000
  %v5009 = vsel %vm5005, %v5004, %v4998
  %v5010 = vsel %vm4993, %v5009, 0.0
  %v5011 = vsel %vm4994, %v5008, 0.0
  %v5012 = vsel %vm4995, %v5007, 0.0
  %v5013 = vsel %vm4996, %v5006, 0.0
  %v5014 = vadd.s32 %v113, 4294967294
  %v5015 = vadd.s32 %v114, 4294967294
  %v5016 = vadd.s32 %v115, 4294967294
  %v5017 = vadd.s32 %v116, 4294967294
  %vm5018 = vcmp.ge.s32.totalorder %v5014, 0
  %vm5019 = vcmp.ge.s32.totalorder %v5015, 0
  %vm5020 = vcmp.ge.s32.totalorder %v5016, 0
  %vm5021 = vcmp.ge.s32.totalorder %v5017, 0
  %vm5022 = vcmp.lt.s32.totalorder %v5014, 16
  %vm5023 = vcmp.lt.s32.totalorder %v5015, 16
  %vm5024 = vcmp.lt.s32.totalorder %v5016, 16
  %vm5025 = vcmp.lt.s32.totalorder %v5017, 16
  %vm5026 = vmand %vm5018, %vm5022
  %vm5027 = vmand %vm5019, %vm5023
  %vm5028 = vmand %vm5020, %vm5024
  %vm5029 = vmand %vm5021, %vm5025
  %v5034 = vrot.slane %v4977, 1
  %v5035 = vrot.slane %v4978, 1
  %v5036 = vrot.slane %v4979, 1
  %v5037 = vrot.slane %v4980, 1
  %5042 = vrot.lane.b32.xlu0 %v5034, 32
  %v5043 = vpop.permute.xlu0 %5042
  %5044 = vrot.lane.b32.xlu0 %v5035, 32
  %v5045 = vpop.permute.xlu0 %5044
  %5046 = vrot.lane.b32.xlu0 %v5036, 32
  %v5047 = vpop.permute.xlu0 %5046
  %5048 = vrot.lane.b32.xlu0 %v5037, 32
  %v5049 = vpop.permute.xlu0 %5048
  %vm5050 = vcmp.lt.s32.totalorder %v101, 32
  %v5051 = vsel %vm5050, %v5047, %v5049
  %v5052 = vsel %vm5050, %v5045, %v5047
  %v5053 = vsel %vm5050, %v5043, %v5045
  %v5054 = vsel %vm5050, %v5049, %v5043
  %v5055 = vsel %vm5026, %v5054, 0.0
  %v5056 = vsel %vm5027, %v5053, 0.0
  %v5057 = vsel %vm5028, %v5052, 0.0
  %v5058 = vsel %vm5029, %v5051, 0.0
  %v5059 = vadd.f32 %v5010, %v5055
  %v5060 = vadd.f32 %v5011, %v5056
  %v5061 = vadd.f32 %v5012, %v5057
  %v5062 = vadd.f32 %v5013, %v5058
  %v5063 = vadd.s32 %v113, 4294967295
  %v5064 = vadd.s32 %v114, 4294967295
  %v5065 = vadd.s32 %v115, 4294967295
  %v5066 = vadd.s32 %v116, 4294967295
  %vm5067 = vcmp.ge.s32.totalorder %v5063, 0
  %vm5068 = vcmp.ge.s32.totalorder %v5064, 0
  %vm5069 = vcmp.ge.s32.totalorder %v5065, 0
  %vm5070 = vcmp.ge.s32.totalorder %v5066, 0
  %vm5071 = vcmp.lt.s32.totalorder %v5063, 16
  %vm5072 = vcmp.lt.s32.totalorder %v5064, 16
  %vm5073 = vcmp.lt.s32.totalorder %v5065, 16
  %vm5074 = vcmp.lt.s32.totalorder %v5066, 16
  %vm5075 = vmand %vm5067, %vm5071
  %vm5076 = vmand %vm5068, %vm5072
  %vm5077 = vmand %vm5069, %vm5073
  %vm5078 = vmand %vm5070, %vm5074
  %v5079 = vrot.slane %v4977, 2
  %v5080 = vrot.slane %v4978, 2
  %v5081 = vrot.slane %v4979, 2
  %v5082 = vrot.slane %v4980, 2
  %5087 = vrot.lane.b32.xlu0 %v5079, 16
  %v5088 = vpop.permute.xlu0 %5087
  %5089 = vrot.lane.b32.xlu0 %v5080, 16
  %v5090 = vpop.permute.xlu0 %5089
  %5091 = vrot.lane.b32.xlu0 %v5081, 16
  %v5092 = vpop.permute.xlu0 %5091
  %5093 = vrot.lane.b32.xlu0 %v5082, 16
  %v5094 = vpop.permute.xlu0 %5093
  %v5095 = vsel %vm1825, %v5092, %v5094
  %v5096 = vsel %vm1825, %v5090, %v5092
  %v5097 = vsel %vm1825, %v5088, %v5090
  %v5098 = vsel %vm1825, %v5094, %v5088
  %v5099 = vsel %vm5075, %v5098, 0.0
  %v5100 = vsel %vm5076, %v5097, 0.0
  %v5101 = vsel %vm5077, %v5096, 0.0
  %v5102 = vsel %vm5078, %v5095, 0.0
  %v5103 = vadd.f32 %v5059, %v5099
  %v5104 = vadd.f32 %v5060, %v5100
  %v5105 = vadd.f32 %v5061, %v5101
  %v5106 = vadd.f32 %v5062, %v5102
  %v5107 = vrot.slane %v4977, 3
  %v5108 = vrot.slane %v4978, 3
  %v5109 = vrot.slane %v4979, 3
  %v5110 = vrot.slane %v4980, 3
  %v5115 = vadd.f32 %v5103, %v5107
  %v5116 = vadd.f32 %v5104, %v5108
  %v5117 = vadd.f32 %v5105, %v5109
  %v5118 = vadd.f32 %v5106, %v5110
  %v5119 = vadd.s32 %v113, 1
  %v5120 = vadd.s32 %v114, 1
  %v5121 = vadd.s32 %v115, 1
  %v5122 = vadd.s32 %v116, 1
  %vm5123 = vcmp.ge.s32.totalorder %v5119, 0
  %vm5124 = vcmp.ge.s32.totalorder %v5120, 0
  %vm5125 = vcmp.ge.s32.totalorder %v5121, 0
  %vm5126 = vcmp.ge.s32.totalorder %v5122, 0
  %vm5127 = vcmp.lt.s32.totalorder %v5119, 16
  %vm5128 = vcmp.lt.s32.totalorder %v5120, 16
  %vm5129 = vcmp.lt.s32.totalorder %v5121, 16
  %vm5130 = vcmp.lt.s32.totalorder %v5122, 16
  %vm5131 = vmand %vm5123, %vm5127
  %vm5132 = vmand %vm5124, %vm5128
  %vm5133 = vmand %vm5125, %vm5129
  %vm5134 = vmand %vm5126, %vm5130
  %v5135 = vrot.slane %v4977, 4
  %v5136 = vrot.slane %v4978, 4
  %v5137 = vrot.slane %v4979, 4
  %v5138 = vrot.slane %v4980, 4
  %5143 = vrot.lane.b32.xlu0 %v5135, 112
  %v5144 = vpop.permute.xlu0 %5143
  %5145 = vrot.lane.b32.xlu0 %v5136, 112
  %v5146 = vpop.permute.xlu0 %5145
  %5147 = vrot.lane.b32.xlu0 %v5137, 112
  %v5148 = vpop.permute.xlu0 %5147
  %5149 = vrot.lane.b32.xlu0 %v5138, 112
  %v5150 = vpop.permute.xlu0 %5149
  %v5151 = vsel %vm1918, %v5148, %v5150
  %v5152 = vsel %vm1918, %v5146, %v5148
  %v5153 = vsel %vm1918, %v5144, %v5146
  %v5154 = vsel %vm1918, %v5150, %v5144
  %v5155 = vsel %vm5131, %v5153, 0.0
  %v5156 = vsel %vm5132, %v5152, 0.0
  %v5157 = vsel %vm5133, %v5151, 0.0
  %v5158 = vsel %vm5134, %v5154, 0.0
  %v5159 = vadd.f32 %v5115, %v5155
  %v5160 = vadd.f32 %v5116, %v5156
  %v5161 = vadd.f32 %v5117, %v5157
  %v5162 = vadd.f32 %v5118, %v5158
  %v5163 = vadd.s32 %v113, 2
  %v5164 = vadd.s32 %v114, 2
  %v5165 = vadd.s32 %v115, 2
  %v5166 = vadd.s32 %v116, 2
  %vm5167 = vcmp.ge.s32.totalorder %v5163, 0
  %vm5168 = vcmp.ge.s32.totalorder %v5164, 0
  %vm5169 = vcmp.ge.s32.totalorder %v5165, 0
  %vm5170 = vcmp.ge.s32.totalorder %v5166, 0
  %vm5171 = vcmp.lt.s32.totalorder %v5163, 16
  %vm5172 = vcmp.lt.s32.totalorder %v5164, 16
  %vm5173 = vcmp.lt.s32.totalorder %v5165, 16
  %vm5174 = vcmp.lt.s32.totalorder %v5166, 16
  %vm5175 = vmand %vm5167, %vm5171
  %vm5176 = vmand %vm5168, %vm5172
  %vm5177 = vmand %vm5169, %vm5173
  %vm5178 = vmand %vm5170, %vm5174
  %v5179 = vrot.slane %v4977, 5
  %v5180 = vrot.slane %v4978, 5
  %v5181 = vrot.slane %v4979, 5
  %v5182 = vrot.slane %v4980, 5
  %5187 = vrot.lane.b32.xlu0 %v5179, 96
  %v5188 = vpop.permute.xlu0 %5187
  %5189 = vrot.lane.b32.xlu0 %v5180, 96
  %v5190 = vpop.permute.xlu0 %5189
  %5191 = vrot.lane.b32.xlu0 %v5181, 96
  %v5192 = vpop.permute.xlu0 %5191
  %5193 = vrot.lane.b32.xlu0 %v5182, 96
  %v5194 = vpop.permute.xlu0 %5193
  %vm5195 = vcmp.lt.s32.totalorder %v101, 96
  %v5196 = vsel %vm5195, %v5192, %v5194
  %v5197 = vsel %vm5195, %v5190, %v5192
  %v5198 = vsel %vm5195, %v5188, %v5190
  %v5199 = vsel %vm5195, %v5194, %v5188
  %v5200 = vsel %vm5175, %v5198, 0.0
  %v5201 = vsel %vm5176, %v5197, 0.0
  %v5202 = vsel %vm5177, %v5196, 0.0
  %v5203 = vsel %vm5178, %v5199, 0.0
  %v5204 = vadd.f32 %v5159, %v5200
  %v5205 = vadd.f32 %v5160, %v5201
  %v5206 = vadd.f32 %v5161, %v5202
  %v5207 = vadd.f32 %v5162, %v5203
  %v5208 = vadd.s32 %v113, 3
  %v5209 = vadd.s32 %v114, 3
  %v5210 = vadd.s32 %v115, 3
  %v5211 = vadd.s32 %v116, 3
  %vm5212 = vcmp.ge.s32.totalorder %v5208, 0
  %vm5213 = vcmp.ge.s32.totalorder %v5209, 0
  %vm5214 = vcmp.ge.s32.totalorder %v5210, 0
  %vm5215 = vcmp.ge.s32.totalorder %v5211, 0
  %vm5216 = vcmp.lt.s32.totalorder %v5208, 16
  %vm5217 = vcmp.lt.s32.totalorder %v5209, 16
  %vm5218 = vcmp.lt.s32.totalorder %v5210, 16
  %vm5219 = vcmp.lt.s32.totalorder %v5211, 16
  %vm5220 = vmand %vm5212, %vm5216
  %vm5221 = vmand %vm5213, %vm5217
  %vm5222 = vmand %vm5214, %vm5218
  %vm5223 = vmand %vm5215, %vm5219
  %v5224 = vrot.slane %v4977, 6
  %v5225 = vrot.slane %v4978, 6
  %v5226 = vrot.slane %v4979, 6
  %v5227 = vrot.slane %v4980, 6
  %5232 = vrot.lane.b32.xlu0 %v5224, 80
  %v5233 = vpop.permute.xlu0 %5232
  %5234 = vrot.lane.b32.xlu0 %v5225, 80
  %v5235 = vpop.permute.xlu0 %5234
  %5236 = vrot.lane.b32.xlu0 %v5226, 80
  %v5237 = vpop.permute.xlu0 %5236
  %5238 = vrot.lane.b32.xlu0 %v5227, 80
  %v5239 = vpop.permute.xlu0 %5238
  %vm5240 = vcmp.lt.s32.totalorder %v101, 80
  %v5241 = vsel %vm5240, %v5237, %v5239
  %v5242 = vsel %vm5240, %v5235, %v5237
  %v5243 = vsel %vm5240, %v5233, %v5235
  %v5244 = vsel %vm5240, %v5239, %v5233
  %v5245 = vsel %vm5220, %v5243, 0.0
  %v5246 = vsel %vm5221, %v5242, 0.0
  %v5247 = vsel %vm5222, %v5241, 0.0
  %v5248 = vsel %vm5223, %v5244, 0.0
  %v5249 = vadd.f32 %v5204, %v5245
  %v5250 = vadd.f32 %v5205, %v5246
  %v5251 = vadd.f32 %v5206, %v5247
  %v5252 = vadd.f32 %v5207, %v5248
  %v5253 = vld [vmem:[#allocation2] sm:$0x1]
  %5255 = vset.pattern.permute.xlu0 0
  %5256 = vperm.xlu0 %5255, %v5253
  %v5257 = vpop.permute.xlu0 %5256
  %v5259 = vlaneseq
  %v5260 = vshrl.u32 %v5259, 7
  %v5261 = vsub.s32 0, %v5260
  %v5262 = vrot.slane %v5257, %v5261
  %v5263 = vadd.f32 %v5249, %v5262
  %v5264 = vadd.f32 %v5250, %v5262
  %v5265 = vadd.f32 %v5251, %v5262
  %v5266 = vadd.f32 %v5252, %v5262
  %v5267 = vxor.u32 %v5263, 2147483648
  %v5268 = vxor.u32 %v5264, 2147483648
  %v5269 = vxor.u32 %v5265, 2147483648
  %v5270 = vxor.u32 %v5266, 2147483648
  %v5271 = vmul.f32 %v5267, 1.442695
  %v5272 = vpow.pop %v5271
  %v5273 = vmul.f32 %v5268, 1.442695
  %v5274 = vpow.pop %v5273
  %v5275 = vmul.f32 %v5269, 1.442695
  %v5276 = vpow.pop %v5275
  %v5277 = vmul.f32 %v5270, 1.442695
  %v5278 = vpow.pop %v5277
  %v5279 = vadd.f32 %v5272, 1.0
  %v5280 = vadd.f32 %v5274, 1.0
  %v5281 = vadd.f32 %v5276, 1.0
  %v5282 = vadd.f32 %v5278, 1.0
  %v5283 = vrcp.pop %v5279
  %v5284 = vmul.f32 1.0, %v5283
  %v5285 = vrcp.pop %v5280
  %v5286 = vmul.f32 1.0, %v5285
  %v5287 = vrcp.pop %v5281
  %v5288 = vmul.f32 1.0, %v5287
  %v5289 = vrcp.pop %v5282
  %v5290 = vmul.f32 1.0, %v5289
  %v5291 = vlaneseq
  %v5292 = vshrl.u32 %v5291, 7
  %v5293 = vsub.s32 0, %v5292
  %v5294 = vrot.slane %v5284, %v5293
  %v5295 = vlaneseq
  %v5296 = vshrl.u32 %v5295, 7
  %v5297 = vsub.s32 0, %v5296
  %v5298 = vrot.slane %v5286, %v5297
  %v5299 = vlaneseq
  %v5300 = vshrl.u32 %v5299, 7
  %v5301 = vsub.s32 0, %v5300
  %v5302 = vrot.slane %v5288, %v5301
  %v5303 = vlaneseq
  %v5304 = vshrl.u32 %v5303, 7
  %v5305 = vsub.s32 0, %v5304
  %v5306 = vrot.slane %v5290, %v5305
  %v5307 = vmul.f32 %v3109, %v5294
  %v5308 = vmul.f32 %v3110, %v5298
  %v5309 = vmul.f32 %v3511, %v5302
  %v5310 = vmul.f32 %v3512, %v5306
  %v5311 = vmul.f32 %v3111, %v5294
  %v5312 = vmul.f32 %v3112, %v5298
  %v5313 = vmul.f32 %v3513, %v5302
  %v5314 = vmul.f32 %v3514, %v5306
  %v5315 = vmul.f32 %v3113, %v5294
  %v5316 = vmul.f32 %v3114, %v5298
  %v5317 = vmul.f32 %v3515, %v5302
  %v5318 = vmul.f32 %v3516, %v5306
  %v5319 = vmul.f32 %v3115, %v5294
  %v5320 = vmul.f32 %v3116, %v5298
  %v5321 = vmul.f32 %v3517, %v5302
  %v5322 = vmul.f32 %v3518, %v5306
  %v5323 = vld [vmem:[%s19] sm:$0x3]
  %v5324 = vld [vmem:[%s20] sm:$0x3]
  %v5325 = vld [vmem:[%s21] sm:$0xff]
  %v5326 = vld [vmem:[%s21 + $0x8] sm:$0xff]
  %v5327 = vld [vmem:[%s21 + $0x10] sm:$0xff]
  %v5328 = vld [vmem:[%s21 + $0x18] sm:$0xff]
  %v5329 = vld [vmem:[%s22] sm:$0xff]
  %v5330 = vld [vmem:[%s22 + $0x8] sm:$0xff]
  %v5331 = vld [vmem:[%s22 + $0x10] sm:$0xff]
  %v5332 = vld [vmem:[%s22 + $0x18] sm:$0xff]
  %v5333 = vadd.f32 %v5307, %v5308
  %5334 = vadd.xlane.f32.xlu0 %v5333
  %v5335 = vpop.xlane.xlu0 %5334
  %v5336 = vadd.f32 %v5311, %v5312
  %5337 = vadd.xlane.f32.xlu0 %v5336
  %v5338 = vpop.xlane.xlu0 %5337
  %v5339 = vadd.f32 %v5315, %v5316
  %5340 = vadd.xlane.f32.xlu0 %v5339
  %v5341 = vpop.xlane.xlu0 %5340
  %v5342 = vadd.f32 %v5319, %v5320
  %5343 = vadd.xlane.f32.xlu0 %v5342
  %v5344 = vpop.xlane.xlu0 %5343
  %v5345 = vmul.f32 %v5335, %v2709
  %v5346 = vmul.f32 %v5338, %v2709
  %v5347 = vmul.f32 %v5341, %v2709
  %v5348 = vmul.f32 %v5344, %v2709
  %v5350 = vsel %vm663, %v5323, 0
  %5352 = vmatprep.subr.mxu0 0.0
  %5353 = vmatpush1.msra.mxu0 0.0
  %5354 = vmatprep.subr.mxu0 0.0
  %5355 = vmatpush1.msra.mxu0 0.0
  %5356 = vmatprep.subr.mxu0 0.0
  %5357 = vmatpush1.msra.mxu0 0.0
  %5358 = vmatprep.subr.mxu0 0.0
  %5359 = vmatpush1.msra.mxu0 0.0
  %5360 = vmatprep.subr.mxu0 0.0
  %5361 = vmatpush1.msra.mxu0 0.0
  %5362 = vmatprep.subr.mxu0 0.0
  %5363 = vmatpush1.msra.mxu0 0.0
  %5364 = vmatprep.subr.mxu0 0.0
  %5365 = vmatpush1.msra.mxu0 0.0
  %5366 = vmatprep.subr.mxu0 0.0
  %5367 = vmatpush1.msra.mxu0 0.0
  %5368 = vmatprep.subr.mxu0 0.0
  %5369 = vmatpush1.msra.mxu0 0.0
  %5370 = vmatprep.subr.mxu0 0.0
  %5371 = vmatpush1.msra.mxu0 0.0
  %5372 = vmatprep.subr.mxu0 0.0
  %5373 = vmatpush1.msra.mxu0 0.0
  %5374 = vmatprep.subr.mxu0 0.0
  %5375 = vmatpush1.msra.mxu0 0.0
  %5376 = vmatprep.subr.mxu0 0.0
  %5377 = vmatpush1.msra.mxu0 %v5348
  %5378 = vmatprep.subr.mxu0 0.0
  %5379 = vmatpush1.msra.mxu0 %v5347
  %5380 = vmatprep.subr.mxu0 0.0
  %5381 = vmatpush1.msra.mxu0 %v5346
  %5382 = vmatprep.subr.mxu0 0.0
  %5383 = vmatpush1.msra.mxu0 %v5345
  %5384 = vmatprep.subr.mxu0 0.0
  %5385 = vmatpush2.msra.mxu0 0.0
  %5386 = vmatprep.subr.mxu0 0.0
  %5387 = vmatpush2.msra.mxu0 0.0
  %5388 = vmatprep.subr.mxu0 0.0
  %5389 = vmatpush2.msra.mxu0 0.0
  %5390 = vmatprep.subr.mxu0 0.0
  %5391 = vmatpush2.msra.mxu0 0.0
  %5392 = vmatprep.subr.mxu0 0.0
  %5393 = vmatpush2.msra.mxu0 0.0
  %5394 = vmatprep.subr.mxu0 0.0
  %5395 = vmatpush2.msra.mxu0 0.0
  %5396 = vmatprep.subr.mxu0 0.0
  %5397 = vmatpush2.msra.mxu0 0.0
  %5398 = vmatprep.subr.mxu0 0.0
  %5399 = vmatpush2.msra.mxu0 0.0
  %5400 = vmatprep.subr.mxu0 0.0
  %5401 = vmatpush2.msra.mxu0 0.0
  %5402 = vmatprep.subr.mxu0 0.0
  %5403 = vmatpush2.msra.mxu0 0.0
  %5404 = vmatprep.subr.mxu0 0.0
  %5405 = vmatpush2.msra.mxu0 0.0
  %5406 = vmatprep.subr.mxu0 0.0
  %5407 = vmatpush2.msra.mxu0 0.0
  %5408 = vmatprep.subr.mxu0 0.0
  %5409 = vmatpush2.msra.mxu0 0.0
  %5410 = vmatprep.subr.mxu0 0.0
  %5411 = vmatpush2.msra.mxu0 0.0
  %5412 = vmatprep.subr.mxu0 0.0
  %5413 = vmatpush2.msra.mxu0 0.0
  %5414 = vmatprep.subr.mxu0 0.0
  %5415 = vmatpush2.msra.mxu0 0.0
  %5416 = vmatprep.mubr.f32.mxu0 0.0
  %5417 = vmatmul.mubr.f32.gmra.mxu0 %v5350
  %v5418 = vpop.f32.mrf.mxu0
  %v5419 = vadd.f32 %v5324, %v5418
  %v5420 = vpop.f32.mrf.mxu0
  %5421 = vdwg.mxu0
  %v5422 = vmax.f32 %v5419, 0.0
  %v5424 = vsel %vm3688, %v5325, 0
  %v5427 = vsel %vm3688, %v5326, 0
  %v5430 = vsel %vm3688, %v5327, 0
  %v5433 = vsel %vm3688, %v5328, 0
  %v5436 = vsel %vm3692, %v5422, 0
  %5438 = vmatprep.subr.mxu0 0.0
  %5439 = vmatpush1.msra.mxu0 0.0
  %5440 = vmatprep.subr.mxu0 0.0
  %5441 = vmatpush1.msra.mxu0 0.0
  %5442 = vmatprep.subr.mxu0 0.0
  %5443 = vmatpush1.msra.mxu0 0.0
  %5444 = vmatprep.subr.mxu0 0.0
  %5445 = vmatpush1.msra.mxu0 0.0
  %5446 = vmatprep.subr.mxu0 0.0
  %5447 = vmatpush1.msra.mxu0 0.0
  %5448 = vmatprep.subr.mxu0 0.0
  %5449 = vmatpush1.msra.mxu0 0.0
  %5450 = vmatprep.subr.mxu0 0.0
  %5451 = vmatpush1.msra.mxu0 0.0
  %5452 = vmatprep.subr.mxu0 0.0
  %5453 = vmatpush1.msra.mxu0 0.0
  %5454 = vmatprep.subr.mxu0 0.0
  %5455 = vmatpush1.msra.mxu0 0.0
  %5456 = vmatprep.subr.mxu0 0.0
  %5457 = vmatpush1.msra.mxu0 0.0
  %5458 = vmatprep.subr.mxu0 0.0
  %5459 = vmatpush1.msra.mxu0 0.0
  %5460 = vmatprep.subr.mxu0 0.0
  %5461 = vmatpush1.msra.mxu0 0.0
  %5462 = vmatprep.subr.mxu0 0.0
  %5463 = vmatpush1.msra.mxu0 0.0
  %5464 = vmatprep.subr.mxu0 0.0
  %5465 = vmatpush1.msra.mxu0 0.0
  %5466 = vmatprep.subr.mxu0 0.0
  %5467 = vmatpush1.msra.mxu0 0.0
  %5468 = vmatprep.subr.mxu0 0.0
  %5469 = vmatpush1.msra.mxu0 %v5436
  %5470 = vmatprep.subr.mxu0 0.0
  %5471 = vmatpush2.msra.mxu0 0.0
  %5472 = vmatprep.subr.mxu0 0.0
  %5473 = vmatpush2.msra.mxu0 0.0
  %5474 = vmatprep.subr.mxu0 0.0
  %5475 = vmatpush2.msra.mxu0 0.0
  %5476 = vmatprep.subr.mxu0 0.0
  %5477 = vmatpush2.msra.mxu0 0.0
  %5478 = vmatprep.subr.mxu0 0.0
  %5479 = vmatpush2.msra.mxu0 0.0
  %5480 = vmatprep.subr.mxu0 0.0
  %5481 = vmatpush2.msra.mxu0 0.0
  %5482 = vmatprep.subr.mxu0 0.0
  %5483 = vmatpush2.msra.mxu0 0.0
  %5484 = vmatprep.subr.mxu0 0.0
  %5485 = vmatpush2.msra.mxu0 0.0
  %5486 = vmatprep.subr.mxu0 0.0
  %5487 = vmatpush2.msra.mxu0 0.0
  %5488 = vmatprep.subr.mxu0 0.0
  %5489 = vmatpush2.msra.mxu0 0.0
  %5490 = vmatprep.subr.mxu0 0.0
  %5491 = vmatpush2.msra.mxu0 0.0
  %5492 = vmatprep.subr.mxu0 0.0
  %5493 = vmatpush2.msra.mxu0 0.0
  %5494 = vmatprep.subr.mxu0 0.0
  %5495 = vmatpush2.msra.mxu0 0.0
  %5496 = vmatprep.subr.mxu0 0.0
  %5497 = vmatpush2.msra.mxu0 0.0
  %5498 = vmatprep.subr.mxu0 0.0
  %5499 = vmatpush2.msra.mxu0 0.0
  %5500 = vmatprep.subr.mxu0 0.0
  %5501 = vmatpush2.msra.mxu0 0.0
  %5502 = vmatprep.mubr.f32.mxu0 0.0
  %5503 = vmatmul.mubr.f32.gmra.mxu0 %v5424
  %v5504 = vpop.f32.mrf.mxu0
  %v5505 = vadd.f32 %v5329, %v5504
  %v5506 = vpop.f32.mrf.mxu0
  %5507 = vmatprep.mubr.f32.mxu0 0.0
  %5508 = vmatmul.mubr.f32.gmra.mxu0 %v5427
  %v5509 = vpop.f32.mrf.mxu0
  %v5510 = vadd.f32 %v5330, %v5509
  %v5511 = vpop.f32.mrf.mxu0
  %5512 = vmatprep.mubr.f32.mxu0 0.0
  %5513 = vmatmul.mubr.f32.gmra.mxu0 %v5430
  %v5514 = vpop.f32.mrf.mxu0
  %v5515 = vadd.f32 %v5331, %v5514
  %v5516 = vpop.f32.mrf.mxu0
  %5517 = vmatprep.mubr.f32.mxu0 0.0
  %5518 = vmatmul.mubr.f32.gmra.mxu0 %v5433
  %v5519 = vpop.f32.mrf.mxu0
  %v5520 = vadd.f32 %v5332, %v5519
  %v5521 = vpop.f32.mrf.mxu0
  %5522 = vdwg.mxu0
  %v5523 = vxor.u32 %v5505, 2147483648
  %v5524 = vxor.u32 %v5510, 2147483648
  %v5525 = vxor.u32 %v5515, 2147483648
  %v5526 = vxor.u32 %v5520, 2147483648
  %v5527 = vmul.f32 %v5523, 1.442695
  %v5528 = vpow.pop %v5527
  %v5529 = vmul.f32 %v5524, 1.442695
  %v5530 = vpow.pop %v5529
  %v5531 = vmul.f32 %v5525, 1.442695
  %v5532 = vpow.pop %v5531
  %v5533 = vmul.f32 %v5526, 1.442695
  %v5534 = vpow.pop %v5533
  %v5535 = vadd.f32 %v5528, 1.0
  %v5536 = vadd.f32 %v5530, 1.0
  %v5537 = vadd.f32 %v5532, 1.0
  %v5538 = vadd.f32 %v5534, 1.0
  %v5539 = vrcp.pop %v5535
  %v5540 = vmul.f32 1.0, %v5539
  %v5541 = vrcp.pop %v5536
  %v5542 = vmul.f32 1.0, %v5541
  %v5543 = vrcp.pop %v5537
  %v5544 = vmul.f32 1.0, %v5543
  %v5545 = vrcp.pop %v5538
  %v5546 = vmul.f32 1.0, %v5545
  %5548 = vset.pattern.permute.xlu0 0
  %5549 = vperm.xlu0 %5548, %v5540
  %v5550 = vpop.permute.xlu0 %5549
  %5553 = vset.pattern.permute.xlu0 0
  %5554 = vperm.xlu0 %5553, %v5542
  %v5555 = vpop.permute.xlu0 %5554
  %5558 = vset.pattern.permute.xlu0 0
  %5559 = vperm.xlu0 %5558, %v5544
  %v5560 = vpop.permute.xlu0 %5559
  %5563 = vset.pattern.permute.xlu0 0
  %5564 = vperm.xlu0 %5563, %v5546
  %v5565 = vpop.permute.xlu0 %5564
  %v5567 = vmul.f32 %v5307, %v5550
  %v5568 = vmul.f32 %v5308, %v5550
  %v5569 = vmul.f32 %v5311, %v5555
  %v5570 = vmul.f32 %v5312, %v5555
  %v5571 = vmul.f32 %v5315, %v5560
  %v5572 = vmul.f32 %v5316, %v5560
  %v5573 = vmul.f32 %v5319, %v5565
  %v5574 = vmul.f32 %v5320, %v5565
  %v5575 = vadd.f32 %v5309, %v5310
  %5576 = vadd.xlane.f32.xlu0 %v5575
  %v5577 = vpop.xlane.xlu0 %5576
  %v5578 = vadd.f32 %v5313, %v5314
  %5579 = vadd.xlane.f32.xlu0 %v5578
  %v5580 = vpop.xlane.xlu0 %5579
  %v5581 = vadd.f32 %v5317, %v5318
  %5582 = vadd.xlane.f32.xlu0 %v5581
  %v5583 = vpop.xlane.xlu0 %5582
  %v5584 = vadd.f32 %v5321, %v5322
  %5585 = vadd.xlane.f32.xlu0 %v5584
  %v5586 = vpop.xlane.xlu0 %5585
  %v5587 = vmul.f32 %v5577, %v2709
  %v5588 = vmul.f32 %v5580, %v2709
  %v5589 = vmul.f32 %v5583, %v2709
  %v5590 = vmul.f32 %v5586, %v2709
  %5591 = vmatprep.subr.mxu0 0.0
  %5592 = vmatpush1.msra.mxu0 0.0
  %5593 = vmatprep.subr.mxu0 0.0
  %5594 = vmatpush1.msra.mxu0 0.0
  %5595 = vmatprep.subr.mxu0 0.0
  %5596 = vmatpush1.msra.mxu0 0.0
  %5597 = vmatprep.subr.mxu0 0.0
  %5598 = vmatpush1.msra.mxu0 0.0
  %5599 = vmatprep.subr.mxu0 0.0
  %5600 = vmatpush1.msra.mxu0 0.0
  %5601 = vmatprep.subr.mxu0 0.0
  %5602 = vmatpush1.msra.mxu0 0.0
  %5603 = vmatprep.subr.mxu0 0.0
  %5604 = vmatpush1.msra.mxu0 0.0
  %5605 = vmatprep.subr.mxu0 0.0
  %5606 = vmatpush1.msra.mxu0 0.0
  %5607 = vmatprep.subr.mxu0 0.0
  %5608 = vmatpush1.msra.mxu0 0.0
  %5609 = vmatprep.subr.mxu0 0.0
  %5610 = vmatpush1.msra.mxu0 0.0
  %5611 = vmatprep.subr.mxu0 0.0
  %5612 = vmatpush1.msra.mxu0 0.0
  %5613 = vmatprep.subr.mxu0 0.0
  %5614 = vmatpush1.msra.mxu0 0.0
  %5615 = vmatprep.subr.mxu0 0.0
  %5616 = vmatpush1.msra.mxu0 %v5590
  %5617 = vmatprep.subr.mxu0 0.0
  %5618 = vmatpush1.msra.mxu0 %v5589
  %5619 = vmatprep.subr.mxu0 0.0
  %5620 = vmatpush1.msra.mxu0 %v5588
  %5621 = vmatprep.subr.mxu0 0.0
  %5622 = vmatpush1.msra.mxu0 %v5587
  %5623 = vmatprep.subr.mxu0 0.0
  %5624 = vmatpush2.msra.mxu0 0.0
  %5625 = vmatprep.subr.mxu0 0.0
  %5626 = vmatpush2.msra.mxu0 0.0
  %5627 = vmatprep.subr.mxu0 0.0
  %5628 = vmatpush2.msra.mxu0 0.0
  %5629 = vmatprep.subr.mxu0 0.0
  %5630 = vmatpush2.msra.mxu0 0.0
  %5631 = vmatprep.subr.mxu0 0.0
  %5632 = vmatpush2.msra.mxu0 0.0
  %5633 = vmatprep.subr.mxu0 0.0
  %5634 = vmatpush2.msra.mxu0 0.0
  %5635 = vmatprep.subr.mxu0 0.0
  %5636 = vmatpush2.msra.mxu0 0.0
  %5637 = vmatprep.subr.mxu0 0.0
  %5638 = vmatpush2.msra.mxu0 0.0
  %5639 = vmatprep.subr.mxu0 0.0
  %5640 = vmatpush2.msra.mxu0 0.0
  %5641 = vmatprep.subr.mxu0 0.0
  %5642 = vmatpush2.msra.mxu0 0.0
  %5643 = vmatprep.subr.mxu0 0.0
  %5644 = vmatpush2.msra.mxu0 0.0
  %5645 = vmatprep.subr.mxu0 0.0
  %5646 = vmatpush2.msra.mxu0 0.0
  %5647 = vmatprep.subr.mxu0 0.0
  %5648 = vmatpush2.msra.mxu0 0.0
  %5649 = vmatprep.subr.mxu0 0.0
  %5650 = vmatpush2.msra.mxu0 0.0
  %5651 = vmatprep.subr.mxu0 0.0
  %5652 = vmatpush2.msra.mxu0 0.0
  %5653 = vmatprep.subr.mxu0 0.0
  %5654 = vmatpush2.msra.mxu0 0.0
  %5655 = vmatprep.mubr.f32.mxu0 0.0
  %5656 = vmatmul.mubr.f32.gmra.mxu0 %v5350
  %v5657 = vpop.f32.mrf.mxu0
  %v5658 = vadd.f32 %v5324, %v5657
  %v5659 = vpop.f32.mrf.mxu0
  %5660 = vdwg.mxu0
  %v5661 = vmax.f32 %v5658, 0.0
  %v5663 = vsel %vm3692, %v5661, 0
  %5665 = vmatprep.subr.mxu0 0.0
  %5666 = vmatpush1.msra.mxu0 0.0
  %5667 = vmatprep.subr.mxu0 0.0
  %5668 = vmatpush1.msra.mxu0 0.0
  %5669 = vmatprep.subr.mxu0 0.0
  %5670 = vmatpush1.msra.mxu0 0.0
  %5671 = vmatprep.subr.mxu0 0.0
  %5672 = vmatpush1.msra.mxu0 0.0
  %5673 = vmatprep.subr.mxu0 0.0
  %5674 = vmatpush1.msra.mxu0 0.0
  %5675 = vmatprep.subr.mxu0 0.0
  %5676 = vmatpush1.msra.mxu0 0.0
  %5677 = vmatprep.subr.mxu0 0.0
  %5678 = vmatpush1.msra.mxu0 0.0
  %5679 = vmatprep.subr.mxu0 0.0
  %5680 = vmatpush1.msra.mxu0 0.0
  %5681 = vmatprep.subr.mxu0 0.0
  %5682 = vmatpush1.msra.mxu0 0.0
  %5683 = vmatprep.subr.mxu0 0.0
  %5684 = vmatpush1.msra.mxu0 0.0
  %5685 = vmatprep.subr.mxu0 0.0
  %5686 = vmatpush1.msra.mxu0 0.0
  %5687 = vmatprep.subr.mxu0 0.0
  %5688 = vmatpush1.msra.mxu0 0.0
  %5689 = vmatprep.subr.mxu0 0.0
  %5690 = vmatpush1.msra.mxu0 0.0
  %5691 = vmatprep.subr.mxu0 0.0
  %5692 = vmatpush1.msra.mxu0 0.0
  %5693 = vmatprep.subr.mxu0 0.0
  %5694 = vmatpush1.msra.mxu0 0.0
  %5695 = vmatprep.subr.mxu0 0.0
  %5696 = vmatpush1.msra.mxu0 %v5663
  %5697 = vmatprep.subr.mxu0 0.0
  %5698 = vmatpush2.msra.mxu0 0.0
  %5699 = vmatprep.subr.mxu0 0.0
  %5700 = vmatpush2.msra.mxu0 0.0
  %5701 = vmatprep.subr.mxu0 0.0
  %5702 = vmatpush2.msra.mxu0 0.0
  %5703 = vmatprep.subr.mxu0 0.0
  %5704 = vmatpush2.msra.mxu0 0.0
  %5705 = vmatprep.subr.mxu0 0.0
  %5706 = vmatpush2.msra.mxu0 0.0
  %5707 = vmatprep.subr.mxu0 0.0
  %5708 = vmatpush2.msra.mxu0 0.0
  %5709 = vmatprep.subr.mxu0 0.0
  %5710 = vmatpush2.msra.mxu0 0.0
  %5711 = vmatprep.subr.mxu0 0.0
  %5712 = vmatpush2.msra.mxu0 0.0
  %5713 = vmatprep.subr.mxu0 0.0
  %5714 = vmatpush2.msra.mxu0 0.0
  %5715 = vmatprep.subr.mxu0 0.0
  %5716 = vmatpush2.msra.mxu0 0.0
  %5717 = vmatprep.subr.mxu0 0.0
  %5718 = vmatpush2.msra.mxu0 0.0
  %5719 = vmatprep.subr.mxu0 0.0
  %5720 = vmatpush2.msra.mxu0 0.0
  %5721 = vmatprep.subr.mxu0 0.0
  %5722 = vmatpush2.msra.mxu0 0.0
  %5723 = vmatprep.subr.mxu0 0.0
  %5724 = vmatpush2.msra.mxu0 0.0
  %5725 = vmatprep.subr.mxu0 0.0
  %5726 = vmatpush2.msra.mxu0 0.0
  %5727 = vmatprep.subr.mxu0 0.0
  %5728 = vmatpush2.msra.mxu0 0.0
  %5729 = vmatprep.mubr.f32.mxu0 0.0
  %5730 = vmatmul.mubr.f32.gmra.mxu0 %v5424
  %v5731 = vpop.f32.mrf.mxu0
  %v5732 = vadd.f32 %v5329, %v5731
  %v5733 = vpop.f32.mrf.mxu0
  %5734 = vmatprep.mubr.f32.mxu0 0.0
  %5735 = vmatmul.mubr.f32.gmra.mxu0 %v5427
  %v5736 = vpop.f32.mrf.mxu0
  %v5737 = vadd.f32 %v5330, %v5736
  %v5738 = vpop.f32.mrf.mxu0
  %5739 = vmatprep.mubr.f32.mxu0 0.0
  %5740 = vmatmul.mubr.f32.gmra.mxu0 %v5430
  %v5741 = vpop.f32.mrf.mxu0
  %v5742 = vadd.f32 %v5331, %v5741
  %v5743 = vpop.f32.mrf.mxu0
  %5744 = vmatprep.mubr.f32.mxu0 0.0
  %5745 = vmatmul.mubr.f32.gmra.mxu0 %v5433
  %v5746 = vpop.f32.mrf.mxu0
  %v5747 = vadd.f32 %v5332, %v5746
  %v5748 = vpop.f32.mrf.mxu0
  %5749 = vdwg.mxu0
  %v5750 = vxor.u32 %v5732, 2147483648
  %v5751 = vxor.u32 %v5737, 2147483648
  %v5752 = vxor.u32 %v5742, 2147483648
  %v5753 = vxor.u32 %v5747, 2147483648
  %v5754 = vmul.f32 %v5750, 1.442695
  %v5755 = vpow.pop %v5754
  %v5756 = vmul.f32 %v5751, 1.442695
  %v5757 = vpow.pop %v5756
  %v5758 = vmul.f32 %v5752, 1.442695
  %v5759 = vpow.pop %v5758
  %v5760 = vmul.f32 %v5753, 1.442695
  %v5761 = vpow.pop %v5760
  %v5762 = vadd.f32 %v5755, 1.0
  %v5763 = vadd.f32 %v5757, 1.0
  %v5764 = vadd.f32 %v5759, 1.0
  %v5765 = vadd.f32 %v5761, 1.0
  %v5766 = vrcp.pop %v5762
  %v5767 = vmul.f32 1.0, %v5766
  %v5768 = vrcp.pop %v5763
  %v5769 = vmul.f32 1.0, %v5768
  %v5770 = vrcp.pop %v5764
  %v5771 = vmul.f32 1.0, %v5770
  %v5772 = vrcp.pop %v5765
  %v5773 = vmul.f32 1.0, %v5772
  %5775 = vset.pattern.permute.xlu0 0
  %5776 = vperm.xlu0 %5775, %v5767
  %v5777 = vpop.permute.xlu0 %5776
  %5780 = vset.pattern.permute.xlu0 0
  %5781 = vperm.xlu0 %5780, %v5769
  %v5782 = vpop.permute.xlu0 %5781
  %5785 = vset.pattern.permute.xlu0 0
  %5786 = vperm.xlu0 %5785, %v5771
  %v5787 = vpop.permute.xlu0 %5786
  %5790 = vset.pattern.permute.xlu0 0
  %5791 = vperm.xlu0 %5790, %v5773
  %v5792 = vpop.permute.xlu0 %5791
  %v5794 = vmul.f32 %v5309, %v5777
  %v5795 = vmul.f32 %v5310, %v5777
  %v5796 = vmul.f32 %v5313, %v5782
  %v5797 = vmul.f32 %v5314, %v5782
  %v5798 = vmul.f32 %v5317, %v5787
  %v5799 = vmul.f32 %v5318, %v5787
  %v5800 = vmul.f32 %v5321, %v5792
  %v5801 = vmul.f32 %v5322, %v5792
  %v5802 = vadd.f32 %v5567, %v289
  %v5803 = vadd.f32 %v5568, %v291
  %v5804 = vadd.f32 %v5794, %v402
  %v5805 = vadd.f32 %v5795, %v404
  %v5806 = vadd.f32 %v5569, %v295
  %v5807 = vadd.f32 %v5570, %v297
  %v5808 = vadd.f32 %v5796, %v408
  %v5809 = vadd.f32 %v5797, %v410
  %v5810 = vadd.f32 %v5571, %v301
  %v5811 = vadd.f32 %v5572, %v303
  %v5812 = vadd.f32 %v5798, %v414
  %v5813 = vadd.f32 %v5799, %v416
  %v5814 = vadd.f32 %v5573, %v307
  %v5815 = vadd.f32 %v5574, %v309
  %v5816 = vadd.f32 %v5800, %v420
  %v5817 = vadd.f32 %v5801, %v422
  %5818 = vst [vmem:[%s23] sm:$0xff] %v5802
  %5819 = vst [vmem:[%s23 + $0x8] sm:$0xff] %v5803
  %5820 = vst [vmem:[%s23 + $0x10] sm:$0xff] %v5804
  %5821 = vst [vmem:[%s23 + $0x18] sm:$0xff] %v5805
  %5822 = vst [vmem:[%s23 + $0x20] sm:$0xff] %v5806
  %5823 = vst [vmem:[%s23 + $0x28] sm:$0xff] %v5807
  %5824 = vst [vmem:[%s23 + $0x30] sm:$0xff] %v5808
  %5825 = vst [vmem:[%s23 + $0x38] sm:$0xff] %v5809
  %5826 = vst [vmem:[%s23 + $0x40] sm:$0xff] %v5810
  %5827 = vst [vmem:[%s23 + $0x48] sm:$0xff] %v5811
  %5828 = vst [vmem:[%s23 + $0x50] sm:$0xff] %v5812
  %5829 = vst [vmem:[%s23 + $0x58] sm:$0xff] %v5813
  %5830 = vst [vmem:[%s23 + $0x60] sm:$0xff] %v5814
  %5831 = vst [vmem:[%s23 + $0x68] sm:$0xff] %v5815
  %5832 = vst [vmem:[%s23 + $0x70] sm:$0xff] %v5816
  %5833 = vst [vmem:[%s23 + $0x78] sm:$0xff] %v5817
  // Predicated region
  $region94: #{enhanced_fpn_block.1} parent=0 // pred_check
    _
  $region95: #{enhanced_fpn_block.1} parent=0 // pred_check_branch
    %5835 = sbr.rel (0) target = $region97
  $region96: #{enhanced_fpn_block.1} parent=0 // pred_region
    _
  $region97: #{enhanced_fpn_block.1} parent=0 // pred_fallthru
    _
  // Predicated region
  $region98: #{enhanced_fpn_block.1} parent=0 // pred_check
    _
  $region99: #{enhanced_fpn_block.1} parent=0 // pred_check_branch
    %5837 = sbr.rel (0) target = $region101
  $region100: #{enhanced_fpn_block.1} parent=0 // pred_region
    _
  $region101: #{enhanced_fpn_block.1} parent=0 // pred_fallthru
    _

</llo_original>
